<compile_context>
chip_gen: v7x
topology: tpu7x:2x2x1
jax: 0.10.0
libtpu: 0.0.40
codegen_flags: <defaults>
</compile_context>

<pallas_src>
import functools
import math

import jax
import jax.numpy as jnp
from jax.experimental import pallas as pl
from jax.experimental.pallas import tpu as pltpu


def _round_up(x, m):
    return -(-x // m) * m


_ARB = pltpu.CompilerParams(dimension_semantics=("arbitrary",))


# --------------------------------------------------------------------------- #
# In-kernel helpers / kernels
# --------------------------------------------------------------------------- #
def _bn_relu_store(r, gamma_ref, beta_ref, mask_ref, o_ref, *, cout, nblk,
                   inv_count, eps):
    """Fused train-mode BatchNorm2d + ReLU epilogue.

    r: (nblk*cout, N) f32 pre-activations; conv channel c lives in rows
    {t*cout + c : t in [0, nblk)}.  Per-channel stats are taken over those
    row-blocks and over lanes where mask == 1 (valid output pixels)."""
    mask = mask_ref[...]                                    # (1, N) f32
    blocks = [r[t * cout:(t + 1) * cout, :] for t in range(nblk)]
    s1 = blocks[0]
    s2 = blocks[0] * blocks[0]
    for t in range(1, nblk):
        s1 = s1 + blocks[t]
        s2 = s2 + blocks[t] * blocks[t]
    mean = jnp.sum(s1 * mask, axis=1, keepdims=True) * inv_count      # (cout,1)
    var = jnp.sum(s2 * mask, axis=1, keepdims=True) * inv_count - mean * mean
    scale = gamma_ref[...] * jax.lax.rsqrt(var + eps)                 # (cout,1)
    shift = beta_ref[...] - mean * scale
    for t in range(nblk):
        y = jnp.maximum(blocks[t] * scale + shift, 0.0)
        o_ref[t * cout:(t + 1) * cout, :] = y.astype(o_ref.dtype)


def _l1_kernel(z_ref, w_ref, bias_ref, sig_ref, gamma_ref, beta_ref, mask_ref,
               o_ref, *, cout, inv_count, eps):
    """SpectralNorm(ConvTranspose2d(zdim, cout, 4, 1, 0)) + BN + ReLU on a 1x1
    input.  Weight rows are ordered (ky, kx, co); output columns = batch."""
    r = jnp.dot(w_ref[...], z_ref[...], preferred_element_type=jnp.float32)
    r = r * sig_ref[0, 0] + bias_ref[...]
    _bn_relu_store(r, gamma_ref, beta_ref, mask_ref, o_ref,
                   cout=cout, nblk=16, inv_count=inv_count, eps=eps)


def _convt_s2_bn_relu_kernel(x_ref, w_ref, bias_ref, sig_ref, gamma_ref,
                             beta_ref, mask_ref, o_ref, *, shifts, npad, cout,
                             inv_count, eps):
    """SpectralNorm(ConvTranspose2d(cin, cout, 4, 2, 1)) + BN + ReLU.

    Output rows are (parity p = 2*py+px, co); the 9 (dy,dx) taps are unrolled
    in-kernel as lane-shifted slices of the padded-flat input (in-kernel
    im2col, no HBM patch matrix, no zero insertion)."""
    acc = None
    for d, s in enumerate(shifts):
        part = jnp.dot(w_ref[d], x_ref[:, s:s + npad],
                       preferred_element_type=jnp.float32)
        acc = part if acc is None else acc + part
    r = acc * sig_ref[0, 0] + bias_ref[...]
    _bn_relu_store(r, gamma_ref, beta_ref, mask_ref, o_ref,
                   cout=cout, nblk=4, inv_count=inv_count, eps=eps)


def _convt_s2_tanh_kernel(x_ref, w_ref, bias_ref, o_ref, *, shifts, npad):
    """ConvTranspose2d(cin, 3, 4, 2, 1) + Tanh (no spectral norm, no BN)."""
    acc = None
    for d, s in enumerate(shifts):
        part = jnp.dot(w_ref[d], x_ref[:, s:s + npad],
                       preferred_element_type=jnp.float32)
        acc = part if acc is None else acc + part
    o_ref[...] = jnp.tanh(acc + bias_ref[...])


# --------------------------------------------------------------------------- #
# pallas_call wrappers
# --------------------------------------------------------------------------- #
def _l1_call(zt, lhs, bias, inv_sigma, gamma, beta, mask, *, batch):
    m, k = lhs.shape
    cout = gamma.shape[0]
    npad = zt.shape[1]
    kern = functools.partial(_l1_kernel, cout=cout,
                             inv_count=1.0 / (16 * batch), eps=1e-5)
    return pl.pallas_call(
        kern,
        out_shape=jax.ShapeDtypeStruct((m, npad), jnp.bfloat16),
        grid=(1,),
        in_specs=[
            pl.BlockSpec((k, npad), lambda i: (0, 0)),
            pl.BlockSpec((m, k), lambda i: (0, 0)),
            pl.BlockSpec((m, 1), lambda i: (0, 0)),
            pl.BlockSpec(memory_space=pltpu.MemorySpace.SMEM),
            pl.BlockSpec((cout, 1), lambda i: (0, 0)),
            pl.BlockSpec((cout, 1), lambda i: (0, 0)),
            pl.BlockSpec((1, npad), lambda i: (0, 0)),
        ],
        out_specs=pl.BlockSpec((m, npad), lambda i: (0, 0)),
        compiler_params=_ARB,
    )(zt, lhs, bias, inv_sigma, gamma, beta, mask)


def _convt_s2_bn_relu_call(xflat, wtaps, bias, inv_sigma, gamma, beta, mask,
                           *, batch, h, w):
    cin, nbuf = xflat.shape
    _, m, cin_w = wtaps.shape
    assert cin_w == cin
    cout = gamma.shape[0]
    wp = w + 2
    npad = mask.shape[1]
    assert npad + 2 * wp + 2 <= nbuf
    shifts = tuple(dy * wp + dx for dy in range(3) for dx in range(3))
    kern = functools.partial(_convt_s2_bn_relu_kernel, shifts=shifts,
                             npad=npad, cout=cout,
                             inv_count=1.0 / (4 * batch * h * w), eps=1e-5)
    return pl.pallas_call(
        kern,
        out_shape=jax.ShapeDtypeStruct((m, npad), jnp.bfloat16),
        grid=(1,),
        in_specs=[
            pl.BlockSpec((cin, nbuf), lambda i: (0, 0)),
            pl.BlockSpec((9, m, cin), lambda i: (0, 0, 0)),
            pl.BlockSpec((m, 1), lambda i: (0, 0)),
            pl.BlockSpec(memory_space=pltpu.MemorySpace.SMEM),
            pl.BlockSpec((cout, 1), lambda i: (0, 0)),
            pl.BlockSpec((cout, 1), lambda i: (0, 0)),
            pl.BlockSpec((1, npad), lambda i: (0, 0)),
        ],
        out_specs=pl.BlockSpec((m, npad), lambda i: (0, 0)),
        compiler_params=_ARB,
    )(xflat, wtaps, bias, inv_sigma, gamma, beta, mask)


def _convt_s2_tanh_call(xflat, wtaps, bias, *, batch, h, w):
    cin, nbuf = xflat.shape
    _, m, _ = wtaps.shape
    hp, wp = h + 2, w + 2
    npad = _round_up(batch * hp * wp, 128)
    assert npad + 2 * wp + 2 <= nbuf
    shifts = tuple(dy * wp + dx for dy in range(3) for dx in range(3))
    kern = functools.partial(_convt_s2_tanh_kernel, shifts=shifts, npad=npad)
    return pl.pallas_call(
        kern,
        out_shape=jax.ShapeDtypeStruct((m, npad), jnp.float32),
        grid=(1,),
        in_specs=[
            pl.BlockSpec((cin, nbuf), lambda i: (0, 0)),
            pl.BlockSpec((9, m, cin), lambda i: (0, 0, 0)),
            pl.BlockSpec((m, 1), lambda i: (0, 0)),
        ],
        out_specs=pl.BlockSpec((m, npad), lambda i: (0, 0)),
        compiler_params=_ARB,
    )(xflat, wtaps, bias)


# --------------------------------------------------------------------------- #
# Lightweight XLA glue (tiny tensors only)
# --------------------------------------------------------------------------- #
def _inv_sigma(weight, u, eps=1e-12):
    """SAGAN-style spectral norm: one power iteration on W.reshape(Cin, -1).
    Note: u is not persisted (stateless forward)."""
    wm = weight.reshape(weight.shape[0], -1)
    v = wm.T @ u
    v = v / (jnp.linalg.norm(v) + eps)
    u2 = wm @ v
    u2 = u2 / (jnp.linalg.norm(u2) + eps)
    sigma = u2 @ (wm @ v)
    return (1.0 / sigma).reshape(1, 1).astype(jnp.float32)


def _flat_pad_input(img, nbuf):
    """(C, B, H, W) -> (C, nbuf) bf16: 1-px zero border, flat index b*Hp*Wp +
    jp*Wp + ip, zero tail so lane-shifted tap slices stay in bounds."""
    c, b, h, w = img.shape
    t = jnp.pad(img, ((0, 0), (0, 0), (1, 1), (1, 1)))
    t = t.reshape(c, b * (h + 2) * (w + 2))
    return jnp.pad(t, ((0, 0), (0, nbuf - t.shape[1]))).astype(jnp.bfloat16)


def _parity_to_image(y, cout, batch, h, w):
    """(4*cout(+pad), Npad) parity-blocked flat output -> (cout, B, 2H, 2W)."""
    hp, wp = h + 2, w + 2
    t = y[:4 * cout, :batch * hp * wp].reshape(2, 2, cout, batch, hp, wp)
    t = t[:, :, :, :, :h, :w]
    t = jnp.transpose(t, (2, 3, 4, 0, 5, 1))        # (co, b, j, py, i, px)
    return t.reshape(cout, batch, 2 * h, 2 * w)


def _l1_to_image(y, c1, batch):
    """(16*c1, NP) l1 output with rows (ky, kx, co) -> (c1, B, 4, 4)."""
    t = y[:, :batch].reshape(4, 4, c1, batch)
    return jnp.transpose(t, (2, 3, 0, 1))


# --------------------------------------------------------------------------- #
# Parameter init / one-time MXU-ready preparation
# --------------------------------------------------------------------------- #
def init_params(key, image_size=32, z_dim=100, conv_dim=64):
    repeat_num = int(math.log2(image_size)) - 3
    mult = 2 ** repeat_num
    c1 = conv_dim * mult
    c2 = c1 // 2
    c3 = c2 // 2
    ks = jax.random.split(key, 12)

    def w_init(k, shape):
        fan = shape[0] * shape[2] * shape[3]
        bound = 1.0 / math.sqrt(fan)
        return jax.random.uniform(k, shape, jnp.float32, -bound, bound)

    def b_init(k, cout, cin):
        bound = 1.0 / math.sqrt(cin * 16)
        return jax.random.uniform(k, (cout,), jnp.float32, -bound, bound)

    return {
        # l1: SpectralNorm(ConvTranspose2d(z_dim, c1, 4, 1, 0)) + BN + ReLU
        "w1": w_init(ks[0], (z_dim, c1, 4, 4)),
        "u1": jax.random.normal(ks[1], (z_dim,), jnp.float32),
        "b1": b_init(ks[2], c1, z_dim),
        "g1": jnp.ones((c1,), jnp.float32), "be1": jnp.zeros((c1,), jnp.float32),
        # l2: SpectralNorm(ConvTranspose2d(c1, c2, 4, 2, 1)) + BN + ReLU
        "w2": w_init(ks[3], (c1, c2, 4, 4)),
        "u2": jax.random.normal(ks[4], (c1,), jnp.float32),
        "b2": b_init(ks[5], c2, c1),
        "g2": jnp.ones((c2,), jnp.float32), "be2": jnp.zeros((c2,), jnp.float32),
        # l3: SpectralNorm(ConvTranspose2d(c2, c3, 4, 2, 1)) + BN + ReLU
        "w3": w_init(ks[6], (c2, c3, 4, 4)),
        "u3": jax.random.normal(ks[7], (c2,), jnp.float32),
        "b3": b_init(ks[8], c3, c2),
        "g3": jnp.ones((c3,), jnp.float32), "be3": jnp.zeros((c3,), jnp.float32),
        # last: ConvTranspose2d(c3, 3, 4, 2, 1) + Tanh
        "w4": w_init(ks[9], (c3, 3, 4, 4)),
        "b4": b_init(ks[10], 3, c3),
    }


def _prep_s2_taps(w, b):
    """ConvTranspose2d(k=4,s=2,p=1) weight -> (9, Mp, Cin) bf16 tap matrices
    (rows = parity p*Cout + co) + (Mp, 1) f32 bias tiled over parities.

    Tap (dy,dx) for output parity (py,px) reads padded input at offset
    (jp+dy, ip+dx) and uses kernel element (3+py-2dy, 3+px-2dx) when valid."""
    cin, cout = w.shape[0], w.shape[1]
    m = 4 * cout
    mp = _round_up(m, 16)
    taps = []
    for dy in range(3):
        for dx in range(3):
            rows = []
            for py in range(2):
                for px in range(2):
                    a, c = dy - py, dx - px
                    if 0 <= a <= 1 and 0 <= c <= 1:
                        blk = w[:, :, 3 - py - 2 * a, 3 - px - 2 * c].T
                    else:
                        blk = jnp.zeros((cout, cin), w.dtype)
                    rows.append(blk)
            taps.append(jnp.concatenate(rows, axis=0))        # (4*cout, cin)
    t = jnp.stack(taps, axis=0)                               # (9, 4*cout, cin)
    bias = jnp.tile(b, 4).reshape(m, 1)
    if mp != m:
        t = jnp.pad(t, ((0, 0), (0, mp - m), (0, 0)))
        bias = jnp.pad(bias, ((0, mp - m), (0, 0)))
    return t.astype(jnp.bfloat16), bias.astype(jnp.float32)


def _valid_mask(batch, h, w):
    """(1, Npad) f32 mask of valid output columns (jp < h, ip < w)."""
    hp, wp = h + 2, w + 2
    npad = _round_up(batch * hp * wp, 128)
    idx = jnp.arange(npad)
    within = idx < batch * hp * wp
    jp = (idx % (hp * wp)) // wp
    ip = idx % wp
    m = within & (jp < h) & (ip < w)
    return m.astype(jnp.float32).reshape(1, npad)


def prepare_params(params, batch):
    """Precompute MXU-ready weight layouts, tiled biases and BN masks (once)."""
    zdim, c1 = params["w1"].shape[0], params["w1"].shape[1]
    c2 = params["w2"].shape[1]
    c3 = params["w3"].shape[1]
    np1 = _round_up(batch, 128)
    prep = {
        "lhs1": jnp.transpose(params["w1"], (2, 3, 1, 0))
                   .reshape(16 * c1, zdim).astype(jnp.bfloat16),
        "bias1": jnp.tile(params["b1"], 16).reshape(16 * c1, 1)
                    .astype(jnp.float32),
        "g1": params["g1"].reshape(c1, 1).astype(jnp.float32),
        "be1": params["be1"].reshape(c1, 1).astype(jnp.float32),
        "mask1": (jnp.arange(np1) < batch).astype(jnp.float32).reshape(1, np1),
        "g2": params["g2"].reshape(c2, 1).astype(jnp.float32),
        "be2": params["be2"].reshape(c2, 1).astype(jnp.float32),
        "mask2": _valid_mask(batch, 4, 4),
        "g3": params["g3"].reshape(c3, 1).astype(jnp.float32),
        "be3": params["be3"].reshape(c3, 1).astype(jnp.float32),
        "mask3": _valid_mask(batch, 8, 8),
    }
    prep["t2"], prep["bias2"] = _prep_s2_taps(params["w2"], params["b2"])
    prep["t3"], prep["bias3"] = _prep_s2_taps(params["w3"], params["b3"])
    prep["t4"], prep["bias4"] = _prep_s2_taps(params["w4"], params["b4"])
    return prep


# --------------------------------------------------------------------------- #
# Generator forward (image_size = 32 ladder: 1 -> 4 -> 8 -> 16 -> 32)
# --------------------------------------------------------------------------- #
@jax.jit
def generator_forward(params, prep, z):
    """z: (B, z_dim) -> image (B, 3, 32, 32) NCHW, values in (-1, 1)."""
    batch = z.shape[0]
    c1 = prep["g1"].shape[0]
    c2 = prep["g2"].shape[0]
    c3 = prep["g3"].shape[0]

    inv_s1 = _inv_sigma(params["w1"], params["u1"])
    inv_s2 = _inv_sigma(params["w2"], params["u2"])
    inv_s3 = _inv_sigma(params["w3"], params["u3"])

    # l1: ConvT(z_dim, c1, 4, 1, 0) + BN + ReLU  -> (c1, B, 4, 4)
    np1 = prep["mask1"].shape[1]
    zt = jnp.pad(z.T.astype(jnp.bfloat16), ((0, 0), (0, np1 - batch)))
    y1 = _l1_call(zt, prep["lhs1"], prep["bias1"], inv_s1,
                  prep["g1"], prep["be1"], prep["mask1"], batch=batch)
    img = _l1_to_image(y1, c1, batch)

    # l2: ConvT(c1, c2, 4, 2, 1) + BN + ReLU  -> (c2, B, 8, 8)
    x2 = _flat_pad_input(img, prep["mask2"].shape[1] + 128)
    y2 = _convt_s2_bn_relu_call(x2, prep["t2"], prep["bias2"], inv_s2,
                                prep["g2"], prep["be2"], prep["mask2"],
                                batch=batch, h=4, w=4)
    img = _parity_to_image(y2, c2, batch, 4, 4)

    # l3: ConvT(c2, c3, 4, 2, 1) + BN + ReLU  -> (c3, B, 16, 16)
    x3 = _flat_pad_input(img, prep["mask3"].shape[1] + 128)
    y3 = _convt_s2_bn_relu_call(x3, prep["t3"], prep["bias3"], inv_s3,
                                prep["g3"], prep["be3"], prep["mask3"],
                                batch=batch, h=8, w=8)
    img = _parity_to_image(y3, c3, batch, 8, 8)

    # last: ConvT(c3, 3, 4, 2, 1) + Tanh  -> (3, B, 32, 32)
    nbuf4 = _round_up(batch * 18 * 18, 128) + 128
    x4 = _flat_pad_input(img, nbuf4)
    y4 = _convt_s2_tanh_call(x4, prep["t4"], prep["bias4"],
                             batch=batch, h=16, w=16)
    img = _parity_to_image(y4, 3, batch, 16, 16)
    return jnp.transpose(img, (1, 0, 2, 3)).astype(jnp.float32)   # NCHW


if __name__ == "__main__":
    image_size, z_dim, conv_dim, batch = 32, 32, 16, 2
    key = jax.random.PRNGKey(0)
    params = init_params(key, image_size=image_size, z_dim=z_dim,
                         conv_dim=conv_dim)
    prep = prepare_params(params, batch)          # one-time MXU-ready layouts
    z = jax.random.normal(jax.random.fold_in(key, 999), (batch, z_dim),
                          jnp.float32)

    out = generator_forward(params, prep, z)
    out = jax.block_until_ready(out)

    assert out.shape == (batch, 3, image_size, image_size), out.shape
    assert out.dtype == jnp.float32
    assert bool(jnp.all(jnp.isfinite(out)))
    assert bool(jnp.all(jnp.abs(out) <= 1.0 + 1e-5))   # tanh range
    print("KERNEL_OK")
</pallas_src>

<mosaic_0001>
module attributes {stable_mosaic.version = 11 : i64} {
  func.func @_l1_kernel(%arg0: i32, %arg1: memref<32x128xbf16, #tpu.memory_space<vmem>>, %arg2: memref<1024x32xbf16, #tpu.memory_space<vmem>>, %arg3: memref<1024x1xf32, #tpu.memory_space<vmem>>, %arg4: memref<1x1xf32, #tpu.memory_space<smem>>, %arg5: memref<64x1xf32, #tpu.memory_space<vmem>>, %arg6: memref<64x1xf32, #tpu.memory_space<vmem>>, %arg7: memref<1x128xf32, #tpu.memory_space<vmem>>, %arg8: memref<1024x128xbf16, #tpu.memory_space<vmem>>) attributes {dimension_semantics = [#tpu.dimension_semantics<arbitrary>], iteration_bounds = array<i64: 1>, scalar_prefetch = 0 : i64, scratch_operands = 0 : i64, tpu.core_type = #tpu.core_type<tc>, window_params = [{pipeline_mode = #tpu.pipeline_mode<synchronous>, transform_indices = @transform_0, window_bounds = array<i64: 32, 128>}, {pipeline_mode = #tpu.pipeline_mode<synchronous>, transform_indices = @transform_1, window_bounds = array<i64: 1024, 32>}, {pipeline_mode = #tpu.pipeline_mode<synchronous>, transform_indices = @transform_2, window_bounds = array<i64: 1024, 1>}, {transform_indices = @transform_3, window_bounds = array<i64: 1, 1>}, {pipeline_mode = #tpu.pipeline_mode<synchronous>, transform_indices = @transform_4, window_bounds = array<i64: 64, 1>}, {pipeline_mode = #tpu.pipeline_mode<synchronous>, transform_indices = @transform_5, window_bounds = array<i64: 64, 1>}, {pipeline_mode = #tpu.pipeline_mode<synchronous>, transform_indices = @transform_6, window_bounds = array<i64: 1, 128>}, {pipeline_mode = #tpu.pipeline_mode<synchronous>, transform_indices = @transform_7, window_bounds = array<i64: 1024, 128>}]} {
    %c0 = arith.constant 0 : index
    %c0_0 = arith.constant 0 : index
    %0 = vector.load %arg2[%c0, %c0_0] : memref<1024x32xbf16, #tpu.memory_space<vmem>>, vector<1024x32xbf16>
    %c0_1 = arith.constant 0 : index
    %c0_2 = arith.constant 0 : index
    %1 = vector.load %arg1[%c0_1, %c0_2] : memref<32x128xbf16, #tpu.memory_space<vmem>>, vector<32x128xbf16>
    %cst = arith.constant dense<0.000000e+00> : vector<1024x128xf32>
    %2 = tpu.matmul %0, %1, %cst {dimension_numbers = #tpu.dot_dimension_numbers<[1], [0], [0], [1], [0, 0, 1, 1], [], []>} : vector<1024x32xbf16>, vector<32x128xbf16>, vector<1024x128xf32> -> vector<1024x128xf32>
    %c0_3 = arith.constant 0 : index
    %c0_4 = arith.constant 0 : index
    %3 = memref.load %arg4[%c0_3, %c0_4] : memref<1x1xf32, #tpu.memory_space<smem>>
    %4 = vector.broadcast %3 : f32 to vector<1024x128xf32>
    %5 = arith.mulf %2, %4 : vector<1024x128xf32>
    %c0_5 = arith.constant 0 : index
    %c0_6 = arith.constant 0 : index
    %6 = vector.load %arg3[%c0_5, %c0_6] : memref<1024x1xf32, #tpu.memory_space<vmem>>, vector<1024x1xf32>
    %7 = vector.broadcast %6 : vector<1024x1xf32> to vector<1024x128xf32>
    %8 = arith.addf %5, %7 : vector<1024x128xf32>
    %c0_7 = arith.constant 0 : index
    %c0_8 = arith.constant 0 : index
    %9 = vector.load %arg7[%c0_7, %c0_8] : memref<1x128xf32, #tpu.memory_space<vmem>>, vector<1x128xf32>
    %10 = vector.extract_strided_slice %8 {offsets = [0, 0], sizes = [64, 128], strides = [1, 1]} : vector<1024x128xf32> to vector<64x128xf32>
    %11 = vector.extract_strided_slice %8 {offsets = [64, 0], sizes = [64, 128], strides = [1, 1]} : vector<1024x128xf32> to vector<64x128xf32>
    %12 = vector.extract_strided_slice %8 {offsets = [128, 0], sizes = [64, 128], strides = [1, 1]} : vector<1024x128xf32> to vector<64x128xf32>
    %13 = vector.extract_strided_slice %8 {offsets = [192, 0], sizes = [64, 128], strides = [1, 1]} : vector<1024x128xf32> to vector<64x128xf32>
    %14 = vector.extract_strided_slice %8 {offsets = [256, 0], sizes = [64, 128], strides = [1, 1]} : vector<1024x128xf32> to vector<64x128xf32>
    %15 = vector.extract_strided_slice %8 {offsets = [320, 0], sizes = [64, 128], strides = [1, 1]} : vector<1024x128xf32> to vector<64x128xf32>
    %16 = vector.extract_strided_slice %8 {offsets = [384, 0], sizes = [64, 128], strides = [1, 1]} : vector<1024x128xf32> to vector<64x128xf32>
    %17 = vector.extract_strided_slice %8 {offsets = [448, 0], sizes = [64, 128], strides = [1, 1]} : vector<1024x128xf32> to vector<64x128xf32>
    %18 = vector.extract_strided_slice %8 {offsets = [512, 0], sizes = [64, 128], strides = [1, 1]} : vector<1024x128xf32> to vector<64x128xf32>
    %19 = vector.extract_strided_slice %8 {offsets = [576, 0], sizes = [64, 128], strides = [1, 1]} : vector<1024x128xf32> to vector<64x128xf32>
    %20 = vector.extract_strided_slice %8 {offsets = [640, 0], sizes = [64, 128], strides = [1, 1]} : vector<1024x128xf32> to vector<64x128xf32>
    %21 = vector.extract_strided_slice %8 {offsets = [704, 0], sizes = [64, 128], strides = [1, 1]} : vector<1024x128xf32> to vector<64x128xf32>
    %22 = vector.extract_strided_slice %8 {offsets = [768, 0], sizes = [64, 128], strides = [1, 1]} : vector<1024x128xf32> to vector<64x128xf32>
    %23 = vector.extract_strided_slice %8 {offsets = [832, 0], sizes = [64, 128], strides = [1, 1]} : vector<1024x128xf32> to vector<64x128xf32>
    %24 = vector.extract_strided_slice %8 {offsets = [896, 0], sizes = [64, 128], strides = [1, 1]} : vector<1024x128xf32> to vector<64x128xf32>
    %25 = vector.extract_strided_slice %8 {offsets = [960, 0], sizes = [64, 128], strides = [1, 1]} : vector<1024x128xf32> to vector<64x128xf32>
    %26 = arith.mulf %10, %10 : vector<64x128xf32>
    %27 = arith.addf %10, %11 : vector<64x128xf32>
    %28 = arith.mulf %11, %11 : vector<64x128xf32>
    %29 = arith.addf %26, %28 : vector<64x128xf32>
    %30 = arith.addf %27, %12 : vector<64x128xf32>
    %31 = arith.mulf %12, %12 : vector<64x128xf32>
    %32 = arith.addf %29, %31 : vector<64x128xf32>
    %33 = arith.addf %30, %13 : vector<64x128xf32>
    %34 = arith.mulf %13, %13 : vector<64x128xf32>
    %35 = arith.addf %32, %34 : vector<64x128xf32>
    %36 = arith.addf %33, %14 : vector<64x128xf32>
    %37 = arith.mulf %14, %14 : vector<64x128xf32>
    %38 = arith.addf %35, %37 : vector<64x128xf32>
    %39 = arith.addf %36, %15 : vector<64x128xf32>
    %40 = arith.mulf %15, %15 : vector<64x128xf32>
    %41 = arith.addf %38, %40 : vector<64x128xf32>
    %42 = arith.addf %39, %16 : vector<64x128xf32>
    %43 = arith.mulf %16, %16 : vector<64x128xf32>
    %44 = arith.addf %41, %43 : vector<64x128xf32>
    %45 = arith.addf %42, %17 : vector<64x128xf32>
    %46 = arith.mulf %17, %17 : vector<64x128xf32>
    %47 = arith.addf %44, %46 : vector<64x128xf32>
    %48 = arith.addf %45, %18 : vector<64x128xf32>
    %49 = arith.mulf %18, %18 : vector<64x128xf32>
    %50 = arith.addf %47, %49 : vector<64x128xf32>
    %51 = arith.addf %48, %19 : vector<64x128xf32>
    %52 = arith.mulf %19, %19 : vector<64x128xf32>
    %53 = arith.addf %50, %52 : vector<64x128xf32>
    %54 = arith.addf %51, %20 : vector<64x128xf32>
    %55 = arith.mulf %20, %20 : vector<64x128xf32>
    %56 = arith.addf %53, %55 : vector<64x128xf32>
    %57 = arith.addf %54, %21 : vector<64x128xf32>
    %58 = arith.mulf %21, %21 : vector<64x128xf32>
    %59 = arith.addf %56, %58 : vector<64x128xf32>
    %60 = arith.addf %57, %22 : vector<64x128xf32>
    %61 = arith.mulf %22, %22 : vector<64x128xf32>
    %62 = arith.addf %59, %61 : vector<64x128xf32>
    %63 = arith.addf %60, %23 : vector<64x128xf32>
    %64 = arith.mulf %23, %23 : vector<64x128xf32>
    %65 = arith.addf %62, %64 : vector<64x128xf32>
    %66 = arith.addf %63, %24 : vector<64x128xf32>
    %67 = arith.mulf %24, %24 : vector<64x128xf32>
    %68 = arith.addf %65, %67 : vector<64x128xf32>
    %69 = arith.addf %66, %25 : vector<64x128xf32>
    %70 = arith.mulf %25, %25 : vector<64x128xf32>
    %71 = arith.addf %68, %70 : vector<64x128xf32>
    %72 = vector.broadcast %9 : vector<1x128xf32> to vector<64x128xf32>
    %73 = arith.mulf %69, %72 : vector<64x128xf32>
    %cst_9 = arith.constant dense<0.000000e+00> : vector<64xf32>
    %74 = vector.multi_reduction <add>, %73, %cst_9 [1] : vector<64x128xf32> to vector<64xf32>
    %75 = vector.shape_cast %74 : vector<64xf32> to vector<64x1xf32>
    %cst_10 = arith.constant 3.125000e-02 : f32
    %76 = vector.broadcast %cst_10 : f32 to vector<64x1xf32>
    %77 = arith.mulf %75, %76 : vector<64x1xf32>
    %78 = vector.broadcast %9 : vector<1x128xf32> to vector<64x128xf32>
    %79 = arith.mulf %71, %78 : vector<64x128xf32>
    %cst_11 = arith.constant dense<0.000000e+00> : vector<64xf32>
    %80 = vector.multi_reduction <add>, %79, %cst_11 [1] : vector<64x128xf32> to vector<64xf32>
    %81 = vector.shape_cast %80 : vector<64xf32> to vector<64x1xf32>
    %cst_12 = arith.constant 3.125000e-02 : f32
    %82 = vector.broadcast %cst_12 : f32 to vector<64x1xf32>
    %83 = arith.mulf %81, %82 : vector<64x1xf32>
    %84 = arith.mulf %77, %77 : vector<64x1xf32>
    %85 = arith.subf %83, %84 : vector<64x1xf32>
    %c0_13 = arith.constant 0 : index
    %c0_14 = arith.constant 0 : index
    %86 = vector.load %arg5[%c0_13, %c0_14] : memref<64x1xf32, #tpu.memory_space<vmem>>, vector<64x1xf32>
    %cst_15 = arith.constant 9.99999974E-6 : f32
    %87 = vector.broadcast %cst_15 : f32 to vector<64x1xf32>
    %88 = arith.addf %85, %87 : vector<64x1xf32>
    %89 = math.rsqrt %88 : vector<64x1xf32>
    %90 = arith.mulf %86, %89 : vector<64x1xf32>
    %c0_16 = arith.constant 0 : index
    %c0_17 = arith.constant 0 : index
    %91 = vector.load %arg6[%c0_16, %c0_17] : memref<64x1xf32, #tpu.memory_space<vmem>>, vector<64x1xf32>
    %92 = arith.mulf %77, %90 : vector<64x1xf32>
    %93 = arith.subf %91, %92 : vector<64x1xf32>
    %94 = vector.broadcast %90 : vector<64x1xf32> to vector<64x128xf32>
    %95 = arith.mulf %10, %94 : vector<64x128xf32>
    %96 = vector.broadcast %93 : vector<64x1xf32> to vector<64x128xf32>
    %97 = arith.addf %95, %96 : vector<64x128xf32>
    %cst_18 = arith.constant 0.000000e+00 : f32
    %98 = vector.broadcast %cst_18 : f32 to vector<64x128xf32>
    %99 = arith.maximumf %97, %98 : vector<64x128xf32>
    %100 = arith.truncf %99 : vector<64x128xf32> to vector<64x128xbf16>
    %c0_19 = arith.constant 0 : index
    %c0_20 = arith.constant 0 : index
    %101 = vector.load %arg8[%c0_19, %c0_20] : memref<1024x128xbf16, #tpu.memory_space<vmem>>, vector<64x128xbf16>
    tpu.vector_store %arg8[%c0_19, %c0_20], %100 {strides = array<i32>} : memref<1024x128xbf16, #tpu.memory_space<vmem>>, vector<64x128xbf16>,
    %102 = vector.broadcast %90 : vector<64x1xf32> to vector<64x128xf32>
    %103 = arith.mulf %11, %102 : vector<64x128xf32>
    %104 = vector.broadcast %93 : vector<64x1xf32> to vector<64x128xf32>
    %105 = arith.addf %103, %104 : vector<64x128xf32>
    %cst_21 = arith.constant 0.000000e+00 : f32
    %106 = vector.broadcast %cst_21 : f32 to vector<64x128xf32>
    %107 = arith.maximumf %105, %106 : vector<64x128xf32>
    %108 = arith.truncf %107 : vector<64x128xf32> to vector<64x128xbf16>
    %c64 = arith.constant 64 : index
    %c0_22 = arith.constant 0 : index
    %109 = vector.load %arg8[%c64, %c0_22] : memref<1024x128xbf16, #tpu.memory_space<vmem>>, vector<64x128xbf16>
    tpu.vector_store %arg8[%c64, %c0_22], %108 {strides = array<i32>} : memref<1024x128xbf16, #tpu.memory_space<vmem>>, vector<64x128xbf16>,
    %110 = vector.broadcast %90 : vector<64x1xf32> to vector<64x128xf32>
    %111 = arith.mulf %12, %110 : vector<64x128xf32>
    %112 = vector.broadcast %93 : vector<64x1xf32> to vector<64x128xf32>
    %113 = arith.addf %111, %112 : vector<64x128xf32>
    %cst_23 = arith.constant 0.000000e+00 : f32
    %114 = vector.broadcast %cst_23 : f32 to vector<64x128xf32>
    %115 = arith.maximumf %113, %114 : vector<64x128xf32>
    %116 = arith.truncf %115 : vector<64x128xf32> to vector<64x128xbf16>
    %c128 = arith.constant 128 : index
    %c0_24 = arith.constant 0 : index
    %117 = vector.load %arg8[%c128, %c0_24] : memref<1024x128xbf16, #tpu.memory_space<vmem>>, vector<64x128xbf16>
    tpu.vector_store %arg8[%c128, %c0_24], %116 {strides = array<i32>} : memref<1024x128xbf16, #tpu.memory_space<vmem>>, vector<64x128xbf16>,
    %118 = vector.broadcast %90 : vector<64x1xf32> to vector<64x128xf32>
    %119 = arith.mulf %13, %118 : vector<64x128xf32>
    %120 = vector.broadcast %93 : vector<64x1xf32> to vector<64x128xf32>
    %121 = arith.addf %119, %120 : vector<64x128xf32>
    %cst_25 = arith.constant 0.000000e+00 : f32
    %122 = vector.broadcast %cst_25 : f32 to vector<64x128xf32>
    %123 = arith.maximumf %121, %122 : vector<64x128xf32>
    %124 = arith.truncf %123 : vector<64x128xf32> to vector<64x128xbf16>
    %c192 = arith.constant 192 : index
    %c0_26 = arith.constant 0 : index
    %125 = vector.load %arg8[%c192, %c0_26] : memref<1024x128xbf16, #tpu.memory_space<vmem>>, vector<64x128xbf16>
    tpu.vector_store %arg8[%c192, %c0_26], %124 {strides = array<i32>} : memref<1024x128xbf16, #tpu.memory_space<vmem>>, vector<64x128xbf16>,
    %126 = vector.broadcast %90 : vector<64x1xf32> to vector<64x128xf32>
    %127 = arith.mulf %14, %126 : vector<64x128xf32>
    %128 = vector.broadcast %93 : vector<64x1xf32> to vector<64x128xf32>
    %129 = arith.addf %127, %128 : vector<64x128xf32>
    %cst_27 = arith.constant 0.000000e+00 : f32
    %130 = vector.broadcast %cst_27 : f32 to vector<64x128xf32>
    %131 = arith.maximumf %129, %130 : vector<64x128xf32>
    %132 = arith.truncf %131 : vector<64x128xf32> to vector<64x128xbf16>
    %c256 = arith.constant 256 : index
    %c0_28 = arith.constant 0 : index
    %133 = vector.load %arg8[%c256, %c0_28] : memref<1024x128xbf16, #tpu.memory_space<vmem>>, vector<64x128xbf16>
    tpu.vector_store %arg8[%c256, %c0_28], %132 {strides = array<i32>} : memref<1024x128xbf16, #tpu.memory_space<vmem>>, vector<64x128xbf16>,
    %134 = vector.broadcast %90 : vector<64x1xf32> to vector<64x128xf32>
    %135 = arith.mulf %15, %134 : vector<64x128xf32>
    %136 = vector.broadcast %93 : vector<64x1xf32> to vector<64x128xf32>
    %137 = arith.addf %135, %136 : vector<64x128xf32>
    %cst_29 = arith.constant 0.000000e+00 : f32
    %138 = vector.broadcast %cst_29 : f32 to vector<64x128xf32>
    %139 = arith.maximumf %137, %138 : vector<64x128xf32>
    %140 = arith.truncf %139 : vector<64x128xf32> to vector<64x128xbf16>
    %c320 = arith.constant 320 : index
    %c0_30 = arith.constant 0 : index
    %141 = vector.load %arg8[%c320, %c0_30] : memref<1024x128xbf16, #tpu.memory_space<vmem>>, vector<64x128xbf16>
    tpu.vector_store %arg8[%c320, %c0_30], %140 {strides = array<i32>} : memref<1024x128xbf16, #tpu.memory_space<vmem>>, vector<64x128xbf16>,
    %142 = vector.broadcast %90 : vector<64x1xf32> to vector<64x128xf32>
    %143 = arith.mulf %16, %142 : vector<64x128xf32>
    %144 = vector.broadcast %93 : vector<64x1xf32> to vector<64x128xf32>
    %145 = arith.addf %143, %144 : vector<64x128xf32>
    %cst_31 = arith.constant 0.000000e+00 : f32
    %146 = vector.broadcast %cst_31 : f32 to vector<64x128xf32>
    %147 = arith.maximumf %145, %146 : vector<64x128xf32>
    %148 = arith.truncf %147 : vector<64x128xf32> to vector<64x128xbf16>
    %c384 = arith.constant 384 : index
    %c0_32 = arith.constant 0 : index
    %149 = vector.load %arg8[%c384, %c0_32] : memref<1024x128xbf16, #tpu.memory_space<vmem>>, vector<64x128xbf16>
    tpu.vector_store %arg8[%c384, %c0_32], %148 {strides = array<i32>} : memref<1024x128xbf16, #tpu.memory_space<vmem>>, vector<64x128xbf16>,
    %150 = vector.broadcast %90 : vector<64x1xf32> to vector<64x128xf32>
    %151 = arith.mulf %17, %150 : vector<64x128xf32>
    %152 = vector.broadcast %93 : vector<64x1xf32> to vector<64x128xf32>
    %153 = arith.addf %151, %152 : vector<64x128xf32>
    %cst_33 = arith.constant 0.000000e+00 : f32
    %154 = vector.broadcast %cst_33 : f32 to vector<64x128xf32>
    %155 = arith.maximumf %153, %154 : vector<64x128xf32>
    %156 = arith.truncf %155 : vector<64x128xf32> to vector<64x128xbf16>
    %c448 = arith.constant 448 : index
    %c0_34 = arith.constant 0 : index
    %157 = vector.load %arg8[%c448, %c0_34] : memref<1024x128xbf16, #tpu.memory_space<vmem>>, vector<64x128xbf16>
    tpu.vector_store %arg8[%c448, %c0_34], %156 {strides = array<i32>} : memref<1024x128xbf16, #tpu.memory_space<vmem>>, vector<64x128xbf16>,
    %158 = vector.broadcast %90 : vector<64x1xf32> to vector<64x128xf32>
    %159 = arith.mulf %18, %158 : vector<64x128xf32>
    %160 = vector.broadcast %93 : vector<64x1xf32> to vector<64x128xf32>
    %161 = arith.addf %159, %160 : vector<64x128xf32>
    %cst_35 = arith.constant 0.000000e+00 : f32
    %162 = vector.broadcast %cst_35 : f32 to vector<64x128xf32>
    %163 = arith.maximumf %161, %162 : vector<64x128xf32>
    %164 = arith.truncf %163 : vector<64x128xf32> to vector<64x128xbf16>
    %c512 = arith.constant 512 : index
    %c0_36 = arith.constant 0 : index
    %165 = vector.load %arg8[%c512, %c0_36] : memref<1024x128xbf16, #tpu.memory_space<vmem>>, vector<64x128xbf16>
    tpu.vector_store %arg8[%c512, %c0_36], %164 {strides = array<i32>} : memref<1024x128xbf16, #tpu.memory_space<vmem>>, vector<64x128xbf16>,
    %166 = vector.broadcast %90 : vector<64x1xf32> to vector<64x128xf32>
    %167 = arith.mulf %19, %166 : vector<64x128xf32>
    %168 = vector.broadcast %93 : vector<64x1xf32> to vector<64x128xf32>
    %169 = arith.addf %167, %168 : vector<64x128xf32>
    %cst_37 = arith.constant 0.000000e+00 : f32
    %170 = vector.broadcast %cst_37 : f32 to vector<64x128xf32>
    %171 = arith.maximumf %169, %170 : vector<64x128xf32>
    %172 = arith.truncf %171 : vector<64x128xf32> to vector<64x128xbf16>
    %c576 = arith.constant 576 : index
    %c0_38 = arith.constant 0 : index
    %173 = vector.load %arg8[%c576, %c0_38] : memref<1024x128xbf16, #tpu.memory_space<vmem>>, vector<64x128xbf16>
    tpu.vector_store %arg8[%c576, %c0_38], %172 {strides = array<i32>} : memref<1024x128xbf16, #tpu.memory_space<vmem>>, vector<64x128xbf16>,
    %174 = vector.broadcast %90 : vector<64x1xf32> to vector<64x128xf32>
    %175 = arith.mulf %20, %174 : vector<64x128xf32>
    %176 = vector.broadcast %93 : vector<64x1xf32> to vector<64x128xf32>
    %177 = arith.addf %175, %176 : vector<64x128xf32>
    %cst_39 = arith.constant 0.000000e+00 : f32
    %178 = vector.broadcast %cst_39 : f32 to vector<64x128xf32>
    %179 = arith.maximumf %177, %178 : vector<64x128xf32>
    %180 = arith.truncf %179 : vector<64x128xf32> to vector<64x128xbf16>
    %c640 = arith.constant 640 : index
    %c0_40 = arith.constant 0 : index
    %181 = vector.load %arg8[%c640, %c0_40] : memref<1024x128xbf16, #tpu.memory_space<vmem>>, vector<64x128xbf16>
    tpu.vector_store %arg8[%c640, %c0_40], %180 {strides = array<i32>} : memref<1024x128xbf16, #tpu.memory_space<vmem>>, vector<64x128xbf16>,
    %182 = vector.broadcast %90 : vector<64x1xf32> to vector<64x128xf32>
    %183 = arith.mulf %21, %182 : vector<64x128xf32>
    %184 = vector.broadcast %93 : vector<64x1xf32> to vector<64x128xf32>
    %185 = arith.addf %183, %184 : vector<64x128xf32>
    %cst_41 = arith.constant 0.000000e+00 : f32
    %186 = vector.broadcast %cst_41 : f32 to vector<64x128xf32>
    %187 = arith.maximumf %185, %186 : vector<64x128xf32>
    %188 = arith.truncf %187 : vector<64x128xf32> to vector<64x128xbf16>
    %c704 = arith.constant 704 : index
    %c0_42 = arith.constant 0 : index
    %189 = vector.load %arg8[%c704, %c0_42] : memref<1024x128xbf16, #tpu.memory_space<vmem>>, vector<64x128xbf16>
    tpu.vector_store %arg8[%c704, %c0_42], %188 {strides = array<i32>} : memref<1024x128xbf16, #tpu.memory_space<vmem>>, vector<64x128xbf16>,
    %190 = vector.broadcast %90 : vector<64x1xf32> to vector<64x128xf32>
    %191 = arith.mulf %22, %190 : vector<64x128xf32>
    %192 = vector.broadcast %93 : vector<64x1xf32> to vector<64x128xf32>
    %193 = arith.addf %191, %192 : vector<64x128xf32>
    %cst_43 = arith.constant 0.000000e+00 : f32
    %194 = vector.broadcast %cst_43 : f32 to vector<64x128xf32>
    %195 = arith.maximumf %193, %194 : vector<64x128xf32>
    %196 = arith.truncf %195 : vector<64x128xf32> to vector<64x128xbf16>
    %c768 = arith.constant 768 : index
    %c0_44 = arith.constant 0 : index
    %197 = vector.load %arg8[%c768, %c0_44] : memref<1024x128xbf16, #tpu.memory_space<vmem>>, vector<64x128xbf16>
    tpu.vector_store %arg8[%c768, %c0_44], %196 {strides = array<i32>} : memref<1024x128xbf16, #tpu.memory_space<vmem>>, vector<64x128xbf16>,
    %198 = vector.broadcast %90 : vector<64x1xf32> to vector<64x128xf32>
    %199 = arith.mulf %23, %198 : vector<64x128xf32>
    %200 = vector.broadcast %93 : vector<64x1xf32> to vector<64x128xf32>
    %201 = arith.addf %199, %200 : vector<64x128xf32>
    %cst_45 = arith.constant 0.000000e+00 : f32
    %202 = vector.broadcast %cst_45 : f32 to vector<64x128xf32>
    %203 = arith.maximumf %201, %202 : vector<64x128xf32>
    %204 = arith.truncf %203 : vector<64x128xf32> to vector<64x128xbf16>
    %c832 = arith.constant 832 : index
    %c0_46 = arith.constant 0 : index
    %205 = vector.load %arg8[%c832, %c0_46] : memref<1024x128xbf16, #tpu.memory_space<vmem>>, vector<64x128xbf16>
    tpu.vector_store %arg8[%c832, %c0_46], %204 {strides = array<i32>} : memref<1024x128xbf16, #tpu.memory_space<vmem>>, vector<64x128xbf16>,
    %206 = vector.broadcast %90 : vector<64x1xf32> to vector<64x128xf32>
    %207 = arith.mulf %24, %206 : vector<64x128xf32>
    %208 = vector.broadcast %93 : vector<64x1xf32> to vector<64x128xf32>
    %209 = arith.addf %207, %208 : vector<64x128xf32>
    %cst_47 = arith.constant 0.000000e+00 : f32
    %210 = vector.broadcast %cst_47 : f32 to vector<64x128xf32>
    %211 = arith.maximumf %209, %210 : vector<64x128xf32>
    %212 = arith.truncf %211 : vector<64x128xf32> to vector<64x128xbf16>
    %c896 = arith.constant 896 : index
    %c0_48 = arith.constant 0 : index
    %213 = vector.load %arg8[%c896, %c0_48] : memref<1024x128xbf16, #tpu.memory_space<vmem>>, vector<64x128xbf16>
    tpu.vector_store %arg8[%c896, %c0_48], %212 {strides = array<i32>} : memref<1024x128xbf16, #tpu.memory_space<vmem>>, vector<64x128xbf16>,
    %214 = vector.broadcast %90 : vector<64x1xf32> to vector<64x128xf32>
    %215 = arith.mulf %25, %214 : vector<64x128xf32>
    %216 = vector.broadcast %93 : vector<64x1xf32> to vector<64x128xf32>
    %217 = arith.addf %215, %216 : vector<64x128xf32>
    %cst_49 = arith.constant 0.000000e+00 : f32
    %218 = vector.broadcast %cst_49 : f32 to vector<64x128xf32>
    %219 = arith.maximumf %217, %218 : vector<64x128xf32>
    %220 = arith.truncf %219 : vector<64x128xf32> to vector<64x128xbf16>
    %c960 = arith.constant 960 : index
    %c0_50 = arith.constant 0 : index
    %221 = vector.load %arg8[%c960, %c0_50] : memref<1024x128xbf16, #tpu.memory_space<vmem>>, vector<64x128xbf16>
    tpu.vector_store %arg8[%c960, %c0_50], %220 {strides = array<i32>} : memref<1024x128xbf16, #tpu.memory_space<vmem>>, vector<64x128xbf16>,
    return
  }
  func.func @transform_0(%arg0: i32) -> (i32, i32) {
    %c0_i32 = arith.constant 0 : i32
    %c0_i32_0 = arith.constant 0 : i32
    %c0_i32_1 = arith.constant 0 : i32
    return %c0_i32, %c0_i32_0 : i32, i32
  }
  func.func @transform_1(%arg0: i32) -> (i32, i32) {
    %c0_i32 = arith.constant 0 : i32
    %c0_i32_0 = arith.constant 0 : i32
    %c0_i32_1 = arith.constant 0 : i32
    return %c0_i32, %c0_i32_0 : i32, i32
  }
  func.func @transform_2(%arg0: i32) -> (i32, i32) {
    %c0_i32 = arith.constant 0 : i32
    %c0_i32_0 = arith.constant 0 : i32
    %c0_i32_1 = arith.constant 0 : i32
    return %c0_i32, %c0_i32_0 : i32, i32
  }
  func.func @transform_3(%arg0: i32) -> (i32, i32) {
    %c0_i32 = arith.constant 0 : i32
    %c0_i32_0 = arith.constant 0 : i32
    %c0_i32_1 = arith.constant 0 : i32
    return %c0_i32, %c0_i32_0 : i32, i32
  }
  func.func @transform_4(%arg0: i32) -> (i32, i32) {
    %c0_i32 = arith.constant 0 : i32
    %c0_i32_0 = arith.constant 0 : i32
    %c0_i32_1 = arith.constant 0 : i32
    return %c0_i32, %c0_i32_0 : i32, i32
  }
  func.func @transform_5(%arg0: i32) -> (i32, i32) {
    %c0_i32 = arith.constant 0 : i32
    %c0_i32_0 = arith.constant 0 : i32
    %c0_i32_1 = arith.constant 0 : i32
    return %c0_i32, %c0_i32_0 : i32, i32
  }
  func.func @transform_6(%arg0: i32) -> (i32, i32) {
    %c0_i32 = arith.constant 0 : i32
    %c0_i32_0 = arith.constant 0 : i32
    %c0_i32_1 = arith.constant 0 : i32
    return %c0_i32, %c0_i32_0 : i32, i32
  }
  func.func @transform_7(%arg0: i32) -> (i32, i32) {
    %c0_i32 = arith.constant 0 : i32
    %c0_i32_0 = arith.constant 0 : i32
    %c0_i32_1 = arith.constant 0 : i32
    return %c0_i32, %c0_i32_0 : i32, i32
  }
}

module attributes {stable_mosaic.version = 11 : i64} {
  func.func @_convt_s2_bn_relu_kernel(%arg0: i32, %arg1: memref<64x256xbf16, #tpu.memory_space<vmem>>, %arg2: memref<9x128x64xbf16, #tpu.memory_space<vmem>>, %arg3: memref<128x1xf32, #tpu.memory_space<vmem>>, %arg4: memref<1x1xf32, #tpu.memory_space<smem>>, %arg5: memref<32x1xf32, #tpu.memory_space<vmem>>, %arg6: memref<32x1xf32, #tpu.memory_space<vmem>>, %arg7: memref<1x128xf32, #tpu.memory_space<vmem>>, %arg8: memref<128x128xbf16, #tpu.memory_space<vmem>>) attributes {dimension_semantics = [#tpu.dimension_semantics<arbitrary>], iteration_bounds = array<i64: 1>, scalar_prefetch = 0 : i64, scratch_operands = 0 : i64, tpu.core_type = #tpu.core_type<tc>, window_params = [{pipeline_mode = #tpu.pipeline_mode<synchronous>, transform_indices = @transform_0, window_bounds = array<i64: 64, 256>}, {pipeline_mode = #tpu.pipeline_mode<synchronous>, transform_indices = @transform_1, window_bounds = array<i64: 9, 128, 64>}, {pipeline_mode = #tpu.pipeline_mode<synchronous>, transform_indices = @transform_2, window_bounds = array<i64: 128, 1>}, {transform_indices = @transform_3, window_bounds = array<i64: 1, 1>}, {pipeline_mode = #tpu.pipeline_mode<synchronous>, transform_indices = @transform_4, window_bounds = array<i64: 32, 1>}, {pipeline_mode = #tpu.pipeline_mode<synchronous>, transform_indices = @transform_5, window_bounds = array<i64: 32, 1>}, {pipeline_mode = #tpu.pipeline_mode<synchronous>, transform_indices = @transform_6, window_bounds = array<i64: 1, 128>}, {pipeline_mode = #tpu.pipeline_mode<synchronous>, transform_indices = @transform_7, window_bounds = array<i64: 128, 128>}]} {
    %c0 = arith.constant 0 : index
    %c0_0 = arith.constant 0 : index
    %c0_1 = arith.constant 0 : index
    %0 = vector.load %arg2[%c0, %c0_0, %c0_1] : memref<9x128x64xbf16, #tpu.memory_space<vmem>>, vector<1x128x64xbf16>
    %1 = vector.shape_cast %0 : vector<1x128x64xbf16> to vector<128x64xbf16>
    %c0_2 = arith.constant 0 : index
    %c0_3 = arith.constant 0 : index
    %2 = vector.load %arg1[%c0_2, %c0_3] : memref<64x256xbf16, #tpu.memory_space<vmem>>, vector<64x128xbf16>
    %cst = arith.constant dense<0.000000e+00> : vector<128x128xf32>
    %3 = tpu.matmul %1, %2, %cst {dimension_numbers = #tpu.dot_dimension_numbers<[1], [0], [0], [1], [0, 0, 1, 1], [], []>} : vector<128x64xbf16>, vector<64x128xbf16>, vector<128x128xf32> -> vector<128x128xf32>
    %c1 = arith.constant 1 : index
    %c0_4 = arith.constant 0 : index
    %c0_5 = arith.constant 0 : index
    %4 = vector.load %arg2[%c1, %c0_4, %c0_5] : memref<9x128x64xbf16, #tpu.memory_space<vmem>>, vector<1x128x64xbf16>
    %5 = vector.shape_cast %4 : vector<1x128x64xbf16> to vector<128x64xbf16>
    %c0_6 = arith.constant 0 : index
    %c1_7 = arith.constant 1 : index
    %6 = vector.load %arg1[%c0_6, %c1_7] : memref<64x256xbf16, #tpu.memory_space<vmem>>, vector<64x128xbf16>
    %cst_8 = arith.constant dense<0.000000e+00> : vector<128x128xf32>
    %7 = tpu.matmul %5, %6, %cst_8 {dimension_numbers = #tpu.dot_dimension_numbers<[1], [0], [0], [1], [0, 0, 1, 1], [], []>} : vector<128x64xbf16>, vector<64x128xbf16>, vector<128x128xf32> -> vector<128x128xf32>
    %8 = arith.addf %3, %7 : vector<128x128xf32>
    %c2 = arith.constant 2 : index
    %c0_9 = arith.constant 0 : index
    %c0_10 = arith.constant 0 : index
    %9 = vector.load %arg2[%c2, %c0_9, %c0_10] : memref<9x128x64xbf16, #tpu.memory_space<vmem>>, vector<1x128x64xbf16>
    %10 = vector.shape_cast %9 : vector<1x128x64xbf16> to vector<128x64xbf16>
    %c0_11 = arith.constant 0 : index
    %c2_12 = arith.constant 2 : index
    %11 = vector.load %arg1[%c0_11, %c2_12] : memref<64x256xbf16, #tpu.memory_space<vmem>>, vector<64x128xbf16>
    %cst_13 = arith.constant dense<0.000000e+00> : vector<128x128xf32>
    %12 = tpu.matmul %10, %11, %cst_13 {dimension_numbers = #tpu.dot_dimension_numbers<[1], [0], [0], [1], [0, 0, 1, 1], [], []>} : vector<128x64xbf16>, vector<64x128xbf16>, vector<128x128xf32> -> vector<128x128xf32>
    %13 = arith.addf %8, %12 : vector<128x128xf32>
    %c3 = arith.constant 3 : index
    %c0_14 = arith.constant 0 : index
    %c0_15 = arith.constant 0 : index
    %14 = vector.load %arg2[%c3, %c0_14, %c0_15] : memref<9x128x64xbf16, #tpu.memory_space<vmem>>, vector<1x128x64xbf16>
    %15 = vector.shape_cast %14 : vector<1x128x64xbf16> to vector<128x64xbf16>
    %c0_16 = arith.constant 0 : index
    %c6 = arith.constant 6 : index
    %16 = vector.load %arg1[%c0_16, %c6] : memref<64x256xbf16, #tpu.memory_space<vmem>>, vector<64x128xbf16>
    %cst_17 = arith.constant dense<0.000000e+00> : vector<128x128xf32>
    %17 = tpu.matmul %15, %16, %cst_17 {dimension_numbers = #tpu.dot_dimension_numbers<[1], [0], [0], [1], [0, 0, 1, 1], [], []>} : vector<128x64xbf16>, vector<64x128xbf16>, vector<128x128xf32> -> vector<128x128xf32>
    %18 = arith.addf %13, %17 : vector<128x128xf32>
    %c4 = arith.constant 4 : index
    %c0_18 = arith.constant 0 : index
    %c0_19 = arith.constant 0 : index
    %19 = vector.load %arg2[%c4, %c0_18, %c0_19] : memref<9x128x64xbf16, #tpu.memory_space<vmem>>, vector<1x128x64xbf16>
    %20 = vector.shape_cast %19 : vector<1x128x64xbf16> to vector<128x64xbf16>
    %c0_20 = arith.constant 0 : index
    %c7 = arith.constant 7 : index
    %21 = vector.load %arg1[%c0_20, %c7] : memref<64x256xbf16, #tpu.memory_space<vmem>>, vector<64x128xbf16>
    %cst_21 = arith.constant dense<0.000000e+00> : vector<128x128xf32>
    %22 = tpu.matmul %20, %21, %cst_21 {dimension_numbers = #tpu.dot_dimension_numbers<[1], [0], [0], [1], [0, 0, 1, 1], [], []>} : vector<128x64xbf16>, vector<64x128xbf16>, vector<128x128xf32> -> vector<128x128xf32>
    %23 = arith.addf %18, %22 : vector<128x128xf32>
    %c5 = arith.constant 5 : index
    %c0_22 = arith.constant 0 : index
    %c0_23 = arith.constant 0 : index
    %24 = vector.load %arg2[%c5, %c0_22, %c0_23] : memref<9x128x64xbf16, #tpu.memory_space<vmem>>, vector<1x128x64xbf16>
    %25 = vector.shape_cast %24 : vector<1x128x64xbf16> to vector<128x64xbf16>
    %c0_24 = arith.constant 0 : index
    %c8 = arith.constant 8 : index
    %26 = vector.load %arg1[%c0_24, %c8] : memref<64x256xbf16, #tpu.memory_space<vmem>>, vector<64x128xbf16>
    %cst_25 = arith.constant dense<0.000000e+00> : vector<128x128xf32>
    %27 = tpu.matmul %25, %26, %cst_25 {dimension_numbers = #tpu.dot_dimension_numbers<[1], [0], [0], [1], [0, 0, 1, 1], [], []>} : vector<128x64xbf16>, vector<64x128xbf16>, vector<128x128xf32> -> vector<128x128xf32>
    %28 = arith.addf %23, %27 : vector<128x128xf32>
    %c6_26 = arith.constant 6 : index
    %c0_27 = arith.constant 0 : index
    %c0_28 = arith.constant 0 : index
    %29 = vector.load %arg2[%c6_26, %c0_27, %c0_28] : memref<9x128x64xbf16, #tpu.memory_space<vmem>>, vector<1x128x64xbf16>
    %30 = vector.shape_cast %29 : vector<1x128x64xbf16> to vector<128x64xbf16>
    %c0_29 = arith.constant 0 : index
    %c12 = arith.constant 12 : index
    %31 = vector.load %arg1[%c0_29, %c12] : memref<64x256xbf16, #tpu.memory_space<vmem>>, vector<64x128xbf16>
    %cst_30 = arith.constant dense<0.000000e+00> : vector<128x128xf32>
    %32 = tpu.matmul %30, %31, %cst_30 {dimension_numbers = #tpu.dot_dimension_numbers<[1], [0], [0], [1], [0, 0, 1, 1], [], []>} : vector<128x64xbf16>, vector<64x128xbf16>, vector<128x128xf32> -> vector<128x128xf32>
    %33 = arith.addf %28, %32 : vector<128x128xf32>
    %c7_31 = arith.constant 7 : index
    %c0_32 = arith.constant 0 : index
    %c0_33 = arith.constant 0 : index
    %34 = vector.load %arg2[%c7_31, %c0_32, %c0_33] : memref<9x128x64xbf16, #tpu.memory_space<vmem>>, vector<1x128x64xbf16>
    %35 = vector.shape_cast %34 : vector<1x128x64xbf16> to vector<128x64xbf16>
    %c0_34 = arith.constant 0 : index
    %c13 = arith.constant 13 : index
    %36 = vector.load %arg1[%c0_34, %c13] : memref<64x256xbf16, #tpu.memory_space<vmem>>, vector<64x128xbf16>
    %cst_35 = arith.constant dense<0.000000e+00> : vector<128x128xf32>
    %37 = tpu.matmul %35, %36, %cst_35 {dimension_numbers = #tpu.dot_dimension_numbers<[1], [0], [0], [1], [0, 0, 1, 1], [], []>} : vector<128x64xbf16>, vector<64x128xbf16>, vector<128x128xf32> -> vector<128x128xf32>
    %38 = arith.addf %33, %37 : vector<128x128xf32>
    %c8_36 = arith.constant 8 : index
    %c0_37 = arith.constant 0 : index
    %c0_38 = arith.constant 0 : index
    %39 = vector.load %arg2[%c8_36, %c0_37, %c0_38] : memref<9x128x64xbf16, #tpu.memory_space<vmem>>, vector<1x128x64xbf16>
    %40 = vector.shape_cast %39 : vector<1x128x64xbf16> to vector<128x64xbf16>
    %c0_39 = arith.constant 0 : index
    %c14 = arith.constant 14 : index
    %41 = vector.load %arg1[%c0_39, %c14] : memref<64x256xbf16, #tpu.memory_space<vmem>>, vector<64x128xbf16>
    %cst_40 = arith.constant dense<0.000000e+00> : vector<128x128xf32>
    %42 = tpu.matmul %40, %41, %cst_40 {dimension_numbers = #tpu.dot_dimension_numbers<[1], [0], [0], [1], [0, 0, 1, 1], [], []>} : vector<128x64xbf16>, vector<64x128xbf16>, vector<128x128xf32> -> vector<128x128xf32>
    %43 = arith.addf %38, %42 : vector<128x128xf32>
    %c0_41 = arith.constant 0 : index
    %c0_42 = arith.constant 0 : index
    %44 = memref.load %arg4[%c0_41, %c0_42] : memref<1x1xf32, #tpu.memory_space<smem>>
    %45 = vector.broadcast %44 : f32 to vector<128x128xf32>
    %46 = arith.mulf %43, %45 : vector<128x128xf32>
    %c0_43 = arith.constant 0 : index
    %c0_44 = arith.constant 0 : index
    %47 = vector.load %arg3[%c0_43, %c0_44] : memref<128x1xf32, #tpu.memory_space<vmem>>, vector<128x1xf32>
    %48 = vector.broadcast %47 : vector<128x1xf32> to vector<128x128xf32>
    %49 = arith.addf %46, %48 : vector<128x128xf32>
    %c0_45 = arith.constant 0 : index
    %c0_46 = arith.constant 0 : index
    %50 = vector.load %arg7[%c0_45, %c0_46] : memref<1x128xf32, #tpu.memory_space<vmem>>, vector<1x128xf32>
    %51 = vector.extract_strided_slice %49 {offsets = [0, 0], sizes = [32, 128], strides = [1, 1]} : vector<128x128xf32> to vector<32x128xf32>
    %52 = vector.extract_strided_slice %49 {offsets = [32, 0], sizes = [32, 128], strides = [1, 1]} : vector<128x128xf32> to vector<32x128xf32>
    %53 = vector.extract_strided_slice %49 {offsets = [64, 0], sizes = [32, 128], strides = [1, 1]} : vector<128x128xf32> to vector<32x128xf32>
    %54 = vector.extract_strided_slice %49 {offsets = [96, 0], sizes = [32, 128], strides = [1, 1]} : vector<128x128xf32> to vector<32x128xf32>
    %55 = arith.mulf %51, %51 : vector<32x128xf32>
    %56 = arith.addf %51, %52 : vector<32x128xf32>
    %57 = arith.mulf %52, %52 : vector<32x128xf32>
    %58 = arith.addf %55, %57 : vector<32x128xf32>
    %59 = arith.addf %56, %53 : vector<32x128xf32>
    %60 = arith.mulf %53, %53 : vector<32x128xf32>
    %61 = arith.addf %58, %60 : vector<32x128xf32>
    %62 = arith.addf %59, %54 : vector<32x128xf32>
    %63 = arith.mulf %54, %54 : vector<32x128xf32>
    %64 = arith.addf %61, %63 : vector<32x128xf32>
    %65 = vector.broadcast %50 : vector<1x128xf32> to vector<32x128xf32>
    %66 = arith.mulf %62, %65 : vector<32x128xf32>
    %cst_47 = arith.constant dense<0.000000e+00> : vector<32xf32>
    %67 = vector.multi_reduction <add>, %66, %cst_47 [1] : vector<32x128xf32> to vector<32xf32>
    %68 = vector.shape_cast %67 : vector<32xf32> to vector<32x1xf32>
    %cst_48 = arith.constant 7.812500e-03 : f32
    %69 = vector.broadcast %cst_48 : f32 to vector<32x1xf32>
    %70 = arith.mulf %68, %69 : vector<32x1xf32>
    %71 = vector.broadcast %50 : vector<1x128xf32> to vector<32x128xf32>
    %72 = arith.mulf %64, %71 : vector<32x128xf32>
    %cst_49 = arith.constant dense<0.000000e+00> : vector<32xf32>
    %73 = vector.multi_reduction <add>, %72, %cst_49 [1] : vector<32x128xf32> to vector<32xf32>
    %74 = vector.shape_cast %73 : vector<32xf32> to vector<32x1xf32>
    %cst_50 = arith.constant 7.812500e-03 : f32
    %75 = vector.broadcast %cst_50 : f32 to vector<32x1xf32>
    %76 = arith.mulf %74, %75 : vector<32x1xf32>
    %77 = arith.mulf %70, %70 : vector<32x1xf32>
    %78 = arith.subf %76, %77 : vector<32x1xf32>
    %c0_51 = arith.constant 0 : index
    %c0_52 = arith.constant 0 : index
    %79 = vector.load %arg5[%c0_51, %c0_52] : memref<32x1xf32, #tpu.memory_space<vmem>>, vector<32x1xf32>
    %cst_53 = arith.constant 9.99999974E-6 : f32
    %80 = vector.broadcast %cst_53 : f32 to vector<32x1xf32>
    %81 = arith.addf %78, %80 : vector<32x1xf32>
    %82 = math.rsqrt %81 : vector<32x1xf32>
    %83 = arith.mulf %79, %82 : vector<32x1xf32>
    %c0_54 = arith.constant 0 : index
    %c0_55 = arith.constant 0 : index
    %84 = vector.load %arg6[%c0_54, %c0_55] : memref<32x1xf32, #tpu.memory_space<vmem>>, vector<32x1xf32>
    %85 = arith.mulf %70, %83 : vector<32x1xf32>
    %86 = arith.subf %84, %85 : vector<32x1xf32>
    %87 = vector.broadcast %83 : vector<32x1xf32> to vector<32x128xf32>
    %88 = arith.mulf %51, %87 : vector<32x128xf32>
    %89 = vector.broadcast %86 : vector<32x1xf32> to vector<32x128xf32>
    %90 = arith.addf %88, %89 : vector<32x128xf32>
    %cst_56 = arith.constant 0.000000e+00 : f32
    %91 = vector.broadcast %cst_56 : f32 to vector<32x128xf32>
    %92 = arith.maximumf %90, %91 : vector<32x128xf32>
    %93 = arith.truncf %92 : vector<32x128xf32> to vector<32x128xbf16>
    %c0_57 = arith.constant 0 : index
    %c0_58 = arith.constant 0 : index
    %94 = vector.load %arg8[%c0_57, %c0_58] : memref<128x128xbf16, #tpu.memory_space<vmem>>, vector<32x128xbf16>
    tpu.vector_store %arg8[%c0_57, %c0_58], %93 {strides = array<i32>} : memref<128x128xbf16, #tpu.memory_space<vmem>>, vector<32x128xbf16>,
    %95 = vector.broadcast %83 : vector<32x1xf32> to vector<32x128xf32>
    %96 = arith.mulf %52, %95 : vector<32x128xf32>
    %97 = vector.broadcast %86 : vector<32x1xf32> to vector<32x128xf32>
    %98 = arith.addf %96, %97 : vector<32x128xf32>
    %cst_59 = arith.constant 0.000000e+00 : f32
    %99 = vector.broadcast %cst_59 : f32 to vector<32x128xf32>
    %100 = arith.maximumf %98, %99 : vector<32x128xf32>
    %101 = arith.truncf %100 : vector<32x128xf32> to vector<32x128xbf16>
    %c32 = arith.constant 32 : index
    %c0_60 = arith.constant 0 : index
    %102 = vector.load %arg8[%c32, %c0_60] : memref<128x128xbf16, #tpu.memory_space<vmem>>, vector<32x128xbf16>
    tpu.vector_store %arg8[%c32, %c0_60], %101 {strides = array<i32>} : memref<128x128xbf16, #tpu.memory_space<vmem>>, vector<32x128xbf16>,
    %103 = vector.broadcast %83 : vector<32x1xf32> to vector<32x128xf32>
    %104 = arith.mulf %53, %103 : vector<32x128xf32>
    %105 = vector.broadcast %86 : vector<32x1xf32> to vector<32x128xf32>
    %106 = arith.addf %104, %105 : vector<32x128xf32>
    %cst_61 = arith.constant 0.000000e+00 : f32
    %107 = vector.broadcast %cst_61 : f32 to vector<32x128xf32>
    %108 = arith.maximumf %106, %107 : vector<32x128xf32>
    %109 = arith.truncf %108 : vector<32x128xf32> to vector<32x128xbf16>
    %c64 = arith.constant 64 : index
    %c0_62 = arith.constant 0 : index
    %110 = vector.load %arg8[%c64, %c0_62] : memref<128x128xbf16, #tpu.memory_space<vmem>>, vector<32x128xbf16>
    tpu.vector_store %arg8[%c64, %c0_62], %109 {strides = array<i32>} : memref<128x128xbf16, #tpu.memory_space<vmem>>, vector<32x128xbf16>,
    %111 = vector.broadcast %83 : vector<32x1xf32> to vector<32x128xf32>
    %112 = arith.mulf %54, %111 : vector<32x128xf32>
    %113 = vector.broadcast %86 : vector<32x1xf32> to vector<32x128xf32>
    %114 = arith.addf %112, %113 : vector<32x128xf32>
    %cst_63 = arith.constant 0.000000e+00 : f32
    %115 = vector.broadcast %cst_63 : f32 to vector<32x128xf32>
    %116 = arith.maximumf %114, %115 : vector<32x128xf32>
    %117 = arith.truncf %116 : vector<32x128xf32> to vector<32x128xbf16>
    %c96 = arith.constant 96 : index
    %c0_64 = arith.constant 0 : index
    %118 = vector.load %arg8[%c96, %c0_64] : memref<128x128xbf16, #tpu.memory_space<vmem>>, vector<32x128xbf16>
    tpu.vector_store %arg8[%c96, %c0_64], %117 {strides = array<i32>} : memref<128x128xbf16, #tpu.memory_space<vmem>>, vector<32x128xbf16>,
    return
  }
  func.func @transform_0(%arg0: i32) -> (i32, i32) {
    %c0_i32 = arith.constant 0 : i32
    %c0_i32_0 = arith.constant 0 : i32
    %c0_i32_1 = arith.constant 0 : i32
    return %c0_i32, %c0_i32_0 : i32, i32
  }
  func.func @transform_1(%arg0: i32) -> (i32, i32, i32) {
    %c0_i32 = arith.constant 0 : i32
    %c0_i32_0 = arith.constant 0 : i32
    %c0_i32_1 = arith.constant 0 : i32
    %c0_i32_2 = arith.constant 0 : i32
    return %c0_i32, %c0_i32_0, %c0_i32_1 : i32, i32, i32
  }
  func.func @transform_2(%arg0: i32) -> (i32, i32) {
    %c0_i32 = arith.constant 0 : i32
    %c0_i32_0 = arith.constant 0 : i32
    %c0_i32_1 = arith.constant 0 : i32
    return %c0_i32, %c0_i32_0 : i32, i32
  }
  func.func @transform_3(%arg0: i32) -> (i32, i32) {
    %c0_i32 = arith.constant 0 : i32
    %c0_i32_0 = arith.constant 0 : i32
    %c0_i32_1 = arith.constant 0 : i32
    return %c0_i32, %c0_i32_0 : i32, i32
  }
  func.func @transform_4(%arg0: i32) -> (i32, i32) {
    %c0_i32 = arith.constant 0 : i32
    %c0_i32_0 = arith.constant 0 : i32
    %c0_i32_1 = arith.constant 0 : i32
    return %c0_i32, %c0_i32_0 : i32, i32
  }
  func.func @transform_5(%arg0: i32) -> (i32, i32) {
    %c0_i32 = arith.constant 0 : i32
    %c0_i32_0 = arith.constant 0 : i32
    %c0_i32_1 = arith.constant 0 : i32
    return %c0_i32, %c0_i32_0 : i32, i32
  }
  func.func @transform_6(%arg0: i32) -> (i32, i32) {
    %c0_i32 = arith.constant 0 : i32
    %c0_i32_0 = arith.constant 0 : i32
    %c0_i32_1 = arith.constant 0 : i32
    return %c0_i32, %c0_i32_0 : i32, i32
  }
  func.func @transform_7(%arg0: i32) -> (i32, i32) {
    %c0_i32 = arith.constant 0 : i32
    %c0_i32_0 = arith.constant 0 : i32
    %c0_i32_1 = arith.constant 0 : i32
    return %c0_i32, %c0_i32_0 : i32, i32
  }
}

module attributes {stable_mosaic.version = 11 : i64} {
  func.func @_convt_s2_bn_relu_kernel(%arg0: i32, %arg1: memref<32x384xbf16, #tpu.memory_space<vmem>>, %arg2: memref<9x64x32xbf16, #tpu.memory_space<vmem>>, %arg3: memref<64x1xf32, #tpu.memory_space<vmem>>, %arg4: memref<1x1xf32, #tpu.memory_space<smem>>, %arg5: memref<16x1xf32, #tpu.memory_space<vmem>>, %arg6: memref<16x1xf32, #tpu.memory_space<vmem>>, %arg7: memref<1x256xf32, #tpu.memory_space<vmem>>, %arg8: memref<64x256xbf16, #tpu.memory_space<vmem>>) attributes {dimension_semantics = [#tpu.dimension_semantics<arbitrary>], iteration_bounds = array<i64: 1>, scalar_prefetch = 0 : i64, scratch_operands = 0 : i64, tpu.core_type = #tpu.core_type<tc>, window_params = [{pipeline_mode = #tpu.pipeline_mode<synchronous>, transform_indices = @transform_0, window_bounds = array<i64: 32, 384>}, {pipeline_mode = #tpu.pipeline_mode<synchronous>, transform_indices = @transform_1, window_bounds = array<i64: 9, 64, 32>}, {pipeline_mode = #tpu.pipeline_mode<synchronous>, transform_indices = @transform_2, window_bounds = array<i64: 64, 1>}, {transform_indices = @transform_3, window_bounds = array<i64: 1, 1>}, {pipeline_mode = #tpu.pipeline_mode<synchronous>, transform_indices = @transform_4, window_bounds = array<i64: 16, 1>}, {pipeline_mode = #tpu.pipeline_mode<synchronous>, transform_indices = @transform_5, window_bounds = array<i64: 16, 1>}, {pipeline_mode = #tpu.pipeline_mode<synchronous>, transform_indices = @transform_6, window_bounds = array<i64: 1, 256>}, {pipeline_mode = #tpu.pipeline_mode<synchronous>, transform_indices = @transform_7, window_bounds = array<i64: 64, 256>}]} {
    %c0 = arith.constant 0 : index
    %c0_0 = arith.constant 0 : index
    %c0_1 = arith.constant 0 : index
    %0 = vector.load %arg2[%c0, %c0_0, %c0_1] : memref<9x64x32xbf16, #tpu.memory_space<vmem>>, vector<1x64x32xbf16>
    %1 = vector.shape_cast %0 : vector<1x64x32xbf16> to vector<64x32xbf16>
    %c0_2 = arith.constant 0 : index
    %c0_3 = arith.constant 0 : index
    %2 = vector.load %arg1[%c0_2, %c0_3] : memref<32x384xbf16, #tpu.memory_space<vmem>>, vector<32x256xbf16>
    %cst = arith.constant dense<0.000000e+00> : vector<64x256xf32>
    %3 = tpu.matmul %1, %2, %cst {dimension_numbers = #tpu.dot_dimension_numbers<[1], [0], [0], [1], [0, 0, 1, 1], [], []>} : vector<64x32xbf16>, vector<32x256xbf16>, vector<64x256xf32> -> vector<64x256xf32>
    %c1 = arith.constant 1 : index
    %c0_4 = arith.constant 0 : index
    %c0_5 = arith.constant 0 : index
    %4 = vector.load %arg2[%c1, %c0_4, %c0_5] : memref<9x64x32xbf16, #tpu.memory_space<vmem>>, vector<1x64x32xbf16>
    %5 = vector.shape_cast %4 : vector<1x64x32xbf16> to vector<64x32xbf16>
    %c0_6 = arith.constant 0 : index
    %c1_7 = arith.constant 1 : index
    %6 = vector.load %arg1[%c0_6, %c1_7] : memref<32x384xbf16, #tpu.memory_space<vmem>>, vector<32x256xbf16>
    %cst_8 = arith.constant dense<0.000000e+00> : vector<64x256xf32>
    %7 = tpu.matmul %5, %6, %cst_8 {dimension_numbers = #tpu.dot_dimension_numbers<[1], [0], [0], [1], [0, 0, 1, 1], [], []>} : vector<64x32xbf16>, vector<32x256xbf16>, vector<64x256xf32> -> vector<64x256xf32>
    %8 = arith.addf %3, %7 : vector<64x256xf32>
    %c2 = arith.constant 2 : index
    %c0_9 = arith.constant 0 : index
    %c0_10 = arith.constant 0 : index
    %9 = vector.load %arg2[%c2, %c0_9, %c0_10] : memref<9x64x32xbf16, #tpu.memory_space<vmem>>, vector<1x64x32xbf16>
    %10 = vector.shape_cast %9 : vector<1x64x32xbf16> to vector<64x32xbf16>
    %c0_11 = arith.constant 0 : index
    %c2_12 = arith.constant 2 : index
    %11 = vector.load %arg1[%c0_11, %c2_12] : memref<32x384xbf16, #tpu.memory_space<vmem>>, vector<32x256xbf16>
    %cst_13 = arith.constant dense<0.000000e+00> : vector<64x256xf32>
    %12 = tpu.matmul %10, %11, %cst_13 {dimension_numbers = #tpu.dot_dimension_numbers<[1], [0], [0], [1], [0, 0, 1, 1], [], []>} : vector<64x32xbf16>, vector<32x256xbf16>, vector<64x256xf32> -> vector<64x256xf32>
    %13 = arith.addf %8, %12 : vector<64x256xf32>
    %c3 = arith.constant 3 : index
    %c0_14 = arith.constant 0 : index
    %c0_15 = arith.constant 0 : index
    %14 = vector.load %arg2[%c3, %c0_14, %c0_15] : memref<9x64x32xbf16, #tpu.memory_space<vmem>>, vector<1x64x32xbf16>
    %15 = vector.shape_cast %14 : vector<1x64x32xbf16> to vector<64x32xbf16>
    %c0_16 = arith.constant 0 : index
    %c10 = arith.constant 10 : index
    %16 = vector.load %arg1[%c0_16, %c10] : memref<32x384xbf16, #tpu.memory_space<vmem>>, vector<32x256xbf16>
    %cst_17 = arith.constant dense<0.000000e+00> : vector<64x256xf32>
    %17 = tpu.matmul %15, %16, %cst_17 {dimension_numbers = #tpu.dot_dimension_numbers<[1], [0], [0], [1], [0, 0, 1, 1], [], []>} : vector<64x32xbf16>, vector<32x256xbf16>, vector<64x256xf32> -> vector<64x256xf32>
    %18 = arith.addf %13, %17 : vector<64x256xf32>
    %c4 = arith.constant 4 : index
    %c0_18 = arith.constant 0 : index
    %c0_19 = arith.constant 0 : index
    %19 = vector.load %arg2[%c4, %c0_18, %c0_19] : memref<9x64x32xbf16, #tpu.memory_space<vmem>>, vector<1x64x32xbf16>
    %20 = vector.shape_cast %19 : vector<1x64x32xbf16> to vector<64x32xbf16>
    %c0_20 = arith.constant 0 : index
    %c11 = arith.constant 11 : index
    %21 = vector.load %arg1[%c0_20, %c11] : memref<32x384xbf16, #tpu.memory_space<vmem>>, vector<32x256xbf16>
    %cst_21 = arith.constant dense<0.000000e+00> : vector<64x256xf32>
    %22 = tpu.matmul %20, %21, %cst_21 {dimension_numbers = #tpu.dot_dimension_numbers<[1], [0], [0], [1], [0, 0, 1, 1], [], []>} : vector<64x32xbf16>, vector<32x256xbf16>, vector<64x256xf32> -> vector<64x256xf32>
    %23 = arith.addf %18, %22 : vector<64x256xf32>
    %c5 = arith.constant 5 : index
    %c0_22 = arith.constant 0 : index
    %c0_23 = arith.constant 0 : index
    %24 = vector.load %arg2[%c5, %c0_22, %c0_23] : memref<9x64x32xbf16, #tpu.memory_space<vmem>>, vector<1x64x32xbf16>
    %25 = vector.shape_cast %24 : vector<1x64x32xbf16> to vector<64x32xbf16>
    %c0_24 = arith.constant 0 : index
    %c12 = arith.constant 12 : index
    %26 = vector.load %arg1[%c0_24, %c12] : memref<32x384xbf16, #tpu.memory_space<vmem>>, vector<32x256xbf16>
    %cst_25 = arith.constant dense<0.000000e+00> : vector<64x256xf32>
    %27 = tpu.matmul %25, %26, %cst_25 {dimension_numbers = #tpu.dot_dimension_numbers<[1], [0], [0], [1], [0, 0, 1, 1], [], []>} : vector<64x32xbf16>, vector<32x256xbf16>, vector<64x256xf32> -> vector<64x256xf32>
    %28 = arith.addf %23, %27 : vector<64x256xf32>
    %c6 = arith.constant 6 : index
    %c0_26 = arith.constant 0 : index
    %c0_27 = arith.constant 0 : index
    %29 = vector.load %arg2[%c6, %c0_26, %c0_27] : memref<9x64x32xbf16, #tpu.memory_space<vmem>>, vector<1x64x32xbf16>
    %30 = vector.shape_cast %29 : vector<1x64x32xbf16> to vector<64x32xbf16>
    %c0_28 = arith.constant 0 : index
    %c20 = arith.constant 20 : index
    %31 = vector.load %arg1[%c0_28, %c20] : memref<32x384xbf16, #tpu.memory_space<vmem>>, vector<32x256xbf16>
    %cst_29 = arith.constant dense<0.000000e+00> : vector<64x256xf32>
    %32 = tpu.matmul %30, %31, %cst_29 {dimension_numbers = #tpu.dot_dimension_numbers<[1], [0], [0], [1], [0, 0, 1, 1], [], []>} : vector<64x32xbf16>, vector<32x256xbf16>, vector<64x256xf32> -> vector<64x256xf32>
    %33 = arith.addf %28, %32 : vector<64x256xf32>
    %c7 = arith.constant 7 : index
    %c0_30 = arith.constant 0 : index
    %c0_31 = arith.constant 0 : index
    %34 = vector.load %arg2[%c7, %c0_30, %c0_31] : memref<9x64x32xbf16, #tpu.memory_space<vmem>>, vector<1x64x32xbf16>
    %35 = vector.shape_cast %34 : vector<1x64x32xbf16> to vector<64x32xbf16>
    %c0_32 = arith.constant 0 : index
    %c21 = arith.constant 21 : index
    %36 = vector.load %arg1[%c0_32, %c21] : memref<32x384xbf16, #tpu.memory_space<vmem>>, vector<32x256xbf16>
    %cst_33 = arith.constant dense<0.000000e+00> : vector<64x256xf32>
    %37 = tpu.matmul %35, %36, %cst_33 {dimension_numbers = #tpu.dot_dimension_numbers<[1], [0], [0], [1], [0, 0, 1, 1], [], []>} : vector<64x32xbf16>, vector<32x256xbf16>, vector<64x256xf32> -> vector<64x256xf32>
    %38 = arith.addf %33, %37 : vector<64x256xf32>
    %c8 = arith.constant 8 : index
    %c0_34 = arith.constant 0 : index
    %c0_35 = arith.constant 0 : index
    %39 = vector.load %arg2[%c8, %c0_34, %c0_35] : memref<9x64x32xbf16, #tpu.memory_space<vmem>>, vector<1x64x32xbf16>
    %40 = vector.shape_cast %39 : vector<1x64x32xbf16> to vector<64x32xbf16>
    %c0_36 = arith.constant 0 : index
    %c22 = arith.constant 22 : index
    %41 = vector.load %arg1[%c0_36, %c22] : memref<32x384xbf16, #tpu.memory_space<vmem>>, vector<32x256xbf16>
    %cst_37 = arith.constant dense<0.000000e+00> : vector<64x256xf32>
    %42 = tpu.matmul %40, %41, %cst_37 {dimension_numbers = #tpu.dot_dimension_numbers<[1], [0], [0], [1], [0, 0, 1, 1], [], []>} : vector<64x32xbf16>, vector<32x256xbf16>, vector<64x256xf32> -> vector<64x256xf32>
    %43 = arith.addf %38, %42 : vector<64x256xf32>
    %c0_38 = arith.constant 0 : index
    %c0_39 = arith.constant 0 : index
    %44 = memref.load %arg4[%c0_38, %c0_39] : memref<1x1xf32, #tpu.memory_space<smem>>
    %45 = vector.broadcast %44 : f32 to vector<64x256xf32>
    %46 = arith.mulf %43, %45 : vector<64x256xf32>
    %c0_40 = arith.constant 0 : index
    %c0_41 = arith.constant 0 : index
    %47 = vector.load %arg3[%c0_40, %c0_41] : memref<64x1xf32, #tpu.memory_space<vmem>>, vector<64x1xf32>
    %48 = vector.broadcast %47 : vector<64x1xf32> to vector<64x256xf32>
    %49 = arith.addf %46, %48 : vector<64x256xf32>
    %c0_42 = arith.constant 0 : index
    %c0_43 = arith.constant 0 : index
    %50 = vector.load %arg7[%c0_42, %c0_43] : memref<1x256xf32, #tpu.memory_space<vmem>>, vector<1x256xf32>
    %51 = vector.extract_strided_slice %49 {offsets = [0, 0], sizes = [16, 256], strides = [1, 1]} : vector<64x256xf32> to vector<16x256xf32>
    %52 = vector.extract_strided_slice %49 {offsets = [16, 0], sizes = [16, 256], strides = [1, 1]} : vector<64x256xf32> to vector<16x256xf32>
    %53 = vector.extract_strided_slice %49 {offsets = [32, 0], sizes = [16, 256], strides = [1, 1]} : vector<64x256xf32> to vector<16x256xf32>
    %54 = vector.extract_strided_slice %49 {offsets = [48, 0], sizes = [16, 256], strides = [1, 1]} : vector<64x256xf32> to vector<16x256xf32>
    %55 = arith.mulf %51, %51 : vector<16x256xf32>
    %56 = arith.addf %51, %52 : vector<16x256xf32>
    %57 = arith.mulf %52, %52 : vector<16x256xf32>
    %58 = arith.addf %55, %57 : vector<16x256xf32>
    %59 = arith.addf %56, %53 : vector<16x256xf32>
    %60 = arith.mulf %53, %53 : vector<16x256xf32>
    %61 = arith.addf %58, %60 : vector<16x256xf32>
    %62 = arith.addf %59, %54 : vector<16x256xf32>
    %63 = arith.mulf %54, %54 : vector<16x256xf32>
    %64 = arith.addf %61, %63 : vector<16x256xf32>
    %65 = vector.broadcast %50 : vector<1x256xf32> to vector<16x256xf32>
    %66 = arith.mulf %62, %65 : vector<16x256xf32>
    %cst_44 = arith.constant dense<0.000000e+00> : vector<16xf32>
    %67 = vector.multi_reduction <add>, %66, %cst_44 [1] : vector<16x256xf32> to vector<16xf32>
    %68 = vector.shape_cast %67 : vector<16xf32> to vector<16x1xf32>
    %cst_45 = arith.constant 0.001953125 : f32
    %69 = vector.broadcast %cst_45 : f32 to vector<16x1xf32>
    %70 = arith.mulf %68, %69 : vector<16x1xf32>
    %71 = vector.broadcast %50 : vector<1x256xf32> to vector<16x256xf32>
    %72 = arith.mulf %64, %71 : vector<16x256xf32>
    %cst_46 = arith.constant dense<0.000000e+00> : vector<16xf32>
    %73 = vector.multi_reduction <add>, %72, %cst_46 [1] : vector<16x256xf32> to vector<16xf32>
    %74 = vector.shape_cast %73 : vector<16xf32> to vector<16x1xf32>
    %cst_47 = arith.constant 0.001953125 : f32
    %75 = vector.broadcast %cst_47 : f32 to vector<16x1xf32>
    %76 = arith.mulf %74, %75 : vector<16x1xf32>
    %77 = arith.mulf %70, %70 : vector<16x1xf32>
    %78 = arith.subf %76, %77 : vector<16x1xf32>
    %c0_48 = arith.constant 0 : index
    %c0_49 = arith.constant 0 : index
    %79 = vector.load %arg5[%c0_48, %c0_49] : memref<16x1xf32, #tpu.memory_space<vmem>>, vector<16x1xf32>
    %cst_50 = arith.constant 9.99999974E-6 : f32
    %80 = vector.broadcast %cst_50 : f32 to vector<16x1xf32>
    %81 = arith.addf %78, %80 : vector<16x1xf32>
    %82 = math.rsqrt %81 : vector<16x1xf32>
    %83 = arith.mulf %79, %82 : vector<16x1xf32>
    %c0_51 = arith.constant 0 : index
    %c0_52 = arith.constant 0 : index
    %84 = vector.load %arg6[%c0_51, %c0_52] : memref<16x1xf32, #tpu.memory_space<vmem>>, vector<16x1xf32>
    %85 = arith.mulf %70, %83 : vector<16x1xf32>
    %86 = arith.subf %84, %85 : vector<16x1xf32>
    %87 = vector.broadcast %83 : vector<16x1xf32> to vector<16x256xf32>
    %88 = arith.mulf %51, %87 : vector<16x256xf32>
    %89 = vector.broadcast %86 : vector<16x1xf32> to vector<16x256xf32>
    %90 = arith.addf %88, %89 : vector<16x256xf32>
    %cst_53 = arith.constant 0.000000e+00 : f32
    %91 = vector.broadcast %cst_53 : f32 to vector<16x256xf32>
    %92 = arith.maximumf %90, %91 : vector<16x256xf32>
    %93 = arith.truncf %92 : vector<16x256xf32> to vector<16x256xbf16>
    %c0_54 = arith.constant 0 : index
    %c0_55 = arith.constant 0 : index
    %94 = vector.load %arg8[%c0_54, %c0_55] : memref<64x256xbf16, #tpu.memory_space<vmem>>, vector<16x256xbf16>
    tpu.vector_store %arg8[%c0_54, %c0_55], %93 {strides = array<i32>} : memref<64x256xbf16, #tpu.memory_space<vmem>>, vector<16x256xbf16>,
    %95 = vector.broadcast %83 : vector<16x1xf32> to vector<16x256xf32>
    %96 = arith.mulf %52, %95 : vector<16x256xf32>
    %97 = vector.broadcast %86 : vector<16x1xf32> to vector<16x256xf32>
    %98 = arith.addf %96, %97 : vector<16x256xf32>
    %cst_56 = arith.constant 0.000000e+00 : f32
    %99 = vector.broadcast %cst_56 : f32 to vector<16x256xf32>
    %100 = arith.maximumf %98, %99 : vector<16x256xf32>
    %101 = arith.truncf %100 : vector<16x256xf32> to vector<16x256xbf16>
    %c16 = arith.constant 16 : index
    %c0_57 = arith.constant 0 : index
    %102 = vector.load %arg8[%c16, %c0_57] : memref<64x256xbf16, #tpu.memory_space<vmem>>, vector<16x256xbf16>
    tpu.vector_store %arg8[%c16, %c0_57], %101 {strides = array<i32>} : memref<64x256xbf16, #tpu.memory_space<vmem>>, vector<16x256xbf16>,
    %103 = vector.broadcast %83 : vector<16x1xf32> to vector<16x256xf32>
    %104 = arith.mulf %53, %103 : vector<16x256xf32>
    %105 = vector.broadcast %86 : vector<16x1xf32> to vector<16x256xf32>
    %106 = arith.addf %104, %105 : vector<16x256xf32>
    %cst_58 = arith.constant 0.000000e+00 : f32
    %107 = vector.broadcast %cst_58 : f32 to vector<16x256xf32>
    %108 = arith.maximumf %106, %107 : vector<16x256xf32>
    %109 = arith.truncf %108 : vector<16x256xf32> to vector<16x256xbf16>
    %c32 = arith.constant 32 : index
    %c0_59 = arith.constant 0 : index
    %110 = vector.load %arg8[%c32, %c0_59] : memref<64x256xbf16, #tpu.memory_space<vmem>>, vector<16x256xbf16>
    tpu.vector_store %arg8[%c32, %c0_59], %109 {strides = array<i32>} : memref<64x256xbf16, #tpu.memory_space<vmem>>, vector<16x256xbf16>,
    %111 = vector.broadcast %83 : vector<16x1xf32> to vector<16x256xf32>
    %112 = arith.mulf %54, %111 : vector<16x256xf32>
    %113 = vector.broadcast %86 : vector<16x1xf32> to vector<16x256xf32>
    %114 = arith.addf %112, %113 : vector<16x256xf32>
    %cst_60 = arith.constant 0.000000e+00 : f32
    %115 = vector.broadcast %cst_60 : f32 to vector<16x256xf32>
    %116 = arith.maximumf %114, %115 : vector<16x256xf32>
    %117 = arith.truncf %116 : vector<16x256xf32> to vector<16x256xbf16>
    %c48 = arith.constant 48 : index
    %c0_61 = arith.constant 0 : index
    %118 = vector.load %arg8[%c48, %c0_61] : memref<64x256xbf16, #tpu.memory_space<vmem>>, vector<16x256xbf16>
    tpu.vector_store %arg8[%c48, %c0_61], %117 {strides = array<i32>} : memref<64x256xbf16, #tpu.memory_space<vmem>>, vector<16x256xbf16>,
    return
  }
  func.func @transform_0(%arg0: i32) -> (i32, i32) {
    %c0_i32 = arith.constant 0 : i32
    %c0_i32_0 = arith.constant 0 : i32
    %c0_i32_1 = arith.constant 0 : i32
    return %c0_i32, %c0_i32_0 : i32, i32
  }
  func.func @transform_1(%arg0: i32) -> (i32, i32, i32) {
    %c0_i32 = arith.constant 0 : i32
    %c0_i32_0 = arith.constant 0 : i32
    %c0_i32_1 = arith.constant 0 : i32
    %c0_i32_2 = arith.constant 0 : i32
    return %c0_i32, %c0_i32_0, %c0_i32_1 : i32, i32, i32
  }
  func.func @transform_2(%arg0: i32) -> (i32, i32) {
    %c0_i32 = arith.constant 0 : i32
    %c0_i32_0 = arith.constant 0 : i32
    %c0_i32_1 = arith.constant 0 : i32
    return %c0_i32, %c0_i32_0 : i32, i32
  }
  func.func @transform_3(%arg0: i32) -> (i32, i32) {
    %c0_i32 = arith.constant 0 : i32
    %c0_i32_0 = arith.constant 0 : i32
    %c0_i32_1 = arith.constant 0 : i32
    return %c0_i32, %c0_i32_0 : i32, i32
  }
  func.func @transform_4(%arg0: i32) -> (i32, i32) {
    %c0_i32 = arith.constant 0 : i32
    %c0_i32_0 = arith.constant 0 : i32
    %c0_i32_1 = arith.constant 0 : i32
    return %c0_i32, %c0_i32_0 : i32, i32
  }
  func.func @transform_5(%arg0: i32) -> (i32, i32) {
    %c0_i32 = arith.constant 0 : i32
    %c0_i32_0 = arith.constant 0 : i32
    %c0_i32_1 = arith.constant 0 : i32
    return %c0_i32, %c0_i32_0 : i32, i32
  }
  func.func @transform_6(%arg0: i32) -> (i32, i32) {
    %c0_i32 = arith.constant 0 : i32
    %c0_i32_0 = arith.constant 0 : i32
    %c0_i32_1 = arith.constant 0 : i32
    return %c0_i32, %c0_i32_0 : i32, i32
  }
  func.func @transform_7(%arg0: i32) -> (i32, i32) {
    %c0_i32 = arith.constant 0 : i32
    %c0_i32_0 = arith.constant 0 : i32
    %c0_i32_1 = arith.constant 0 : i32
    return %c0_i32, %c0_i32_0 : i32, i32
  }
}

module attributes {stable_mosaic.version = 11 : i64} {
  func.func @_convt_s2_tanh_kernel(%arg0: i32, %arg1: memref<16x896xbf16, #tpu.memory_space<vmem>>, %arg2: memref<9x16x16xbf16, #tpu.memory_space<vmem>>, %arg3: memref<16x1xf32, #tpu.memory_space<vmem>>, %arg4: memref<16x768xf32, #tpu.memory_space<vmem>>) attributes {dimension_semantics = [#tpu.dimension_semantics<arbitrary>], iteration_bounds = array<i64: 1>, scalar_prefetch = 0 : i64, scratch_operands = 0 : i64, tpu.core_type = #tpu.core_type<tc>, window_params = [{pipeline_mode = #tpu.pipeline_mode<synchronous>, transform_indices = @transform_0, window_bounds = array<i64: 16, 896>}, {pipeline_mode = #tpu.pipeline_mode<synchronous>, transform_indices = @transform_1, window_bounds = array<i64: 9, 16, 16>}, {pipeline_mode = #tpu.pipeline_mode<synchronous>, transform_indices = @transform_2, window_bounds = array<i64: 16, 1>}, {pipeline_mode = #tpu.pipeline_mode<synchronous>, transform_indices = @transform_3, window_bounds = array<i64: 16, 768>}]} {
    %c0 = arith.constant 0 : index
    %c0_0 = arith.constant 0 : index
    %c0_1 = arith.constant 0 : index
    %0 = vector.load %arg2[%c0, %c0_0, %c0_1] : memref<9x16x16xbf16, #tpu.memory_space<vmem>>, vector<1x16x16xbf16>
    %1 = vector.shape_cast %0 : vector<1x16x16xbf16> to vector<16x16xbf16>
    %c0_2 = arith.constant 0 : index
    %c0_3 = arith.constant 0 : index
    %2 = vector.load %arg1[%c0_2, %c0_3] : memref<16x896xbf16, #tpu.memory_space<vmem>>, vector<16x768xbf16>
    %cst = arith.constant dense<0.000000e+00> : vector<16x768xf32>
    %3 = tpu.matmul %1, %2, %cst {dimension_numbers = #tpu.dot_dimension_numbers<[1], [0], [0], [1], [0, 0, 1, 1], [], []>} : vector<16x16xbf16>, vector<16x768xbf16>, vector<16x768xf32> -> vector<16x768xf32>
    %c1 = arith.constant 1 : index
    %c0_4 = arith.constant 0 : index
    %c0_5 = arith.constant 0 : index
    %4 = vector.load %arg2[%c1, %c0_4, %c0_5] : memref<9x16x16xbf16, #tpu.memory_space<vmem>>, vector<1x16x16xbf16>
    %5 = vector.shape_cast %4 : vector<1x16x16xbf16> to vector<16x16xbf16>
    %c0_6 = arith.constant 0 : index
    %c1_7 = arith.constant 1 : index
    %6 = vector.load %arg1[%c0_6, %c1_7] : memref<16x896xbf16, #tpu.memory_space<vmem>>, vector<16x768xbf16>
    %cst_8 = arith.constant dense<0.000000e+00> : vector<16x768xf32>
    %7 = tpu.matmul %5, %6, %cst_8 {dimension_numbers = #tpu.dot_dimension_numbers<[1], [0], [0], [1], [0, 0, 1, 1], [], []>} : vector<16x16xbf16>, vector<16x768xbf16>, vector<16x768xf32> -> vector<16x768xf32>
    %8 = arith.addf %3, %7 : vector<16x768xf32>
    %c2 = arith.constant 2 : index
    %c0_9 = arith.constant 0 : index
    %c0_10 = arith.constant 0 : index
    %9 = vector.load %arg2[%c2, %c0_9, %c0_10] : memref<9x16x16xbf16, #tpu.memory_space<vmem>>, vector<1x16x16xbf16>
    %10 = vector.shape_cast %9 : vector<1x16x16xbf16> to vector<16x16xbf16>
    %c0_11 = arith.constant 0 : index
    %c2_12 = arith.constant 2 : index
    %11 = vector.load %arg1[%c0_11, %c2_12] : memref<16x896xbf16, #tpu.memory_space<vmem>>, vector<16x768xbf16>
    %cst_13 = arith.constant dense<0.000000e+00> : vector<16x768xf32>
    %12 = tpu.matmul %10, %11, %cst_13 {dimension_numbers = #tpu.dot_dimension_numbers<[1], [0], [0], [1], [0, 0, 1, 1], [], []>} : vector<16x16xbf16>, vector<16x768xbf16>, vector<16x768xf32> -> vector<16x768xf32>
    %13 = arith.addf %8, %12 : vector<16x768xf32>
    %c3 = arith.constant 3 : index
    %c0_14 = arith.constant 0 : index
    %c0_15 = arith.constant 0 : index
    %14 = vector.load %arg2[%c3, %c0_14, %c0_15] : memref<9x16x16xbf16, #tpu.memory_space<vmem>>, vector<1x16x16xbf16>
    %15 = vector.shape_cast %14 : vector<1x16x16xbf16> to vector<16x16xbf16>
    %c0_16 = arith.constant 0 : index
    %c18 = arith.constant 18 : index
    %16 = vector.load %arg1[%c0_16, %c18] : memref<16x896xbf16, #tpu.memory_space<vmem>>, vector<16x768xbf16>
    %cst_17 = arith.constant dense<0.000000e+00> : vector<16x768xf32>
    %17 = tpu.matmul %15, %16, %cst_17 {dimension_numbers = #tpu.dot_dimension_numbers<[1], [0], [0], [1], [0, 0, 1, 1], [], []>} : vector<16x16xbf16>, vector<16x768xbf16>, vector<16x768xf32> -> vector<16x768xf32>
    %18 = arith.addf %13, %17 : vector<16x768xf32>
    %c4 = arith.constant 4 : index
    %c0_18 = arith.constant 0 : index
    %c0_19 = arith.constant 0 : index
    %19 = vector.load %arg2[%c4, %c0_18, %c0_19] : memref<9x16x16xbf16, #tpu.memory_space<vmem>>, vector<1x16x16xbf16>
    %20 = vector.shape_cast %19 : vector<1x16x16xbf16> to vector<16x16xbf16>
    %c0_20 = arith.constant 0 : index
    %c19 = arith.constant 19 : index
    %21 = vector.load %arg1[%c0_20, %c19] : memref<16x896xbf16, #tpu.memory_space<vmem>>, vector<16x768xbf16>
    %cst_21 = arith.constant dense<0.000000e+00> : vector<16x768xf32>
    %22 = tpu.matmul %20, %21, %cst_21 {dimension_numbers = #tpu.dot_dimension_numbers<[1], [0], [0], [1], [0, 0, 1, 1], [], []>} : vector<16x16xbf16>, vector<16x768xbf16>, vector<16x768xf32> -> vector<16x768xf32>
    %23 = arith.addf %18, %22 : vector<16x768xf32>
    %c5 = arith.constant 5 : index
    %c0_22 = arith.constant 0 : index
    %c0_23 = arith.constant 0 : index
    %24 = vector.load %arg2[%c5, %c0_22, %c0_23] : memref<9x16x16xbf16, #tpu.memory_space<vmem>>, vector<1x16x16xbf16>
    %25 = vector.shape_cast %24 : vector<1x16x16xbf16> to vector<16x16xbf16>
    %c0_24 = arith.constant 0 : index
    %c20 = arith.constant 20 : index
    %26 = vector.load %arg1[%c0_24, %c20] : memref<16x896xbf16, #tpu.memory_space<vmem>>, vector<16x768xbf16>
    %cst_25 = arith.constant dense<0.000000e+00> : vector<16x768xf32>
    %27 = tpu.matmul %25, %26, %cst_25 {dimension_numbers = #tpu.dot_dimension_numbers<[1], [0], [0], [1], [0, 0, 1, 1], [], []>} : vector<16x16xbf16>, vector<16x768xbf16>, vector<16x768xf32> -> vector<16x768xf32>
    %28 = arith.addf %23, %27 : vector<16x768xf32>
    %c6 = arith.constant 6 : index
    %c0_26 = arith.constant 0 : index
    %c0_27 = arith.constant 0 : index
    %29 = vector.load %arg2[%c6, %c0_26, %c0_27] : memref<9x16x16xbf16, #tpu.memory_space<vmem>>, vector<1x16x16xbf16>
    %30 = vector.shape_cast %29 : vector<1x16x16xbf16> to vector<16x16xbf16>
    %c0_28 = arith.constant 0 : index
    %c36 = arith.constant 36 : index
    %31 = vector.load %arg1[%c0_28, %c36] : memref<16x896xbf16, #tpu.memory_space<vmem>>, vector<16x768xbf16>
    %cst_29 = arith.constant dense<0.000000e+00> : vector<16x768xf32>
    %32 = tpu.matmul %30, %31, %cst_29 {dimension_numbers = #tpu.dot_dimension_numbers<[1], [0], [0], [1], [0, 0, 1, 1], [], []>} : vector<16x16xbf16>, vector<16x768xbf16>, vector<16x768xf32> -> vector<16x768xf32>
    %33 = arith.addf %28, %32 : vector<16x768xf32>
    %c7 = arith.constant 7 : index
    %c0_30 = arith.constant 0 : index
    %c0_31 = arith.constant 0 : index
    %34 = vector.load %arg2[%c7, %c0_30, %c0_31] : memref<9x16x16xbf16, #tpu.memory_space<vmem>>, vector<1x16x16xbf16>
    %35 = vector.shape_cast %34 : vector<1x16x16xbf16> to vector<16x16xbf16>
    %c0_32 = arith.constant 0 : index
    %c37 = arith.constant 37 : index
    %36 = vector.load %arg1[%c0_32, %c37] : memref<16x896xbf16, #tpu.memory_space<vmem>>, vector<16x768xbf16>
    %cst_33 = arith.constant dense<0.000000e+00> : vector<16x768xf32>
    %37 = tpu.matmul %35, %36, %cst_33 {dimension_numbers = #tpu.dot_dimension_numbers<[1], [0], [0], [1], [0, 0, 1, 1], [], []>} : vector<16x16xbf16>, vector<16x768xbf16>, vector<16x768xf32> -> vector<16x768xf32>
    %38 = arith.addf %33, %37 : vector<16x768xf32>
    %c8 = arith.constant 8 : index
    %c0_34 = arith.constant 0 : index
    %c0_35 = arith.constant 0 : index
    %39 = vector.load %arg2[%c8, %c0_34, %c0_35] : memref<9x16x16xbf16, #tpu.memory_space<vmem>>, vector<1x16x16xbf16>
    %40 = vector.shape_cast %39 : vector<1x16x16xbf16> to vector<16x16xbf16>
    %c0_36 = arith.constant 0 : index
    %c38 = arith.constant 38 : index
    %41 = vector.load %arg1[%c0_36, %c38] : memref<16x896xbf16, #tpu.memory_space<vmem>>, vector<16x768xbf16>
    %cst_37 = arith.constant dense<0.000000e+00> : vector<16x768xf32>
    %42 = tpu.matmul %40, %41, %cst_37 {dimension_numbers = #tpu.dot_dimension_numbers<[1], [0], [0], [1], [0, 0, 1, 1], [], []>} : vector<16x16xbf16>, vector<16x768xbf16>, vector<16x768xf32> -> vector<16x768xf32>
    %43 = arith.addf %38, %42 : vector<16x768xf32>
    %c0_38 = arith.constant 0 : index
    %c0_39 = arith.constant 0 : index
    %44 = vector.load %arg3[%c0_38, %c0_39] : memref<16x1xf32, #tpu.memory_space<vmem>>, vector<16x1xf32>
    %45 = vector.broadcast %44 : vector<16x1xf32> to vector<16x768xf32>
    %46 = arith.addf %43, %45 : vector<16x768xf32>
    %47 = math.tanh %46 : vector<16x768xf32>
    %c0_40 = arith.constant 0 : index
    %c0_41 = arith.constant 0 : index
    %48 = vector.load %arg4[%c0_40, %c0_41] : memref<16x768xf32, #tpu.memory_space<vmem>>, vector<16x768xf32>
    tpu.vector_store %arg4[%c0_40, %c0_41], %47 {strides = array<i32>} : memref<16x768xf32, #tpu.memory_space<vmem>>, vector<16x768xf32>,
    return
  }
  func.func @transform_0(%arg0: i32) -> (i32, i32) {
    %c0_i32 = arith.constant 0 : i32
    %c0_i32_0 = arith.constant 0 : i32
    %c0_i32_1 = arith.constant 0 : i32
    return %c0_i32, %c0_i32_0 : i32, i32
  }
  func.func @transform_1(%arg0: i32) -> (i32, i32, i32) {
    %c0_i32 = arith.constant 0 : i32
    %c0_i32_0 = arith.constant 0 : i32
    %c0_i32_1 = arith.constant 0 : i32
    %c0_i32_2 = arith.constant 0 : i32
    return %c0_i32, %c0_i32_0, %c0_i32_1 : i32, i32, i32
  }
  func.func @transform_2(%arg0: i32) -> (i32, i32) {
    %c0_i32 = arith.constant 0 : i32
    %c0_i32_0 = arith.constant 0 : i32
    %c0_i32_1 = arith.constant 0 : i32
    return %c0_i32, %c0_i32_0 : i32, i32
  }
  func.func @transform_3(%arg0: i32) -> (i32, i32) {
    %c0_i32 = arith.constant 0 : i32
    %c0_i32_0 = arith.constant 0 : i32
    %c0_i32_1 = arith.constant 0 : i32
    return %c0_i32, %c0_i32_0 : i32, i32
  }
}

</mosaic_0001>

<llo_original>
// kernel: generator_forward.5
$region0: #{generator_forward.5}
  #allocation0 [shape = 'u32[]', space=smem, size = 0x4, offset = 0x4, fixed_abs, tag = 'smem constant byte address 0x4 - core index']
  #allocation1 [shape = 'u32[144,128]{1,0:T(1,128)}', space=vmem, size = 0x12000, scoped, tag = 'internal scratch']
  #allocation2 [shape = 'f32[1,1]{1,0:T(1,128)S(6)}', space=smem, size = 0x200, scoped, tag = 'scoped memory for generator_forward.5']
  %s0 = inlined_call_operand.vmem [shape: bf16[64,256], index: 0, kind: input, shape index: {}]
  %s1 = inlined_call_operand.vmem [shape: bf16[9,128,64], index: 1, kind: input, shape index: {}]
  %s2 = inlined_call_operand.vmem [shape: f32[128,1], index: 2, kind: input, shape index: {}]
  %s3 = inlined_call_operand.<no memory space> [shape: f32[1,1], index: 3, kind: input, shape index: {}]
  %s4 = inlined_call_operand.vmem [shape: f32[32,1], index: 4, kind: input, shape index: {}]
  %s5 = inlined_call_operand.vmem [shape: f32[32,1], index: 5, kind: input, shape index: {}]
  %s6 = inlined_call_operand.vmem [shape: f32[1,128], index: 6, kind: input, shape index: {}]
  %s7 = inlined_call_operand.vmem [shape: bf16[128,128], index: 7, kind: output, shape index: {}]
  %s8 = sld [smem:[#allocation0]]
  $region38: #{generator_forward.5} parent=0
    _
  %s10 = ssub.s32 1, %s8
  %s11 = scalar_select 0, %s10, %s8
  %12 = sst [smem:[#allocation2]] %s3
  // Predicated region
  $region2: #{generator_forward.5} parent=0 // pred_check
    _
  $region3: #{generator_forward.5} parent=0 // pred_check_branch
    %14 = sbr.rel (0) target = $region5
  $region4: #{generator_forward.5} parent=0 // pred_region
    _
  $region5: #{generator_forward.5} parent=0 // pred_fallthru
    _
  // Predicated region
  $region6: #{generator_forward.5} parent=0 // pred_check
    _
  $region7: #{generator_forward.5} parent=0 // pred_check_branch
    %16 = sbr.rel (0) target = $region9
  $region8: #{generator_forward.5} parent=0 // pred_region
    _
  $region9: #{generator_forward.5} parent=0 // pred_fallthru
    _
  // Predicated region
  $region10: #{generator_forward.5} parent=0 // pred_check
    _
  $region11: #{generator_forward.5} parent=0 // pred_check_branch
    %18 = sbr.rel (0) target = $region13
  $region12: #{generator_forward.5} parent=0 // pred_region
    _
  $region13: #{generator_forward.5} parent=0 // pred_fallthru
    _
  // Predicated region
  $region14: #{generator_forward.5} parent=0 // pred_check
    _
  $region15: #{generator_forward.5} parent=0 // pred_check_branch
    %20 = sbr.rel (0) target = $region17
  $region16: #{generator_forward.5} parent=0 // pred_region
    _
  $region17: #{generator_forward.5} parent=0 // pred_fallthru
    _
  // Predicated region
  $region18: #{generator_forward.5} parent=0 // pred_check
    _
  $region19: #{generator_forward.5} parent=0 // pred_check_branch
    %22 = sbr.rel (0) target = $region21
  $region20: #{generator_forward.5} parent=0 // pred_region
    _
  $region21: #{generator_forward.5} parent=0 // pred_fallthru
    _
  // Predicated region
  $region22: #{generator_forward.5} parent=0 // pred_check
    _
  $region23: #{generator_forward.5} parent=0 // pred_check_branch
    %24 = sbr.rel (0) target = $region25
  $region24: #{generator_forward.5} parent=0 // pred_region
    _
  $region25: #{generator_forward.5} parent=0 // pred_fallthru
    _
  // Predicated region
  $region26: #{generator_forward.5} parent=0 // pred_check
    _
  $region27: #{generator_forward.5} parent=0 // pred_check_branch
    %26 = sbr.rel (0) target = $region29
  $region28: #{generator_forward.5} parent=0 // pred_region
    _
  $region29: #{generator_forward.5} parent=0 // pred_fallthru
    _
  %v28 = vld [vmem:[%s1] sm:$0xf]
  %v29 = vld [vmem:[%s1 + $0x4] sm:$0xf]
  %v30 = vld [vmem:[%s1 + $0x8] sm:$0xf]
  %v31 = vld [vmem:[%s1 + $0xc] sm:$0xf]
  %v32 = vld [vmem:[%s1 + $0x10] sm:$0xf]
  %v33 = vld [vmem:[%s1 + $0x14] sm:$0xf]
  %v34 = vld [vmem:[%s1 + $0x18] sm:$0xf]
  %v35 = vld [vmem:[%s1 + $0x1c] sm:$0xf]
  %v36 = vld [vmem:[%s1 + $0x20] sm:$0xf]
  %v37 = vld [vmem:[%s1 + $0x24] sm:$0xf]
  %v38 = vld [vmem:[%s1 + $0x28] sm:$0xf]
  %v39 = vld [vmem:[%s1 + $0x2c] sm:$0xf]
  %v40 = vld [vmem:[%s1 + $0x30] sm:$0xf]
  %v41 = vld [vmem:[%s1 + $0x34] sm:$0xf]
  %v42 = vld [vmem:[%s1 + $0x38] sm:$0xf]
  %v43 = vld [vmem:[%s1 + $0x3c] sm:$0xf]
  %v44 = vld [vmem:[%s0] sm:$0xf]
  %v45 = vld [vmem:[%s0 + $0x8] sm:$0xf]
  %v46 = vld [vmem:[%s0 + $0x10] sm:$0xf]
  %v47 = vld [vmem:[%s0 + $0x18] sm:$0xf]
  %v48 = vld [vmem:[%s0 + $0x20] sm:$0xf]
  %v49 = vld [vmem:[%s0 + $0x28] sm:$0xf]
  %v50 = vld [vmem:[%s0 + $0x30] sm:$0xf]
  %v51 = vld [vmem:[%s0 + $0x38] sm:$0xf]
  %s52 = scalar_lea.vmem %s1, 64
  %v53 = vld [vmem:[%s52] sm:$0xf]
  %v54 = vld [vmem:[%s52 + $0x4] sm:$0xf]
  %v55 = vld [vmem:[%s52 + $0x8] sm:$0xf]
  %v56 = vld [vmem:[%s52 + $0xc] sm:$0xf]
  %v57 = vld [vmem:[%s52 + $0x10] sm:$0xf]
  %v58 = vld [vmem:[%s52 + $0x14] sm:$0xf]
  %v59 = vld [vmem:[%s52 + $0x18] sm:$0xf]
  %v60 = vld [vmem:[%s52 + $0x1c] sm:$0xf]
  %v61 = vld [vmem:[%s52 + $0x20] sm:$0xf]
  %v62 = vld [vmem:[%s52 + $0x24] sm:$0xf]
  %v63 = vld [vmem:[%s52 + $0x28] sm:$0xf]
  %v64 = vld [vmem:[%s52 + $0x2c] sm:$0xf]
  %v65 = vld [vmem:[%s52 + $0x30] sm:$0xf]
  %v66 = vld [vmem:[%s52 + $0x34] sm:$0xf]
  %v67 = vld [vmem:[%s52 + $0x38] sm:$0xf]
  %v68 = vld [vmem:[%s52 + $0x3c] sm:$0xf]
  %v69 = vld [vmem:[%s0] sm:$0xff]
  %v70 = vld [vmem:[%s0 + $0x8] sm:$0xff]
  %v71 = vld [vmem:[%s0 + $0x10] sm:$0xff]
  %v72 = vld [vmem:[%s0 + $0x18] sm:$0xff]
  %v73 = vld [vmem:[%s0 + $0x20] sm:$0xff]
  %v74 = vld [vmem:[%s0 + $0x28] sm:$0xff]
  %v75 = vld [vmem:[%s0 + $0x30] sm:$0xff]
  %v76 = vld [vmem:[%s0 + $0x38] sm:$0xff]
  %v93 = vunpack.c.l.b16 %v53
  %v94 = vunpack.c.l.b16 %v54
  %v95 = vunpack.c.l.b16 %v55
  %v96 = vunpack.c.l.b16 %v56
  %v97 = vunpack.c.l.b16 %v57
  %v98 = vunpack.c.l.b16 %v58
  %v99 = vunpack.c.l.b16 %v59
  %v100 = vunpack.c.l.b16 %v60
  %v101 = vunpack.c.l.b16 %v61
  %v102 = vunpack.c.l.b16 %v62
  %v103 = vunpack.c.l.b16 %v63
  %v104 = vunpack.c.l.b16 %v64
  %v105 = vunpack.c.l.b16 %v65
  %v106 = vunpack.c.l.b16 %v66
  %v107 = vunpack.c.l.b16 %v67
  %v108 = vunpack.c.l.b16 %v68
  %v109 = vpack.c.b16 %v94, %v93
  %v110 = vpack.c.b16 %v96, %v95
  %v111 = vpack.c.b16 %v98, %v97
  %v112 = vpack.c.b16 %v100, %v99
  %v113 = vpack.c.b16 %v102, %v101
  %v114 = vpack.c.b16 %v104, %v103
  %v115 = vpack.c.b16 %v106, %v105
  %v116 = vpack.c.b16 %v108, %v107
  %v125 = vunpack.c.l.b16 %v69
  %v126 = vunpack.c.h.b16 %v69
  %v127 = vunpack.c.l.b16 %v70
  %v128 = vunpack.c.h.b16 %v70
  %v129 = vunpack.c.l.b16 %v71
  %v130 = vunpack.c.h.b16 %v71
  %v131 = vunpack.c.l.b16 %v72
  %v132 = vunpack.c.h.b16 %v72
  %v133 = vunpack.c.l.b16 %v73
  %v134 = vunpack.c.h.b16 %v73
  %v135 = vunpack.c.l.b16 %v74
  %v136 = vunpack.c.h.b16 %v74
  %v137 = vunpack.c.l.b16 %v75
  %v138 = vunpack.c.h.b16 %v75
  %v139 = vunpack.c.l.b16 %v76
  %v140 = vunpack.c.h.b16 %v76
  %v141 = vpack.c.b16 %v127, %v125
  %v142 = vpack.c.b16 %v128, %v126
  %v143 = vpack.c.b16 %v131, %v129
  %v144 = vpack.c.b16 %v132, %v130
  %v145 = vpack.c.b16 %v135, %v133
  %v146 = vpack.c.b16 %v136, %v134
  %v147 = vpack.c.b16 %v139, %v137
  %v148 = vpack.c.b16 %v140, %v138
  %149 = vrot.lane.b32.xlu0 %v141, 127
  %v150 = vpop.permute.xlu0 %149
  %151 = vrot.lane.b32.xlu0 %v142, 127
  %v152 = vpop.permute.xlu0 %151
  %153 = vrot.lane.b32.xlu0 %v143, 127
  %v154 = vpop.permute.xlu0 %153
  %155 = vrot.lane.b32.xlu0 %v144, 127
  %v156 = vpop.permute.xlu0 %155
  %157 = vrot.lane.b32.xlu0 %v145, 127
  %v158 = vpop.permute.xlu0 %157
  %159 = vrot.lane.b32.xlu0 %v146, 127
  %v160 = vpop.permute.xlu0 %159
  %161 = vrot.lane.b32.xlu0 %v147, 127
  %v162 = vpop.permute.xlu0 %161
  %163 = vrot.lane.b32.xlu0 %v148, 127
  %v164 = vpop.permute.xlu0 %163
  %vm165 = vcmask 1039360
  %v166 = vsel %vm165, %v150, %v152
  %v167 = vsel %vm165, %v154, %v156
  %v168 = vsel %vm165, %v158, %v160
  %v169 = vsel %vm165, %v162, %v164
  %vm174 = vcmask 523264
  %v176 = vsel %vm174, %v109, 0
  %v179 = vsel %vm174, %v110, 0
  %v182 = vsel %vm174, %v111, 0
  %v185 = vsel %vm174, %v112, 0
  %v188 = vsel %vm174, %v113, 0
  %v191 = vsel %vm174, %v114, 0
  %v194 = vsel %vm174, %v115, 0
  %v197 = vsel %vm174, %v116, 0
  %199 = vmatprep.subr.bf16.mxu0 0
  %200 = vmatpush1.bf16.msra.mxu0 %v166
  %201 = vmatprep.subr.bf16.mxu0 0
  %202 = vmatpush1.bf16.msra.mxu0 %v167
  %203 = vmatprep.subr.bf16.mxu0 0
  %204 = vmatpush1.bf16.msra.mxu0 %v168
  %205 = vmatprep.subr.bf16.mxu0 0
  %206 = vmatpush1.bf16.msra.mxu0 %v169
  %207 = vmatprep.subr.bf16.mxu0 0
  %208 = vmatpush1.bf16.msra.mxu0 0
  %209 = vmatprep.subr.bf16.mxu0 0
  %210 = vmatpush1.bf16.msra.mxu0 0
  %211 = vmatprep.subr.bf16.mxu0 0
  %212 = vmatpush1.bf16.msra.mxu0 0
  %213 = vmatprep.subr.bf16.mxu0 0
  %214 = vmatpush1.bf16.msra.mxu0 0
  %215 = vmatprep.subr.bf16.mxu0 0
  %216 = vmatpush1.bf16.msra.mxu0 0
  %217 = vmatprep.subr.bf16.mxu0 0
  %218 = vmatpush1.bf16.msra.mxu0 0
  %219 = vmatprep.subr.bf16.mxu0 0
  %220 = vmatpush1.bf16.msra.mxu0 0
  %221 = vmatprep.subr.bf16.mxu0 0
  %222 = vmatpush1.bf16.msra.mxu0 0
  %223 = vmatprep.subr.bf16.mxu0 0
  %224 = vmatpush1.bf16.msra.mxu0 0
  %225 = vmatprep.subr.bf16.mxu0 0
  %226 = vmatpush1.bf16.msra.mxu0 0
  %227 = vmatprep.subr.bf16.mxu0 0
  %228 = vmatpush1.bf16.msra.mxu0 0
  %229 = vmatprep.subr.bf16.mxu0 0
  %230 = vmatpush1.bf16.msra.mxu0 0
  %231 = vmatprep.mubr.bf16.mxu0 0
  %232 = vmatmul.mubr.bf16.gmra.mrb[0].mxu0 %v176
  %v233 = vpop.f32.mrb[0].mxu0
  %v234 = vadd.f32 0.0, %v233
  %v235 = vpop.f32.mrb[0].mxu0
  %v236 = vpop.f32.mrb[0].mxu0
  %v237 = vadd.f32 0.0, %v236
  %v238 = vpop.f32.mrb[0].mxu0
  %239 = vmatprep.mubr.bf16.mxu0 0
  %240 = vmatmul.mubr.bf16.gmra.mrb[0].mxu0 %v179
  %v241 = vpop.f32.mrb[0].mxu0
  %v242 = vadd.f32 0.0, %v241
  %v243 = vpop.f32.mrb[0].mxu0
  %v244 = vpop.f32.mrb[0].mxu0
  %v245 = vadd.f32 0.0, %v244
  %v246 = vpop.f32.mrb[0].mxu0
  %247 = vmatprep.mubr.bf16.mxu0 0
  %248 = vmatmul.mubr.bf16.gmra.mrb[0].mxu0 %v182
  %v249 = vpop.f32.mrb[0].mxu0
  %v250 = vadd.f32 0.0, %v249
  %v251 = vpop.f32.mrb[0].mxu0
  %v252 = vpop.f32.mrb[0].mxu0
  %v253 = vadd.f32 0.0, %v252
  %v254 = vpop.f32.mrb[0].mxu0
  %255 = vmatprep.mubr.bf16.mxu0 0
  %256 = vmatmul.mubr.bf16.gmra.mrb[0].mxu0 %v185
  %v257 = vpop.f32.mrb[0].mxu0
  %v258 = vadd.f32 0.0, %v257
  %v259 = vpop.f32.mrb[0].mxu0
  %v260 = vpop.f32.mrb[0].mxu0
  %v261 = vadd.f32 0.0, %v260
  %v262 = vpop.f32.mrb[0].mxu0
  %263 = vmatprep.mubr.bf16.mxu0 0
  %264 = vmatmul.mubr.bf16.gmra.mrb[0].mxu0 %v188
  %v265 = vpop.f32.mrb[0].mxu0
  %v266 = vadd.f32 0.0, %v265
  %v267 = vpop.f32.mrb[0].mxu0
  %v268 = vpop.f32.mrb[0].mxu0
  %v269 = vadd.f32 0.0, %v268
  %v270 = vpop.f32.mrb[0].mxu0
  %271 = vmatprep.mubr.bf16.mxu0 0
  %272 = vmatmul.mubr.bf16.gmra.mrb[0].mxu0 %v191
  %v273 = vpop.f32.mrb[0].mxu0
  %v274 = vadd.f32 0.0, %v273
  %v275 = vpop.f32.mrb[0].mxu0
  %v276 = vpop.f32.mrb[0].mxu0
  %v277 = vadd.f32 0.0, %v276
  %v278 = vpop.f32.mrb[0].mxu0
  %279 = vmatprep.mubr.bf16.mxu0 0
  %280 = vmatmul.mubr.bf16.gmra.mrb[0].mxu0 %v194
  %v281 = vpop.f32.mrb[0].mxu0
  %v282 = vadd.f32 0.0, %v281
  %v283 = vpop.f32.mrb[0].mxu0
  %v284 = vpop.f32.mrb[0].mxu0
  %v285 = vadd.f32 0.0, %v284
  %v286 = vpop.f32.mrb[0].mxu0
  %287 = vmatprep.mubr.bf16.mxu0 0
  %288 = vmatmul.mubr.bf16.gmra.mrb[0].mxu0 %v197
  %v289 = vpop.f32.mrb[0].mxu0
  %v290 = vadd.f32 0.0, %v289
  %v291 = vpop.f32.mrb[0].mxu0
  %v292 = vpop.f32.mrb[0].mxu0
  %v293 = vadd.f32 0.0, %v292
  %v294 = vpop.f32.mrb[0].mxu0
  %295 = vdwg.mxu0
  %v312 = vunpack.c.l.b16 %v28
  %v313 = vunpack.c.l.b16 %v29
  %v314 = vunpack.c.l.b16 %v30
  %v315 = vunpack.c.l.b16 %v31
  %v316 = vunpack.c.l.b16 %v32
  %v317 = vunpack.c.l.b16 %v33
  %v318 = vunpack.c.l.b16 %v34
  %v319 = vunpack.c.l.b16 %v35
  %v320 = vunpack.c.l.b16 %v36
  %v321 = vunpack.c.l.b16 %v37
  %v322 = vunpack.c.l.b16 %v38
  %v323 = vunpack.c.l.b16 %v39
  %v324 = vunpack.c.l.b16 %v40
  %v325 = vunpack.c.l.b16 %v41
  %v326 = vunpack.c.l.b16 %v42
  %v327 = vunpack.c.l.b16 %v43
  %v328 = vpack.c.b16 %v313, %v312
  %v329 = vpack.c.b16 %v315, %v314
  %v330 = vpack.c.b16 %v317, %v316
  %v331 = vpack.c.b16 %v319, %v318
  %v332 = vpack.c.b16 %v321, %v320
  %v333 = vpack.c.b16 %v323, %v322
  %v334 = vpack.c.b16 %v325, %v324
  %v335 = vpack.c.b16 %v327, %v326
  %v344 = vunpack.c.l.b16 %v44
  %v345 = vunpack.c.l.b16 %v45
  %v346 = vunpack.c.l.b16 %v46
  %v347 = vunpack.c.l.b16 %v47
  %v348 = vunpack.c.l.b16 %v48
  %v349 = vunpack.c.l.b16 %v49
  %v350 = vunpack.c.l.b16 %v50
  %v351 = vunpack.c.l.b16 %v51
  %v352 = vpack.c.b16 %v345, %v344
  %v353 = vpack.c.b16 %v347, %v346
  %v354 = vpack.c.b16 %v349, %v348
  %v355 = vpack.c.b16 %v351, %v350
  %v361 = vsel %vm174, %v328, 0
  %v364 = vsel %vm174, %v329, 0
  %v367 = vsel %vm174, %v330, 0
  %v370 = vsel %vm174, %v331, 0
  %v373 = vsel %vm174, %v332, 0
  %v376 = vsel %vm174, %v333, 0
  %v379 = vsel %vm174, %v334, 0
  %v382 = vsel %vm174, %v335, 0
  %384 = vmatprep.subr.bf16.mxu0 0
  %385 = vmatpush1.bf16.msra.mxu0 %v352
  %386 = vmatprep.subr.bf16.mxu0 0
  %387 = vmatpush1.bf16.msra.mxu0 %v353
  %388 = vmatprep.subr.bf16.mxu0 0
  %389 = vmatpush1.bf16.msra.mxu0 %v354
  %390 = vmatprep.subr.bf16.mxu0 0
  %391 = vmatpush1.bf16.msra.mxu0 %v355
  %392 = vmatprep.subr.bf16.mxu0 0
  %393 = vmatpush1.bf16.msra.mxu0 0
  %394 = vmatprep.subr.bf16.mxu0 0
  %395 = vmatpush1.bf16.msra.mxu0 0
  %396 = vmatprep.subr.bf16.mxu0 0
  %397 = vmatpush1.bf16.msra.mxu0 0
  %398 = vmatprep.subr.bf16.mxu0 0
  %399 = vmatpush1.bf16.msra.mxu0 0
  %400 = vmatprep.subr.bf16.mxu0 0
  %401 = vmatpush1.bf16.msra.mxu0 0
  %402 = vmatprep.subr.bf16.mxu0 0
  %403 = vmatpush1.bf16.msra.mxu0 0
  %404 = vmatprep.subr.bf16.mxu0 0
  %405 = vmatpush1.bf16.msra.mxu0 0
  %406 = vmatprep.subr.bf16.mxu0 0
  %407 = vmatpush1.bf16.msra.mxu0 0
  %408 = vmatprep.subr.bf16.mxu0 0
  %409 = vmatpush1.bf16.msra.mxu0 0
  %410 = vmatprep.subr.bf16.mxu0 0
  %411 = vmatpush1.bf16.msra.mxu0 0
  %412 = vmatprep.subr.bf16.mxu0 0
  %413 = vmatpush1.bf16.msra.mxu0 0
  %414 = vmatprep.subr.bf16.mxu0 0
  %415 = vmatpush1.bf16.msra.mxu0 0
  %416 = vmatprep.mubr.bf16.mxu0 0
  %417 = vmatmul.mubr.bf16.gmra.mrb[0].mxu0 %v361
  %v418 = vpop.f32.mrb[0].mxu0
  %v419 = vadd.f32 %v234, %v418
  %v420 = vpop.f32.mrb[0].mxu0
  %v421 = vpop.f32.mrb[0].mxu0
  %v422 = vadd.f32 %v237, %v421
  %v423 = vpop.f32.mrb[0].mxu0
  %424 = vmatprep.mubr.bf16.mxu0 0
  %425 = vmatmul.mubr.bf16.gmra.mrb[0].mxu0 %v364
  %v426 = vpop.f32.mrb[0].mxu0
  %v427 = vadd.f32 %v242, %v426
  %v428 = vpop.f32.mrb[0].mxu0
  %v429 = vpop.f32.mrb[0].mxu0
  %v430 = vadd.f32 %v245, %v429
  %v431 = vpop.f32.mrb[0].mxu0
  %432 = vmatprep.mubr.bf16.mxu0 0
  %433 = vmatmul.mubr.bf16.gmra.mrb[0].mxu0 %v367
  %v434 = vpop.f32.mrb[0].mxu0
  %v435 = vadd.f32 %v250, %v434
  %v436 = vpop.f32.mrb[0].mxu0
  %v437 = vpop.f32.mrb[0].mxu0
  %v438 = vadd.f32 %v253, %v437
  %v439 = vpop.f32.mrb[0].mxu0
  %440 = vmatprep.mubr.bf16.mxu0 0
  %441 = vmatmul.mubr.bf16.gmra.mrb[0].mxu0 %v370
  %v442 = vpop.f32.mrb[0].mxu0
  %v443 = vadd.f32 %v258, %v442
  %v444 = vpop.f32.mrb[0].mxu0
  %v445 = vpop.f32.mrb[0].mxu0
  %v446 = vadd.f32 %v261, %v445
  %v447 = vpop.f32.mrb[0].mxu0
  %448 = vmatprep.mubr.bf16.mxu0 0
  %449 = vmatmul.mubr.bf16.gmra.mrb[0].mxu0 %v373
  %v450 = vpop.f32.mrb[0].mxu0
  %v451 = vadd.f32 %v266, %v450
  %v452 = vpop.f32.mrb[0].mxu0
  %v453 = vpop.f32.mrb[0].mxu0
  %v454 = vadd.f32 %v269, %v453
  %v455 = vpop.f32.mrb[0].mxu0
  %456 = vmatprep.mubr.bf16.mxu0 0
  %457 = vmatmul.mubr.bf16.gmra.mrb[0].mxu0 %v376
  %v458 = vpop.f32.mrb[0].mxu0
  %v459 = vadd.f32 %v274, %v458
  %v460 = vpop.f32.mrb[0].mxu0
  %v461 = vpop.f32.mrb[0].mxu0
  %v462 = vadd.f32 %v277, %v461
  %v463 = vpop.f32.mrb[0].mxu0
  %464 = vmatprep.mubr.bf16.mxu0 0
  %465 = vmatmul.mubr.bf16.gmra.mrb[0].mxu0 %v379
  %v466 = vpop.f32.mrb[0].mxu0
  %v467 = vadd.f32 %v282, %v466
  %v468 = vpop.f32.mrb[0].mxu0
  %v469 = vpop.f32.mrb[0].mxu0
  %v470 = vadd.f32 %v285, %v469
  %v471 = vpop.f32.mrb[0].mxu0
  %472 = vmatprep.mubr.bf16.mxu0 0
  %473 = vmatmul.mubr.bf16.gmra.mrb[0].mxu0 %v382
  %v474 = vpop.f32.mrb[0].mxu0
  %v475 = vadd.f32 %v290, %v474
  %v476 = vpop.f32.mrb[0].mxu0
  %v477 = vpop.f32.mrb[0].mxu0
  %v478 = vadd.f32 %v293, %v477
  %v479 = vpop.f32.mrb[0].mxu0
  %480 = vdwg.mxu0
  %s481 = scalar_lea.vmem %s1, 128
  %v482 = vld [vmem:[%s481] sm:$0xf]
  %v483 = vld [vmem:[%s481 + $0x4] sm:$0xf]
  %v484 = vld [vmem:[%s481 + $0x8] sm:$0xf]
  %v485 = vld [vmem:[%s481 + $0xc] sm:$0xf]
  %v486 = vld [vmem:[%s481 + $0x10] sm:$0xf]
  %v487 = vld [vmem:[%s481 + $0x14] sm:$0xf]
  %v488 = vld [vmem:[%s481 + $0x18] sm:$0xf]
  %v489 = vld [vmem:[%s481 + $0x1c] sm:$0xf]
  %v490 = vld [vmem:[%s481 + $0x20] sm:$0xf]
  %v491 = vld [vmem:[%s481 + $0x24] sm:$0xf]
  %v492 = vld [vmem:[%s481 + $0x28] sm:$0xf]
  %v493 = vld [vmem:[%s481 + $0x2c] sm:$0xf]
  %v494 = vld [vmem:[%s481 + $0x30] sm:$0xf]
  %v495 = vld [vmem:[%s481 + $0x34] sm:$0xf]
  %v496 = vld [vmem:[%s481 + $0x38] sm:$0xf]
  %v497 = vld [vmem:[%s481 + $0x3c] sm:$0xf]
  %v514 = vunpack.c.l.b16 %v482
  %v515 = vunpack.c.l.b16 %v483
  %v516 = vunpack.c.l.b16 %v484
  %v517 = vunpack.c.l.b16 %v485
  %v518 = vunpack.c.l.b16 %v486
  %v519 = vunpack.c.l.b16 %v487
  %v520 = vunpack.c.l.b16 %v488
  %v521 = vunpack.c.l.b16 %v489
  %v522 = vunpack.c.l.b16 %v490
  %v523 = vunpack.c.l.b16 %v491
  %v524 = vunpack.c.l.b16 %v492
  %v525 = vunpack.c.l.b16 %v493
  %v526 = vunpack.c.l.b16 %v494
  %v527 = vunpack.c.l.b16 %v495
  %v528 = vunpack.c.l.b16 %v496
  %v529 = vunpack.c.l.b16 %v497
  %v530 = vpack.c.b16 %v515, %v514
  %v531 = vpack.c.b16 %v517, %v516
  %v532 = vpack.c.b16 %v519, %v518
  %v533 = vpack.c.b16 %v521, %v520
  %v534 = vpack.c.b16 %v523, %v522
  %v535 = vpack.c.b16 %v525, %v524
  %v536 = vpack.c.b16 %v527, %v526
  %v537 = vpack.c.b16 %v529, %v528
  %538 = vrot.lane.b32.xlu0 %v141, 126
  %v539 = vpop.permute.xlu0 %538
  %540 = vrot.lane.b32.xlu0 %v142, 126
  %v541 = vpop.permute.xlu0 %540
  %542 = vrot.lane.b32.xlu0 %v143, 126
  %v543 = vpop.permute.xlu0 %542
  %544 = vrot.lane.b32.xlu0 %v144, 126
  %v545 = vpop.permute.xlu0 %544
  %546 = vrot.lane.b32.xlu0 %v145, 126
  %v547 = vpop.permute.xlu0 %546
  %548 = vrot.lane.b32.xlu0 %v146, 126
  %v549 = vpop.permute.xlu0 %548
  %550 = vrot.lane.b32.xlu0 %v147, 126
  %v551 = vpop.permute.xlu0 %550
  %552 = vrot.lane.b32.xlu0 %v148, 126
  %v553 = vpop.permute.xlu0 %552
  %vm554 = vcmask 1031168
  %v555 = vsel %vm554, %v539, %v541
  %v556 = vsel %vm554, %v543, %v545
  %v557 = vsel %vm554, %v547, %v549
  %v558 = vsel %vm554, %v551, %v553
  %v564 = vsel %vm174, %v530, 0
  %v567 = vsel %vm174, %v531, 0
  %v570 = vsel %vm174, %v532, 0
  %v573 = vsel %vm174, %v533, 0
  %v576 = vsel %vm174, %v534, 0
  %v579 = vsel %vm174, %v535, 0
  %v582 = vsel %vm174, %v536, 0
  %v585 = vsel %vm174, %v537, 0
  %587 = vmatprep.subr.bf16.mxu0 0
  %588 = vmatpush1.bf16.msra.mxu0 %v555
  %589 = vmatprep.subr.bf16.mxu0 0
  %590 = vmatpush1.bf16.msra.mxu0 %v556
  %591 = vmatprep.subr.bf16.mxu0 0
  %592 = vmatpush1.bf16.msra.mxu0 %v557
  %593 = vmatprep.subr.bf16.mxu0 0
  %594 = vmatpush1.bf16.msra.mxu0 %v558
  %595 = vmatprep.subr.bf16.mxu0 0
  %596 = vmatpush1.bf16.msra.mxu0 0
  %597 = vmatprep.subr.bf16.mxu0 0
  %598 = vmatpush1.bf16.msra.mxu0 0
  %599 = vmatprep.subr.bf16.mxu0 0
  %600 = vmatpush1.bf16.msra.mxu0 0
  %601 = vmatprep.subr.bf16.mxu0 0
  %602 = vmatpush1.bf16.msra.mxu0 0
  %603 = vmatprep.subr.bf16.mxu0 0
  %604 = vmatpush1.bf16.msra.mxu0 0
  %605 = vmatprep.subr.bf16.mxu0 0
  %606 = vmatpush1.bf16.msra.mxu0 0
  %607 = vmatprep.subr.bf16.mxu0 0
  %608 = vmatpush1.bf16.msra.mxu0 0
  %609 = vmatprep.subr.bf16.mxu0 0
  %610 = vmatpush1.bf16.msra.mxu0 0
  %611 = vmatprep.subr.bf16.mxu0 0
  %612 = vmatpush1.bf16.msra.mxu0 0
  %613 = vmatprep.subr.bf16.mxu0 0
  %614 = vmatpush1.bf16.msra.mxu0 0
  %615 = vmatprep.subr.bf16.mxu0 0
  %616 = vmatpush1.bf16.msra.mxu0 0
  %617 = vmatprep.subr.bf16.mxu0 0
  %618 = vmatpush1.bf16.msra.mxu0 0
  %619 = vmatprep.mubr.bf16.mxu0 0
  %620 = vmatmul.mubr.bf16.gmra.mrb[0].mxu0 %v564
  %v621 = vpop.f32.mrb[0].mxu0
  %v622 = vadd.f32 0.0, %v621
  %v623 = vpop.f32.mrb[0].mxu0
  %v624 = vpop.f32.mrb[0].mxu0
  %v625 = vadd.f32 0.0, %v624
  %v626 = vpop.f32.mrb[0].mxu0
  %627 = vmatprep.mubr.bf16.mxu0 0
  %628 = vmatmul.mubr.bf16.gmra.mrb[0].mxu0 %v567
  %v629 = vpop.f32.mrb[0].mxu0
  %v630 = vadd.f32 0.0, %v629
  %v631 = vpop.f32.mrb[0].mxu0
  %v632 = vpop.f32.mrb[0].mxu0
  %v633 = vadd.f32 0.0, %v632
  %v634 = vpop.f32.mrb[0].mxu0
  %635 = vmatprep.mubr.bf16.mxu0 0
  %636 = vmatmul.mubr.bf16.gmra.mrb[0].mxu0 %v570
  %v637 = vpop.f32.mrb[0].mxu0
  %v638 = vadd.f32 0.0, %v637
  %v639 = vpop.f32.mrb[0].mxu0
  %v640 = vpop.f32.mrb[0].mxu0
  %v641 = vadd.f32 0.0, %v640
  %v642 = vpop.f32.mrb[0].mxu0
  %643 = vmatprep.mubr.bf16.mxu0 0
  %644 = vmatmul.mubr.bf16.gmra.mrb[0].mxu0 %v573
  %v645 = vpop.f32.mrb[0].mxu0
  %v646 = vadd.f32 0.0, %v645
  %v647 = vpop.f32.mrb[0].mxu0
  %v648 = vpop.f32.mrb[0].mxu0
  %v649 = vadd.f32 0.0, %v648
  %v650 = vpop.f32.mrb[0].mxu0
  %651 = vmatprep.mubr.bf16.mxu0 0
  %652 = vmatmul.mubr.bf16.gmra.mrb[0].mxu0 %v576
  %v653 = vpop.f32.mrb[0].mxu0
  %v654 = vadd.f32 0.0, %v653
  %v655 = vpop.f32.mrb[0].mxu0
  %v656 = vpop.f32.mrb[0].mxu0
  %v657 = vadd.f32 0.0, %v656
  %v658 = vpop.f32.mrb[0].mxu0
  %659 = vmatprep.mubr.bf16.mxu0 0
  %660 = vmatmul.mubr.bf16.gmra.mrb[0].mxu0 %v579
  %v661 = vpop.f32.mrb[0].mxu0
  %v662 = vadd.f32 0.0, %v661
  %v663 = vpop.f32.mrb[0].mxu0
  %v664 = vpop.f32.mrb[0].mxu0
  %v665 = vadd.f32 0.0, %v664
  %v666 = vpop.f32.mrb[0].mxu0
  %667 = vmatprep.mubr.bf16.mxu0 0
  %668 = vmatmul.mubr.bf16.gmra.mrb[0].mxu0 %v582
  %v669 = vpop.f32.mrb[0].mxu0
  %v670 = vadd.f32 0.0, %v669
  %v671 = vpop.f32.mrb[0].mxu0
  %v672 = vpop.f32.mrb[0].mxu0
  %v673 = vadd.f32 0.0, %v672
  %v674 = vpop.f32.mrb[0].mxu0
  %675 = vmatprep.mubr.bf16.mxu0 0
  %676 = vmatmul.mubr.bf16.gmra.mrb[0].mxu0 %v585
  %v677 = vpop.f32.mrb[0].mxu0
  %v678 = vadd.f32 0.0, %v677
  %v679 = vpop.f32.mrb[0].mxu0
  %v680 = vpop.f32.mrb[0].mxu0
  %v681 = vadd.f32 0.0, %v680
  %v682 = vpop.f32.mrb[0].mxu0
  %683 = vdwg.mxu0
  %v684 = vadd.f32 %v419, %v622
  %v685 = vadd.f32 %v422, %v625
  %v686 = vadd.f32 %v427, %v630
  %v687 = vadd.f32 %v430, %v633
  %v688 = vadd.f32 %v435, %v638
  %v689 = vadd.f32 %v438, %v641
  %v690 = vadd.f32 %v443, %v646
  %v691 = vadd.f32 %v446, %v649
  %v692 = vadd.f32 %v451, %v654
  %v693 = vadd.f32 %v454, %v657
  %v694 = vadd.f32 %v459, %v662
  %v695 = vadd.f32 %v462, %v665
  %v696 = vadd.f32 %v467, %v670
  %v697 = vadd.f32 %v470, %v673
  %v698 = vadd.f32 %v475, %v678
  %v699 = vadd.f32 %v478, %v681
  %s700 = scalar_lea.vmem %s1, 192
  %v701 = vld [vmem:[%s700] sm:$0xf]
  %v702 = vld [vmem:[%s700 + $0x4] sm:$0xf]
  %v703 = vld [vmem:[%s700 + $0x8] sm:$0xf]
  %v704 = vld [vmem:[%s700 + $0xc] sm:$0xf]
  %v705 = vld [vmem:[%s700 + $0x10] sm:$0xf]
  %v706 = vld [vmem:[%s700 + $0x14] sm:$0xf]
  %v707 = vld [vmem:[%s700 + $0x18] sm:$0xf]
  %v708 = vld [vmem:[%s700 + $0x1c] sm:$0xf]
  %v709 = vld [vmem:[%s700 + $0x20] sm:$0xf]
  %v710 = vld [vmem:[%s700 + $0x24] sm:$0xf]
  %v711 = vld [vmem:[%s700 + $0x28] sm:$0xf]
  %v712 = vld [vmem:[%s700 + $0x2c] sm:$0xf]
  %v713 = vld [vmem:[%s700 + $0x30] sm:$0xf]
  %v714 = vld [vmem:[%s700 + $0x34] sm:$0xf]
  %v715 = vld [vmem:[%s700 + $0x38] sm:$0xf]
  %v716 = vld [vmem:[%s700 + $0x3c] sm:$0xf]
  %v733 = vunpack.c.l.b16 %v701
  %v734 = vunpack.c.l.b16 %v702
  %v735 = vunpack.c.l.b16 %v703
  %v736 = vunpack.c.l.b16 %v704
  %v737 = vunpack.c.l.b16 %v705
  %v738 = vunpack.c.l.b16 %v706
  %v739 = vunpack.c.l.b16 %v707
  %v740 = vunpack.c.l.b16 %v708
  %v741 = vunpack.c.l.b16 %v709
  %v742 = vunpack.c.l.b16 %v710
  %v743 = vunpack.c.l.b16 %v711
  %v744 = vunpack.c.l.b16 %v712
  %v745 = vunpack.c.l.b16 %v713
  %v746 = vunpack.c.l.b16 %v714
  %v747 = vunpack.c.l.b16 %v715
  %v748 = vunpack.c.l.b16 %v716
  %v749 = vpack.c.b16 %v734, %v733
  %v750 = vpack.c.b16 %v736, %v735
  %v751 = vpack.c.b16 %v738, %v737
  %v752 = vpack.c.b16 %v740, %v739
  %v753 = vpack.c.b16 %v742, %v741
  %v754 = vpack.c.b16 %v744, %v743
  %v755 = vpack.c.b16 %v746, %v745
  %v756 = vpack.c.b16 %v748, %v747
  %757 = vrot.lane.b32.xlu0 %v141, 122
  %v758 = vpop.permute.xlu0 %757
  %759 = vrot.lane.b32.xlu0 %v142, 122
  %v760 = vpop.permute.xlu0 %759
  %761 = vrot.lane.b32.xlu0 %v143, 122
  %v762 = vpop.permute.xlu0 %761
  %763 = vrot.lane.b32.xlu0 %v144, 122
  %v764 = vpop.permute.xlu0 %763
  %765 = vrot.lane.b32.xlu0 %v145, 122
  %v766 = vpop.permute.xlu0 %765
  %767 = vrot.lane.b32.xlu0 %v146, 122
  %v768 = vpop.permute.xlu0 %767
  %769 = vrot.lane.b32.xlu0 %v147, 122
  %v770 = vpop.permute.xlu0 %769
  %771 = vrot.lane.b32.xlu0 %v148, 122
  %v772 = vpop.permute.xlu0 %771
  %vm773 = vcmask 998400
  %v774 = vsel %vm773, %v758, %v760
  %v775 = vsel %vm773, %v762, %v764
  %v776 = vsel %vm773, %v766, %v768
  %v777 = vsel %vm773, %v770, %v772
  %v783 = vsel %vm174, %v749, 0
  %v786 = vsel %vm174, %v750, 0
  %v789 = vsel %vm174, %v751, 0
  %v792 = vsel %vm174, %v752, 0
  %v795 = vsel %vm174, %v753, 0
  %v798 = vsel %vm174, %v754, 0
  %v801 = vsel %vm174, %v755, 0
  %v804 = vsel %vm174, %v756, 0
  %806 = vmatprep.subr.bf16.mxu0 0
  %807 = vmatpush1.bf16.msra.mxu0 %v774
  %808 = vmatprep.subr.bf16.mxu0 0
  %809 = vmatpush1.bf16.msra.mxu0 %v775
  %810 = vmatprep.subr.bf16.mxu0 0
  %811 = vmatpush1.bf16.msra.mxu0 %v776
  %812 = vmatprep.subr.bf16.mxu0 0
  %813 = vmatpush1.bf16.msra.mxu0 %v777
  %814 = vmatprep.subr.bf16.mxu0 0
  %815 = vmatpush1.bf16.msra.mxu0 0
  %816 = vmatprep.subr.bf16.mxu0 0
  %817 = vmatpush1.bf16.msra.mxu0 0
  %818 = vmatprep.subr.bf16.mxu0 0
  %819 = vmatpush1.bf16.msra.mxu0 0
  %820 = vmatprep.subr.bf16.mxu0 0
  %821 = vmatpush1.bf16.msra.mxu0 0
  %822 = vmatprep.subr.bf16.mxu0 0
  %823 = vmatpush1.bf16.msra.mxu0 0
  %824 = vmatprep.subr.bf16.mxu0 0
  %825 = vmatpush1.bf16.msra.mxu0 0
  %826 = vmatprep.subr.bf16.mxu0 0
  %827 = vmatpush1.bf16.msra.mxu0 0
  %828 = vmatprep.subr.bf16.mxu0 0
  %829 = vmatpush1.bf16.msra.mxu0 0
  %830 = vmatprep.subr.bf16.mxu0 0
  %831 = vmatpush1.bf16.msra.mxu0 0
  %832 = vmatprep.subr.bf16.mxu0 0
  %833 = vmatpush1.bf16.msra.mxu0 0
  %834 = vmatprep.subr.bf16.mxu0 0
  %835 = vmatpush1.bf16.msra.mxu0 0
  %836 = vmatprep.subr.bf16.mxu0 0
  %837 = vmatpush1.bf16.msra.mxu0 0
  %838 = vmatprep.mubr.bf16.mxu0 0
  %839 = vmatmul.mubr.bf16.gmra.mrb[0].mxu0 %v783
  %v840 = vpop.f32.mrb[0].mxu0
  %v841 = vadd.f32 0.0, %v840
  %v842 = vpop.f32.mrb[0].mxu0
  %v843 = vpop.f32.mrb[0].mxu0
  %v844 = vadd.f32 0.0, %v843
  %v845 = vpop.f32.mrb[0].mxu0
  %846 = vmatprep.mubr.bf16.mxu0 0
  %847 = vmatmul.mubr.bf16.gmra.mrb[0].mxu0 %v786
  %v848 = vpop.f32.mrb[0].mxu0
  %v849 = vadd.f32 0.0, %v848
  %v850 = vpop.f32.mrb[0].mxu0
  %v851 = vpop.f32.mrb[0].mxu0
  %v852 = vadd.f32 0.0, %v851
  %v853 = vpop.f32.mrb[0].mxu0
  %854 = vmatprep.mubr.bf16.mxu0 0
  %855 = vmatmul.mubr.bf16.gmra.mrb[0].mxu0 %v789
  %v856 = vpop.f32.mrb[0].mxu0
  %v857 = vadd.f32 0.0, %v856
  %v858 = vpop.f32.mrb[0].mxu0
  %v859 = vpop.f32.mrb[0].mxu0
  %v860 = vadd.f32 0.0, %v859
  %v861 = vpop.f32.mrb[0].mxu0
  %862 = vmatprep.mubr.bf16.mxu0 0
  %863 = vmatmul.mubr.bf16.gmra.mrb[0].mxu0 %v792
  %v864 = vpop.f32.mrb[0].mxu0
  %v865 = vadd.f32 0.0, %v864
  %v866 = vpop.f32.mrb[0].mxu0
  %v867 = vpop.f32.mrb[0].mxu0
  %v868 = vadd.f32 0.0, %v867
  %v869 = vpop.f32.mrb[0].mxu0
  %870 = vmatprep.mubr.bf16.mxu0 0
  %871 = vmatmul.mubr.bf16.gmra.mrb[0].mxu0 %v795
  %v872 = vpop.f32.mrb[0].mxu0
  %v873 = vadd.f32 0.0, %v872
  %v874 = vpop.f32.mrb[0].mxu0
  %v875 = vpop.f32.mrb[0].mxu0
  %v876 = vadd.f32 0.0, %v875
  %v877 = vpop.f32.mrb[0].mxu0
  %878 = vmatprep.mubr.bf16.mxu0 0
  %879 = vmatmul.mubr.bf16.gmra.mrb[0].mxu0 %v798
  %v880 = vpop.f32.mrb[0].mxu0
  %v881 = vadd.f32 0.0, %v880
  %v882 = vpop.f32.mrb[0].mxu0
  %v883 = vpop.f32.mrb[0].mxu0
  %v884 = vadd.f32 0.0, %v883
  %v885 = vpop.f32.mrb[0].mxu0
  %886 = vmatprep.mubr.bf16.mxu0 0
  %887 = vmatmul.mubr.bf16.gmra.mrb[0].mxu0 %v801
  %v888 = vpop.f32.mrb[0].mxu0
  %v889 = vadd.f32 0.0, %v888
  %v890 = vpop.f32.mrb[0].mxu0
  %v891 = vpop.f32.mrb[0].mxu0
  %v892 = vadd.f32 0.0, %v891
  %v893 = vpop.f32.mrb[0].mxu0
  %894 = vmatprep.mubr.bf16.mxu0 0
  %895 = vmatmul.mubr.bf16.gmra.mrb[0].mxu0 %v804
  %v896 = vpop.f32.mrb[0].mxu0
  %v897 = vadd.f32 0.0, %v896
  %v898 = vpop.f32.mrb[0].mxu0
  %v899 = vpop.f32.mrb[0].mxu0
  %v900 = vadd.f32 0.0, %v899
  %v901 = vpop.f32.mrb[0].mxu0
  %902 = vdwg.mxu0
  %v903 = vadd.f32 %v684, %v841
  %v904 = vadd.f32 %v685, %v844
  %v905 = vadd.f32 %v686, %v849
  %v906 = vadd.f32 %v687, %v852
  %v907 = vadd.f32 %v688, %v857
  %v908 = vadd.f32 %v689, %v860
  %v909 = vadd.f32 %v690, %v865
  %v910 = vadd.f32 %v691, %v868
  %v911 = vadd.f32 %v692, %v873
  %v912 = vadd.f32 %v693, %v876
  %v913 = vadd.f32 %v694, %v881
  %v914 = vadd.f32 %v695, %v884
  %v915 = vadd.f32 %v696, %v889
  %v916 = vadd.f32 %v697, %v892
  %v917 = vadd.f32 %v698, %v897
  %v918 = vadd.f32 %v699, %v900
  %s919 = scalar_lea.vmem %s1, 256
  %v920 = vld [vmem:[%s919] sm:$0xf]
  %v921 = vld [vmem:[%s919 + $0x4] sm:$0xf]
  %v922 = vld [vmem:[%s919 + $0x8] sm:$0xf]
  %v923 = vld [vmem:[%s919 + $0xc] sm:$0xf]
  %v924 = vld [vmem:[%s919 + $0x10] sm:$0xf]
  %v925 = vld [vmem:[%s919 + $0x14] sm:$0xf]
  %v926 = vld [vmem:[%s919 + $0x18] sm:$0xf]
  %v927 = vld [vmem:[%s919 + $0x1c] sm:$0xf]
  %v928 = vld [vmem:[%s919 + $0x20] sm:$0xf]
  %v929 = vld [vmem:[%s919 + $0x24] sm:$0xf]
  %v930 = vld [vmem:[%s919 + $0x28] sm:$0xf]
  %v931 = vld [vmem:[%s919 + $0x2c] sm:$0xf]
  %v932 = vld [vmem:[%s919 + $0x30] sm:$0xf]
  %v933 = vld [vmem:[%s919 + $0x34] sm:$0xf]
  %v934 = vld [vmem:[%s919 + $0x38] sm:$0xf]
  %v935 = vld [vmem:[%s919 + $0x3c] sm:$0xf]
  %v952 = vunpack.c.l.b16 %v920
  %v953 = vunpack.c.l.b16 %v921
  %v954 = vunpack.c.l.b16 %v922
  %v955 = vunpack.c.l.b16 %v923
  %v956 = vunpack.c.l.b16 %v924
  %v957 = vunpack.c.l.b16 %v925
  %v958 = vunpack.c.l.b16 %v926
  %v959 = vunpack.c.l.b16 %v927
  %v960 = vunpack.c.l.b16 %v928
  %v961 = vunpack.c.l.b16 %v929
  %v962 = vunpack.c.l.b16 %v930
  %v963 = vunpack.c.l.b16 %v931
  %v964 = vunpack.c.l.b16 %v932
  %v965 = vunpack.c.l.b16 %v933
  %v966 = vunpack.c.l.b16 %v934
  %v967 = vunpack.c.l.b16 %v935
  %v968 = vpack.c.b16 %v953, %v952
  %v969 = vpack.c.b16 %v955, %v954
  %v970 = vpack.c.b16 %v957, %v956
  %v971 = vpack.c.b16 %v959, %v958
  %v972 = vpack.c.b16 %v961, %v960
  %v973 = vpack.c.b16 %v963, %v962
  %v974 = vpack.c.b16 %v965, %v964
  %v975 = vpack.c.b16 %v967, %v966
  %976 = vrot.lane.b32.xlu0 %v141, 121
  %v977 = vpop.permute.xlu0 %976
  %978 = vrot.lane.b32.xlu0 %v142, 121
  %v979 = vpop.permute.xlu0 %978
  %980 = vrot.lane.b32.xlu0 %v143, 121
  %v981 = vpop.permute.xlu0 %980
  %982 = vrot.lane.b32.xlu0 %v144, 121
  %v983 = vpop.permute.xlu0 %982
  %984 = vrot.lane.b32.xlu0 %v145, 121
  %v985 = vpop.permute.xlu0 %984
  %986 = vrot.lane.b32.xlu0 %v146, 121
  %v987 = vpop.permute.xlu0 %986
  %988 = vrot.lane.b32.xlu0 %v147, 121
  %v989 = vpop.permute.xlu0 %988
  %990 = vrot.lane.b32.xlu0 %v148, 121
  %v991 = vpop.permute.xlu0 %990
  %vm992 = vcmask 990208
  %v993 = vsel %vm992, %v977, %v979
  %v994 = vsel %vm992, %v981, %v983
  %v995 = vsel %vm992, %v985, %v987
  %v996 = vsel %vm992, %v989, %v991
  %v1002 = vsel %vm174, %v968, 0
  %v1005 = vsel %vm174, %v969, 0
  %v1008 = vsel %vm174, %v970, 0
  %v1011 = vsel %vm174, %v971, 0
  %v1014 = vsel %vm174, %v972, 0
  %v1017 = vsel %vm174, %v973, 0
  %v1020 = vsel %vm174, %v974, 0
  %v1023 = vsel %vm174, %v975, 0
  %1025 = vmatprep.subr.bf16.mxu0 0
  %1026 = vmatpush1.bf16.msra.mxu0 %v993
  %1027 = vmatprep.subr.bf16.mxu0 0
  %1028 = vmatpush1.bf16.msra.mxu0 %v994
  %1029 = vmatprep.subr.bf16.mxu0 0
  %1030 = vmatpush1.bf16.msra.mxu0 %v995
  %1031 = vmatprep.subr.bf16.mxu0 0
  %1032 = vmatpush1.bf16.msra.mxu0 %v996
  %1033 = vmatprep.subr.bf16.mxu0 0
  %1034 = vmatpush1.bf16.msra.mxu0 0
  %1035 = vmatprep.subr.bf16.mxu0 0
  %1036 = vmatpush1.bf16.msra.mxu0 0
  %1037 = vmatprep.subr.bf16.mxu0 0
  %1038 = vmatpush1.bf16.msra.mxu0 0
  %1039 = vmatprep.subr.bf16.mxu0 0
  %1040 = vmatpush1.bf16.msra.mxu0 0
  %1041 = vmatprep.subr.bf16.mxu0 0
  %1042 = vmatpush1.bf16.msra.mxu0 0
  %1043 = vmatprep.subr.bf16.mxu0 0
  %1044 = vmatpush1.bf16.msra.mxu0 0
  %1045 = vmatprep.subr.bf16.mxu0 0
  %1046 = vmatpush1.bf16.msra.mxu0 0
  %1047 = vmatprep.subr.bf16.mxu0 0
  %1048 = vmatpush1.bf16.msra.mxu0 0
  %1049 = vmatprep.subr.bf16.mxu0 0
  %1050 = vmatpush1.bf16.msra.mxu0 0
  %1051 = vmatprep.subr.bf16.mxu0 0
  %1052 = vmatpush1.bf16.msra.mxu0 0
  %1053 = vmatprep.subr.bf16.mxu0 0
  %1054 = vmatpush1.bf16.msra.mxu0 0
  %1055 = vmatprep.subr.bf16.mxu0 0
  %1056 = vmatpush1.bf16.msra.mxu0 0
  %1057 = vmatprep.mubr.bf16.mxu0 0
  %1058 = vmatmul.mubr.bf16.gmra.mrb[0].mxu0 %v1002
  %v1059 = vpop.f32.mrb[0].mxu0
  %v1060 = vadd.f32 0.0, %v1059
  %v1061 = vpop.f32.mrb[0].mxu0
  %v1062 = vpop.f32.mrb[0].mxu0
  %v1063 = vadd.f32 0.0, %v1062
  %v1064 = vpop.f32.mrb[0].mxu0
  %1065 = vmatprep.mubr.bf16.mxu0 0
  %1066 = vmatmul.mubr.bf16.gmra.mrb[0].mxu0 %v1005
  %v1067 = vpop.f32.mrb[0].mxu0
  %v1068 = vadd.f32 0.0, %v1067
  %v1069 = vpop.f32.mrb[0].mxu0
  %v1070 = vpop.f32.mrb[0].mxu0
  %v1071 = vadd.f32 0.0, %v1070
  %v1072 = vpop.f32.mrb[0].mxu0
  %1073 = vmatprep.mubr.bf16.mxu0 0
  %1074 = vmatmul.mubr.bf16.gmra.mrb[0].mxu0 %v1008
  %v1075 = vpop.f32.mrb[0].mxu0
  %v1076 = vadd.f32 0.0, %v1075
  %v1077 = vpop.f32.mrb[0].mxu0
  %v1078 = vpop.f32.mrb[0].mxu0
  %v1079 = vadd.f32 0.0, %v1078
  %v1080 = vpop.f32.mrb[0].mxu0
  %1081 = vmatprep.mubr.bf16.mxu0 0
  %1082 = vmatmul.mubr.bf16.gmra.mrb[0].mxu0 %v1011
  %v1083 = vpop.f32.mrb[0].mxu0
  %v1084 = vadd.f32 0.0, %v1083
  %v1085 = vpop.f32.mrb[0].mxu0
  %v1086 = vpop.f32.mrb[0].mxu0
  %v1087 = vadd.f32 0.0, %v1086
  %v1088 = vpop.f32.mrb[0].mxu0
  %1089 = vmatprep.mubr.bf16.mxu0 0
  %1090 = vmatmul.mubr.bf16.gmra.mrb[0].mxu0 %v1014
  %v1091 = vpop.f32.mrb[0].mxu0
  %v1092 = vadd.f32 0.0, %v1091
  %v1093 = vpop.f32.mrb[0].mxu0
  %v1094 = vpop.f32.mrb[0].mxu0
  %v1095 = vadd.f32 0.0, %v1094
  %v1096 = vpop.f32.mrb[0].mxu0
  %1097 = vmatprep.mubr.bf16.mxu0 0
  %1098 = vmatmul.mubr.bf16.gmra.mrb[0].mxu0 %v1017
  %v1099 = vpop.f32.mrb[0].mxu0
  %v1100 = vadd.f32 0.0, %v1099
  %v1101 = vpop.f32.mrb[0].mxu0
  %v1102 = vpop.f32.mrb[0].mxu0
  %v1103 = vadd.f32 0.0, %v1102
  %v1104 = vpop.f32.mrb[0].mxu0
  %1105 = vmatprep.mubr.bf16.mxu0 0
  %1106 = vmatmul.mubr.bf16.gmra.mrb[0].mxu0 %v1020
  %v1107 = vpop.f32.mrb[0].mxu0
  %v1108 = vadd.f32 0.0, %v1107
  %v1109 = vpop.f32.mrb[0].mxu0
  %v1110 = vpop.f32.mrb[0].mxu0
  %v1111 = vadd.f32 0.0, %v1110
  %v1112 = vpop.f32.mrb[0].mxu0
  %1113 = vmatprep.mubr.bf16.mxu0 0
  %1114 = vmatmul.mubr.bf16.gmra.mrb[0].mxu0 %v1023
  %v1115 = vpop.f32.mrb[0].mxu0
  %v1116 = vadd.f32 0.0, %v1115
  %v1117 = vpop.f32.mrb[0].mxu0
  %v1118 = vpop.f32.mrb[0].mxu0
  %v1119 = vadd.f32 0.0, %v1118
  %v1120 = vpop.f32.mrb[0].mxu0
  %1121 = vdwg.mxu0
  %v1122 = vadd.f32 %v903, %v1060
  %v1123 = vadd.f32 %v904, %v1063
  %v1124 = vadd.f32 %v905, %v1068
  %v1125 = vadd.f32 %v906, %v1071
  %v1126 = vadd.f32 %v907, %v1076
  %v1127 = vadd.f32 %v908, %v1079
  %v1128 = vadd.f32 %v909, %v1084
  %v1129 = vadd.f32 %v910, %v1087
  %v1130 = vadd.f32 %v911, %v1092
  %v1131 = vadd.f32 %v912, %v1095
  %v1132 = vadd.f32 %v913, %v1100
  %v1133 = vadd.f32 %v914, %v1103
  %v1134 = vadd.f32 %v915, %v1108
  %v1135 = vadd.f32 %v916, %v1111
  %v1136 = vadd.f32 %v917, %v1116
  %v1137 = vadd.f32 %v918, %v1119
  %s1138 = scalar_lea.vmem %s1, 320
  %v1139 = vld [vmem:[%s1138] sm:$0xf]
  %v1140 = vld [vmem:[%s1138 + $0x4] sm:$0xf]
  %v1141 = vld [vmem:[%s1138 + $0x8] sm:$0xf]
  %v1142 = vld [vmem:[%s1138 + $0xc] sm:$0xf]
  %v1143 = vld [vmem:[%s1138 + $0x10] sm:$0xf]
  %v1144 = vld [vmem:[%s1138 + $0x14] sm:$0xf]
  %v1145 = vld [vmem:[%s1138 + $0x18] sm:$0xf]
  %v1146 = vld [vmem:[%s1138 + $0x1c] sm:$0xf]
  %v1147 = vld [vmem:[%s1138 + $0x20] sm:$0xf]
  %v1148 = vld [vmem:[%s1138 + $0x24] sm:$0xf]
  %v1149 = vld [vmem:[%s1138 + $0x28] sm:$0xf]
  %v1150 = vld [vmem:[%s1138 + $0x2c] sm:$0xf]
  %v1151 = vld [vmem:[%s1138 + $0x30] sm:$0xf]
  %v1152 = vld [vmem:[%s1138 + $0x34] sm:$0xf]
  %v1153 = vld [vmem:[%s1138 + $0x38] sm:$0xf]
  %v1154 = vld [vmem:[%s1138 + $0x3c] sm:$0xf]
  %v1171 = vunpack.c.l.b16 %v1139
  %v1172 = vunpack.c.l.b16 %v1140
  %v1173 = vunpack.c.l.b16 %v1141
  %v1174 = vunpack.c.l.b16 %v1142
  %v1175 = vunpack.c.l.b16 %v1143
  %v1176 = vunpack.c.l.b16 %v1144
  %v1177 = vunpack.c.l.b16 %v1145
  %v1178 = vunpack.c.l.b16 %v1146
  %v1179 = vunpack.c.l.b16 %v1147
  %v1180 = vunpack.c.l.b16 %v1148
  %v1181 = vunpack.c.l.b16 %v1149
  %v1182 = vunpack.c.l.b16 %v1150
  %v1183 = vunpack.c.l.b16 %v1151
  %v1184 = vunpack.c.l.b16 %v1152
  %v1185 = vunpack.c.l.b16 %v1153
  %v1186 = vunpack.c.l.b16 %v1154
  %v1187 = vpack.c.b16 %v1172, %v1171
  %v1188 = vpack.c.b16 %v1174, %v1173
  %v1189 = vpack.c.b16 %v1176, %v1175
  %v1190 = vpack.c.b16 %v1178, %v1177
  %v1191 = vpack.c.b16 %v1180, %v1179
  %v1192 = vpack.c.b16 %v1182, %v1181
  %v1193 = vpack.c.b16 %v1184, %v1183
  %v1194 = vpack.c.b16 %v1186, %v1185
  %1195 = vrot.lane.b32.xlu0 %v141, 120
  %v1196 = vpop.permute.xlu0 %1195
  %1197 = vrot.lane.b32.xlu0 %v142, 120
  %v1198 = vpop.permute.xlu0 %1197
  %1199 = vrot.lane.b32.xlu0 %v143, 120
  %v1200 = vpop.permute.xlu0 %1199
  %1201 = vrot.lane.b32.xlu0 %v144, 120
  %v1202 = vpop.permute.xlu0 %1201
  %1203 = vrot.lane.b32.xlu0 %v145, 120
  %v1204 = vpop.permute.xlu0 %1203
  %1205 = vrot.lane.b32.xlu0 %v146, 120
  %v1206 = vpop.permute.xlu0 %1205
  %1207 = vrot.lane.b32.xlu0 %v147, 120
  %v1208 = vpop.permute.xlu0 %1207
  %1209 = vrot.lane.b32.xlu0 %v148, 120
  %v1210 = vpop.permute.xlu0 %1209
  %vm1211 = vcmask 982016
  %v1212 = vsel %vm1211, %v1196, %v1198
  %v1213 = vsel %vm1211, %v1200, %v1202
  %v1214 = vsel %vm1211, %v1204, %v1206
  %v1215 = vsel %vm1211, %v1208, %v1210
  %v1221 = vsel %vm174, %v1187, 0
  %v1224 = vsel %vm174, %v1188, 0
  %v1227 = vsel %vm174, %v1189, 0
  %v1230 = vsel %vm174, %v1190, 0
  %v1233 = vsel %vm174, %v1191, 0
  %v1236 = vsel %vm174, %v1192, 0
  %v1239 = vsel %vm174, %v1193, 0
  %v1242 = vsel %vm174, %v1194, 0
  %1244 = vmatprep.subr.bf16.mxu0 0
  %1245 = vmatpush1.bf16.msra.mxu0 %v1212
  %1246 = vmatprep.subr.bf16.mxu0 0
  %1247 = vmatpush1.bf16.msra.mxu0 %v1213
  %1248 = vmatprep.subr.bf16.mxu0 0
  %1249 = vmatpush1.bf16.msra.mxu0 %v1214
  %1250 = vmatprep.subr.bf16.mxu0 0
  %1251 = vmatpush1.bf16.msra.mxu0 %v1215
  %1252 = vmatprep.subr.bf16.mxu0 0
  %1253 = vmatpush1.bf16.msra.mxu0 0
  %1254 = vmatprep.subr.bf16.mxu0 0
  %1255 = vmatpush1.bf16.msra.mxu0 0
  %1256 = vmatprep.subr.bf16.mxu0 0
  %1257 = vmatpush1.bf16.msra.mxu0 0
  %1258 = vmatprep.subr.bf16.mxu0 0
  %1259 = vmatpush1.bf16.msra.mxu0 0
  %1260 = vmatprep.subr.bf16.mxu0 0
  %1261 = vmatpush1.bf16.msra.mxu0 0
  %1262 = vmatprep.subr.bf16.mxu0 0
  %1263 = vmatpush1.bf16.msra.mxu0 0
  %1264 = vmatprep.subr.bf16.mxu0 0
  %1265 = vmatpush1.bf16.msra.mxu0 0
  %1266 = vmatprep.subr.bf16.mxu0 0
  %1267 = vmatpush1.bf16.msra.mxu0 0
  %1268 = vmatprep.subr.bf16.mxu0 0
  %1269 = vmatpush1.bf16.msra.mxu0 0
  %1270 = vmatprep.subr.bf16.mxu0 0
  %1271 = vmatpush1.bf16.msra.mxu0 0
  %1272 = vmatprep.subr.bf16.mxu0 0
  %1273 = vmatpush1.bf16.msra.mxu0 0
  %1274 = vmatprep.subr.bf16.mxu0 0
  %1275 = vmatpush1.bf16.msra.mxu0 0
  %1276 = vmatprep.mubr.bf16.mxu0 0
  %1277 = vmatmul.mubr.bf16.gmra.mrb[0].mxu0 %v1221
  %v1278 = vpop.f32.mrb[0].mxu0
  %v1279 = vadd.f32 0.0, %v1278
  %v1280 = vpop.f32.mrb[0].mxu0
  %v1281 = vpop.f32.mrb[0].mxu0
  %v1282 = vadd.f32 0.0, %v1281
  %v1283 = vpop.f32.mrb[0].mxu0
  %1284 = vmatprep.mubr.bf16.mxu0 0
  %1285 = vmatmul.mubr.bf16.gmra.mrb[0].mxu0 %v1224
  %v1286 = vpop.f32.mrb[0].mxu0
  %v1287 = vadd.f32 0.0, %v1286
  %v1288 = vpop.f32.mrb[0].mxu0
  %v1289 = vpop.f32.mrb[0].mxu0
  %v1290 = vadd.f32 0.0, %v1289
  %v1291 = vpop.f32.mrb[0].mxu0
  %1292 = vmatprep.mubr.bf16.mxu0 0
  %1293 = vmatmul.mubr.bf16.gmra.mrb[0].mxu0 %v1227
  %v1294 = vpop.f32.mrb[0].mxu0
  %v1295 = vadd.f32 0.0, %v1294
  %v1296 = vpop.f32.mrb[0].mxu0
  %v1297 = vpop.f32.mrb[0].mxu0
  %v1298 = vadd.f32 0.0, %v1297
  %v1299 = vpop.f32.mrb[0].mxu0
  %1300 = vmatprep.mubr.bf16.mxu0 0
  %1301 = vmatmul.mubr.bf16.gmra.mrb[0].mxu0 %v1230
  %v1302 = vpop.f32.mrb[0].mxu0
  %v1303 = vadd.f32 0.0, %v1302
  %v1304 = vpop.f32.mrb[0].mxu0
  %v1305 = vpop.f32.mrb[0].mxu0
  %v1306 = vadd.f32 0.0, %v1305
  %v1307 = vpop.f32.mrb[0].mxu0
  %1308 = vmatprep.mubr.bf16.mxu0 0
  %1309 = vmatmul.mubr.bf16.gmra.mrb[0].mxu0 %v1233
  %v1310 = vpop.f32.mrb[0].mxu0
  %v1311 = vadd.f32 0.0, %v1310
  %v1312 = vpop.f32.mrb[0].mxu0
  %v1313 = vpop.f32.mrb[0].mxu0
  %v1314 = vadd.f32 0.0, %v1313
  %v1315 = vpop.f32.mrb[0].mxu0
  %1316 = vmatprep.mubr.bf16.mxu0 0
  %1317 = vmatmul.mubr.bf16.gmra.mrb[0].mxu0 %v1236
  %v1318 = vpop.f32.mrb[0].mxu0
  %v1319 = vadd.f32 0.0, %v1318
  %v1320 = vpop.f32.mrb[0].mxu0
  %v1321 = vpop.f32.mrb[0].mxu0
  %v1322 = vadd.f32 0.0, %v1321
  %v1323 = vpop.f32.mrb[0].mxu0
  %1324 = vmatprep.mubr.bf16.mxu0 0
  %1325 = vmatmul.mubr.bf16.gmra.mrb[0].mxu0 %v1239
  %v1326 = vpop.f32.mrb[0].mxu0
  %v1327 = vadd.f32 0.0, %v1326
  %v1328 = vpop.f32.mrb[0].mxu0
  %v1329 = vpop.f32.mrb[0].mxu0
  %v1330 = vadd.f32 0.0, %v1329
  %v1331 = vpop.f32.mrb[0].mxu0
  %1332 = vmatprep.mubr.bf16.mxu0 0
  %1333 = vmatmul.mubr.bf16.gmra.mrb[0].mxu0 %v1242
  %v1334 = vpop.f32.mrb[0].mxu0
  %v1335 = vadd.f32 0.0, %v1334
  %v1336 = vpop.f32.mrb[0].mxu0
  %v1337 = vpop.f32.mrb[0].mxu0
  %v1338 = vadd.f32 0.0, %v1337
  %v1339 = vpop.f32.mrb[0].mxu0
  %1340 = vdwg.mxu0
  %v1341 = vadd.f32 %v1122, %v1279
  %v1342 = vadd.f32 %v1123, %v1282
  %v1343 = vadd.f32 %v1124, %v1287
  %v1344 = vadd.f32 %v1125, %v1290
  %v1345 = vadd.f32 %v1126, %v1295
  %v1346 = vadd.f32 %v1127, %v1298
  %v1347 = vadd.f32 %v1128, %v1303
  %v1348 = vadd.f32 %v1129, %v1306
  %v1349 = vadd.f32 %v1130, %v1311
  %v1350 = vadd.f32 %v1131, %v1314
  %v1351 = vadd.f32 %v1132, %v1319
  %v1352 = vadd.f32 %v1133, %v1322
  %v1353 = vadd.f32 %v1134, %v1327
  %v1354 = vadd.f32 %v1135, %v1330
  %v1355 = vadd.f32 %v1136, %v1335
  %v1356 = vadd.f32 %v1137, %v1338
  %s1357 = scalar_lea.vmem %s1, 384
  %v1358 = vld [vmem:[%s1357] sm:$0xf]
  %v1359 = vld [vmem:[%s1357 + $0x4] sm:$0xf]
  %v1360 = vld [vmem:[%s1357 + $0x8] sm:$0xf]
  %v1361 = vld [vmem:[%s1357 + $0xc] sm:$0xf]
  %v1362 = vld [vmem:[%s1357 + $0x10] sm:$0xf]
  %v1363 = vld [vmem:[%s1357 + $0x14] sm:$0xf]
  %v1364 = vld [vmem:[%s1357 + $0x18] sm:$0xf]
  %v1365 = vld [vmem:[%s1357 + $0x1c] sm:$0xf]
  %v1366 = vld [vmem:[%s1357 + $0x20] sm:$0xf]
  %v1367 = vld [vmem:[%s1357 + $0x24] sm:$0xf]
  %v1368 = vld [vmem:[%s1357 + $0x28] sm:$0xf]
  %v1369 = vld [vmem:[%s1357 + $0x2c] sm:$0xf]
  %v1370 = vld [vmem:[%s1357 + $0x30] sm:$0xf]
  %v1371 = vld [vmem:[%s1357 + $0x34] sm:$0xf]
  %v1372 = vld [vmem:[%s1357 + $0x38] sm:$0xf]
  %v1373 = vld [vmem:[%s1357 + $0x3c] sm:$0xf]
  %v1390 = vunpack.c.l.b16 %v1358
  %v1391 = vunpack.c.l.b16 %v1359
  %v1392 = vunpack.c.l.b16 %v1360
  %v1393 = vunpack.c.l.b16 %v1361
  %v1394 = vunpack.c.l.b16 %v1362
  %v1395 = vunpack.c.l.b16 %v1363
  %v1396 = vunpack.c.l.b16 %v1364
  %v1397 = vunpack.c.l.b16 %v1365
  %v1398 = vunpack.c.l.b16 %v1366
  %v1399 = vunpack.c.l.b16 %v1367
  %v1400 = vunpack.c.l.b16 %v1368
  %v1401 = vunpack.c.l.b16 %v1369
  %v1402 = vunpack.c.l.b16 %v1370
  %v1403 = vunpack.c.l.b16 %v1371
  %v1404 = vunpack.c.l.b16 %v1372
  %v1405 = vunpack.c.l.b16 %v1373
  %v1406 = vpack.c.b16 %v1391, %v1390
  %v1407 = vpack.c.b16 %v1393, %v1392
  %v1408 = vpack.c.b16 %v1395, %v1394
  %v1409 = vpack.c.b16 %v1397, %v1396
  %v1410 = vpack.c.b16 %v1399, %v1398
  %v1411 = vpack.c.b16 %v1401, %v1400
  %v1412 = vpack.c.b16 %v1403, %v1402
  %v1413 = vpack.c.b16 %v1405, %v1404
  %1414 = vrot.lane.b32.xlu0 %v141, 116
  %v1415 = vpop.permute.xlu0 %1414
  %1416 = vrot.lane.b32.xlu0 %v142, 116
  %v1417 = vpop.permute.xlu0 %1416
  %1418 = vrot.lane.b32.xlu0 %v143, 116
  %v1419 = vpop.permute.xlu0 %1418
  %1420 = vrot.lane.b32.xlu0 %v144, 116
  %v1421 = vpop.permute.xlu0 %1420
  %1422 = vrot.lane.b32.xlu0 %v145, 116
  %v1423 = vpop.permute.xlu0 %1422
  %1424 = vrot.lane.b32.xlu0 %v146, 116
  %v1425 = vpop.permute.xlu0 %1424
  %1426 = vrot.lane.b32.xlu0 %v147, 116
  %v1427 = vpop.permute.xlu0 %1426
  %1428 = vrot.lane.b32.xlu0 %v148, 116
  %v1429 = vpop.permute.xlu0 %1428
  %vm1430 = vcmask 949248
  %v1431 = vsel %vm1430, %v1415, %v1417
  %v1432 = vsel %vm1430, %v1419, %v1421
  %v1433 = vsel %vm1430, %v1423, %v1425
  %v1434 = vsel %vm1430, %v1427, %v1429
  %v1440 = vsel %vm174, %v1406, 0
  %v1443 = vsel %vm174, %v1407, 0
  %v1446 = vsel %vm174, %v1408, 0
  %v1449 = vsel %vm174, %v1409, 0
  %v1452 = vsel %vm174, %v1410, 0
  %v1455 = vsel %vm174, %v1411, 0
  %v1458 = vsel %vm174, %v1412, 0
  %v1461 = vsel %vm174, %v1413, 0
  %1463 = vmatprep.subr.bf16.mxu0 0
  %1464 = vmatpush1.bf16.msra.mxu0 %v1431
  %1465 = vmatprep.subr.bf16.mxu0 0
  %1466 = vmatpush1.bf16.msra.mxu0 %v1432
  %1467 = vmatprep.subr.bf16.mxu0 0
  %1468 = vmatpush1.bf16.msra.mxu0 %v1433
  %1469 = vmatprep.subr.bf16.mxu0 0
  %1470 = vmatpush1.bf16.msra.mxu0 %v1434
  %1471 = vmatprep.subr.bf16.mxu0 0
  %1472 = vmatpush1.bf16.msra.mxu0 0
  %1473 = vmatprep.subr.bf16.mxu0 0
  %1474 = vmatpush1.bf16.msra.mxu0 0
  %1475 = vmatprep.subr.bf16.mxu0 0
  %1476 = vmatpush1.bf16.msra.mxu0 0
  %1477 = vmatprep.subr.bf16.mxu0 0
  %1478 = vmatpush1.bf16.msra.mxu0 0
  %1479 = vmatprep.subr.bf16.mxu0 0
  %1480 = vmatpush1.bf16.msra.mxu0 0
  %1481 = vmatprep.subr.bf16.mxu0 0
  %1482 = vmatpush1.bf16.msra.mxu0 0
  %1483 = vmatprep.subr.bf16.mxu0 0
  %1484 = vmatpush1.bf16.msra.mxu0 0
  %1485 = vmatprep.subr.bf16.mxu0 0
  %1486 = vmatpush1.bf16.msra.mxu0 0
  %1487 = vmatprep.subr.bf16.mxu0 0
  %1488 = vmatpush1.bf16.msra.mxu0 0
  %1489 = vmatprep.subr.bf16.mxu0 0
  %1490 = vmatpush1.bf16.msra.mxu0 0
  %1491 = vmatprep.subr.bf16.mxu0 0
  %1492 = vmatpush1.bf16.msra.mxu0 0
  %1493 = vmatprep.subr.bf16.mxu0 0
  %1494 = vmatpush1.bf16.msra.mxu0 0
  %1495 = vmatprep.mubr.bf16.mxu0 0
  %1496 = vmatmul.mubr.bf16.gmra.mrb[0].mxu0 %v1440
  %v1497 = vpop.f32.mrb[0].mxu0
  %v1498 = vadd.f32 0.0, %v1497
  %v1499 = vpop.f32.mrb[0].mxu0
  %v1500 = vpop.f32.mrb[0].mxu0
  %v1501 = vadd.f32 0.0, %v1500
  %v1502 = vpop.f32.mrb[0].mxu0
  %1503 = vmatprep.mubr.bf16.mxu0 0
  %1504 = vmatmul.mubr.bf16.gmra.mrb[0].mxu0 %v1443
  %v1505 = vpop.f32.mrb[0].mxu0
  %v1506 = vadd.f32 0.0, %v1505
  %v1507 = vpop.f32.mrb[0].mxu0
  %v1508 = vpop.f32.mrb[0].mxu0
  %v1509 = vadd.f32 0.0, %v1508
  %v1510 = vpop.f32.mrb[0].mxu0
  %1511 = vmatprep.mubr.bf16.mxu0 0
  %1512 = vmatmul.mubr.bf16.gmra.mrb[0].mxu0 %v1446
  %v1513 = vpop.f32.mrb[0].mxu0
  %v1514 = vadd.f32 0.0, %v1513
  %v1515 = vpop.f32.mrb[0].mxu0
  %v1516 = vpop.f32.mrb[0].mxu0
  %v1517 = vadd.f32 0.0, %v1516
  %v1518 = vpop.f32.mrb[0].mxu0
  %1519 = vmatprep.mubr.bf16.mxu0 0
  %1520 = vmatmul.mubr.bf16.gmra.mrb[0].mxu0 %v1449
  %v1521 = vpop.f32.mrb[0].mxu0
  %v1522 = vadd.f32 0.0, %v1521
  %v1523 = vpop.f32.mrb[0].mxu0
  %v1524 = vpop.f32.mrb[0].mxu0
  %v1525 = vadd.f32 0.0, %v1524
  %v1526 = vpop.f32.mrb[0].mxu0
  %1527 = vmatprep.mubr.bf16.mxu0 0
  %1528 = vmatmul.mubr.bf16.gmra.mrb[0].mxu0 %v1452
  %v1529 = vpop.f32.mrb[0].mxu0
  %v1530 = vadd.f32 0.0, %v1529
  %v1531 = vpop.f32.mrb[0].mxu0
  %v1532 = vpop.f32.mrb[0].mxu0
  %v1533 = vadd.f32 0.0, %v1532
  %v1534 = vpop.f32.mrb[0].mxu0
  %1535 = vmatprep.mubr.bf16.mxu0 0
  %1536 = vmatmul.mubr.bf16.gmra.mrb[0].mxu0 %v1455
  %v1537 = vpop.f32.mrb[0].mxu0
  %v1538 = vadd.f32 0.0, %v1537
  %v1539 = vpop.f32.mrb[0].mxu0
  %v1540 = vpop.f32.mrb[0].mxu0
  %v1541 = vadd.f32 0.0, %v1540
  %v1542 = vpop.f32.mrb[0].mxu0
  %1543 = vmatprep.mubr.bf16.mxu0 0
  %1544 = vmatmul.mubr.bf16.gmra.mrb[0].mxu0 %v1458
  %v1545 = vpop.f32.mrb[0].mxu0
  %v1546 = vadd.f32 0.0, %v1545
  %v1547 = vpop.f32.mrb[0].mxu0
  %v1548 = vpop.f32.mrb[0].mxu0
  %v1549 = vadd.f32 0.0, %v1548
  %v1550 = vpop.f32.mrb[0].mxu0
  %1551 = vmatprep.mubr.bf16.mxu0 0
  %1552 = vmatmul.mubr.bf16.gmra.mrb[0].mxu0 %v1461
  %v1553 = vpop.f32.mrb[0].mxu0
  %v1554 = vadd.f32 0.0, %v1553
  %v1555 = vpop.f32.mrb[0].mxu0
  %v1556 = vpop.f32.mrb[0].mxu0
  %v1557 = vadd.f32 0.0, %v1556
  %v1558 = vpop.f32.mrb[0].mxu0
  %1559 = vdwg.mxu0
  %v1560 = vadd.f32 %v1341, %v1498
  %v1561 = vadd.f32 %v1342, %v1501
  %v1562 = vadd.f32 %v1343, %v1506
  %v1563 = vadd.f32 %v1344, %v1509
  %v1564 = vadd.f32 %v1345, %v1514
  %v1565 = vadd.f32 %v1346, %v1517
  %v1566 = vadd.f32 %v1347, %v1522
  %v1567 = vadd.f32 %v1348, %v1525
  %v1568 = vadd.f32 %v1349, %v1530
  %v1569 = vadd.f32 %v1350, %v1533
  %v1570 = vadd.f32 %v1351, %v1538
  %v1571 = vadd.f32 %v1352, %v1541
  %v1572 = vadd.f32 %v1353, %v1546
  %v1573 = vadd.f32 %v1354, %v1549
  %v1574 = vadd.f32 %v1355, %v1554
  %v1575 = vadd.f32 %v1356, %v1557
  %s1576 = scalar_lea.vmem %s1, 448
  %v1577 = vld [vmem:[%s1576] sm:$0xf]
  %v1578 = vld [vmem:[%s1576 + $0x4] sm:$0xf]
  %v1579 = vld [vmem:[%s1576 + $0x8] sm:$0xf]
  %v1580 = vld [vmem:[%s1576 + $0xc] sm:$0xf]
  %v1581 = vld [vmem:[%s1576 + $0x10] sm:$0xf]
  %v1582 = vld [vmem:[%s1576 + $0x14] sm:$0xf]
  %v1583 = vld [vmem:[%s1576 + $0x18] sm:$0xf]
  %v1584 = vld [vmem:[%s1576 + $0x1c] sm:$0xf]
  %v1585 = vld [vmem:[%s1576 + $0x20] sm:$0xf]
  %v1586 = vld [vmem:[%s1576 + $0x24] sm:$0xf]
  %v1587 = vld [vmem:[%s1576 + $0x28] sm:$0xf]
  %v1588 = vld [vmem:[%s1576 + $0x2c] sm:$0xf]
  %v1589 = vld [vmem:[%s1576 + $0x30] sm:$0xf]
  %v1590 = vld [vmem:[%s1576 + $0x34] sm:$0xf]
  %v1591 = vld [vmem:[%s1576 + $0x38] sm:$0xf]
  %v1592 = vld [vmem:[%s1576 + $0x3c] sm:$0xf]
  %v1609 = vunpack.c.l.b16 %v1577
  %v1610 = vunpack.c.l.b16 %v1578
  %v1611 = vunpack.c.l.b16 %v1579
  %v1612 = vunpack.c.l.b16 %v1580
  %v1613 = vunpack.c.l.b16 %v1581
  %v1614 = vunpack.c.l.b16 %v1582
  %v1615 = vunpack.c.l.b16 %v1583
  %v1616 = vunpack.c.l.b16 %v1584
  %v1617 = vunpack.c.l.b16 %v1585
  %v1618 = vunpack.c.l.b16 %v1586
  %v1619 = vunpack.c.l.b16 %v1587
  %v1620 = vunpack.c.l.b16 %v1588
  %v1621 = vunpack.c.l.b16 %v1589
  %v1622 = vunpack.c.l.b16 %v1590
  %v1623 = vunpack.c.l.b16 %v1591
  %v1624 = vunpack.c.l.b16 %v1592
  %v1625 = vpack.c.b16 %v1610, %v1609
  %v1626 = vpack.c.b16 %v1612, %v1611
  %v1627 = vpack.c.b16 %v1614, %v1613
  %v1628 = vpack.c.b16 %v1616, %v1615
  %v1629 = vpack.c.b16 %v1618, %v1617
  %v1630 = vpack.c.b16 %v1620, %v1619
  %v1631 = vpack.c.b16 %v1622, %v1621
  %v1632 = vpack.c.b16 %v1624, %v1623
  %1633 = vrot.lane.b32.xlu0 %v141, 115
  %v1634 = vpop.permute.xlu0 %1633
  %1635 = vrot.lane.b32.xlu0 %v142, 115
  %v1636 = vpop.permute.xlu0 %1635
  %1637 = vrot.lane.b32.xlu0 %v143, 115
  %v1638 = vpop.permute.xlu0 %1637
  %1639 = vrot.lane.b32.xlu0 %v144, 115
  %v1640 = vpop.permute.xlu0 %1639
  %1641 = vrot.lane.b32.xlu0 %v145, 115
  %v1642 = vpop.permute.xlu0 %1641
  %1643 = vrot.lane.b32.xlu0 %v146, 115
  %v1644 = vpop.permute.xlu0 %1643
  %1645 = vrot.lane.b32.xlu0 %v147, 115
  %v1646 = vpop.permute.xlu0 %1645
  %1647 = vrot.lane.b32.xlu0 %v148, 115
  %v1648 = vpop.permute.xlu0 %1647
  %vm1649 = vcmask 941056
  %v1650 = vsel %vm1649, %v1634, %v1636
  %v1651 = vsel %vm1649, %v1638, %v1640
  %v1652 = vsel %vm1649, %v1642, %v1644
  %v1653 = vsel %vm1649, %v1646, %v1648
  %v1659 = vsel %vm174, %v1625, 0
  %v1662 = vsel %vm174, %v1626, 0
  %v1665 = vsel %vm174, %v1627, 0
  %v1668 = vsel %vm174, %v1628, 0
  %v1671 = vsel %vm174, %v1629, 0
  %v1674 = vsel %vm174, %v1630, 0
  %v1677 = vsel %vm174, %v1631, 0
  %v1680 = vsel %vm174, %v1632, 0
  %1682 = vmatprep.subr.bf16.mxu0 0
  %1683 = vmatpush1.bf16.msra.mxu0 %v1650
  %1684 = vmatprep.subr.bf16.mxu0 0
  %1685 = vmatpush1.bf16.msra.mxu0 %v1651
  %1686 = vmatprep.subr.bf16.mxu0 0
  %1687 = vmatpush1.bf16.msra.mxu0 %v1652
  %1688 = vmatprep.subr.bf16.mxu0 0
  %1689 = vmatpush1.bf16.msra.mxu0 %v1653
  %1690 = vmatprep.subr.bf16.mxu0 0
  %1691 = vmatpush1.bf16.msra.mxu0 0
  %1692 = vmatprep.subr.bf16.mxu0 0
  %1693 = vmatpush1.bf16.msra.mxu0 0
  %1694 = vmatprep.subr.bf16.mxu0 0
  %1695 = vmatpush1.bf16.msra.mxu0 0
  %1696 = vmatprep.subr.bf16.mxu0 0
  %1697 = vmatpush1.bf16.msra.mxu0 0
  %1698 = vmatprep.subr.bf16.mxu0 0
  %1699 = vmatpush1.bf16.msra.mxu0 0
  %1700 = vmatprep.subr.bf16.mxu0 0
  %1701 = vmatpush1.bf16.msra.mxu0 0
  %1702 = vmatprep.subr.bf16.mxu0 0
  %1703 = vmatpush1.bf16.msra.mxu0 0
  %1704 = vmatprep.subr.bf16.mxu0 0
  %1705 = vmatpush1.bf16.msra.mxu0 0
  %1706 = vmatprep.subr.bf16.mxu0 0
  %1707 = vmatpush1.bf16.msra.mxu0 0
  %1708 = vmatprep.subr.bf16.mxu0 0
  %1709 = vmatpush1.bf16.msra.mxu0 0
  %1710 = vmatprep.subr.bf16.mxu0 0
  %1711 = vmatpush1.bf16.msra.mxu0 0
  %1712 = vmatprep.subr.bf16.mxu0 0
  %1713 = vmatpush1.bf16.msra.mxu0 0
  %1714 = vmatprep.mubr.bf16.mxu0 0
  %1715 = vmatmul.mubr.bf16.gmra.mrb[0].mxu0 %v1659
  %v1716 = vpop.f32.mrb[0].mxu0
  %v1717 = vadd.f32 0.0, %v1716
  %v1718 = vpop.f32.mrb[0].mxu0
  %v1719 = vpop.f32.mrb[0].mxu0
  %v1720 = vadd.f32 0.0, %v1719
  %v1721 = vpop.f32.mrb[0].mxu0
  %1722 = vmatprep.mubr.bf16.mxu0 0
  %1723 = vmatmul.mubr.bf16.gmra.mrb[0].mxu0 %v1662
  %v1724 = vpop.f32.mrb[0].mxu0
  %v1725 = vadd.f32 0.0, %v1724
  %v1726 = vpop.f32.mrb[0].mxu0
  %v1727 = vpop.f32.mrb[0].mxu0
  %v1728 = vadd.f32 0.0, %v1727
  %v1729 = vpop.f32.mrb[0].mxu0
  %1730 = vmatprep.mubr.bf16.mxu0 0
  %1731 = vmatmul.mubr.bf16.gmra.mrb[0].mxu0 %v1665
  %v1732 = vpop.f32.mrb[0].mxu0
  %v1733 = vadd.f32 0.0, %v1732
  %v1734 = vpop.f32.mrb[0].mxu0
  %v1735 = vpop.f32.mrb[0].mxu0
  %v1736 = vadd.f32 0.0, %v1735
  %v1737 = vpop.f32.mrb[0].mxu0
  %1738 = vmatprep.mubr.bf16.mxu0 0
  %1739 = vmatmul.mubr.bf16.gmra.mrb[0].mxu0 %v1668
  %v1740 = vpop.f32.mrb[0].mxu0
  %v1741 = vadd.f32 0.0, %v1740
  %v1742 = vpop.f32.mrb[0].mxu0
  %v1743 = vpop.f32.mrb[0].mxu0
  %v1744 = vadd.f32 0.0, %v1743
  %v1745 = vpop.f32.mrb[0].mxu0
  %1746 = vmatprep.mubr.bf16.mxu0 0
  %1747 = vmatmul.mubr.bf16.gmra.mrb[0].mxu0 %v1671
  %v1748 = vpop.f32.mrb[0].mxu0
  %v1749 = vadd.f32 0.0, %v1748
  %v1750 = vpop.f32.mrb[0].mxu0
  %v1751 = vpop.f32.mrb[0].mxu0
  %v1752 = vadd.f32 0.0, %v1751
  %v1753 = vpop.f32.mrb[0].mxu0
  %1754 = vmatprep.mubr.bf16.mxu0 0
  %1755 = vmatmul.mubr.bf16.gmra.mrb[0].mxu0 %v1674
  %v1756 = vpop.f32.mrb[0].mxu0
  %v1757 = vadd.f32 0.0, %v1756
  %v1758 = vpop.f32.mrb[0].mxu0
  %v1759 = vpop.f32.mrb[0].mxu0
  %v1760 = vadd.f32 0.0, %v1759
  %v1761 = vpop.f32.mrb[0].mxu0
  %1762 = vmatprep.mubr.bf16.mxu0 0
  %1763 = vmatmul.mubr.bf16.gmra.mrb[0].mxu0 %v1677
  %v1764 = vpop.f32.mrb[0].mxu0
  %v1765 = vadd.f32 0.0, %v1764
  %v1766 = vpop.f32.mrb[0].mxu0
  %v1767 = vpop.f32.mrb[0].mxu0
  %v1768 = vadd.f32 0.0, %v1767
  %v1769 = vpop.f32.mrb[0].mxu0
  %1770 = vmatprep.mubr.bf16.mxu0 0
  %1771 = vmatmul.mubr.bf16.gmra.mrb[0].mxu0 %v1680
  %v1772 = vpop.f32.mrb[0].mxu0
  %v1773 = vadd.f32 0.0, %v1772
  %v1774 = vpop.f32.mrb[0].mxu0
  %v1775 = vpop.f32.mrb[0].mxu0
  %v1776 = vadd.f32 0.0, %v1775
  %v1777 = vpop.f32.mrb[0].mxu0
  %1778 = vdwg.mxu0
  %v1779 = vadd.f32 %v1560, %v1717
  %v1780 = vadd.f32 %v1561, %v1720
  %v1781 = vadd.f32 %v1562, %v1725
  %v1782 = vadd.f32 %v1563, %v1728
  %v1783 = vadd.f32 %v1564, %v1733
  %v1784 = vadd.f32 %v1565, %v1736
  %v1785 = vadd.f32 %v1566, %v1741
  %v1786 = vadd.f32 %v1567, %v1744
  %v1787 = vadd.f32 %v1568, %v1749
  %v1788 = vadd.f32 %v1569, %v1752
  %v1789 = vadd.f32 %v1570, %v1757
  %v1790 = vadd.f32 %v1571, %v1760
  %v1791 = vadd.f32 %v1572, %v1765
  %v1792 = vadd.f32 %v1573, %v1768
  %v1793 = vadd.f32 %v1574, %v1773
  %v1794 = vadd.f32 %v1575, %v1776
  %s1795 = scalar_lea.vmem %s1, 512
  %v1796 = vld [vmem:[%s1795] sm:$0xf]
  %v1797 = vld [vmem:[%s1795 + $0x4] sm:$0xf]
  %v1798 = vld [vmem:[%s1795 + $0x8] sm:$0xf]
  %v1799 = vld [vmem:[%s1795 + $0xc] sm:$0xf]
  %v1800 = vld [vmem:[%s1795 + $0x10] sm:$0xf]
  %v1801 = vld [vmem:[%s1795 + $0x14] sm:$0xf]
  %v1802 = vld [vmem:[%s1795 + $0x18] sm:$0xf]
  %v1803 = vld [vmem:[%s1795 + $0x1c] sm:$0xf]
  %v1804 = vld [vmem:[%s1795 + $0x20] sm:$0xf]
  %v1805 = vld [vmem:[%s1795 + $0x24] sm:$0xf]
  %v1806 = vld [vmem:[%s1795 + $0x28] sm:$0xf]
  %v1807 = vld [vmem:[%s1795 + $0x2c] sm:$0xf]
  %v1808 = vld [vmem:[%s1795 + $0x30] sm:$0xf]
  %v1809 = vld [vmem:[%s1795 + $0x34] sm:$0xf]
  %v1810 = vld [vmem:[%s1795 + $0x38] sm:$0xf]
  %v1811 = vld [vmem:[%s1795 + $0x3c] sm:$0xf]
  %v1828 = vunpack.c.l.b16 %v1796
  %v1829 = vunpack.c.l.b16 %v1797
  %v1830 = vunpack.c.l.b16 %v1798
  %v1831 = vunpack.c.l.b16 %v1799
  %v1832 = vunpack.c.l.b16 %v1800
  %v1833 = vunpack.c.l.b16 %v1801
  %v1834 = vunpack.c.l.b16 %v1802
  %v1835 = vunpack.c.l.b16 %v1803
  %v1836 = vunpack.c.l.b16 %v1804
  %v1837 = vunpack.c.l.b16 %v1805
  %v1838 = vunpack.c.l.b16 %v1806
  %v1839 = vunpack.c.l.b16 %v1807
  %v1840 = vunpack.c.l.b16 %v1808
  %v1841 = vunpack.c.l.b16 %v1809
  %v1842 = vunpack.c.l.b16 %v1810
  %v1843 = vunpack.c.l.b16 %v1811
  %v1844 = vpack.c.b16 %v1829, %v1828
  %v1845 = vpack.c.b16 %v1831, %v1830
  %v1846 = vpack.c.b16 %v1833, %v1832
  %v1847 = vpack.c.b16 %v1835, %v1834
  %v1848 = vpack.c.b16 %v1837, %v1836
  %v1849 = vpack.c.b16 %v1839, %v1838
  %v1850 = vpack.c.b16 %v1841, %v1840
  %v1851 = vpack.c.b16 %v1843, %v1842
  %1852 = vrot.lane.b32.xlu0 %v141, 114
  %v1853 = vpop.permute.xlu0 %1852
  %1854 = vrot.lane.b32.xlu0 %v142, 114
  %v1855 = vpop.permute.xlu0 %1854
  %1856 = vrot.lane.b32.xlu0 %v143, 114
  %v1857 = vpop.permute.xlu0 %1856
  %1858 = vrot.lane.b32.xlu0 %v144, 114
  %v1859 = vpop.permute.xlu0 %1858
  %1860 = vrot.lane.b32.xlu0 %v145, 114
  %v1861 = vpop.permute.xlu0 %1860
  %1862 = vrot.lane.b32.xlu0 %v146, 114
  %v1863 = vpop.permute.xlu0 %1862
  %1864 = vrot.lane.b32.xlu0 %v147, 114
  %v1865 = vpop.permute.xlu0 %1864
  %1866 = vrot.lane.b32.xlu0 %v148, 114
  %v1867 = vpop.permute.xlu0 %1866
  %vm1868 = vcmask 932864
  %v1869 = vsel %vm1868, %v1853, %v1855
  %v1870 = vsel %vm1868, %v1857, %v1859
  %v1871 = vsel %vm1868, %v1861, %v1863
  %v1872 = vsel %vm1868, %v1865, %v1867
  %v1878 = vsel %vm174, %v1844, 0
  %v1881 = vsel %vm174, %v1845, 0
  %v1884 = vsel %vm174, %v1846, 0
  %v1887 = vsel %vm174, %v1847, 0
  %v1890 = vsel %vm174, %v1848, 0
  %v1893 = vsel %vm174, %v1849, 0
  %v1896 = vsel %vm174, %v1850, 0
  %v1899 = vsel %vm174, %v1851, 0
  %1901 = vmatprep.subr.bf16.mxu0 0
  %1902 = vmatpush1.bf16.msra.mxu0 %v1869
  %1903 = vmatprep.subr.bf16.mxu0 0
  %1904 = vmatpush1.bf16.msra.mxu0 %v1870
  %1905 = vmatprep.subr.bf16.mxu0 0
  %1906 = vmatpush1.bf16.msra.mxu0 %v1871
  %1907 = vmatprep.subr.bf16.mxu0 0
  %1908 = vmatpush1.bf16.msra.mxu0 %v1872
  %1909 = vmatprep.subr.bf16.mxu0 0
  %1910 = vmatpush1.bf16.msra.mxu0 0
  %1911 = vmatprep.subr.bf16.mxu0 0
  %1912 = vmatpush1.bf16.msra.mxu0 0
  %1913 = vmatprep.subr.bf16.mxu0 0
  %1914 = vmatpush1.bf16.msra.mxu0 0
  %1915 = vmatprep.subr.bf16.mxu0 0
  %1916 = vmatpush1.bf16.msra.mxu0 0
  %1917 = vmatprep.subr.bf16.mxu0 0
  %1918 = vmatpush1.bf16.msra.mxu0 0
  %1919 = vmatprep.subr.bf16.mxu0 0
  %1920 = vmatpush1.bf16.msra.mxu0 0
  %1921 = vmatprep.subr.bf16.mxu0 0
  %1922 = vmatpush1.bf16.msra.mxu0 0
  %1923 = vmatprep.subr.bf16.mxu0 0
  %1924 = vmatpush1.bf16.msra.mxu0 0
  %1925 = vmatprep.subr.bf16.mxu0 0
  %1926 = vmatpush1.bf16.msra.mxu0 0
  %1927 = vmatprep.subr.bf16.mxu0 0
  %1928 = vmatpush1.bf16.msra.mxu0 0
  %1929 = vmatprep.subr.bf16.mxu0 0
  %1930 = vmatpush1.bf16.msra.mxu0 0
  %1931 = vmatprep.subr.bf16.mxu0 0
  %1932 = vmatpush1.bf16.msra.mxu0 0
  %1933 = vmatprep.mubr.bf16.mxu0 0
  %1934 = vmatmul.mubr.bf16.gmra.mrb[0].mxu0 %v1878
  %v1935 = vpop.f32.mrb[0].mxu0
  %v1936 = vadd.f32 0.0, %v1935
  %v1937 = vpop.f32.mrb[0].mxu0
  %v1938 = vpop.f32.mrb[0].mxu0
  %v1939 = vadd.f32 0.0, %v1938
  %v1940 = vpop.f32.mrb[0].mxu0
  %1941 = vmatprep.mubr.bf16.mxu0 0
  %1942 = vmatmul.mubr.bf16.gmra.mrb[0].mxu0 %v1881
  %v1943 = vpop.f32.mrb[0].mxu0
  %v1944 = vadd.f32 0.0, %v1943
  %v1945 = vpop.f32.mrb[0].mxu0
  %v1946 = vpop.f32.mrb[0].mxu0
  %v1947 = vadd.f32 0.0, %v1946
  %v1948 = vpop.f32.mrb[0].mxu0
  %1949 = vmatprep.mubr.bf16.mxu0 0
  %1950 = vmatmul.mubr.bf16.gmra.mrb[0].mxu0 %v1884
  %v1951 = vpop.f32.mrb[0].mxu0
  %v1952 = vadd.f32 0.0, %v1951
  %v1953 = vpop.f32.mrb[0].mxu0
  %v1954 = vpop.f32.mrb[0].mxu0
  %v1955 = vadd.f32 0.0, %v1954
  %v1956 = vpop.f32.mrb[0].mxu0
  %1957 = vmatprep.mubr.bf16.mxu0 0
  %1958 = vmatmul.mubr.bf16.gmra.mrb[0].mxu0 %v1887
  %v1959 = vpop.f32.mrb[0].mxu0
  %v1960 = vadd.f32 0.0, %v1959
  %v1961 = vpop.f32.mrb[0].mxu0
  %v1962 = vpop.f32.mrb[0].mxu0
  %v1963 = vadd.f32 0.0, %v1962
  %v1964 = vpop.f32.mrb[0].mxu0
  %1965 = vmatprep.mubr.bf16.mxu0 0
  %1966 = vmatmul.mubr.bf16.gmra.mrb[0].mxu0 %v1890
  %v1967 = vpop.f32.mrb[0].mxu0
  %v1968 = vadd.f32 0.0, %v1967
  %v1969 = vpop.f32.mrb[0].mxu0
  %v1970 = vpop.f32.mrb[0].mxu0
  %v1971 = vadd.f32 0.0, %v1970
  %v1972 = vpop.f32.mrb[0].mxu0
  %1973 = vmatprep.mubr.bf16.mxu0 0
  %1974 = vmatmul.mubr.bf16.gmra.mrb[0].mxu0 %v1893
  %v1975 = vpop.f32.mrb[0].mxu0
  %v1976 = vadd.f32 0.0, %v1975
  %v1977 = vpop.f32.mrb[0].mxu0
  %v1978 = vpop.f32.mrb[0].mxu0
  %v1979 = vadd.f32 0.0, %v1978
  %v1980 = vpop.f32.mrb[0].mxu0
  %1981 = vmatprep.mubr.bf16.mxu0 0
  %1982 = vmatmul.mubr.bf16.gmra.mrb[0].mxu0 %v1896
  %v1983 = vpop.f32.mrb[0].mxu0
  %v1984 = vadd.f32 0.0, %v1983
  %v1985 = vpop.f32.mrb[0].mxu0
  %v1986 = vpop.f32.mrb[0].mxu0
  %v1987 = vadd.f32 0.0, %v1986
  %v1988 = vpop.f32.mrb[0].mxu0
  %1989 = vmatprep.mubr.bf16.mxu0 0
  %1990 = vmatmul.mubr.bf16.gmra.mrb[0].mxu0 %v1899
  %v1991 = vpop.f32.mrb[0].mxu0
  %v1992 = vadd.f32 0.0, %v1991
  %v1993 = vpop.f32.mrb[0].mxu0
  %v1994 = vpop.f32.mrb[0].mxu0
  %v1995 = vadd.f32 0.0, %v1994
  %v1996 = vpop.f32.mrb[0].mxu0
  %1997 = vdwg.mxu0
  %v1998 = vadd.f32 %v1779, %v1936
  %v1999 = vadd.f32 %v1780, %v1939
  %v2000 = vadd.f32 %v1781, %v1944
  %v2001 = vadd.f32 %v1782, %v1947
  %v2002 = vadd.f32 %v1783, %v1952
  %v2003 = vadd.f32 %v1784, %v1955
  %v2004 = vadd.f32 %v1785, %v1960
  %v2005 = vadd.f32 %v1786, %v1963
  %v2006 = vadd.f32 %v1787, %v1968
  %v2007 = vadd.f32 %v1788, %v1971
  %v2008 = vadd.f32 %v1789, %v1976
  %v2009 = vadd.f32 %v1790, %v1979
  %v2010 = vadd.f32 %v1791, %v1984
  %v2011 = vadd.f32 %v1792, %v1987
  %v2012 = vadd.f32 %v1793, %v1992
  %v2013 = vadd.f32 %v1794, %v1995
  %s2014 = sld [smem:[#allocation2]]
  %v2015 = vstv %s2014
  %v2016 = vmul.f32 %v1998, %v2015
  %v2017 = vmul.f32 %v1999, %v2015
  %v2018 = vmul.f32 %v2000, %v2015
  %v2019 = vmul.f32 %v2001, %v2015
  %v2020 = vmul.f32 %v2002, %v2015
  %v2021 = vmul.f32 %v2003, %v2015
  %v2022 = vmul.f32 %v2004, %v2015
  %v2023 = vmul.f32 %v2005, %v2015
  %v2024 = vmul.f32 %v2006, %v2015
  %v2025 = vmul.f32 %v2007, %v2015
  %v2026 = vmul.f32 %v2008, %v2015
  %v2027 = vmul.f32 %v2009, %v2015
  %v2028 = vmul.f32 %v2010, %v2015
  %v2029 = vmul.f32 %v2011, %v2015
  %v2030 = vmul.f32 %v2012, %v2015
  %v2031 = vmul.f32 %v2013, %v2015
  %v2032 = vld [vmem:[%s2] sm:$0xff]
  %v2033 = vld [vmem:[%s2 + $0x8] sm:$0xff]
  %v2034 = vld [vmem:[%s2 + $0x10] sm:$0xff]
  %v2035 = vld [vmem:[%s2 + $0x18] sm:$0xff]
  %v2036 = vld [vmem:[%s2 + $0x20] sm:$0xff]
  %v2037 = vld [vmem:[%s2 + $0x28] sm:$0xff]
  %v2038 = vld [vmem:[%s2 + $0x30] sm:$0xff]
  %v2039 = vld [vmem:[%s2 + $0x38] sm:$0xff]
  %v2040 = vld [vmem:[%s2 + $0x40] sm:$0xff]
  %v2041 = vld [vmem:[%s2 + $0x48] sm:$0xff]
  %v2042 = vld [vmem:[%s2 + $0x50] sm:$0xff]
  %v2043 = vld [vmem:[%s2 + $0x58] sm:$0xff]
  %v2044 = vld [vmem:[%s2 + $0x60] sm:$0xff]
  %v2045 = vld [vmem:[%s2 + $0x68] sm:$0xff]
  %v2046 = vld [vmem:[%s2 + $0x70] sm:$0xff]
  %v2047 = vld [vmem:[%s2 + $0x78] sm:$0xff]
  %2049 = vset.pattern.permute.xlu0 0
  %2050 = vperm.xlu0 %2049, %v2032
  %v2051 = vpop.permute.xlu0 %2050
  %2054 = vset.pattern.permute.xlu0 0
  %2055 = vperm.xlu0 %2054, %v2033
  %v2056 = vpop.permute.xlu0 %2055
  %2059 = vset.pattern.permute.xlu0 0
  %2060 = vperm.xlu0 %2059, %v2034
  %v2061 = vpop.permute.xlu0 %2060
  %2064 = vset.pattern.permute.xlu0 0
  %2065 = vperm.xlu0 %2064, %v2035
  %v2066 = vpop.permute.xlu0 %2065
  %2069 = vset.pattern.permute.xlu0 0
  %2070 = vperm.xlu0 %2069, %v2036
  %v2071 = vpop.permute.xlu0 %2070
  %2074 = vset.pattern.permute.xlu0 0
  %2075 = vperm.xlu0 %2074, %v2037
  %v2076 = vpop.permute.xlu0 %2075
  %2079 = vset.pattern.permute.xlu0 0
  %2080 = vperm.xlu0 %2079, %v2038
  %v2081 = vpop.permute.xlu0 %2080
  %2084 = vset.pattern.permute.xlu0 0
  %2085 = vperm.xlu0 %2084, %v2039
  %v2086 = vpop.permute.xlu0 %2085
  %2089 = vset.pattern.permute.xlu0 0
  %2090 = vperm.xlu0 %2089, %v2040
  %v2091 = vpop.permute.xlu0 %2090
  %2094 = vset.pattern.permute.xlu0 0
  %2095 = vperm.xlu0 %2094, %v2041
  %v2096 = vpop.permute.xlu0 %2095
  %2099 = vset.pattern.permute.xlu0 0
  %2100 = vperm.xlu0 %2099, %v2042
  %v2101 = vpop.permute.xlu0 %2100
  %2104 = vset.pattern.permute.xlu0 0
  %2105 = vperm.xlu0 %2104, %v2043
  %v2106 = vpop.permute.xlu0 %2105
  %2109 = vset.pattern.permute.xlu0 0
  %2110 = vperm.xlu0 %2109, %v2044
  %v2111 = vpop.permute.xlu0 %2110
  %2114 = vset.pattern.permute.xlu0 0
  %2115 = vperm.xlu0 %2114, %v2045
  %v2116 = vpop.permute.xlu0 %2115
  %2119 = vset.pattern.permute.xlu0 0
  %2120 = vperm.xlu0 %2119, %v2046
  %v2121 = vpop.permute.xlu0 %2120
  %2124 = vset.pattern.permute.xlu0 0
  %2125 = vperm.xlu0 %2124, %v2047
  %v2126 = vpop.permute.xlu0 %2125
  %v2128 = vadd.f32 %v2016, %v2051
  %v2129 = vadd.f32 %v2017, %v2056
  %v2130 = vadd.f32 %v2018, %v2061
  %v2131 = vadd.f32 %v2019, %v2066
  %v2132 = vadd.f32 %v2020, %v2071
  %v2133 = vadd.f32 %v2021, %v2076
  %v2134 = vadd.f32 %v2022, %v2081
  %v2135 = vadd.f32 %v2023, %v2086
  %v2136 = vadd.f32 %v2024, %v2091
  %v2137 = vadd.f32 %v2025, %v2096
  %v2138 = vadd.f32 %v2026, %v2101
  %v2139 = vadd.f32 %v2027, %v2106
  %v2140 = vadd.f32 %v2028, %v2111
  %v2141 = vadd.f32 %v2029, %v2116
  %v2142 = vadd.f32 %v2030, %v2121
  %v2143 = vadd.f32 %v2031, %v2126
  %v2144 = vld [vmem:[%s6] sm:$0x1]
  %v2145 = vmul.f32 %v2128, %v2128
  %v2146 = vmul.f32 %v2129, %v2129
  %v2147 = vmul.f32 %v2130, %v2130
  %v2148 = vmul.f32 %v2131, %v2131
  %v2149 = vadd.f32 %v2128, %v2132
  %v2150 = vadd.f32 %v2129, %v2133
  %v2151 = vadd.f32 %v2130, %v2134
  %v2152 = vadd.f32 %v2131, %v2135
  %v2153 = vmul.f32 %v2132, %v2132
  %v2154 = vmul.f32 %v2133, %v2133
  %v2155 = vmul.f32 %v2134, %v2134
  %v2156 = vmul.f32 %v2135, %v2135
  %v2157 = vadd.f32 %v2145, %v2153
  %v2158 = vadd.f32 %v2146, %v2154
  %v2159 = vadd.f32 %v2147, %v2155
  %v2160 = vadd.f32 %v2148, %v2156
  %v2161 = vadd.f32 %v2149, %v2136
  %v2162 = vadd.f32 %v2150, %v2137
  %v2163 = vadd.f32 %v2151, %v2138
  %v2164 = vadd.f32 %v2152, %v2139
  %v2165 = vmul.f32 %v2136, %v2136
  %v2166 = vmul.f32 %v2137, %v2137
  %v2167 = vmul.f32 %v2138, %v2138
  %v2168 = vmul.f32 %v2139, %v2139
  %v2169 = vadd.f32 %v2157, %v2165
  %v2170 = vadd.f32 %v2158, %v2166
  %v2171 = vadd.f32 %v2159, %v2167
  %v2172 = vadd.f32 %v2160, %v2168
  %v2173 = vadd.f32 %v2161, %v2140
  %v2174 = vadd.f32 %v2162, %v2141
  %v2175 = vadd.f32 %v2163, %v2142
  %v2176 = vadd.f32 %v2164, %v2143
  %v2177 = vmul.f32 %v2140, %v2140
  %v2178 = vmul.f32 %v2141, %v2141
  %v2179 = vmul.f32 %v2142, %v2142
  %v2180 = vmul.f32 %v2143, %v2143
  %v2181 = vadd.f32 %v2169, %v2177
  %v2182 = vadd.f32 %v2170, %v2178
  %v2183 = vadd.f32 %v2171, %v2179
  %v2184 = vadd.f32 %v2172, %v2180
  %v2186 = vlaneseq
  %v2187 = vshrl.u32 %v2186, 7
  %v2188 = vsub.s32 0, %v2187
  %v2189 = vrot.slane %v2144, %v2188
  %v2191 = vmul.f32 %v2173, %v2189
  %v2192 = vmul.f32 %v2174, %v2189
  %v2193 = vmul.f32 %v2175, %v2189
  %v2194 = vmul.f32 %v2176, %v2189
  %2195 = vadd.xlane.f32.xlu0 %v2191
  %v2196 = vpop.xlane.xlu0 %2195
  %2197 = vadd.xlane.f32.xlu0 %v2192
  %v2198 = vpop.xlane.xlu0 %2197
  %2199 = vadd.xlane.f32.xlu0 %v2193
  %v2200 = vpop.xlane.xlu0 %2199
  %2201 = vadd.xlane.f32.xlu0 %v2194
  %v2202 = vpop.xlane.xlu0 %2201
  %v2203 = vmul.f32 %v2196, 0.0078125
  %v2204 = vmul.f32 %v2198, 0.0078125
  %v2205 = vmul.f32 %v2200, 0.0078125
  %v2206 = vmul.f32 %v2202, 0.0078125
  %v2207 = vmul.f32 %v2181, %v2189
  %v2208 = vmul.f32 %v2182, %v2189
  %v2209 = vmul.f32 %v2183, %v2189
  %v2210 = vmul.f32 %v2184, %v2189
  %2211 = vadd.xlane.f32.xlu0 %v2207
  %v2212 = vpop.xlane.xlu0 %2211
  %2213 = vadd.xlane.f32.xlu0 %v2208
  %v2214 = vpop.xlane.xlu0 %2213
  %2215 = vadd.xlane.f32.xlu0 %v2209
  %v2216 = vpop.xlane.xlu0 %2215
  %2217 = vadd.xlane.f32.xlu0 %v2210
  %v2218 = vpop.xlane.xlu0 %2217
  %v2219 = vmul.f32 %v2212, 0.0078125
  %v2220 = vmul.f32 %v2214, 0.0078125
  %v2221 = vmul.f32 %v2216, 0.0078125
  %v2222 = vmul.f32 %v2218, 0.0078125
  %v2223 = vmul.f32 %v2203, %v2203
  %v2224 = vmul.f32 %v2204, %v2204
  %v2225 = vmul.f32 %v2205, %v2205
  %v2226 = vmul.f32 %v2206, %v2206
  %v2227 = vsub.f32 %v2219, %v2223
  %v2228 = vsub.f32 %v2220, %v2224
  %v2229 = vsub.f32 %v2221, %v2225
  %v2230 = vsub.f32 %v2222, %v2226
  %v2231 = vld [vmem:[%s4] sm:$0xff]
  %v2232 = vld [vmem:[%s4 + $0x8] sm:$0xff]
  %v2233 = vld [vmem:[%s4 + $0x10] sm:$0xff]
  %v2234 = vld [vmem:[%s4 + $0x18] sm:$0xff]
  %v2235 = vadd.f32 %v2227, 1e-05
  %v2236 = vadd.f32 %v2228, 1e-05
  %v2237 = vadd.f32 %v2229, 1e-05
  %v2238 = vadd.f32 %v2230, 1e-05
  %v2239 = vrsqrt.pop %v2235
  %v2240 = vrsqrt.pop %v2236
  %v2241 = vrsqrt.pop %v2237
  %v2242 = vrsqrt.pop %v2238
  %v2243 = vmul.f32 %v2231, %v2239
  %v2244 = vmul.f32 %v2232, %v2240
  %v2245 = vmul.f32 %v2233, %v2241
  %v2246 = vmul.f32 %v2234, %v2242
  %v2247 = vld [vmem:[%s5] sm:$0xff]
  %v2248 = vld [vmem:[%s5 + $0x8] sm:$0xff]
  %v2249 = vld [vmem:[%s5 + $0x10] sm:$0xff]
  %v2250 = vld [vmem:[%s5 + $0x18] sm:$0xff]
  %v2251 = vmul.f32 %v2203, %v2243
  %v2252 = vmul.f32 %v2204, %v2244
  %v2253 = vmul.f32 %v2205, %v2245
  %v2254 = vmul.f32 %v2206, %v2246
  %v2255 = vsub.f32 %v2247, %v2251
  %v2256 = vsub.f32 %v2248, %v2252
  %v2257 = vsub.f32 %v2249, %v2253
  %v2258 = vsub.f32 %v2250, %v2254
  %2260 = vset.pattern.permute.xlu0 0
  %2261 = vperm.xlu0 %2260, %v2243
  %v2262 = vpop.permute.xlu0 %2261
  %2265 = vset.pattern.permute.xlu0 0
  %2266 = vperm.xlu0 %2265, %v2244
  %v2267 = vpop.permute.xlu0 %2266
  %2270 = vset.pattern.permute.xlu0 0
  %2271 = vperm.xlu0 %2270, %v2245
  %v2272 = vpop.permute.xlu0 %2271
  %2275 = vset.pattern.permute.xlu0 0
  %2276 = vperm.xlu0 %2275, %v2246
  %v2277 = vpop.permute.xlu0 %2276
  %v2279 = vmul.f32 %v2128, %v2262
  %v2280 = vmul.f32 %v2129, %v2267
  %v2281 = vmul.f32 %v2130, %v2272
  %v2282 = vmul.f32 %v2131, %v2277
  %2284 = vset.pattern.permute.xlu0 0
  %2285 = vperm.xlu0 %2284, %v2255
  %v2286 = vpop.permute.xlu0 %2285
  %2289 = vset.pattern.permute.xlu0 0
  %2290 = vperm.xlu0 %2289, %v2256
  %v2291 = vpop.permute.xlu0 %2290
  %2294 = vset.pattern.permute.xlu0 0
  %2295 = vperm.xlu0 %2294, %v2257
  %v2296 = vpop.permute.xlu0 %2295
  %2299 = vset.pattern.permute.xlu0 0
  %2300 = vperm.xlu0 %2299, %v2258
  %v2301 = vpop.permute.xlu0 %2300
  %v2303 = vadd.f32 %v2279, %v2286
  %v2304 = vadd.f32 %v2280, %v2291
  %v2305 = vadd.f32 %v2281, %v2296
  %v2306 = vadd.f32 %v2282, %v2301
  %v2307 = vmax.f32 %v2303, 0.0
  %v2308 = vmax.f32 %v2304, 0.0
  %v2309 = vmax.f32 %v2305, 0.0
  %v2310 = vmax.f32 %v2306, 0.0
  %v2311 = vpack.c.bf16 %v2308, %v2307
  %v2312 = vpack.c.bf16 %v2310, %v2309
  %v2315 = vunpack.c.l.b16 %v2311
  %v2316 = vunpack.c.h.b16 %v2311
  %v2317 = vunpack.c.l.b16 %v2312
  %v2318 = vunpack.c.h.b16 %v2312
  %v2319 = vpack.c.b16 %v2315, %v2315
  %v2320 = vpack.c.b16 %v2316, %v2316
  %v2321 = vpack.c.b16 %v2317, %v2317
  %v2322 = vpack.c.b16 %v2318, %v2318
  %2327 = vst [vmem:[%s7] sm:$0xf] %v2319
  %2328 = vst [vmem:[%s7 + $0x4] sm:$0xf] %v2320
  %2329 = vst [vmem:[%s7 + $0x8] sm:$0xf] %v2321
  %2330 = vst [vmem:[%s7 + $0xc] sm:$0xf] %v2322
  %v2331 = vmul.f32 %v2132, %v2262
  %v2332 = vmul.f32 %v2133, %v2267
  %v2333 = vmul.f32 %v2134, %v2272
  %v2334 = vmul.f32 %v2135, %v2277
  %v2335 = vadd.f32 %v2331, %v2286
  %v2336 = vadd.f32 %v2332, %v2291
  %v2337 = vadd.f32 %v2333, %v2296
  %v2338 = vadd.f32 %v2334, %v2301
  %v2339 = vmax.f32 %v2335, 0.0
  %v2340 = vmax.f32 %v2336, 0.0
  %v2341 = vmax.f32 %v2337, 0.0
  %v2342 = vmax.f32 %v2338, 0.0
  %v2343 = vpack.c.bf16 %v2340, %v2339
  %v2344 = vpack.c.bf16 %v2342, %v2341
  %v2347 = vunpack.c.l.b16 %v2343
  %v2348 = vunpack.c.h.b16 %v2343
  %v2349 = vunpack.c.l.b16 %v2344
  %v2350 = vunpack.c.h.b16 %v2344
  %v2351 = vpack.c.b16 %v2347, %v2347
  %v2352 = vpack.c.b16 %v2348, %v2348
  %v2353 = vpack.c.b16 %v2349, %v2349
  %v2354 = vpack.c.b16 %v2350, %v2350
  %2359 = vst [vmem:[%s7 + $0x10] sm:$0xf] %v2351
  %2360 = vst [vmem:[%s7 + $0x14] sm:$0xf] %v2352
  %2361 = vst [vmem:[%s7 + $0x18] sm:$0xf] %v2353
  %2362 = vst [vmem:[%s7 + $0x1c] sm:$0xf] %v2354
  %v2363 = vmul.f32 %v2136, %v2262
  %v2364 = vmul.f32 %v2137, %v2267
  %v2365 = vmul.f32 %v2138, %v2272
  %v2366 = vmul.f32 %v2139, %v2277
  %v2367 = vadd.f32 %v2363, %v2286
  %v2368 = vadd.f32 %v2364, %v2291
  %v2369 = vadd.f32 %v2365, %v2296
  %v2370 = vadd.f32 %v2366, %v2301
  %v2371 = vmax.f32 %v2367, 0.0
  %v2372 = vmax.f32 %v2368, 0.0
  %v2373 = vmax.f32 %v2369, 0.0
  %v2374 = vmax.f32 %v2370, 0.0
  %v2375 = vpack.c.bf16 %v2372, %v2371
  %v2376 = vpack.c.bf16 %v2374, %v2373
  %v2379 = vunpack.c.l.b16 %v2375
  %v2380 = vunpack.c.h.b16 %v2375
  %v2381 = vunpack.c.l.b16 %v2376
  %v2382 = vunpack.c.h.b16 %v2376
  %v2383 = vpack.c.b16 %v2379, %v2379
  %v2384 = vpack.c.b16 %v2380, %v2380
  %v2385 = vpack.c.b16 %v2381, %v2381
  %v2386 = vpack.c.b16 %v2382, %v2382
  %2391 = vst [vmem:[%s7 + $0x20] sm:$0xf] %v2383
  %2392 = vst [vmem:[%s7 + $0x24] sm:$0xf] %v2384
  %2393 = vst [vmem:[%s7 + $0x28] sm:$0xf] %v2385
  %2394 = vst [vmem:[%s7 + $0x2c] sm:$0xf] %v2386
  %v2395 = vmul.f32 %v2140, %v2262
  %v2396 = vmul.f32 %v2141, %v2267
  %v2397 = vmul.f32 %v2142, %v2272
  %v2398 = vmul.f32 %v2143, %v2277
  %v2399 = vadd.f32 %v2395, %v2286
  %v2400 = vadd.f32 %v2396, %v2291
  %v2401 = vadd.f32 %v2397, %v2296
  %v2402 = vadd.f32 %v2398, %v2301
  %v2403 = vmax.f32 %v2399, 0.0
  %v2404 = vmax.f32 %v2400, 0.0
  %v2405 = vmax.f32 %v2401, 0.0
  %v2406 = vmax.f32 %v2402, 0.0
  %v2407 = vpack.c.bf16 %v2404, %v2403
  %v2408 = vpack.c.bf16 %v2406, %v2405
  %v2411 = vunpack.c.l.b16 %v2407
  %v2412 = vunpack.c.h.b16 %v2407
  %v2413 = vunpack.c.l.b16 %v2408
  %v2414 = vunpack.c.h.b16 %v2408
  %v2415 = vpack.c.b16 %v2411, %v2411
  %v2416 = vpack.c.b16 %v2412, %v2412
  %v2417 = vpack.c.b16 %v2413, %v2413
  %v2418 = vpack.c.b16 %v2414, %v2414
  %2423 = vst [vmem:[%s7 + $0x30] sm:$0xf] %v2415
  %2424 = vst [vmem:[%s7 + $0x34] sm:$0xf] %v2416
  %2425 = vst [vmem:[%s7 + $0x38] sm:$0xf] %v2417
  %2426 = vst [vmem:[%s7 + $0x3c] sm:$0xf] %v2418
  // Predicated region
  $region30: #{generator_forward.5} parent=0 // pred_check
    _
  $region31: #{generator_forward.5} parent=0 // pred_check_branch
    %2428 = sbr.rel (0) target = $region33
  $region32: #{generator_forward.5} parent=0 // pred_region
    _
  $region33: #{generator_forward.5} parent=0 // pred_fallthru
    _
  // Predicated region
  $region34: #{generator_forward.5} parent=0 // pred_check
    _
  $region35: #{generator_forward.5} parent=0 // pred_check_branch
    %2430 = sbr.rel (0) target = $region37
  $region36: #{generator_forward.5} parent=0 // pred_region
    _
  $region37: #{generator_forward.5} parent=0 // pred_fallthru
    _

// kernel: generator_forward.4
$region0: #{generator_forward.4}
  #allocation0 [shape = 'u32[]', space=smem, size = 0x4, offset = 0x4, fixed_abs, tag = 'smem constant byte address 0x4 - core index']
  #allocation1 [shape = 'u32[144,128]{1,0:T(1,128)}', space=vmem, size = 0x12000, scoped, tag = 'internal scratch']
  #allocation2 [shape = 'f32[1,1]{1,0:T(1,128)S(6)}', space=smem, size = 0x200, scoped, tag = 'scoped memory for generator_forward.4']
  %s0 = inlined_call_operand.vmem [shape: bf16[32,128], index: 0, kind: input, shape index: {}]
  %s1 = inlined_call_operand.vmem [shape: bf16[1024,32], index: 1, kind: input, shape index: {}]
  %s2 = inlined_call_operand.vmem [shape: f32[1024,1], index: 2, kind: input, shape index: {}]
  %s3 = inlined_call_operand.<no memory space> [shape: f32[1,1], index: 3, kind: input, shape index: {}]
  %s4 = inlined_call_operand.vmem [shape: f32[64,1], index: 4, kind: input, shape index: {}]
  %s5 = inlined_call_operand.vmem [shape: f32[64,1], index: 5, kind: input, shape index: {}]
  %s6 = inlined_call_operand.vmem [shape: f32[1,128], index: 6, kind: input, shape index: {}]
  %s7 = inlined_call_operand.vmem [shape: bf16[1024,128], index: 7, kind: output, shape index: {}]
  %s8 = sld [smem:[#allocation0]]
  $region38: #{generator_forward.4} parent=0
    _
  %s10 = ssub.s32 1, %s8
  %s11 = scalar_select 0, %s10, %s8
  %12 = sst [smem:[#allocation2]] %s3
  // Predicated region
  $region2: #{generator_forward.4} parent=0 // pred_check
    _
  $region3: #{generator_forward.4} parent=0 // pred_check_branch
    %14 = sbr.rel (0) target = $region5
  $region4: #{generator_forward.4} parent=0 // pred_region
    _
  $region5: #{generator_forward.4} parent=0 // pred_fallthru
    _
  // Predicated region
  $region6: #{generator_forward.4} parent=0 // pred_check
    _
  $region7: #{generator_forward.4} parent=0 // pred_check_branch
    %16 = sbr.rel (0) target = $region9
  $region8: #{generator_forward.4} parent=0 // pred_region
    _
  $region9: #{generator_forward.4} parent=0 // pred_fallthru
    _
  // Predicated region
  $region10: #{generator_forward.4} parent=0 // pred_check
    _
  $region11: #{generator_forward.4} parent=0 // pred_check_branch
    %18 = sbr.rel (0) target = $region13
  $region12: #{generator_forward.4} parent=0 // pred_region
    _
  $region13: #{generator_forward.4} parent=0 // pred_fallthru
    _
  // Predicated region
  $region14: #{generator_forward.4} parent=0 // pred_check
    _
  $region15: #{generator_forward.4} parent=0 // pred_check_branch
    %20 = sbr.rel (0) target = $region17
  $region16: #{generator_forward.4} parent=0 // pred_region
    _
  $region17: #{generator_forward.4} parent=0 // pred_fallthru
    _
  // Predicated region
  $region18: #{generator_forward.4} parent=0 // pred_check
    _
  $region19: #{generator_forward.4} parent=0 // pred_check_branch
    %22 = sbr.rel (0) target = $region21
  $region20: #{generator_forward.4} parent=0 // pred_region
    _
  $region21: #{generator_forward.4} parent=0 // pred_fallthru
    _
  // Predicated region
  $region22: #{generator_forward.4} parent=0 // pred_check
    _
  $region23: #{generator_forward.4} parent=0 // pred_check_branch
    %24 = sbr.rel (0) target = $region25
  $region24: #{generator_forward.4} parent=0 // pred_region
    _
  $region25: #{generator_forward.4} parent=0 // pred_fallthru
    _
  // Predicated region
  $region26: #{generator_forward.4} parent=0 // pred_check
    _
  $region27: #{generator_forward.4} parent=0 // pred_check_branch
    %26 = sbr.rel (0) target = $region29
  $region28: #{generator_forward.4} parent=0 // pred_region
    _
  $region29: #{generator_forward.4} parent=0 // pred_fallthru
    _
  %v28 = vld [vmem:[%s1] sm:$0xf]
  %v29 = vld [vmem:[%s1 + $0x4] sm:$0xf]
  %v30 = vld [vmem:[%s1 + $0x8] sm:$0xf]
  %v31 = vld [vmem:[%s1 + $0xc] sm:$0xf]
  %v32 = vld [vmem:[%s1 + $0x10] sm:$0xf]
  %v33 = vld [vmem:[%s1 + $0x14] sm:$0xf]
  %v34 = vld [vmem:[%s1 + $0x18] sm:$0xf]
  %v35 = vld [vmem:[%s1 + $0x1c] sm:$0xf]
  %v36 = vld [vmem:[%s1 + $0x20] sm:$0xf]
  %v37 = vld [vmem:[%s1 + $0x24] sm:$0xf]
  %v38 = vld [vmem:[%s1 + $0x28] sm:$0xf]
  %v39 = vld [vmem:[%s1 + $0x2c] sm:$0xf]
  %v40 = vld [vmem:[%s1 + $0x30] sm:$0xf]
  %v41 = vld [vmem:[%s1 + $0x34] sm:$0xf]
  %v42 = vld [vmem:[%s1 + $0x38] sm:$0xf]
  %v43 = vld [vmem:[%s1 + $0x3c] sm:$0xf]
  %v44 = vld [vmem:[%s1 + $0x40] sm:$0xf]
  %v45 = vld [vmem:[%s1 + $0x44] sm:$0xf]
  %v46 = vld [vmem:[%s1 + $0x48] sm:$0xf]
  %v47 = vld [vmem:[%s1 + $0x4c] sm:$0xf]
  %v48 = vld [vmem:[%s1 + $0x50] sm:$0xf]
  %v49 = vld [vmem:[%s1 + $0x54] sm:$0xf]
  %v50 = vld [vmem:[%s1 + $0x58] sm:$0xf]
  %v51 = vld [vmem:[%s1 + $0x5c] sm:$0xf]
  %v52 = vld [vmem:[%s1 + $0x60] sm:$0xf]
  %v53 = vld [vmem:[%s1 + $0x64] sm:$0xf]
  %v54 = vld [vmem:[%s1 + $0x68] sm:$0xf]
  %v55 = vld [vmem:[%s1 + $0x6c] sm:$0xf]
  %v56 = vld [vmem:[%s1 + $0x70] sm:$0xf]
  %v57 = vld [vmem:[%s1 + $0x74] sm:$0xf]
  %v58 = vld [vmem:[%s1 + $0x78] sm:$0xf]
  %v59 = vld [vmem:[%s1 + $0x7c] sm:$0xf]
  %v60 = vld [vmem:[%s1 + $0x80] sm:$0xf]
  %v61 = vld [vmem:[%s1 + $0x84] sm:$0xf]
  %v62 = vld [vmem:[%s1 + $0x88] sm:$0xf]
  %v63 = vld [vmem:[%s1 + $0x8c] sm:$0xf]
  %v64 = vld [vmem:[%s1 + $0x90] sm:$0xf]
  %v65 = vld [vmem:[%s1 + $0x94] sm:$0xf]
  %v66 = vld [vmem:[%s1 + $0x98] sm:$0xf]
  %v67 = vld [vmem:[%s1 + $0x9c] sm:$0xf]
  %v68 = vld [vmem:[%s1 + $0xa0] sm:$0xf]
  %v69 = vld [vmem:[%s1 + $0xa4] sm:$0xf]
  %v70 = vld [vmem:[%s1 + $0xa8] sm:$0xf]
  %v71 = vld [vmem:[%s1 + $0xac] sm:$0xf]
  %v72 = vld [vmem:[%s1 + $0xb0] sm:$0xf]
  %v73 = vld [vmem:[%s1 + $0xb4] sm:$0xf]
  %v74 = vld [vmem:[%s1 + $0xb8] sm:$0xf]
  %v75 = vld [vmem:[%s1 + $0xbc] sm:$0xf]
  %v76 = vld [vmem:[%s1 + $0xc0] sm:$0xf]
  %v77 = vld [vmem:[%s1 + $0xc4] sm:$0xf]
  %v78 = vld [vmem:[%s1 + $0xc8] sm:$0xf]
  %v79 = vld [vmem:[%s1 + $0xcc] sm:$0xf]
  %v80 = vld [vmem:[%s1 + $0xd0] sm:$0xf]
  %v81 = vld [vmem:[%s1 + $0xd4] sm:$0xf]
  %v82 = vld [vmem:[%s1 + $0xd8] sm:$0xf]
  %v83 = vld [vmem:[%s1 + $0xdc] sm:$0xf]
  %v84 = vld [vmem:[%s1 + $0xe0] sm:$0xf]
  %v85 = vld [vmem:[%s1 + $0xe4] sm:$0xf]
  %v86 = vld [vmem:[%s1 + $0xe8] sm:$0xf]
  %v87 = vld [vmem:[%s1 + $0xec] sm:$0xf]
  %v88 = vld [vmem:[%s1 + $0xf0] sm:$0xf]
  %v89 = vld [vmem:[%s1 + $0xf4] sm:$0xf]
  %v90 = vld [vmem:[%s1 + $0xf8] sm:$0xf]
  %v91 = vld [vmem:[%s1 + $0xfc] sm:$0xf]
  %v92 = vld [vmem:[%s1 + $0x100] sm:$0xf]
  %v93 = vld [vmem:[%s1 + $0x104] sm:$0xf]
  %v94 = vld [vmem:[%s1 + $0x108] sm:$0xf]
  %v95 = vld [vmem:[%s1 + $0x10c] sm:$0xf]
  %v96 = vld [vmem:[%s1 + $0x110] sm:$0xf]
  %v97 = vld [vmem:[%s1 + $0x114] sm:$0xf]
  %v98 = vld [vmem:[%s1 + $0x118] sm:$0xf]
  %v99 = vld [vmem:[%s1 + $0x11c] sm:$0xf]
  %v100 = vld [vmem:[%s1 + $0x120] sm:$0xf]
  %v101 = vld [vmem:[%s1 + $0x124] sm:$0xf]
  %v102 = vld [vmem:[%s1 + $0x128] sm:$0xf]
  %v103 = vld [vmem:[%s1 + $0x12c] sm:$0xf]
  %v104 = vld [vmem:[%s1 + $0x130] sm:$0xf]
  %v105 = vld [vmem:[%s1 + $0x134] sm:$0xf]
  %v106 = vld [vmem:[%s1 + $0x138] sm:$0xf]
  %v107 = vld [vmem:[%s1 + $0x13c] sm:$0xf]
  %v108 = vld [vmem:[%s1 + $0x140] sm:$0xf]
  %v109 = vld [vmem:[%s1 + $0x144] sm:$0xf]
  %v110 = vld [vmem:[%s1 + $0x148] sm:$0xf]
  %v111 = vld [vmem:[%s1 + $0x14c] sm:$0xf]
  %v112 = vld [vmem:[%s1 + $0x150] sm:$0xf]
  %v113 = vld [vmem:[%s1 + $0x154] sm:$0xf]
  %v114 = vld [vmem:[%s1 + $0x158] sm:$0xf]
  %v115 = vld [vmem:[%s1 + $0x15c] sm:$0xf]
  %v116 = vld [vmem:[%s1 + $0x160] sm:$0xf]
  %v117 = vld [vmem:[%s1 + $0x164] sm:$0xf]
  %v118 = vld [vmem:[%s1 + $0x168] sm:$0xf]
  %v119 = vld [vmem:[%s1 + $0x16c] sm:$0xf]
  %v120 = vld [vmem:[%s1 + $0x170] sm:$0xf]
  %v121 = vld [vmem:[%s1 + $0x174] sm:$0xf]
  %v122 = vld [vmem:[%s1 + $0x178] sm:$0xf]
  %v123 = vld [vmem:[%s1 + $0x17c] sm:$0xf]
  %v124 = vld [vmem:[%s1 + $0x180] sm:$0xf]
  %v125 = vld [vmem:[%s1 + $0x184] sm:$0xf]
  %v126 = vld [vmem:[%s1 + $0x188] sm:$0xf]
  %v127 = vld [vmem:[%s1 + $0x18c] sm:$0xf]
  %v128 = vld [vmem:[%s1 + $0x190] sm:$0xf]
  %v129 = vld [vmem:[%s1 + $0x194] sm:$0xf]
  %v130 = vld [vmem:[%s1 + $0x198] sm:$0xf]
  %v131 = vld [vmem:[%s1 + $0x19c] sm:$0xf]
  %v132 = vld [vmem:[%s1 + $0x1a0] sm:$0xf]
  %v133 = vld [vmem:[%s1 + $0x1a4] sm:$0xf]
  %v134 = vld [vmem:[%s1 + $0x1a8] sm:$0xf]
  %v135 = vld [vmem:[%s1 + $0x1ac] sm:$0xf]
  %v136 = vld [vmem:[%s1 + $0x1b0] sm:$0xf]
  %v137 = vld [vmem:[%s1 + $0x1b4] sm:$0xf]
  %v138 = vld [vmem:[%s1 + $0x1b8] sm:$0xf]
  %v139 = vld [vmem:[%s1 + $0x1bc] sm:$0xf]
  %v140 = vld [vmem:[%s1 + $0x1c0] sm:$0xf]
  %v141 = vld [vmem:[%s1 + $0x1c4] sm:$0xf]
  %v142 = vld [vmem:[%s1 + $0x1c8] sm:$0xf]
  %v143 = vld [vmem:[%s1 + $0x1cc] sm:$0xf]
  %v144 = vld [vmem:[%s1 + $0x1d0] sm:$0xf]
  %v145 = vld [vmem:[%s1 + $0x1d4] sm:$0xf]
  %v146 = vld [vmem:[%s1 + $0x1d8] sm:$0xf]
  %v147 = vld [vmem:[%s1 + $0x1dc] sm:$0xf]
  %v148 = vld [vmem:[%s1 + $0x1e0] sm:$0xf]
  %v149 = vld [vmem:[%s1 + $0x1e4] sm:$0xf]
  %v150 = vld [vmem:[%s1 + $0x1e8] sm:$0xf]
  %v151 = vld [vmem:[%s1 + $0x1ec] sm:$0xf]
  %v152 = vld [vmem:[%s1 + $0x1f0] sm:$0xf]
  %v153 = vld [vmem:[%s1 + $0x1f4] sm:$0xf]
  %v154 = vld [vmem:[%s1 + $0x1f8] sm:$0xf]
  %v155 = vld [vmem:[%s1 + $0x1fc] sm:$0xf]
  %v156 = vld [vmem:[%s0] sm:$0xf]
  %v157 = vld [vmem:[%s0 + $0x4] sm:$0xf]
  %v158 = vld [vmem:[%s0 + $0x8] sm:$0xf]
  %v159 = vld [vmem:[%s0 + $0xc] sm:$0xf]
  %v288 = vunpack.c.l.b16 %v28
  %v289 = vunpack.c.l.b16 %v29
  %v290 = vunpack.c.l.b16 %v30
  %v291 = vunpack.c.l.b16 %v31
  %v292 = vunpack.c.l.b16 %v32
  %v293 = vunpack.c.l.b16 %v33
  %v294 = vunpack.c.l.b16 %v34
  %v295 = vunpack.c.l.b16 %v35
  %v296 = vunpack.c.l.b16 %v36
  %v297 = vunpack.c.l.b16 %v37
  %v298 = vunpack.c.l.b16 %v38
  %v299 = vunpack.c.l.b16 %v39
  %v300 = vunpack.c.l.b16 %v40
  %v301 = vunpack.c.l.b16 %v41
  %v302 = vunpack.c.l.b16 %v42
  %v303 = vunpack.c.l.b16 %v43
  %v304 = vunpack.c.l.b16 %v44
  %v305 = vunpack.c.l.b16 %v45
  %v306 = vunpack.c.l.b16 %v46
  %v307 = vunpack.c.l.b16 %v47
  %v308 = vunpack.c.l.b16 %v48
  %v309 = vunpack.c.l.b16 %v49
  %v310 = vunpack.c.l.b16 %v50
  %v311 = vunpack.c.l.b16 %v51
  %v312 = vunpack.c.l.b16 %v52
  %v313 = vunpack.c.l.b16 %v53
  %v314 = vunpack.c.l.b16 %v54
  %v315 = vunpack.c.l.b16 %v55
  %v316 = vunpack.c.l.b16 %v56
  %v317 = vunpack.c.l.b16 %v57
  %v318 = vunpack.c.l.b16 %v58
  %v319 = vunpack.c.l.b16 %v59
  %v320 = vunpack.c.l.b16 %v60
  %v321 = vunpack.c.l.b16 %v61
  %v322 = vunpack.c.l.b16 %v62
  %v323 = vunpack.c.l.b16 %v63
  %v324 = vunpack.c.l.b16 %v64
  %v325 = vunpack.c.l.b16 %v65
  %v326 = vunpack.c.l.b16 %v66
  %v327 = vunpack.c.l.b16 %v67
  %v328 = vunpack.c.l.b16 %v68
  %v329 = vunpack.c.l.b16 %v69
  %v330 = vunpack.c.l.b16 %v70
  %v331 = vunpack.c.l.b16 %v71
  %v332 = vunpack.c.l.b16 %v72
  %v333 = vunpack.c.l.b16 %v73
  %v334 = vunpack.c.l.b16 %v74
  %v335 = vunpack.c.l.b16 %v75
  %v336 = vunpack.c.l.b16 %v76
  %v337 = vunpack.c.l.b16 %v77
  %v338 = vunpack.c.l.b16 %v78
  %v339 = vunpack.c.l.b16 %v79
  %v340 = vunpack.c.l.b16 %v80
  %v341 = vunpack.c.l.b16 %v81
  %v342 = vunpack.c.l.b16 %v82
  %v343 = vunpack.c.l.b16 %v83
  %v344 = vunpack.c.l.b16 %v84
  %v345 = vunpack.c.l.b16 %v85
  %v346 = vunpack.c.l.b16 %v86
  %v347 = vunpack.c.l.b16 %v87
  %v348 = vunpack.c.l.b16 %v88
  %v349 = vunpack.c.l.b16 %v89
  %v350 = vunpack.c.l.b16 %v90
  %v351 = vunpack.c.l.b16 %v91
  %v352 = vunpack.c.l.b16 %v92
  %v353 = vunpack.c.l.b16 %v93
  %v354 = vunpack.c.l.b16 %v94
  %v355 = vunpack.c.l.b16 %v95
  %v356 = vunpack.c.l.b16 %v96
  %v357 = vunpack.c.l.b16 %v97
  %v358 = vunpack.c.l.b16 %v98
  %v359 = vunpack.c.l.b16 %v99
  %v360 = vunpack.c.l.b16 %v100
  %v361 = vunpack.c.l.b16 %v101
  %v362 = vunpack.c.l.b16 %v102
  %v363 = vunpack.c.l.b16 %v103
  %v364 = vunpack.c.l.b16 %v104
  %v365 = vunpack.c.l.b16 %v105
  %v366 = vunpack.c.l.b16 %v106
  %v367 = vunpack.c.l.b16 %v107
  %v368 = vunpack.c.l.b16 %v108
  %v369 = vunpack.c.l.b16 %v109
  %v370 = vunpack.c.l.b16 %v110
  %v371 = vunpack.c.l.b16 %v111
  %v372 = vunpack.c.l.b16 %v112
  %v373 = vunpack.c.l.b16 %v113
  %v374 = vunpack.c.l.b16 %v114
  %v375 = vunpack.c.l.b16 %v115
  %v376 = vunpack.c.l.b16 %v116
  %v377 = vunpack.c.l.b16 %v117
  %v378 = vunpack.c.l.b16 %v118
  %v379 = vunpack.c.l.b16 %v119
  %v380 = vunpack.c.l.b16 %v120
  %v381 = vunpack.c.l.b16 %v121
  %v382 = vunpack.c.l.b16 %v122
  %v383 = vunpack.c.l.b16 %v123
  %v384 = vunpack.c.l.b16 %v124
  %v385 = vunpack.c.l.b16 %v125
  %v386 = vunpack.c.l.b16 %v126
  %v387 = vunpack.c.l.b16 %v127
  %v388 = vunpack.c.l.b16 %v128
  %v389 = vunpack.c.l.b16 %v129
  %v390 = vunpack.c.l.b16 %v130
  %v391 = vunpack.c.l.b16 %v131
  %v392 = vunpack.c.l.b16 %v132
  %v393 = vunpack.c.l.b16 %v133
  %v394 = vunpack.c.l.b16 %v134
  %v395 = vunpack.c.l.b16 %v135
  %v396 = vunpack.c.l.b16 %v136
  %v397 = vunpack.c.l.b16 %v137
  %v398 = vunpack.c.l.b16 %v138
  %v399 = vunpack.c.l.b16 %v139
  %v400 = vunpack.c.l.b16 %v140
  %v401 = vunpack.c.l.b16 %v141
  %v402 = vunpack.c.l.b16 %v142
  %v403 = vunpack.c.l.b16 %v143
  %v404 = vunpack.c.l.b16 %v144
  %v405 = vunpack.c.l.b16 %v145
  %v406 = vunpack.c.l.b16 %v146
  %v407 = vunpack.c.l.b16 %v147
  %v408 = vunpack.c.l.b16 %v148
  %v409 = vunpack.c.l.b16 %v149
  %v410 = vunpack.c.l.b16 %v150
  %v411 = vunpack.c.l.b16 %v151
  %v412 = vunpack.c.l.b16 %v152
  %v413 = vunpack.c.l.b16 %v153
  %v414 = vunpack.c.l.b16 %v154
  %v415 = vunpack.c.l.b16 %v155
  %v416 = vpack.c.b16 %v289, %v288
  %v417 = vpack.c.b16 %v291, %v290
  %v418 = vpack.c.b16 %v293, %v292
  %v419 = vpack.c.b16 %v295, %v294
  %v420 = vpack.c.b16 %v297, %v296
  %v421 = vpack.c.b16 %v299, %v298
  %v422 = vpack.c.b16 %v301, %v300
  %v423 = vpack.c.b16 %v303, %v302
  %v424 = vpack.c.b16 %v305, %v304
  %v425 = vpack.c.b16 %v307, %v306
  %v426 = vpack.c.b16 %v309, %v308
  %v427 = vpack.c.b16 %v311, %v310
  %v428 = vpack.c.b16 %v313, %v312
  %v429 = vpack.c.b16 %v315, %v314
  %v430 = vpack.c.b16 %v317, %v316
  %v431 = vpack.c.b16 %v319, %v318
  %v432 = vpack.c.b16 %v321, %v320
  %v433 = vpack.c.b16 %v323, %v322
  %v434 = vpack.c.b16 %v325, %v324
  %v435 = vpack.c.b16 %v327, %v326
  %v436 = vpack.c.b16 %v329, %v328
  %v437 = vpack.c.b16 %v331, %v330
  %v438 = vpack.c.b16 %v333, %v332
  %v439 = vpack.c.b16 %v335, %v334
  %v440 = vpack.c.b16 %v337, %v336
  %v441 = vpack.c.b16 %v339, %v338
  %v442 = vpack.c.b16 %v341, %v340
  %v443 = vpack.c.b16 %v343, %v342
  %v444 = vpack.c.b16 %v345, %v344
  %v445 = vpack.c.b16 %v347, %v346
  %v446 = vpack.c.b16 %v349, %v348
  %v447 = vpack.c.b16 %v351, %v350
  %v448 = vpack.c.b16 %v353, %v352
  %v449 = vpack.c.b16 %v355, %v354
  %v450 = vpack.c.b16 %v357, %v356
  %v451 = vpack.c.b16 %v359, %v358
  %v452 = vpack.c.b16 %v361, %v360
  %v453 = vpack.c.b16 %v363, %v362
  %v454 = vpack.c.b16 %v365, %v364
  %v455 = vpack.c.b16 %v367, %v366
  %v456 = vpack.c.b16 %v369, %v368
  %v457 = vpack.c.b16 %v371, %v370
  %v458 = vpack.c.b16 %v373, %v372
  %v459 = vpack.c.b16 %v375, %v374
  %v460 = vpack.c.b16 %v377, %v376
  %v461 = vpack.c.b16 %v379, %v378
  %v462 = vpack.c.b16 %v381, %v380
  %v463 = vpack.c.b16 %v383, %v382
  %v464 = vpack.c.b16 %v385, %v384
  %v465 = vpack.c.b16 %v387, %v386
  %v466 = vpack.c.b16 %v389, %v388
  %v467 = vpack.c.b16 %v391, %v390
  %v468 = vpack.c.b16 %v393, %v392
  %v469 = vpack.c.b16 %v395, %v394
  %v470 = vpack.c.b16 %v397, %v396
  %v471 = vpack.c.b16 %v399, %v398
  %v472 = vpack.c.b16 %v401, %v400
  %v473 = vpack.c.b16 %v403, %v402
  %v474 = vpack.c.b16 %v405, %v404
  %v475 = vpack.c.b16 %v407, %v406
  %v476 = vpack.c.b16 %v409, %v408
  %v477 = vpack.c.b16 %v411, %v410
  %v478 = vpack.c.b16 %v413, %v412
  %v479 = vpack.c.b16 %v415, %v414
  %v484 = vunpack.c.l.b16 %v156
  %v485 = vunpack.c.l.b16 %v157
  %v486 = vunpack.c.l.b16 %v158
  %v487 = vunpack.c.l.b16 %v159
  %v488 = vpack.c.b16 %v485, %v484
  %v489 = vpack.c.b16 %v487, %v486
  %vm492 = vcmask 261120
  %v494 = vsel %vm492, %v416, 0
  %v497 = vsel %vm492, %v417, 0
  %v500 = vsel %vm492, %v418, 0
  %v503 = vsel %vm492, %v419, 0
  %v506 = vsel %vm492, %v420, 0
  %v509 = vsel %vm492, %v421, 0
  %v512 = vsel %vm492, %v422, 0
  %v515 = vsel %vm492, %v423, 0
  %v518 = vsel %vm492, %v424, 0
  %v521 = vsel %vm492, %v425, 0
  %v524 = vsel %vm492, %v426, 0
  %v527 = vsel %vm492, %v427, 0
  %v530 = vsel %vm492, %v428, 0
  %v533 = vsel %vm492, %v429, 0
  %v536 = vsel %vm492, %v430, 0
  %v539 = vsel %vm492, %v431, 0
  %v542 = vsel %vm492, %v432, 0
  %v545 = vsel %vm492, %v433, 0
  %v548 = vsel %vm492, %v434, 0
  %v551 = vsel %vm492, %v435, 0
  %v554 = vsel %vm492, %v436, 0
  %v557 = vsel %vm492, %v437, 0
  %v560 = vsel %vm492, %v438, 0
  %v563 = vsel %vm492, %v439, 0
  %v566 = vsel %vm492, %v440, 0
  %v569 = vsel %vm492, %v441, 0
  %v572 = vsel %vm492, %v442, 0
  %v575 = vsel %vm492, %v443, 0
  %v578 = vsel %vm492, %v444, 0
  %v581 = vsel %vm492, %v445, 0
  %v584 = vsel %vm492, %v446, 0
  %v587 = vsel %vm492, %v447, 0
  %v590 = vsel %vm492, %v448, 0
  %v593 = vsel %vm492, %v449, 0
  %v596 = vsel %vm492, %v450, 0
  %v599 = vsel %vm492, %v451, 0
  %v602 = vsel %vm492, %v452, 0
  %v605 = vsel %vm492, %v453, 0
  %v608 = vsel %vm492, %v454, 0
  %v611 = vsel %vm492, %v455, 0
  %v614 = vsel %vm492, %v456, 0
  %v617 = vsel %vm492, %v457, 0
  %v620 = vsel %vm492, %v458, 0
  %v623 = vsel %vm492, %v459, 0
  %v626 = vsel %vm492, %v460, 0
  %v629 = vsel %vm492, %v461, 0
  %v632 = vsel %vm492, %v462, 0
  %v635 = vsel %vm492, %v463, 0
  %v638 = vsel %vm492, %v464, 0
  %v641 = vsel %vm492, %v465, 0
  %v644 = vsel %vm492, %v466, 0
  %v647 = vsel %vm492, %v467, 0
  %v650 = vsel %vm492, %v468, 0
  %v653 = vsel %vm492, %v469, 0
  %v656 = vsel %vm492, %v470, 0
  %v659 = vsel %vm492, %v471, 0
  %v662 = vsel %vm492, %v472, 0
  %v665 = vsel %vm492, %v473, 0
  %v668 = vsel %vm492, %v474, 0
  %v671 = vsel %vm492, %v475, 0
  %v674 = vsel %vm492, %v476, 0
  %v677 = vsel %vm492, %v477, 0
  %v680 = vsel %vm492, %v478, 0
  %v683 = vsel %vm492, %v479, 0
  %685 = vmatprep.subr.bf16.mxu0 0
  %686 = vmatpush1.bf16.msra.mxu0 %v488
  %687 = vmatprep.subr.bf16.mxu0 0
  %688 = vmatpush1.bf16.msra.mxu0 %v489
  %689 = vmatprep.subr.bf16.mxu0 0
  %690 = vmatpush1.bf16.msra.mxu0 0
  %691 = vmatprep.subr.bf16.mxu0 0
  %692 = vmatpush1.bf16.msra.mxu0 0
  %693 = vmatprep.subr.bf16.mxu0 0
  %694 = vmatpush1.bf16.msra.mxu0 0
  %695 = vmatprep.subr.bf16.mxu0 0
  %696 = vmatpush1.bf16.msra.mxu0 0
  %697 = vmatprep.subr.bf16.mxu0 0
  %698 = vmatpush1.bf16.msra.mxu0 0
  %699 = vmatprep.subr.bf16.mxu0 0
  %700 = vmatpush1.bf16.msra.mxu0 0
  %701 = vmatprep.subr.bf16.mxu0 0
  %702 = vmatpush1.bf16.msra.mxu0 0
  %703 = vmatprep.subr.bf16.mxu0 0
  %704 = vmatpush1.bf16.msra.mxu0 0
  %705 = vmatprep.subr.bf16.mxu0 0
  %706 = vmatpush1.bf16.msra.mxu0 0
  %707 = vmatprep.subr.bf16.mxu0 0
  %708 = vmatpush1.bf16.msra.mxu0 0
  %709 = vmatprep.subr.bf16.mxu0 0
  %710 = vmatpush1.bf16.msra.mxu0 0
  %711 = vmatprep.subr.bf16.mxu0 0
  %712 = vmatpush1.bf16.msra.mxu0 0
  %713 = vmatprep.subr.bf16.mxu0 0
  %714 = vmatpush1.bf16.msra.mxu0 0
  %715 = vmatprep.subr.bf16.mxu0 0
  %716 = vmatpush1.bf16.msra.mxu0 0
  %717 = vmatprep.mubr.bf16.mxu0 0
  %718 = vmatmul.mubr.bf16.gmra.mrb[0].mxu0 %v494
  %v719 = vpop.f32.mrb[0].mxu0
  %v720 = vadd.f32 0.0, %v719
  %v721 = vpop.f32.mrb[0].mxu0
  %v722 = vpop.f32.mrb[0].mxu0
  %v723 = vadd.f32 0.0, %v722
  %v724 = vpop.f32.mrb[0].mxu0
  %725 = vmatprep.mubr.bf16.mxu0 0
  %726 = vmatmul.mubr.bf16.gmra.mrb[0].mxu0 %v497
  %v727 = vpop.f32.mrb[0].mxu0
  %v728 = vadd.f32 0.0, %v727
  %v729 = vpop.f32.mrb[0].mxu0
  %v730 = vpop.f32.mrb[0].mxu0
  %v731 = vadd.f32 0.0, %v730
  %v732 = vpop.f32.mrb[0].mxu0
  %733 = vmatprep.mubr.bf16.mxu0 0
  %734 = vmatmul.mubr.bf16.gmra.mrb[0].mxu0 %v500
  %v735 = vpop.f32.mrb[0].mxu0
  %v736 = vadd.f32 0.0, %v735
  %v737 = vpop.f32.mrb[0].mxu0
  %v738 = vpop.f32.mrb[0].mxu0
  %v739 = vadd.f32 0.0, %v738
  %v740 = vpop.f32.mrb[0].mxu0
  %741 = vmatprep.mubr.bf16.mxu0 0
  %742 = vmatmul.mubr.bf16.gmra.mrb[0].mxu0 %v503
  %v743 = vpop.f32.mrb[0].mxu0
  %v744 = vadd.f32 0.0, %v743
  %v745 = vpop.f32.mrb[0].mxu0
  %v746 = vpop.f32.mrb[0].mxu0
  %v747 = vadd.f32 0.0, %v746
  %v748 = vpop.f32.mrb[0].mxu0
  %749 = vmatprep.mubr.bf16.mxu0 0
  %750 = vmatmul.mubr.bf16.gmra.mrb[0].mxu0 %v506
  %v751 = vpop.f32.mrb[0].mxu0
  %v752 = vadd.f32 0.0, %v751
  %v753 = vpop.f32.mrb[0].mxu0
  %v754 = vpop.f32.mrb[0].mxu0
  %v755 = vadd.f32 0.0, %v754
  %v756 = vpop.f32.mrb[0].mxu0
  %757 = vmatprep.mubr.bf16.mxu0 0
  %758 = vmatmul.mubr.bf16.gmra.mrb[0].mxu0 %v509
  %v759 = vpop.f32.mrb[0].mxu0
  %v760 = vadd.f32 0.0, %v759
  %v761 = vpop.f32.mrb[0].mxu0
  %v762 = vpop.f32.mrb[0].mxu0
  %v763 = vadd.f32 0.0, %v762
  %v764 = vpop.f32.mrb[0].mxu0
  %765 = vmatprep.mubr.bf16.mxu0 0
  %766 = vmatmul.mubr.bf16.gmra.mrb[0].mxu0 %v512
  %v767 = vpop.f32.mrb[0].mxu0
  %v768 = vadd.f32 0.0, %v767
  %v769 = vpop.f32.mrb[0].mxu0
  %v770 = vpop.f32.mrb[0].mxu0
  %v771 = vadd.f32 0.0, %v770
  %v772 = vpop.f32.mrb[0].mxu0
  %773 = vmatprep.mubr.bf16.mxu0 0
  %774 = vmatmul.mubr.bf16.gmra.mrb[0].mxu0 %v515
  %v775 = vpop.f32.mrb[0].mxu0
  %v776 = vadd.f32 0.0, %v775
  %v777 = vpop.f32.mrb[0].mxu0
  %v778 = vpop.f32.mrb[0].mxu0
  %v779 = vadd.f32 0.0, %v778
  %v780 = vpop.f32.mrb[0].mxu0
  %781 = vmatprep.mubr.bf16.mxu0 0
  %782 = vmatmul.mubr.bf16.gmra.mrb[0].mxu0 %v518
  %v783 = vpop.f32.mrb[0].mxu0
  %v784 = vadd.f32 0.0, %v783
  %v785 = vpop.f32.mrb[0].mxu0
  %v786 = vpop.f32.mrb[0].mxu0
  %v787 = vadd.f32 0.0, %v786
  %v788 = vpop.f32.mrb[0].mxu0
  %789 = vmatprep.mubr.bf16.mxu0 0
  %790 = vmatmul.mubr.bf16.gmra.mrb[0].mxu0 %v521
  %v791 = vpop.f32.mrb[0].mxu0
  %v792 = vadd.f32 0.0, %v791
  %v793 = vpop.f32.mrb[0].mxu0
  %v794 = vpop.f32.mrb[0].mxu0
  %v795 = vadd.f32 0.0, %v794
  %v796 = vpop.f32.mrb[0].mxu0
  %797 = vmatprep.mubr.bf16.mxu0 0
  %798 = vmatmul.mubr.bf16.gmra.mrb[0].mxu0 %v524
  %v799 = vpop.f32.mrb[0].mxu0
  %v800 = vadd.f32 0.0, %v799
  %v801 = vpop.f32.mrb[0].mxu0
  %v802 = vpop.f32.mrb[0].mxu0
  %v803 = vadd.f32 0.0, %v802
  %v804 = vpop.f32.mrb[0].mxu0
  %805 = vmatprep.mubr.bf16.mxu0 0
  %806 = vmatmul.mubr.bf16.gmra.mrb[0].mxu0 %v527
  %v807 = vpop.f32.mrb[0].mxu0
  %v808 = vadd.f32 0.0, %v807
  %v809 = vpop.f32.mrb[0].mxu0
  %v810 = vpop.f32.mrb[0].mxu0
  %v811 = vadd.f32 0.0, %v810
  %v812 = vpop.f32.mrb[0].mxu0
  %813 = vmatprep.mubr.bf16.mxu0 0
  %814 = vmatmul.mubr.bf16.gmra.mrb[0].mxu0 %v530
  %v815 = vpop.f32.mrb[0].mxu0
  %v816 = vadd.f32 0.0, %v815
  %v817 = vpop.f32.mrb[0].mxu0
  %v818 = vpop.f32.mrb[0].mxu0
  %v819 = vadd.f32 0.0, %v818
  %v820 = vpop.f32.mrb[0].mxu0
  %821 = vmatprep.mubr.bf16.mxu0 0
  %822 = vmatmul.mubr.bf16.gmra.mrb[0].mxu0 %v533
  %v823 = vpop.f32.mrb[0].mxu0
  %v824 = vadd.f32 0.0, %v823
  %v825 = vpop.f32.mrb[0].mxu0
  %v826 = vpop.f32.mrb[0].mxu0
  %v827 = vadd.f32 0.0, %v826
  %v828 = vpop.f32.mrb[0].mxu0
  %829 = vmatprep.mubr.bf16.mxu0 0
  %830 = vmatmul.mubr.bf16.gmra.mrb[0].mxu0 %v536
  %v831 = vpop.f32.mrb[0].mxu0
  %v832 = vadd.f32 0.0, %v831
  %v833 = vpop.f32.mrb[0].mxu0
  %v834 = vpop.f32.mrb[0].mxu0
  %v835 = vadd.f32 0.0, %v834
  %v836 = vpop.f32.mrb[0].mxu0
  %837 = vmatprep.mubr.bf16.mxu0 0
  %838 = vmatmul.mubr.bf16.gmra.mrb[0].mxu0 %v539
  %v839 = vpop.f32.mrb[0].mxu0
  %v840 = vadd.f32 0.0, %v839
  %v841 = vpop.f32.mrb[0].mxu0
  %v842 = vpop.f32.mrb[0].mxu0
  %v843 = vadd.f32 0.0, %v842
  %v844 = vpop.f32.mrb[0].mxu0
  %845 = vmatprep.mubr.bf16.mxu0 0
  %846 = vmatmul.mubr.bf16.gmra.mrb[0].mxu0 %v542
  %v847 = vpop.f32.mrb[0].mxu0
  %v848 = vadd.f32 0.0, %v847
  %v849 = vpop.f32.mrb[0].mxu0
  %v850 = vpop.f32.mrb[0].mxu0
  %v851 = vadd.f32 0.0, %v850
  %v852 = vpop.f32.mrb[0].mxu0
  %853 = vmatprep.mubr.bf16.mxu0 0
  %854 = vmatmul.mubr.bf16.gmra.mrb[0].mxu0 %v545
  %v855 = vpop.f32.mrb[0].mxu0
  %v856 = vadd.f32 0.0, %v855
  %v857 = vpop.f32.mrb[0].mxu0
  %v858 = vpop.f32.mrb[0].mxu0
  %v859 = vadd.f32 0.0, %v858
  %v860 = vpop.f32.mrb[0].mxu0
  %861 = vmatprep.mubr.bf16.mxu0 0
  %862 = vmatmul.mubr.bf16.gmra.mrb[0].mxu0 %v548
  %v863 = vpop.f32.mrb[0].mxu0
  %v864 = vadd.f32 0.0, %v863
  %v865 = vpop.f32.mrb[0].mxu0
  %v866 = vpop.f32.mrb[0].mxu0
  %v867 = vadd.f32 0.0, %v866
  %v868 = vpop.f32.mrb[0].mxu0
  %869 = vmatprep.mubr.bf16.mxu0 0
  %870 = vmatmul.mubr.bf16.gmra.mrb[0].mxu0 %v551
  %v871 = vpop.f32.mrb[0].mxu0
  %v872 = vadd.f32 0.0, %v871
  %v873 = vpop.f32.mrb[0].mxu0
  %v874 = vpop.f32.mrb[0].mxu0
  %v875 = vadd.f32 0.0, %v874
  %v876 = vpop.f32.mrb[0].mxu0
  %877 = vmatprep.mubr.bf16.mxu0 0
  %878 = vmatmul.mubr.bf16.gmra.mrb[0].mxu0 %v554
  %v879 = vpop.f32.mrb[0].mxu0
  %v880 = vadd.f32 0.0, %v879
  %v881 = vpop.f32.mrb[0].mxu0
  %v882 = vpop.f32.mrb[0].mxu0
  %v883 = vadd.f32 0.0, %v882
  %v884 = vpop.f32.mrb[0].mxu0
  %885 = vmatprep.mubr.bf16.mxu0 0
  %886 = vmatmul.mubr.bf16.gmra.mrb[0].mxu0 %v557
  %v887 = vpop.f32.mrb[0].mxu0
  %v888 = vadd.f32 0.0, %v887
  %v889 = vpop.f32.mrb[0].mxu0
  %v890 = vpop.f32.mrb[0].mxu0
  %v891 = vadd.f32 0.0, %v890
  %v892 = vpop.f32.mrb[0].mxu0
  %893 = vmatprep.mubr.bf16.mxu0 0
  %894 = vmatmul.mubr.bf16.gmra.mrb[0].mxu0 %v560
  %v895 = vpop.f32.mrb[0].mxu0
  %v896 = vadd.f32 0.0, %v895
  %v897 = vpop.f32.mrb[0].mxu0
  %v898 = vpop.f32.mrb[0].mxu0
  %v899 = vadd.f32 0.0, %v898
  %v900 = vpop.f32.mrb[0].mxu0
  %901 = vmatprep.mubr.bf16.mxu0 0
  %902 = vmatmul.mubr.bf16.gmra.mrb[0].mxu0 %v563
  %v903 = vpop.f32.mrb[0].mxu0
  %v904 = vadd.f32 0.0, %v903
  %v905 = vpop.f32.mrb[0].mxu0
  %v906 = vpop.f32.mrb[0].mxu0
  %v907 = vadd.f32 0.0, %v906
  %v908 = vpop.f32.mrb[0].mxu0
  %909 = vmatprep.mubr.bf16.mxu0 0
  %910 = vmatmul.mubr.bf16.gmra.mrb[0].mxu0 %v566
  %v911 = vpop.f32.mrb[0].mxu0
  %v912 = vadd.f32 0.0, %v911
  %v913 = vpop.f32.mrb[0].mxu0
  %v914 = vpop.f32.mrb[0].mxu0
  %v915 = vadd.f32 0.0, %v914
  %v916 = vpop.f32.mrb[0].mxu0
  %917 = vmatprep.mubr.bf16.mxu0 0
  %918 = vmatmul.mubr.bf16.gmra.mrb[0].mxu0 %v569
  %v919 = vpop.f32.mrb[0].mxu0
  %v920 = vadd.f32 0.0, %v919
  %v921 = vpop.f32.mrb[0].mxu0
  %v922 = vpop.f32.mrb[0].mxu0
  %v923 = vadd.f32 0.0, %v922
  %v924 = vpop.f32.mrb[0].mxu0
  %925 = vmatprep.mubr.bf16.mxu0 0
  %926 = vmatmul.mubr.bf16.gmra.mrb[0].mxu0 %v572
  %v927 = vpop.f32.mrb[0].mxu0
  %v928 = vadd.f32 0.0, %v927
  %v929 = vpop.f32.mrb[0].mxu0
  %v930 = vpop.f32.mrb[0].mxu0
  %v931 = vadd.f32 0.0, %v930
  %v932 = vpop.f32.mrb[0].mxu0
  %933 = vmatprep.mubr.bf16.mxu0 0
  %934 = vmatmul.mubr.bf16.gmra.mrb[0].mxu0 %v575
  %v935 = vpop.f32.mrb[0].mxu0
  %v936 = vadd.f32 0.0, %v935
  %v937 = vpop.f32.mrb[0].mxu0
  %v938 = vpop.f32.mrb[0].mxu0
  %v939 = vadd.f32 0.0, %v938
  %v940 = vpop.f32.mrb[0].mxu0
  %941 = vmatprep.mubr.bf16.mxu0 0
  %942 = vmatmul.mubr.bf16.gmra.mrb[0].mxu0 %v578
  %v943 = vpop.f32.mrb[0].mxu0
  %v944 = vadd.f32 0.0, %v943
  %v945 = vpop.f32.mrb[0].mxu0
  %v946 = vpop.f32.mrb[0].mxu0
  %v947 = vadd.f32 0.0, %v946
  %v948 = vpop.f32.mrb[0].mxu0
  %949 = vmatprep.mubr.bf16.mxu0 0
  %950 = vmatmul.mubr.bf16.gmra.mrb[0].mxu0 %v581
  %v951 = vpop.f32.mrb[0].mxu0
  %v952 = vadd.f32 0.0, %v951
  %v953 = vpop.f32.mrb[0].mxu0
  %v954 = vpop.f32.mrb[0].mxu0
  %v955 = vadd.f32 0.0, %v954
  %v956 = vpop.f32.mrb[0].mxu0
  %957 = vmatprep.mubr.bf16.mxu0 0
  %958 = vmatmul.mubr.bf16.gmra.mrb[0].mxu0 %v584
  %v959 = vpop.f32.mrb[0].mxu0
  %v960 = vadd.f32 0.0, %v959
  %v961 = vpop.f32.mrb[0].mxu0
  %v962 = vpop.f32.mrb[0].mxu0
  %v963 = vadd.f32 0.0, %v962
  %v964 = vpop.f32.mrb[0].mxu0
  %965 = vmatprep.mubr.bf16.mxu0 0
  %966 = vmatmul.mubr.bf16.gmra.mrb[0].mxu0 %v587
  %v967 = vpop.f32.mrb[0].mxu0
  %v968 = vadd.f32 0.0, %v967
  %v969 = vpop.f32.mrb[0].mxu0
  %v970 = vpop.f32.mrb[0].mxu0
  %v971 = vadd.f32 0.0, %v970
  %v972 = vpop.f32.mrb[0].mxu0
  %973 = vmatprep.mubr.bf16.mxu0 0
  %974 = vmatmul.mubr.bf16.gmra.mrb[0].mxu0 %v590
  %v975 = vpop.f32.mrb[0].mxu0
  %v976 = vadd.f32 0.0, %v975
  %v977 = vpop.f32.mrb[0].mxu0
  %v978 = vpop.f32.mrb[0].mxu0
  %v979 = vadd.f32 0.0, %v978
  %v980 = vpop.f32.mrb[0].mxu0
  %981 = vmatprep.mubr.bf16.mxu0 0
  %982 = vmatmul.mubr.bf16.gmra.mrb[0].mxu0 %v593
  %v983 = vpop.f32.mrb[0].mxu0
  %v984 = vadd.f32 0.0, %v983
  %v985 = vpop.f32.mrb[0].mxu0
  %v986 = vpop.f32.mrb[0].mxu0
  %v987 = vadd.f32 0.0, %v986
  %v988 = vpop.f32.mrb[0].mxu0
  %989 = vmatprep.mubr.bf16.mxu0 0
  %990 = vmatmul.mubr.bf16.gmra.mrb[0].mxu0 %v596
  %v991 = vpop.f32.mrb[0].mxu0
  %v992 = vadd.f32 0.0, %v991
  %v993 = vpop.f32.mrb[0].mxu0
  %v994 = vpop.f32.mrb[0].mxu0
  %v995 = vadd.f32 0.0, %v994
  %v996 = vpop.f32.mrb[0].mxu0
  %997 = vmatprep.mubr.bf16.mxu0 0
  %998 = vmatmul.mubr.bf16.gmra.mrb[0].mxu0 %v599
  %v999 = vpop.f32.mrb[0].mxu0
  %v1000 = vadd.f32 0.0, %v999
  %v1001 = vpop.f32.mrb[0].mxu0
  %v1002 = vpop.f32.mrb[0].mxu0
  %v1003 = vadd.f32 0.0, %v1002
  %v1004 = vpop.f32.mrb[0].mxu0
  %1005 = vmatprep.mubr.bf16.mxu0 0
  %1006 = vmatmul.mubr.bf16.gmra.mrb[0].mxu0 %v602
  %v1007 = vpop.f32.mrb[0].mxu0
  %v1008 = vadd.f32 0.0, %v1007
  %v1009 = vpop.f32.mrb[0].mxu0
  %v1010 = vpop.f32.mrb[0].mxu0
  %v1011 = vadd.f32 0.0, %v1010
  %v1012 = vpop.f32.mrb[0].mxu0
  %1013 = vmatprep.mubr.bf16.mxu0 0
  %1014 = vmatmul.mubr.bf16.gmra.mrb[0].mxu0 %v605
  %v1015 = vpop.f32.mrb[0].mxu0
  %v1016 = vadd.f32 0.0, %v1015
  %v1017 = vpop.f32.mrb[0].mxu0
  %v1018 = vpop.f32.mrb[0].mxu0
  %v1019 = vadd.f32 0.0, %v1018
  %v1020 = vpop.f32.mrb[0].mxu0
  %1021 = vmatprep.mubr.bf16.mxu0 0
  %1022 = vmatmul.mubr.bf16.gmra.mrb[0].mxu0 %v608
  %v1023 = vpop.f32.mrb[0].mxu0
  %v1024 = vadd.f32 0.0, %v1023
  %v1025 = vpop.f32.mrb[0].mxu0
  %v1026 = vpop.f32.mrb[0].mxu0
  %v1027 = vadd.f32 0.0, %v1026
  %v1028 = vpop.f32.mrb[0].mxu0
  %1029 = vmatprep.mubr.bf16.mxu0 0
  %1030 = vmatmul.mubr.bf16.gmra.mrb[0].mxu0 %v611
  %v1031 = vpop.f32.mrb[0].mxu0
  %v1032 = vadd.f32 0.0, %v1031
  %v1033 = vpop.f32.mrb[0].mxu0
  %v1034 = vpop.f32.mrb[0].mxu0
  %v1035 = vadd.f32 0.0, %v1034
  %v1036 = vpop.f32.mrb[0].mxu0
  %1037 = vmatprep.mubr.bf16.mxu0 0
  %1038 = vmatmul.mubr.bf16.gmra.mrb[0].mxu0 %v614
  %v1039 = vpop.f32.mrb[0].mxu0
  %v1040 = vadd.f32 0.0, %v1039
  %v1041 = vpop.f32.mrb[0].mxu0
  %v1042 = vpop.f32.mrb[0].mxu0
  %v1043 = vadd.f32 0.0, %v1042
  %v1044 = vpop.f32.mrb[0].mxu0
  %1045 = vmatprep.mubr.bf16.mxu0 0
  %1046 = vmatmul.mubr.bf16.gmra.mrb[0].mxu0 %v617
  %v1047 = vpop.f32.mrb[0].mxu0
  %v1048 = vadd.f32 0.0, %v1047
  %v1049 = vpop.f32.mrb[0].mxu0
  %v1050 = vpop.f32.mrb[0].mxu0
  %v1051 = vadd.f32 0.0, %v1050
  %v1052 = vpop.f32.mrb[0].mxu0
  %1053 = vmatprep.mubr.bf16.mxu0 0
  %1054 = vmatmul.mubr.bf16.gmra.mrb[0].mxu0 %v620
  %v1055 = vpop.f32.mrb[0].mxu0
  %v1056 = vadd.f32 0.0, %v1055
  %v1057 = vpop.f32.mrb[0].mxu0
  %v1058 = vpop.f32.mrb[0].mxu0
  %v1059 = vadd.f32 0.0, %v1058
  %v1060 = vpop.f32.mrb[0].mxu0
  %1061 = vmatprep.mubr.bf16.mxu0 0
  %1062 = vmatmul.mubr.bf16.gmra.mrb[0].mxu0 %v623
  %v1063 = vpop.f32.mrb[0].mxu0
  %v1064 = vadd.f32 0.0, %v1063
  %v1065 = vpop.f32.mrb[0].mxu0
  %v1066 = vpop.f32.mrb[0].mxu0
  %v1067 = vadd.f32 0.0, %v1066
  %v1068 = vpop.f32.mrb[0].mxu0
  %1069 = vmatprep.mubr.bf16.mxu0 0
  %1070 = vmatmul.mubr.bf16.gmra.mrb[0].mxu0 %v626
  %v1071 = vpop.f32.mrb[0].mxu0
  %v1072 = vadd.f32 0.0, %v1071
  %v1073 = vpop.f32.mrb[0].mxu0
  %v1074 = vpop.f32.mrb[0].mxu0
  %v1075 = vadd.f32 0.0, %v1074
  %v1076 = vpop.f32.mrb[0].mxu0
  %1077 = vmatprep.mubr.bf16.mxu0 0
  %1078 = vmatmul.mubr.bf16.gmra.mrb[0].mxu0 %v629
  %v1079 = vpop.f32.mrb[0].mxu0
  %v1080 = vadd.f32 0.0, %v1079
  %v1081 = vpop.f32.mrb[0].mxu0
  %v1082 = vpop.f32.mrb[0].mxu0
  %v1083 = vadd.f32 0.0, %v1082
  %v1084 = vpop.f32.mrb[0].mxu0
  %1085 = vmatprep.mubr.bf16.mxu0 0
  %1086 = vmatmul.mubr.bf16.gmra.mrb[0].mxu0 %v632
  %v1087 = vpop.f32.mrb[0].mxu0
  %v1088 = vadd.f32 0.0, %v1087
  %v1089 = vpop.f32.mrb[0].mxu0
  %v1090 = vpop.f32.mrb[0].mxu0
  %v1091 = vadd.f32 0.0, %v1090
  %v1092 = vpop.f32.mrb[0].mxu0
  %1093 = vmatprep.mubr.bf16.mxu0 0
  %1094 = vmatmul.mubr.bf16.gmra.mrb[0].mxu0 %v635
  %v1095 = vpop.f32.mrb[0].mxu0
  %v1096 = vadd.f32 0.0, %v1095
  %v1097 = vpop.f32.mrb[0].mxu0
  %v1098 = vpop.f32.mrb[0].mxu0
  %v1099 = vadd.f32 0.0, %v1098
  %v1100 = vpop.f32.mrb[0].mxu0
  %1101 = vmatprep.mubr.bf16.mxu0 0
  %1102 = vmatmul.mubr.bf16.gmra.mrb[0].mxu0 %v638
  %v1103 = vpop.f32.mrb[0].mxu0
  %v1104 = vadd.f32 0.0, %v1103
  %v1105 = vpop.f32.mrb[0].mxu0
  %v1106 = vpop.f32.mrb[0].mxu0
  %v1107 = vadd.f32 0.0, %v1106
  %v1108 = vpop.f32.mrb[0].mxu0
  %1109 = vmatprep.mubr.bf16.mxu0 0
  %1110 = vmatmul.mubr.bf16.gmra.mrb[0].mxu0 %v641
  %v1111 = vpop.f32.mrb[0].mxu0
  %v1112 = vadd.f32 0.0, %v1111
  %v1113 = vpop.f32.mrb[0].mxu0
  %v1114 = vpop.f32.mrb[0].mxu0
  %v1115 = vadd.f32 0.0, %v1114
  %v1116 = vpop.f32.mrb[0].mxu0
  %1117 = vmatprep.mubr.bf16.mxu0 0
  %1118 = vmatmul.mubr.bf16.gmra.mrb[0].mxu0 %v644
  %v1119 = vpop.f32.mrb[0].mxu0
  %v1120 = vadd.f32 0.0, %v1119
  %v1121 = vpop.f32.mrb[0].mxu0
  %v1122 = vpop.f32.mrb[0].mxu0
  %v1123 = vadd.f32 0.0, %v1122
  %v1124 = vpop.f32.mrb[0].mxu0
  %1125 = vmatprep.mubr.bf16.mxu0 0
  %1126 = vmatmul.mubr.bf16.gmra.mrb[0].mxu0 %v647
  %v1127 = vpop.f32.mrb[0].mxu0
  %v1128 = vadd.f32 0.0, %v1127
  %v1129 = vpop.f32.mrb[0].mxu0
  %v1130 = vpop.f32.mrb[0].mxu0
  %v1131 = vadd.f32 0.0, %v1130
  %v1132 = vpop.f32.mrb[0].mxu0
  %1133 = vmatprep.mubr.bf16.mxu0 0
  %1134 = vmatmul.mubr.bf16.gmra.mrb[0].mxu0 %v650
  %v1135 = vpop.f32.mrb[0].mxu0
  %v1136 = vadd.f32 0.0, %v1135
  %v1137 = vpop.f32.mrb[0].mxu0
  %v1138 = vpop.f32.mrb[0].mxu0
  %v1139 = vadd.f32 0.0, %v1138
  %v1140 = vpop.f32.mrb[0].mxu0
  %1141 = vmatprep.mubr.bf16.mxu0 0
  %1142 = vmatmul.mubr.bf16.gmra.mrb[0].mxu0 %v653
  %v1143 = vpop.f32.mrb[0].mxu0
  %v1144 = vadd.f32 0.0, %v1143
  %v1145 = vpop.f32.mrb[0].mxu0
  %v1146 = vpop.f32.mrb[0].mxu0
  %v1147 = vadd.f32 0.0, %v1146
  %v1148 = vpop.f32.mrb[0].mxu0
  %1149 = vmatprep.mubr.bf16.mxu0 0
  %1150 = vmatmul.mubr.bf16.gmra.mrb[0].mxu0 %v656
  %v1151 = vpop.f32.mrb[0].mxu0
  %v1152 = vadd.f32 0.0, %v1151
  %v1153 = vpop.f32.mrb[0].mxu0
  %v1154 = vpop.f32.mrb[0].mxu0
  %v1155 = vadd.f32 0.0, %v1154
  %v1156 = vpop.f32.mrb[0].mxu0
  %1157 = vmatprep.mubr.bf16.mxu0 0
  %1158 = vmatmul.mubr.bf16.gmra.mrb[0].mxu0 %v659
  %v1159 = vpop.f32.mrb[0].mxu0
  %v1160 = vadd.f32 0.0, %v1159
  %v1161 = vpop.f32.mrb[0].mxu0
  %v1162 = vpop.f32.mrb[0].mxu0
  %v1163 = vadd.f32 0.0, %v1162
  %v1164 = vpop.f32.mrb[0].mxu0
  %1165 = vmatprep.mubr.bf16.mxu0 0
  %1166 = vmatmul.mubr.bf16.gmra.mrb[0].mxu0 %v662
  %v1167 = vpop.f32.mrb[0].mxu0
  %v1168 = vadd.f32 0.0, %v1167
  %v1169 = vpop.f32.mrb[0].mxu0
  %v1170 = vpop.f32.mrb[0].mxu0
  %v1171 = vadd.f32 0.0, %v1170
  %v1172 = vpop.f32.mrb[0].mxu0
  %1173 = vmatprep.mubr.bf16.mxu0 0
  %1174 = vmatmul.mubr.bf16.gmra.mrb[0].mxu0 %v665
  %v1175 = vpop.f32.mrb[0].mxu0
  %v1176 = vadd.f32 0.0, %v1175
  %v1177 = vpop.f32.mrb[0].mxu0
  %v1178 = vpop.f32.mrb[0].mxu0
  %v1179 = vadd.f32 0.0, %v1178
  %v1180 = vpop.f32.mrb[0].mxu0
  %1181 = vmatprep.mubr.bf16.mxu0 0
  %1182 = vmatmul.mubr.bf16.gmra.mrb[0].mxu0 %v668
  %v1183 = vpop.f32.mrb[0].mxu0
  %v1184 = vadd.f32 0.0, %v1183
  %v1185 = vpop.f32.mrb[0].mxu0
  %v1186 = vpop.f32.mrb[0].mxu0
  %v1187 = vadd.f32 0.0, %v1186
  %v1188 = vpop.f32.mrb[0].mxu0
  %1189 = vmatprep.mubr.bf16.mxu0 0
  %1190 = vmatmul.mubr.bf16.gmra.mrb[0].mxu0 %v671
  %v1191 = vpop.f32.mrb[0].mxu0
  %v1192 = vadd.f32 0.0, %v1191
  %v1193 = vpop.f32.mrb[0].mxu0
  %v1194 = vpop.f32.mrb[0].mxu0
  %v1195 = vadd.f32 0.0, %v1194
  %v1196 = vpop.f32.mrb[0].mxu0
  %1197 = vmatprep.mubr.bf16.mxu0 0
  %1198 = vmatmul.mubr.bf16.gmra.mrb[0].mxu0 %v674
  %v1199 = vpop.f32.mrb[0].mxu0
  %v1200 = vadd.f32 0.0, %v1199
  %v1201 = vpop.f32.mrb[0].mxu0
  %v1202 = vpop.f32.mrb[0].mxu0
  %v1203 = vadd.f32 0.0, %v1202
  %v1204 = vpop.f32.mrb[0].mxu0
  %1205 = vmatprep.mubr.bf16.mxu0 0
  %1206 = vmatmul.mubr.bf16.gmra.mrb[0].mxu0 %v677
  %v1207 = vpop.f32.mrb[0].mxu0
  %v1208 = vadd.f32 0.0, %v1207
  %v1209 = vpop.f32.mrb[0].mxu0
  %v1210 = vpop.f32.mrb[0].mxu0
  %v1211 = vadd.f32 0.0, %v1210
  %v1212 = vpop.f32.mrb[0].mxu0
  %1213 = vmatprep.mubr.bf16.mxu0 0
  %1214 = vmatmul.mubr.bf16.gmra.mrb[0].mxu0 %v680
  %v1215 = vpop.f32.mrb[0].mxu0
  %v1216 = vadd.f32 0.0, %v1215
  %v1217 = vpop.f32.mrb[0].mxu0
  %v1218 = vpop.f32.mrb[0].mxu0
  %v1219 = vadd.f32 0.0, %v1218
  %v1220 = vpop.f32.mrb[0].mxu0
  %1221 = vmatprep.mubr.bf16.mxu0 0
  %1222 = vmatmul.mubr.bf16.gmra.mrb[0].mxu0 %v683
  %v1223 = vpop.f32.mrb[0].mxu0
  %v1224 = vadd.f32 0.0, %v1223
  %v1225 = vpop.f32.mrb[0].mxu0
  %v1226 = vpop.f32.mrb[0].mxu0
  %v1227 = vadd.f32 0.0, %v1226
  %v1228 = vpop.f32.mrb[0].mxu0
  %1229 = vdwg.mxu0
  %s1230 = sld [smem:[#allocation2]]
  %v1231 = vstv %s1230
  %v1232 = vmul.f32 %v720, %v1231
  %v1233 = vmul.f32 %v723, %v1231
  %v1234 = vmul.f32 %v728, %v1231
  %v1235 = vmul.f32 %v731, %v1231
  %v1236 = vmul.f32 %v736, %v1231
  %v1237 = vmul.f32 %v739, %v1231
  %v1238 = vmul.f32 %v744, %v1231
  %v1239 = vmul.f32 %v747, %v1231
  %v1240 = vmul.f32 %v752, %v1231
  %v1241 = vmul.f32 %v755, %v1231
  %v1242 = vmul.f32 %v760, %v1231
  %v1243 = vmul.f32 %v763, %v1231
  %v1244 = vmul.f32 %v768, %v1231
  %v1245 = vmul.f32 %v771, %v1231
  %v1246 = vmul.f32 %v776, %v1231
  %v1247 = vmul.f32 %v779, %v1231
  %v1248 = vmul.f32 %v784, %v1231
  %v1249 = vmul.f32 %v787, %v1231
  %v1250 = vmul.f32 %v792, %v1231
  %v1251 = vmul.f32 %v795, %v1231
  %v1252 = vmul.f32 %v800, %v1231
  %v1253 = vmul.f32 %v803, %v1231
  %v1254 = vmul.f32 %v808, %v1231
  %v1255 = vmul.f32 %v811, %v1231
  %v1256 = vmul.f32 %v816, %v1231
  %v1257 = vmul.f32 %v819, %v1231
  %v1258 = vmul.f32 %v824, %v1231
  %v1259 = vmul.f32 %v827, %v1231
  %v1260 = vmul.f32 %v832, %v1231
  %v1261 = vmul.f32 %v835, %v1231
  %v1262 = vmul.f32 %v840, %v1231
  %v1263 = vmul.f32 %v843, %v1231
  %v1264 = vmul.f32 %v848, %v1231
  %v1265 = vmul.f32 %v851, %v1231
  %v1266 = vmul.f32 %v856, %v1231
  %v1267 = vmul.f32 %v859, %v1231
  %v1268 = vmul.f32 %v864, %v1231
  %v1269 = vmul.f32 %v867, %v1231
  %v1270 = vmul.f32 %v872, %v1231
  %v1271 = vmul.f32 %v875, %v1231
  %v1272 = vmul.f32 %v880, %v1231
  %v1273 = vmul.f32 %v883, %v1231
  %v1274 = vmul.f32 %v888, %v1231
  %v1275 = vmul.f32 %v891, %v1231
  %v1276 = vmul.f32 %v896, %v1231
  %v1277 = vmul.f32 %v899, %v1231
  %v1278 = vmul.f32 %v904, %v1231
  %v1279 = vmul.f32 %v907, %v1231
  %v1280 = vmul.f32 %v912, %v1231
  %v1281 = vmul.f32 %v915, %v1231
  %v1282 = vmul.f32 %v920, %v1231
  %v1283 = vmul.f32 %v923, %v1231
  %v1284 = vmul.f32 %v928, %v1231
  %v1285 = vmul.f32 %v931, %v1231
  %v1286 = vmul.f32 %v936, %v1231
  %v1287 = vmul.f32 %v939, %v1231
  %v1288 = vmul.f32 %v944, %v1231
  %v1289 = vmul.f32 %v947, %v1231
  %v1290 = vmul.f32 %v952, %v1231
  %v1291 = vmul.f32 %v955, %v1231
  %v1292 = vmul.f32 %v960, %v1231
  %v1293 = vmul.f32 %v963, %v1231
  %v1294 = vmul.f32 %v968, %v1231
  %v1295 = vmul.f32 %v971, %v1231
  %v1296 = vmul.f32 %v976, %v1231
  %v1297 = vmul.f32 %v979, %v1231
  %v1298 = vmul.f32 %v984, %v1231
  %v1299 = vmul.f32 %v987, %v1231
  %v1300 = vmul.f32 %v992, %v1231
  %v1301 = vmul.f32 %v995, %v1231
  %v1302 = vmul.f32 %v1000, %v1231
  %v1303 = vmul.f32 %v1003, %v1231
  %v1304 = vmul.f32 %v1008, %v1231
  %v1305 = vmul.f32 %v1011, %v1231
  %v1306 = vmul.f32 %v1016, %v1231
  %v1307 = vmul.f32 %v1019, %v1231
  %v1308 = vmul.f32 %v1024, %v1231
  %v1309 = vmul.f32 %v1027, %v1231
  %v1310 = vmul.f32 %v1032, %v1231
  %v1311 = vmul.f32 %v1035, %v1231
  %v1312 = vmul.f32 %v1040, %v1231
  %v1313 = vmul.f32 %v1043, %v1231
  %v1314 = vmul.f32 %v1048, %v1231
  %v1315 = vmul.f32 %v1051, %v1231
  %v1316 = vmul.f32 %v1056, %v1231
  %v1317 = vmul.f32 %v1059, %v1231
  %v1318 = vmul.f32 %v1064, %v1231
  %v1319 = vmul.f32 %v1067, %v1231
  %v1320 = vmul.f32 %v1072, %v1231
  %v1321 = vmul.f32 %v1075, %v1231
  %v1322 = vmul.f32 %v1080, %v1231
  %v1323 = vmul.f32 %v1083, %v1231
  %v1324 = vmul.f32 %v1088, %v1231
  %v1325 = vmul.f32 %v1091, %v1231
  %v1326 = vmul.f32 %v1096, %v1231
  %v1327 = vmul.f32 %v1099, %v1231
  %v1328 = vmul.f32 %v1104, %v1231
  %v1329 = vmul.f32 %v1107, %v1231
  %v1330 = vmul.f32 %v1112, %v1231
  %v1331 = vmul.f32 %v1115, %v1231
  %v1332 = vmul.f32 %v1120, %v1231
  %v1333 = vmul.f32 %v1123, %v1231
  %v1334 = vmul.f32 %v1128, %v1231
  %v1335 = vmul.f32 %v1131, %v1231
  %v1336 = vmul.f32 %v1136, %v1231
  %v1337 = vmul.f32 %v1139, %v1231
  %v1338 = vmul.f32 %v1144, %v1231
  %v1339 = vmul.f32 %v1147, %v1231
  %v1340 = vmul.f32 %v1152, %v1231
  %v1341 = vmul.f32 %v1155, %v1231
  %v1342 = vmul.f32 %v1160, %v1231
  %v1343 = vmul.f32 %v1163, %v1231
  %v1344 = vmul.f32 %v1168, %v1231
  %v1345 = vmul.f32 %v1171, %v1231
  %v1346 = vmul.f32 %v1176, %v1231
  %v1347 = vmul.f32 %v1179, %v1231
  %v1348 = vmul.f32 %v1184, %v1231
  %v1349 = vmul.f32 %v1187, %v1231
  %v1350 = vmul.f32 %v1192, %v1231
  %v1351 = vmul.f32 %v1195, %v1231
  %v1352 = vmul.f32 %v1200, %v1231
  %v1353 = vmul.f32 %v1203, %v1231
  %v1354 = vmul.f32 %v1208, %v1231
  %v1355 = vmul.f32 %v1211, %v1231
  %v1356 = vmul.f32 %v1216, %v1231
  %v1357 = vmul.f32 %v1219, %v1231
  %v1358 = vmul.f32 %v1224, %v1231
  %v1359 = vmul.f32 %v1227, %v1231
  %v1360 = vld [vmem:[%s2] sm:$0xff]
  %v1361 = vld [vmem:[%s2 + $0x8] sm:$0xff]
  %v1362 = vld [vmem:[%s2 + $0x10] sm:$0xff]
  %v1363 = vld [vmem:[%s2 + $0x18] sm:$0xff]
  %v1364 = vld [vmem:[%s2 + $0x20] sm:$0xff]
  %v1365 = vld [vmem:[%s2 + $0x28] sm:$0xff]
  %v1366 = vld [vmem:[%s2 + $0x30] sm:$0xff]
  %v1367 = vld [vmem:[%s2 + $0x38] sm:$0xff]
  %v1368 = vld [vmem:[%s2 + $0x40] sm:$0xff]
  %v1369 = vld [vmem:[%s2 + $0x48] sm:$0xff]
  %v1370 = vld [vmem:[%s2 + $0x50] sm:$0xff]
  %v1371 = vld [vmem:[%s2 + $0x58] sm:$0xff]
  %v1372 = vld [vmem:[%s2 + $0x60] sm:$0xff]
  %v1373 = vld [vmem:[%s2 + $0x68] sm:$0xff]
  %v1374 = vld [vmem:[%s2 + $0x70] sm:$0xff]
  %v1375 = vld [vmem:[%s2 + $0x78] sm:$0xff]
  %v1376 = vld [vmem:[%s2 + $0x80] sm:$0xff]
  %v1377 = vld [vmem:[%s2 + $0x88] sm:$0xff]
  %v1378 = vld [vmem:[%s2 + $0x90] sm:$0xff]
  %v1379 = vld [vmem:[%s2 + $0x98] sm:$0xff]
  %v1380 = vld [vmem:[%s2 + $0xa0] sm:$0xff]
  %v1381 = vld [vmem:[%s2 + $0xa8] sm:$0xff]
  %v1382 = vld [vmem:[%s2 + $0xb0] sm:$0xff]
  %v1383 = vld [vmem:[%s2 + $0xb8] sm:$0xff]
  %v1384 = vld [vmem:[%s2 + $0xc0] sm:$0xff]
  %v1385 = vld [vmem:[%s2 + $0xc8] sm:$0xff]
  %v1386 = vld [vmem:[%s2 + $0xd0] sm:$0xff]
  %v1387 = vld [vmem:[%s2 + $0xd8] sm:$0xff]
  %v1388 = vld [vmem:[%s2 + $0xe0] sm:$0xff]
  %v1389 = vld [vmem:[%s2 + $0xe8] sm:$0xff]
  %v1390 = vld [vmem:[%s2 + $0xf0] sm:$0xff]
  %v1391 = vld [vmem:[%s2 + $0xf8] sm:$0xff]
  %v1392 = vld [vmem:[%s2 + $0x100] sm:$0xff]
  %v1393 = vld [vmem:[%s2 + $0x108] sm:$0xff]
  %v1394 = vld [vmem:[%s2 + $0x110] sm:$0xff]
  %v1395 = vld [vmem:[%s2 + $0x118] sm:$0xff]
  %v1396 = vld [vmem:[%s2 + $0x120] sm:$0xff]
  %v1397 = vld [vmem:[%s2 + $0x128] sm:$0xff]
  %v1398 = vld [vmem:[%s2 + $0x130] sm:$0xff]
  %v1399 = vld [vmem:[%s2 + $0x138] sm:$0xff]
  %v1400 = vld [vmem:[%s2 + $0x140] sm:$0xff]
  %v1401 = vld [vmem:[%s2 + $0x148] sm:$0xff]
  %v1402 = vld [vmem:[%s2 + $0x150] sm:$0xff]
  %v1403 = vld [vmem:[%s2 + $0x158] sm:$0xff]
  %v1404 = vld [vmem:[%s2 + $0x160] sm:$0xff]
  %v1405 = vld [vmem:[%s2 + $0x168] sm:$0xff]
  %v1406 = vld [vmem:[%s2 + $0x170] sm:$0xff]
  %v1407 = vld [vmem:[%s2 + $0x178] sm:$0xff]
  %v1408 = vld [vmem:[%s2 + $0x180] sm:$0xff]
  %v1409 = vld [vmem:[%s2 + $0x188] sm:$0xff]
  %v1410 = vld [vmem:[%s2 + $0x190] sm:$0xff]
  %v1411 = vld [vmem:[%s2 + $0x198] sm:$0xff]
  %v1412 = vld [vmem:[%s2 + $0x1a0] sm:$0xff]
  %v1413 = vld [vmem:[%s2 + $0x1a8] sm:$0xff]
  %v1414 = vld [vmem:[%s2 + $0x1b0] sm:$0xff]
  %v1415 = vld [vmem:[%s2 + $0x1b8] sm:$0xff]
  %v1416 = vld [vmem:[%s2 + $0x1c0] sm:$0xff]
  %v1417 = vld [vmem:[%s2 + $0x1c8] sm:$0xff]
  %v1418 = vld [vmem:[%s2 + $0x1d0] sm:$0xff]
  %v1419 = vld [vmem:[%s2 + $0x1d8] sm:$0xff]
  %v1420 = vld [vmem:[%s2 + $0x1e0] sm:$0xff]
  %v1421 = vld [vmem:[%s2 + $0x1e8] sm:$0xff]
  %v1422 = vld [vmem:[%s2 + $0x1f0] sm:$0xff]
  %v1423 = vld [vmem:[%s2 + $0x1f8] sm:$0xff]
  %v1424 = vld [vmem:[%s2 + $0x200] sm:$0xff]
  %v1425 = vld [vmem:[%s2 + $0x208] sm:$0xff]
  %v1426 = vld [vmem:[%s2 + $0x210] sm:$0xff]
  %v1427 = vld [vmem:[%s2 + $0x218] sm:$0xff]
  %v1428 = vld [vmem:[%s2 + $0x220] sm:$0xff]
  %v1429 = vld [vmem:[%s2 + $0x228] sm:$0xff]
  %v1430 = vld [vmem:[%s2 + $0x230] sm:$0xff]
  %v1431 = vld [vmem:[%s2 + $0x238] sm:$0xff]
  %v1432 = vld [vmem:[%s2 + $0x240] sm:$0xff]
  %v1433 = vld [vmem:[%s2 + $0x248] sm:$0xff]
  %v1434 = vld [vmem:[%s2 + $0x250] sm:$0xff]
  %v1435 = vld [vmem:[%s2 + $0x258] sm:$0xff]
  %v1436 = vld [vmem:[%s2 + $0x260] sm:$0xff]
  %v1437 = vld [vmem:[%s2 + $0x268] sm:$0xff]
  %v1438 = vld [vmem:[%s2 + $0x270] sm:$0xff]
  %v1439 = vld [vmem:[%s2 + $0x278] sm:$0xff]
  %v1440 = vld [vmem:[%s2 + $0x280] sm:$0xff]
  %v1441 = vld [vmem:[%s2 + $0x288] sm:$0xff]
  %v1442 = vld [vmem:[%s2 + $0x290] sm:$0xff]
  %v1443 = vld [vmem:[%s2 + $0x298] sm:$0xff]
  %v1444 = vld [vmem:[%s2 + $0x2a0] sm:$0xff]
  %v1445 = vld [vmem:[%s2 + $0x2a8] sm:$0xff]
  %v1446 = vld [vmem:[%s2 + $0x2b0] sm:$0xff]
  %v1447 = vld [vmem:[%s2 + $0x2b8] sm:$0xff]
  %v1448 = vld [vmem:[%s2 + $0x2c0] sm:$0xff]
  %v1449 = vld [vmem:[%s2 + $0x2c8] sm:$0xff]
  %v1450 = vld [vmem:[%s2 + $0x2d0] sm:$0xff]
  %v1451 = vld [vmem:[%s2 + $0x2d8] sm:$0xff]
  %v1452 = vld [vmem:[%s2 + $0x2e0] sm:$0xff]
  %v1453 = vld [vmem:[%s2 + $0x2e8] sm:$0xff]
  %v1454 = vld [vmem:[%s2 + $0x2f0] sm:$0xff]
  %v1455 = vld [vmem:[%s2 + $0x2f8] sm:$0xff]
  %v1456 = vld [vmem:[%s2 + $0x300] sm:$0xff]
  %v1457 = vld [vmem:[%s2 + $0x308] sm:$0xff]
  %v1458 = vld [vmem:[%s2 + $0x310] sm:$0xff]
  %v1459 = vld [vmem:[%s2 + $0x318] sm:$0xff]
  %v1460 = vld [vmem:[%s2 + $0x320] sm:$0xff]
  %v1461 = vld [vmem:[%s2 + $0x328] sm:$0xff]
  %v1462 = vld [vmem:[%s2 + $0x330] sm:$0xff]
  %v1463 = vld [vmem:[%s2 + $0x338] sm:$0xff]
  %v1464 = vld [vmem:[%s2 + $0x340] sm:$0xff]
  %v1465 = vld [vmem:[%s2 + $0x348] sm:$0xff]
  %v1466 = vld [vmem:[%s2 + $0x350] sm:$0xff]
  %v1467 = vld [vmem:[%s2 + $0x358] sm:$0xff]
  %v1468 = vld [vmem:[%s2 + $0x360] sm:$0xff]
  %v1469 = vld [vmem:[%s2 + $0x368] sm:$0xff]
  %v1470 = vld [vmem:[%s2 + $0x370] sm:$0xff]
  %v1471 = vld [vmem:[%s2 + $0x378] sm:$0xff]
  %v1472 = vld [vmem:[%s2 + $0x380] sm:$0xff]
  %v1473 = vld [vmem:[%s2 + $0x388] sm:$0xff]
  %v1474 = vld [vmem:[%s2 + $0x390] sm:$0xff]
  %v1475 = vld [vmem:[%s2 + $0x398] sm:$0xff]
  %v1476 = vld [vmem:[%s2 + $0x3a0] sm:$0xff]
  %v1477 = vld [vmem:[%s2 + $0x3a8] sm:$0xff]
  %v1478 = vld [vmem:[%s2 + $0x3b0] sm:$0xff]
  %v1479 = vld [vmem:[%s2 + $0x3b8] sm:$0xff]
  %v1480 = vld [vmem:[%s2 + $0x3c0] sm:$0xff]
  %v1481 = vld [vmem:[%s2 + $0x3c8] sm:$0xff]
  %v1482 = vld [vmem:[%s2 + $0x3d0] sm:$0xff]
  %v1483 = vld [vmem:[%s2 + $0x3d8] sm:$0xff]
  %v1484 = vld [vmem:[%s2 + $0x3e0] sm:$0xff]
  %v1485 = vld [vmem:[%s2 + $0x3e8] sm:$0xff]
  %v1486 = vld [vmem:[%s2 + $0x3f0] sm:$0xff]
  %v1487 = vld [vmem:[%s2 + $0x3f8] sm:$0xff]
  %1489 = vset.pattern.permute.xlu0 0
  %1490 = vperm.xlu0 %1489, %v1360
  %v1491 = vpop.permute.xlu0 %1490
  %1494 = vset.pattern.permute.xlu0 0
  %1495 = vperm.xlu0 %1494, %v1361
  %v1496 = vpop.permute.xlu0 %1495
  %1499 = vset.pattern.permute.xlu0 0
  %1500 = vperm.xlu0 %1499, %v1362
  %v1501 = vpop.permute.xlu0 %1500
  %1504 = vset.pattern.permute.xlu0 0
  %1505 = vperm.xlu0 %1504, %v1363
  %v1506 = vpop.permute.xlu0 %1505
  %1509 = vset.pattern.permute.xlu0 0
  %1510 = vperm.xlu0 %1509, %v1364
  %v1511 = vpop.permute.xlu0 %1510
  %1514 = vset.pattern.permute.xlu0 0
  %1515 = vperm.xlu0 %1514, %v1365
  %v1516 = vpop.permute.xlu0 %1515
  %1519 = vset.pattern.permute.xlu0 0
  %1520 = vperm.xlu0 %1519, %v1366
  %v1521 = vpop.permute.xlu0 %1520
  %1524 = vset.pattern.permute.xlu0 0
  %1525 = vperm.xlu0 %1524, %v1367
  %v1526 = vpop.permute.xlu0 %1525
  %1529 = vset.pattern.permute.xlu0 0
  %1530 = vperm.xlu0 %1529, %v1368
  %v1531 = vpop.permute.xlu0 %1530
  %1534 = vset.pattern.permute.xlu0 0
  %1535 = vperm.xlu0 %1534, %v1369
  %v1536 = vpop.permute.xlu0 %1535
  %1539 = vset.pattern.permute.xlu0 0
  %1540 = vperm.xlu0 %1539, %v1370
  %v1541 = vpop.permute.xlu0 %1540
  %1544 = vset.pattern.permute.xlu0 0
  %1545 = vperm.xlu0 %1544, %v1371
  %v1546 = vpop.permute.xlu0 %1545
  %1549 = vset.pattern.permute.xlu0 0
  %1550 = vperm.xlu0 %1549, %v1372
  %v1551 = vpop.permute.xlu0 %1550
  %1554 = vset.pattern.permute.xlu0 0
  %1555 = vperm.xlu0 %1554, %v1373
  %v1556 = vpop.permute.xlu0 %1555
  %1559 = vset.pattern.permute.xlu0 0
  %1560 = vperm.xlu0 %1559, %v1374
  %v1561 = vpop.permute.xlu0 %1560
  %1564 = vset.pattern.permute.xlu0 0
  %1565 = vperm.xlu0 %1564, %v1375
  %v1566 = vpop.permute.xlu0 %1565
  %1569 = vset.pattern.permute.xlu0 0
  %1570 = vperm.xlu0 %1569, %v1376
  %v1571 = vpop.permute.xlu0 %1570
  %1574 = vset.pattern.permute.xlu0 0
  %1575 = vperm.xlu0 %1574, %v1377
  %v1576 = vpop.permute.xlu0 %1575
  %1579 = vset.pattern.permute.xlu0 0
  %1580 = vperm.xlu0 %1579, %v1378
  %v1581 = vpop.permute.xlu0 %1580
  %1584 = vset.pattern.permute.xlu0 0
  %1585 = vperm.xlu0 %1584, %v1379
  %v1586 = vpop.permute.xlu0 %1585
  %1589 = vset.pattern.permute.xlu0 0
  %1590 = vperm.xlu0 %1589, %v1380
  %v1591 = vpop.permute.xlu0 %1590
  %1594 = vset.pattern.permute.xlu0 0
  %1595 = vperm.xlu0 %1594, %v1381
  %v1596 = vpop.permute.xlu0 %1595
  %1599 = vset.pattern.permute.xlu0 0
  %1600 = vperm.xlu0 %1599, %v1382
  %v1601 = vpop.permute.xlu0 %1600
  %1604 = vset.pattern.permute.xlu0 0
  %1605 = vperm.xlu0 %1604, %v1383
  %v1606 = vpop.permute.xlu0 %1605
  %1609 = vset.pattern.permute.xlu0 0
  %1610 = vperm.xlu0 %1609, %v1384
  %v1611 = vpop.permute.xlu0 %1610
  %1614 = vset.pattern.permute.xlu0 0
  %1615 = vperm.xlu0 %1614, %v1385
  %v1616 = vpop.permute.xlu0 %1615
  %1619 = vset.pattern.permute.xlu0 0
  %1620 = vperm.xlu0 %1619, %v1386
  %v1621 = vpop.permute.xlu0 %1620
  %1624 = vset.pattern.permute.xlu0 0
  %1625 = vperm.xlu0 %1624, %v1387
  %v1626 = vpop.permute.xlu0 %1625
  %1629 = vset.pattern.permute.xlu0 0
  %1630 = vperm.xlu0 %1629, %v1388
  %v1631 = vpop.permute.xlu0 %1630
  %1634 = vset.pattern.permute.xlu0 0
  %1635 = vperm.xlu0 %1634, %v1389
  %v1636 = vpop.permute.xlu0 %1635
  %1639 = vset.pattern.permute.xlu0 0
  %1640 = vperm.xlu0 %1639, %v1390
  %v1641 = vpop.permute.xlu0 %1640
  %1644 = vset.pattern.permute.xlu0 0
  %1645 = vperm.xlu0 %1644, %v1391
  %v1646 = vpop.permute.xlu0 %1645
  %1649 = vset.pattern.permute.xlu0 0
  %1650 = vperm.xlu0 %1649, %v1392
  %v1651 = vpop.permute.xlu0 %1650
  %1654 = vset.pattern.permute.xlu0 0
  %1655 = vperm.xlu0 %1654, %v1393
  %v1656 = vpop.permute.xlu0 %1655
  %1659 = vset.pattern.permute.xlu0 0
  %1660 = vperm.xlu0 %1659, %v1394
  %v1661 = vpop.permute.xlu0 %1660
  %1664 = vset.pattern.permute.xlu0 0
  %1665 = vperm.xlu0 %1664, %v1395
  %v1666 = vpop.permute.xlu0 %1665
  %1669 = vset.pattern.permute.xlu0 0
  %1670 = vperm.xlu0 %1669, %v1396
  %v1671 = vpop.permute.xlu0 %1670
  %1674 = vset.pattern.permute.xlu0 0
  %1675 = vperm.xlu0 %1674, %v1397
  %v1676 = vpop.permute.xlu0 %1675
  %1679 = vset.pattern.permute.xlu0 0
  %1680 = vperm.xlu0 %1679, %v1398
  %v1681 = vpop.permute.xlu0 %1680
  %1684 = vset.pattern.permute.xlu0 0
  %1685 = vperm.xlu0 %1684, %v1399
  %v1686 = vpop.permute.xlu0 %1685
  %1689 = vset.pattern.permute.xlu0 0
  %1690 = vperm.xlu0 %1689, %v1400
  %v1691 = vpop.permute.xlu0 %1690
  %1694 = vset.pattern.permute.xlu0 0
  %1695 = vperm.xlu0 %1694, %v1401
  %v1696 = vpop.permute.xlu0 %1695
  %1699 = vset.pattern.permute.xlu0 0
  %1700 = vperm.xlu0 %1699, %v1402
  %v1701 = vpop.permute.xlu0 %1700
  %1704 = vset.pattern.permute.xlu0 0
  %1705 = vperm.xlu0 %1704, %v1403
  %v1706 = vpop.permute.xlu0 %1705
  %1709 = vset.pattern.permute.xlu0 0
  %1710 = vperm.xlu0 %1709, %v1404
  %v1711 = vpop.permute.xlu0 %1710
  %1714 = vset.pattern.permute.xlu0 0
  %1715 = vperm.xlu0 %1714, %v1405
  %v1716 = vpop.permute.xlu0 %1715
  %1719 = vset.pattern.permute.xlu0 0
  %1720 = vperm.xlu0 %1719, %v1406
  %v1721 = vpop.permute.xlu0 %1720
  %1724 = vset.pattern.permute.xlu0 0
  %1725 = vperm.xlu0 %1724, %v1407
  %v1726 = vpop.permute.xlu0 %1725
  %1729 = vset.pattern.permute.xlu0 0
  %1730 = vperm.xlu0 %1729, %v1408
  %v1731 = vpop.permute.xlu0 %1730
  %1734 = vset.pattern.permute.xlu0 0
  %1735 = vperm.xlu0 %1734, %v1409
  %v1736 = vpop.permute.xlu0 %1735
  %1739 = vset.pattern.permute.xlu0 0
  %1740 = vperm.xlu0 %1739, %v1410
  %v1741 = vpop.permute.xlu0 %1740
  %1744 = vset.pattern.permute.xlu0 0
  %1745 = vperm.xlu0 %1744, %v1411
  %v1746 = vpop.permute.xlu0 %1745
  %1749 = vset.pattern.permute.xlu0 0
  %1750 = vperm.xlu0 %1749, %v1412
  %v1751 = vpop.permute.xlu0 %1750
  %1754 = vset.pattern.permute.xlu0 0
  %1755 = vperm.xlu0 %1754, %v1413
  %v1756 = vpop.permute.xlu0 %1755
  %1759 = vset.pattern.permute.xlu0 0
  %1760 = vperm.xlu0 %1759, %v1414
  %v1761 = vpop.permute.xlu0 %1760
  %1764 = vset.pattern.permute.xlu0 0
  %1765 = vperm.xlu0 %1764, %v1415
  %v1766 = vpop.permute.xlu0 %1765
  %1769 = vset.pattern.permute.xlu0 0
  %1770 = vperm.xlu0 %1769, %v1416
  %v1771 = vpop.permute.xlu0 %1770
  %1774 = vset.pattern.permute.xlu0 0
  %1775 = vperm.xlu0 %1774, %v1417
  %v1776 = vpop.permute.xlu0 %1775
  %1779 = vset.pattern.permute.xlu0 0
  %1780 = vperm.xlu0 %1779, %v1418
  %v1781 = vpop.permute.xlu0 %1780
  %1784 = vset.pattern.permute.xlu0 0
  %1785 = vperm.xlu0 %1784, %v1419
  %v1786 = vpop.permute.xlu0 %1785
  %1789 = vset.pattern.permute.xlu0 0
  %1790 = vperm.xlu0 %1789, %v1420
  %v1791 = vpop.permute.xlu0 %1790
  %1794 = vset.pattern.permute.xlu0 0
  %1795 = vperm.xlu0 %1794, %v1421
  %v1796 = vpop.permute.xlu0 %1795
  %1799 = vset.pattern.permute.xlu0 0
  %1800 = vperm.xlu0 %1799, %v1422
  %v1801 = vpop.permute.xlu0 %1800
  %1804 = vset.pattern.permute.xlu0 0
  %1805 = vperm.xlu0 %1804, %v1423
  %v1806 = vpop.permute.xlu0 %1805
  %1809 = vset.pattern.permute.xlu0 0
  %1810 = vperm.xlu0 %1809, %v1424
  %v1811 = vpop.permute.xlu0 %1810
  %1814 = vset.pattern.permute.xlu0 0
  %1815 = vperm.xlu0 %1814, %v1425
  %v1816 = vpop.permute.xlu0 %1815
  %1819 = vset.pattern.permute.xlu0 0
  %1820 = vperm.xlu0 %1819, %v1426
  %v1821 = vpop.permute.xlu0 %1820
  %1824 = vset.pattern.permute.xlu0 0
  %1825 = vperm.xlu0 %1824, %v1427
  %v1826 = vpop.permute.xlu0 %1825
  %1829 = vset.pattern.permute.xlu0 0
  %1830 = vperm.xlu0 %1829, %v1428
  %v1831 = vpop.permute.xlu0 %1830
  %1834 = vset.pattern.permute.xlu0 0
  %1835 = vperm.xlu0 %1834, %v1429
  %v1836 = vpop.permute.xlu0 %1835
  %1839 = vset.pattern.permute.xlu0 0
  %1840 = vperm.xlu0 %1839, %v1430
  %v1841 = vpop.permute.xlu0 %1840
  %1844 = vset.pattern.permute.xlu0 0
  %1845 = vperm.xlu0 %1844, %v1431
  %v1846 = vpop.permute.xlu0 %1845
  %1849 = vset.pattern.permute.xlu0 0
  %1850 = vperm.xlu0 %1849, %v1432
  %v1851 = vpop.permute.xlu0 %1850
  %1854 = vset.pattern.permute.xlu0 0
  %1855 = vperm.xlu0 %1854, %v1433
  %v1856 = vpop.permute.xlu0 %1855
  %1859 = vset.pattern.permute.xlu0 0
  %1860 = vperm.xlu0 %1859, %v1434
  %v1861 = vpop.permute.xlu0 %1860
  %1864 = vset.pattern.permute.xlu0 0
  %1865 = vperm.xlu0 %1864, %v1435
  %v1866 = vpop.permute.xlu0 %1865
  %1869 = vset.pattern.permute.xlu0 0
  %1870 = vperm.xlu0 %1869, %v1436
  %v1871 = vpop.permute.xlu0 %1870
  %1874 = vset.pattern.permute.xlu0 0
  %1875 = vperm.xlu0 %1874, %v1437
  %v1876 = vpop.permute.xlu0 %1875
  %1879 = vset.pattern.permute.xlu0 0
  %1880 = vperm.xlu0 %1879, %v1438
  %v1881 = vpop.permute.xlu0 %1880
  %1884 = vset.pattern.permute.xlu0 0
  %1885 = vperm.xlu0 %1884, %v1439
  %v1886 = vpop.permute.xlu0 %1885
  %1889 = vset.pattern.permute.xlu0 0
  %1890 = vperm.xlu0 %1889, %v1440
  %v1891 = vpop.permute.xlu0 %1890
  %1894 = vset.pattern.permute.xlu0 0
  %1895 = vperm.xlu0 %1894, %v1441
  %v1896 = vpop.permute.xlu0 %1895
  %1899 = vset.pattern.permute.xlu0 0
  %1900 = vperm.xlu0 %1899, %v1442
  %v1901 = vpop.permute.xlu0 %1900
  %1904 = vset.pattern.permute.xlu0 0
  %1905 = vperm.xlu0 %1904, %v1443
  %v1906 = vpop.permute.xlu0 %1905
  %1909 = vset.pattern.permute.xlu0 0
  %1910 = vperm.xlu0 %1909, %v1444
  %v1911 = vpop.permute.xlu0 %1910
  %1914 = vset.pattern.permute.xlu0 0
  %1915 = vperm.xlu0 %1914, %v1445
  %v1916 = vpop.permute.xlu0 %1915
  %1919 = vset.pattern.permute.xlu0 0
  %1920 = vperm.xlu0 %1919, %v1446
  %v1921 = vpop.permute.xlu0 %1920
  %1924 = vset.pattern.permute.xlu0 0
  %1925 = vperm.xlu0 %1924, %v1447
  %v1926 = vpop.permute.xlu0 %1925
  %1929 = vset.pattern.permute.xlu0 0
  %1930 = vperm.xlu0 %1929, %v1448
  %v1931 = vpop.permute.xlu0 %1930
  %1934 = vset.pattern.permute.xlu0 0
  %1935 = vperm.xlu0 %1934, %v1449
  %v1936 = vpop.permute.xlu0 %1935
  %1939 = vset.pattern.permute.xlu0 0
  %1940 = vperm.xlu0 %1939, %v1450
  %v1941 = vpop.permute.xlu0 %1940
  %1944 = vset.pattern.permute.xlu0 0
  %1945 = vperm.xlu0 %1944, %v1451
  %v1946 = vpop.permute.xlu0 %1945
  %1949 = vset.pattern.permute.xlu0 0
  %1950 = vperm.xlu0 %1949, %v1452
  %v1951 = vpop.permute.xlu0 %1950
  %1954 = vset.pattern.permute.xlu0 0
  %1955 = vperm.xlu0 %1954, %v1453
  %v1956 = vpop.permute.xlu0 %1955
  %1959 = vset.pattern.permute.xlu0 0
  %1960 = vperm.xlu0 %1959, %v1454
  %v1961 = vpop.permute.xlu0 %1960
  %1964 = vset.pattern.permute.xlu0 0
  %1965 = vperm.xlu0 %1964, %v1455
  %v1966 = vpop.permute.xlu0 %1965
  %1969 = vset.pattern.permute.xlu0 0
  %1970 = vperm.xlu0 %1969, %v1456
  %v1971 = vpop.permute.xlu0 %1970
  %1974 = vset.pattern.permute.xlu0 0
  %1975 = vperm.xlu0 %1974, %v1457
  %v1976 = vpop.permute.xlu0 %1975
  %1979 = vset.pattern.permute.xlu0 0
  %1980 = vperm.xlu0 %1979, %v1458
  %v1981 = vpop.permute.xlu0 %1980
  %1984 = vset.pattern.permute.xlu0 0
  %1985 = vperm.xlu0 %1984, %v1459
  %v1986 = vpop.permute.xlu0 %1985
  %1989 = vset.pattern.permute.xlu0 0
  %1990 = vperm.xlu0 %1989, %v1460
  %v1991 = vpop.permute.xlu0 %1990
  %1994 = vset.pattern.permute.xlu0 0
  %1995 = vperm.xlu0 %1994, %v1461
  %v1996 = vpop.permute.xlu0 %1995
  %1999 = vset.pattern.permute.xlu0 0
  %2000 = vperm.xlu0 %1999, %v1462
  %v2001 = vpop.permute.xlu0 %2000
  %2004 = vset.pattern.permute.xlu0 0
  %2005 = vperm.xlu0 %2004, %v1463
  %v2006 = vpop.permute.xlu0 %2005
  %2009 = vset.pattern.permute.xlu0 0
  %2010 = vperm.xlu0 %2009, %v1464
  %v2011 = vpop.permute.xlu0 %2010
  %2014 = vset.pattern.permute.xlu0 0
  %2015 = vperm.xlu0 %2014, %v1465
  %v2016 = vpop.permute.xlu0 %2015
  %2019 = vset.pattern.permute.xlu0 0
  %2020 = vperm.xlu0 %2019, %v1466
  %v2021 = vpop.permute.xlu0 %2020
  %2024 = vset.pattern.permute.xlu0 0
  %2025 = vperm.xlu0 %2024, %v1467
  %v2026 = vpop.permute.xlu0 %2025
  %2029 = vset.pattern.permute.xlu0 0
  %2030 = vperm.xlu0 %2029, %v1468
  %v2031 = vpop.permute.xlu0 %2030
  %2034 = vset.pattern.permute.xlu0 0
  %2035 = vperm.xlu0 %2034, %v1469
  %v2036 = vpop.permute.xlu0 %2035
  %2039 = vset.pattern.permute.xlu0 0
  %2040 = vperm.xlu0 %2039, %v1470
  %v2041 = vpop.permute.xlu0 %2040
  %2044 = vset.pattern.permute.xlu0 0
  %2045 = vperm.xlu0 %2044, %v1471
  %v2046 = vpop.permute.xlu0 %2045
  %2049 = vset.pattern.permute.xlu0 0
  %2050 = vperm.xlu0 %2049, %v1472
  %v2051 = vpop.permute.xlu0 %2050
  %2054 = vset.pattern.permute.xlu0 0
  %2055 = vperm.xlu0 %2054, %v1473
  %v2056 = vpop.permute.xlu0 %2055
  %2059 = vset.pattern.permute.xlu0 0
  %2060 = vperm.xlu0 %2059, %v1474
  %v2061 = vpop.permute.xlu0 %2060
  %2064 = vset.pattern.permute.xlu0 0
  %2065 = vperm.xlu0 %2064, %v1475
  %v2066 = vpop.permute.xlu0 %2065
  %2069 = vset.pattern.permute.xlu0 0
  %2070 = vperm.xlu0 %2069, %v1476
  %v2071 = vpop.permute.xlu0 %2070
  %2074 = vset.pattern.permute.xlu0 0
  %2075 = vperm.xlu0 %2074, %v1477
  %v2076 = vpop.permute.xlu0 %2075
  %2079 = vset.pattern.permute.xlu0 0
  %2080 = vperm.xlu0 %2079, %v1478
  %v2081 = vpop.permute.xlu0 %2080
  %2084 = vset.pattern.permute.xlu0 0
  %2085 = vperm.xlu0 %2084, %v1479
  %v2086 = vpop.permute.xlu0 %2085
  %2089 = vset.pattern.permute.xlu0 0
  %2090 = vperm.xlu0 %2089, %v1480
  %v2091 = vpop.permute.xlu0 %2090
  %2094 = vset.pattern.permute.xlu0 0
  %2095 = vperm.xlu0 %2094, %v1481
  %v2096 = vpop.permute.xlu0 %2095
  %2099 = vset.pattern.permute.xlu0 0
  %2100 = vperm.xlu0 %2099, %v1482
  %v2101 = vpop.permute.xlu0 %2100
  %2104 = vset.pattern.permute.xlu0 0
  %2105 = vperm.xlu0 %2104, %v1483
  %v2106 = vpop.permute.xlu0 %2105
  %2109 = vset.pattern.permute.xlu0 0
  %2110 = vperm.xlu0 %2109, %v1484
  %v2111 = vpop.permute.xlu0 %2110
  %2114 = vset.pattern.permute.xlu0 0
  %2115 = vperm.xlu0 %2114, %v1485
  %v2116 = vpop.permute.xlu0 %2115
  %2119 = vset.pattern.permute.xlu0 0
  %2120 = vperm.xlu0 %2119, %v1486
  %v2121 = vpop.permute.xlu0 %2120
  %2124 = vset.pattern.permute.xlu0 0
  %2125 = vperm.xlu0 %2124, %v1487
  %v2126 = vpop.permute.xlu0 %2125
  %v2128 = vadd.f32 %v1232, %v1491
  %v2129 = vadd.f32 %v1233, %v1496
  %v2130 = vadd.f32 %v1234, %v1501
  %v2131 = vadd.f32 %v1235, %v1506
  %v2132 = vadd.f32 %v1236, %v1511
  %v2133 = vadd.f32 %v1237, %v1516
  %v2134 = vadd.f32 %v1238, %v1521
  %v2135 = vadd.f32 %v1239, %v1526
  %v2136 = vadd.f32 %v1240, %v1531
  %v2137 = vadd.f32 %v1241, %v1536
  %v2138 = vadd.f32 %v1242, %v1541
  %v2139 = vadd.f32 %v1243, %v1546
  %v2140 = vadd.f32 %v1244, %v1551
  %v2141 = vadd.f32 %v1245, %v1556
  %v2142 = vadd.f32 %v1246, %v1561
  %v2143 = vadd.f32 %v1247, %v1566
  %v2144 = vadd.f32 %v1248, %v1571
  %v2145 = vadd.f32 %v1249, %v1576
  %v2146 = vadd.f32 %v1250, %v1581
  %v2147 = vadd.f32 %v1251, %v1586
  %v2148 = vadd.f32 %v1252, %v1591
  %v2149 = vadd.f32 %v1253, %v1596
  %v2150 = vadd.f32 %v1254, %v1601
  %v2151 = vadd.f32 %v1255, %v1606
  %v2152 = vadd.f32 %v1256, %v1611
  %v2153 = vadd.f32 %v1257, %v1616
  %v2154 = vadd.f32 %v1258, %v1621
  %v2155 = vadd.f32 %v1259, %v1626
  %v2156 = vadd.f32 %v1260, %v1631
  %v2157 = vadd.f32 %v1261, %v1636
  %v2158 = vadd.f32 %v1262, %v1641
  %v2159 = vadd.f32 %v1263, %v1646
  %v2160 = vadd.f32 %v1264, %v1651
  %v2161 = vadd.f32 %v1265, %v1656
  %v2162 = vadd.f32 %v1266, %v1661
  %v2163 = vadd.f32 %v1267, %v1666
  %v2164 = vadd.f32 %v1268, %v1671
  %v2165 = vadd.f32 %v1269, %v1676
  %v2166 = vadd.f32 %v1270, %v1681
  %v2167 = vadd.f32 %v1271, %v1686
  %v2168 = vadd.f32 %v1272, %v1691
  %v2169 = vadd.f32 %v1273, %v1696
  %v2170 = vadd.f32 %v1274, %v1701
  %v2171 = vadd.f32 %v1275, %v1706
  %v2172 = vadd.f32 %v1276, %v1711
  %v2173 = vadd.f32 %v1277, %v1716
  %v2174 = vadd.f32 %v1278, %v1721
  %v2175 = vadd.f32 %v1279, %v1726
  %v2176 = vadd.f32 %v1280, %v1731
  %v2177 = vadd.f32 %v1281, %v1736
  %v2178 = vadd.f32 %v1282, %v1741
  %v2179 = vadd.f32 %v1283, %v1746
  %v2180 = vadd.f32 %v1284, %v1751
  %v2181 = vadd.f32 %v1285, %v1756
  %v2182 = vadd.f32 %v1286, %v1761
  %v2183 = vadd.f32 %v1287, %v1766
  %v2184 = vadd.f32 %v1288, %v1771
  %v2185 = vadd.f32 %v1289, %v1776
  %v2186 = vadd.f32 %v1290, %v1781
  %v2187 = vadd.f32 %v1291, %v1786
  %v2188 = vadd.f32 %v1292, %v1791
  %v2189 = vadd.f32 %v1293, %v1796
  %v2190 = vadd.f32 %v1294, %v1801
  %v2191 = vadd.f32 %v1295, %v1806
  %v2192 = vadd.f32 %v1296, %v1811
  %v2193 = vadd.f32 %v1297, %v1816
  %v2194 = vadd.f32 %v1298, %v1821
  %v2195 = vadd.f32 %v1299, %v1826
  %v2196 = vadd.f32 %v1300, %v1831
  %v2197 = vadd.f32 %v1301, %v1836
  %v2198 = vadd.f32 %v1302, %v1841
  %v2199 = vadd.f32 %v1303, %v1846
  %v2200 = vadd.f32 %v1304, %v1851
  %v2201 = vadd.f32 %v1305, %v1856
  %v2202 = vadd.f32 %v1306, %v1861
  %v2203 = vadd.f32 %v1307, %v1866
  %v2204 = vadd.f32 %v1308, %v1871
  %v2205 = vadd.f32 %v1309, %v1876
  %v2206 = vadd.f32 %v1310, %v1881
  %v2207 = vadd.f32 %v1311, %v1886
  %v2208 = vadd.f32 %v1312, %v1891
  %v2209 = vadd.f32 %v1313, %v1896
  %v2210 = vadd.f32 %v1314, %v1901
  %v2211 = vadd.f32 %v1315, %v1906
  %v2212 = vadd.f32 %v1316, %v1911
  %v2213 = vadd.f32 %v1317, %v1916
  %v2214 = vadd.f32 %v1318, %v1921
  %v2215 = vadd.f32 %v1319, %v1926
  %v2216 = vadd.f32 %v1320, %v1931
  %v2217 = vadd.f32 %v1321, %v1936
  %v2218 = vadd.f32 %v1322, %v1941
  %v2219 = vadd.f32 %v1323, %v1946
  %v2220 = vadd.f32 %v1324, %v1951
  %v2221 = vadd.f32 %v1325, %v1956
  %v2222 = vadd.f32 %v1326, %v1961
  %v2223 = vadd.f32 %v1327, %v1966
  %v2224 = vadd.f32 %v1328, %v1971
  %v2225 = vadd.f32 %v1329, %v1976
  %v2226 = vadd.f32 %v1330, %v1981
  %v2227 = vadd.f32 %v1331, %v1986
  %v2228 = vadd.f32 %v1332, %v1991
  %v2229 = vadd.f32 %v1333, %v1996
  %v2230 = vadd.f32 %v1334, %v2001
  %v2231 = vadd.f32 %v1335, %v2006
  %v2232 = vadd.f32 %v1336, %v2011
  %v2233 = vadd.f32 %v1337, %v2016
  %v2234 = vadd.f32 %v1338, %v2021
  %v2235 = vadd.f32 %v1339, %v2026
  %v2236 = vadd.f32 %v1340, %v2031
  %v2237 = vadd.f32 %v1341, %v2036
  %v2238 = vadd.f32 %v1342, %v2041
  %v2239 = vadd.f32 %v1343, %v2046
  %v2240 = vadd.f32 %v1344, %v2051
  %v2241 = vadd.f32 %v1345, %v2056
  %v2242 = vadd.f32 %v1346, %v2061
  %v2243 = vadd.f32 %v1347, %v2066
  %v2244 = vadd.f32 %v1348, %v2071
  %v2245 = vadd.f32 %v1349, %v2076
  %v2246 = vadd.f32 %v1350, %v2081
  %v2247 = vadd.f32 %v1351, %v2086
  %v2248 = vadd.f32 %v1352, %v2091
  %v2249 = vadd.f32 %v1353, %v2096
  %v2250 = vadd.f32 %v1354, %v2101
  %v2251 = vadd.f32 %v1355, %v2106
  %v2252 = vadd.f32 %v1356, %v2111
  %v2253 = vadd.f32 %v1357, %v2116
  %v2254 = vadd.f32 %v1358, %v2121
  %v2255 = vadd.f32 %v1359, %v2126
  %v2256 = vld [vmem:[%s6] sm:$0x1]
  %v2257 = vmul.f32 %v2128, %v2128
  %v2258 = vmul.f32 %v2129, %v2129
  %v2259 = vmul.f32 %v2130, %v2130
  %v2260 = vmul.f32 %v2131, %v2131
  %v2261 = vmul.f32 %v2132, %v2132
  %v2262 = vmul.f32 %v2133, %v2133
  %v2263 = vmul.f32 %v2134, %v2134
  %v2264 = vmul.f32 %v2135, %v2135
  %v2265 = vadd.f32 %v2128, %v2136
  %v2266 = vadd.f32 %v2129, %v2137
  %v2267 = vadd.f32 %v2130, %v2138
  %v2268 = vadd.f32 %v2131, %v2139
  %v2269 = vadd.f32 %v2132, %v2140
  %v2270 = vadd.f32 %v2133, %v2141
  %v2271 = vadd.f32 %v2134, %v2142
  %v2272 = vadd.f32 %v2135, %v2143
  %v2273 = vmul.f32 %v2136, %v2136
  %v2274 = vmul.f32 %v2137, %v2137
  %v2275 = vmul.f32 %v2138, %v2138
  %v2276 = vmul.f32 %v2139, %v2139
  %v2277 = vmul.f32 %v2140, %v2140
  %v2278 = vmul.f32 %v2141, %v2141
  %v2279 = vmul.f32 %v2142, %v2142
  %v2280 = vmul.f32 %v2143, %v2143
  %v2281 = vadd.f32 %v2257, %v2273
  %v2282 = vadd.f32 %v2258, %v2274
  %v2283 = vadd.f32 %v2259, %v2275
  %v2284 = vadd.f32 %v2260, %v2276
  %v2285 = vadd.f32 %v2261, %v2277
  %v2286 = vadd.f32 %v2262, %v2278
  %v2287 = vadd.f32 %v2263, %v2279
  %v2288 = vadd.f32 %v2264, %v2280
  %v2289 = vadd.f32 %v2265, %v2144
  %v2290 = vadd.f32 %v2266, %v2145
  %v2291 = vadd.f32 %v2267, %v2146
  %v2292 = vadd.f32 %v2268, %v2147
  %v2293 = vadd.f32 %v2269, %v2148
  %v2294 = vadd.f32 %v2270, %v2149
  %v2295 = vadd.f32 %v2271, %v2150
  %v2296 = vadd.f32 %v2272, %v2151
  %v2297 = vmul.f32 %v2144, %v2144
  %v2298 = vmul.f32 %v2145, %v2145
  %v2299 = vmul.f32 %v2146, %v2146
  %v2300 = vmul.f32 %v2147, %v2147
  %v2301 = vmul.f32 %v2148, %v2148
  %v2302 = vmul.f32 %v2149, %v2149
  %v2303 = vmul.f32 %v2150, %v2150
  %v2304 = vmul.f32 %v2151, %v2151
  %v2305 = vadd.f32 %v2281, %v2297
  %v2306 = vadd.f32 %v2282, %v2298
  %v2307 = vadd.f32 %v2283, %v2299
  %v2308 = vadd.f32 %v2284, %v2300
  %v2309 = vadd.f32 %v2285, %v2301
  %v2310 = vadd.f32 %v2286, %v2302
  %v2311 = vadd.f32 %v2287, %v2303
  %v2312 = vadd.f32 %v2288, %v2304
  %v2313 = vadd.f32 %v2289, %v2152
  %v2314 = vadd.f32 %v2290, %v2153
  %v2315 = vadd.f32 %v2291, %v2154
  %v2316 = vadd.f32 %v2292, %v2155
  %v2317 = vadd.f32 %v2293, %v2156
  %v2318 = vadd.f32 %v2294, %v2157
  %v2319 = vadd.f32 %v2295, %v2158
  %v2320 = vadd.f32 %v2296, %v2159
  %v2321 = vmul.f32 %v2152, %v2152
  %v2322 = vmul.f32 %v2153, %v2153
  %v2323 = vmul.f32 %v2154, %v2154
  %v2324 = vmul.f32 %v2155, %v2155
  %v2325 = vmul.f32 %v2156, %v2156
  %v2326 = vmul.f32 %v2157, %v2157
  %v2327 = vmul.f32 %v2158, %v2158
  %v2328 = vmul.f32 %v2159, %v2159
  %v2329 = vadd.f32 %v2305, %v2321
  %v2330 = vadd.f32 %v2306, %v2322
  %v2331 = vadd.f32 %v2307, %v2323
  %v2332 = vadd.f32 %v2308, %v2324
  %v2333 = vadd.f32 %v2309, %v2325
  %v2334 = vadd.f32 %v2310, %v2326
  %v2335 = vadd.f32 %v2311, %v2327
  %v2336 = vadd.f32 %v2312, %v2328
  %v2337 = vadd.f32 %v2313, %v2160
  %v2338 = vadd.f32 %v2314, %v2161
  %v2339 = vadd.f32 %v2315, %v2162
  %v2340 = vadd.f32 %v2316, %v2163
  %v2341 = vadd.f32 %v2317, %v2164
  %v2342 = vadd.f32 %v2318, %v2165
  %v2343 = vadd.f32 %v2319, %v2166
  %v2344 = vadd.f32 %v2320, %v2167
  %v2345 = vmul.f32 %v2160, %v2160
  %v2346 = vmul.f32 %v2161, %v2161
  %v2347 = vmul.f32 %v2162, %v2162
  %v2348 = vmul.f32 %v2163, %v2163
  %v2349 = vmul.f32 %v2164, %v2164
  %v2350 = vmul.f32 %v2165, %v2165
  %v2351 = vmul.f32 %v2166, %v2166
  %v2352 = vmul.f32 %v2167, %v2167
  %v2353 = vadd.f32 %v2329, %v2345
  %v2354 = vadd.f32 %v2330, %v2346
  %v2355 = vadd.f32 %v2331, %v2347
  %v2356 = vadd.f32 %v2332, %v2348
  %v2357 = vadd.f32 %v2333, %v2349
  %v2358 = vadd.f32 %v2334, %v2350
  %v2359 = vadd.f32 %v2335, %v2351
  %v2360 = vadd.f32 %v2336, %v2352
  %v2361 = vadd.f32 %v2337, %v2168
  %v2362 = vadd.f32 %v2338, %v2169
  %v2363 = vadd.f32 %v2339, %v2170
  %v2364 = vadd.f32 %v2340, %v2171
  %v2365 = vadd.f32 %v2341, %v2172
  %v2366 = vadd.f32 %v2342, %v2173
  %v2367 = vadd.f32 %v2343, %v2174
  %v2368 = vadd.f32 %v2344, %v2175
  %v2369 = vmul.f32 %v2168, %v2168
  %v2370 = vmul.f32 %v2169, %v2169
  %v2371 = vmul.f32 %v2170, %v2170
  %v2372 = vmul.f32 %v2171, %v2171
  %v2373 = vmul.f32 %v2172, %v2172
  %v2374 = vmul.f32 %v2173, %v2173
  %v2375 = vmul.f32 %v2174, %v2174
  %v2376 = vmul.f32 %v2175, %v2175
  %v2377 = vadd.f32 %v2353, %v2369
  %v2378 = vadd.f32 %v2354, %v2370
  %v2379 = vadd.f32 %v2355, %v2371
  %v2380 = vadd.f32 %v2356, %v2372
  %v2381 = vadd.f32 %v2357, %v2373
  %v2382 = vadd.f32 %v2358, %v2374
  %v2383 = vadd.f32 %v2359, %v2375
  %v2384 = vadd.f32 %v2360, %v2376
  %v2385 = vadd.f32 %v2361, %v2176
  %v2386 = vadd.f32 %v2362, %v2177
  %v2387 = vadd.f32 %v2363, %v2178
  %v2388 = vadd.f32 %v2364, %v2179
  %v2389 = vadd.f32 %v2365, %v2180
  %v2390 = vadd.f32 %v2366, %v2181
  %v2391 = vadd.f32 %v2367, %v2182
  %v2392 = vadd.f32 %v2368, %v2183
  %v2393 = vmul.f32 %v2176, %v2176
  %v2394 = vmul.f32 %v2177, %v2177
  %v2395 = vmul.f32 %v2178, %v2178
  %v2396 = vmul.f32 %v2179, %v2179
  %v2397 = vmul.f32 %v2180, %v2180
  %v2398 = vmul.f32 %v2181, %v2181
  %v2399 = vmul.f32 %v2182, %v2182
  %v2400 = vmul.f32 %v2183, %v2183
  %v2401 = vadd.f32 %v2377, %v2393
  %v2402 = vadd.f32 %v2378, %v2394
  %v2403 = vadd.f32 %v2379, %v2395
  %v2404 = vadd.f32 %v2380, %v2396
  %v2405 = vadd.f32 %v2381, %v2397
  %v2406 = vadd.f32 %v2382, %v2398
  %v2407 = vadd.f32 %v2383, %v2399
  %v2408 = vadd.f32 %v2384, %v2400
  %v2409 = vadd.f32 %v2385, %v2184
  %v2410 = vadd.f32 %v2386, %v2185
  %v2411 = vadd.f32 %v2387, %v2186
  %v2412 = vadd.f32 %v2388, %v2187
  %v2413 = vadd.f32 %v2389, %v2188
  %v2414 = vadd.f32 %v2390, %v2189
  %v2415 = vadd.f32 %v2391, %v2190
  %v2416 = vadd.f32 %v2392, %v2191
  %v2417 = vmul.f32 %v2184, %v2184
  %v2418 = vmul.f32 %v2185, %v2185
  %v2419 = vmul.f32 %v2186, %v2186
  %v2420 = vmul.f32 %v2187, %v2187
  %v2421 = vmul.f32 %v2188, %v2188
  %v2422 = vmul.f32 %v2189, %v2189
  %v2423 = vmul.f32 %v2190, %v2190
  %v2424 = vmul.f32 %v2191, %v2191
  %v2425 = vadd.f32 %v2401, %v2417
  %v2426 = vadd.f32 %v2402, %v2418
  %v2427 = vadd.f32 %v2403, %v2419
  %v2428 = vadd.f32 %v2404, %v2420
  %v2429 = vadd.f32 %v2405, %v2421
  %v2430 = vadd.f32 %v2406, %v2422
  %v2431 = vadd.f32 %v2407, %v2423
  %v2432 = vadd.f32 %v2408, %v2424
  %v2433 = vadd.f32 %v2409, %v2192
  %v2434 = vadd.f32 %v2410, %v2193
  %v2435 = vadd.f32 %v2411, %v2194
  %v2436 = vadd.f32 %v2412, %v2195
  %v2437 = vadd.f32 %v2413, %v2196
  %v2438 = vadd.f32 %v2414, %v2197
  %v2439 = vadd.f32 %v2415, %v2198
  %v2440 = vadd.f32 %v2416, %v2199
  %v2441 = vmul.f32 %v2192, %v2192
  %v2442 = vmul.f32 %v2193, %v2193
  %v2443 = vmul.f32 %v2194, %v2194
  %v2444 = vmul.f32 %v2195, %v2195
  %v2445 = vmul.f32 %v2196, %v2196
  %v2446 = vmul.f32 %v2197, %v2197
  %v2447 = vmul.f32 %v2198, %v2198
  %v2448 = vmul.f32 %v2199, %v2199
  %v2449 = vadd.f32 %v2425, %v2441
  %v2450 = vadd.f32 %v2426, %v2442
  %v2451 = vadd.f32 %v2427, %v2443
  %v2452 = vadd.f32 %v2428, %v2444
  %v2453 = vadd.f32 %v2429, %v2445
  %v2454 = vadd.f32 %v2430, %v2446
  %v2455 = vadd.f32 %v2431, %v2447
  %v2456 = vadd.f32 %v2432, %v2448
  %v2457 = vadd.f32 %v2433, %v2200
  %v2458 = vadd.f32 %v2434, %v2201
  %v2459 = vadd.f32 %v2435, %v2202
  %v2460 = vadd.f32 %v2436, %v2203
  %v2461 = vadd.f32 %v2437, %v2204
  %v2462 = vadd.f32 %v2438, %v2205
  %v2463 = vadd.f32 %v2439, %v2206
  %v2464 = vadd.f32 %v2440, %v2207
  %v2465 = vmul.f32 %v2200, %v2200
  %v2466 = vmul.f32 %v2201, %v2201
  %v2467 = vmul.f32 %v2202, %v2202
  %v2468 = vmul.f32 %v2203, %v2203
  %v2469 = vmul.f32 %v2204, %v2204
  %v2470 = vmul.f32 %v2205, %v2205
  %v2471 = vmul.f32 %v2206, %v2206
  %v2472 = vmul.f32 %v2207, %v2207
  %v2473 = vadd.f32 %v2449, %v2465
  %v2474 = vadd.f32 %v2450, %v2466
  %v2475 = vadd.f32 %v2451, %v2467
  %v2476 = vadd.f32 %v2452, %v2468
  %v2477 = vadd.f32 %v2453, %v2469
  %v2478 = vadd.f32 %v2454, %v2470
  %v2479 = vadd.f32 %v2455, %v2471
  %v2480 = vadd.f32 %v2456, %v2472
  %v2481 = vadd.f32 %v2457, %v2208
  %v2482 = vadd.f32 %v2458, %v2209
  %v2483 = vadd.f32 %v2459, %v2210
  %v2484 = vadd.f32 %v2460, %v2211
  %v2485 = vadd.f32 %v2461, %v2212
  %v2486 = vadd.f32 %v2462, %v2213
  %v2487 = vadd.f32 %v2463, %v2214
  %v2488 = vadd.f32 %v2464, %v2215
  %v2489 = vmul.f32 %v2208, %v2208
  %v2490 = vmul.f32 %v2209, %v2209
  %v2491 = vmul.f32 %v2210, %v2210
  %v2492 = vmul.f32 %v2211, %v2211
  %v2493 = vmul.f32 %v2212, %v2212
  %v2494 = vmul.f32 %v2213, %v2213
  %v2495 = vmul.f32 %v2214, %v2214
  %v2496 = vmul.f32 %v2215, %v2215
  %v2497 = vadd.f32 %v2473, %v2489
  %v2498 = vadd.f32 %v2474, %v2490
  %v2499 = vadd.f32 %v2475, %v2491
  %v2500 = vadd.f32 %v2476, %v2492
  %v2501 = vadd.f32 %v2477, %v2493
  %v2502 = vadd.f32 %v2478, %v2494
  %v2503 = vadd.f32 %v2479, %v2495
  %v2504 = vadd.f32 %v2480, %v2496
  %v2505 = vadd.f32 %v2481, %v2216
  %v2506 = vadd.f32 %v2482, %v2217
  %v2507 = vadd.f32 %v2483, %v2218
  %v2508 = vadd.f32 %v2484, %v2219
  %v2509 = vadd.f32 %v2485, %v2220
  %v2510 = vadd.f32 %v2486, %v2221
  %v2511 = vadd.f32 %v2487, %v2222
  %v2512 = vadd.f32 %v2488, %v2223
  %v2513 = vmul.f32 %v2216, %v2216
  %v2514 = vmul.f32 %v2217, %v2217
  %v2515 = vmul.f32 %v2218, %v2218
  %v2516 = vmul.f32 %v2219, %v2219
  %v2517 = vmul.f32 %v2220, %v2220
  %v2518 = vmul.f32 %v2221, %v2221
  %v2519 = vmul.f32 %v2222, %v2222
  %v2520 = vmul.f32 %v2223, %v2223
  %v2521 = vadd.f32 %v2497, %v2513
  %v2522 = vadd.f32 %v2498, %v2514
  %v2523 = vadd.f32 %v2499, %v2515
  %v2524 = vadd.f32 %v2500, %v2516
  %v2525 = vadd.f32 %v2501, %v2517
  %v2526 = vadd.f32 %v2502, %v2518
  %v2527 = vadd.f32 %v2503, %v2519
  %v2528 = vadd.f32 %v2504, %v2520
  %v2529 = vadd.f32 %v2505, %v2224
  %v2530 = vadd.f32 %v2506, %v2225
  %v2531 = vadd.f32 %v2507, %v2226
  %v2532 = vadd.f32 %v2508, %v2227
  %v2533 = vadd.f32 %v2509, %v2228
  %v2534 = vadd.f32 %v2510, %v2229
  %v2535 = vadd.f32 %v2511, %v2230
  %v2536 = vadd.f32 %v2512, %v2231
  %v2537 = vmul.f32 %v2224, %v2224
  %v2538 = vmul.f32 %v2225, %v2225
  %v2539 = vmul.f32 %v2226, %v2226
  %v2540 = vmul.f32 %v2227, %v2227
  %v2541 = vmul.f32 %v2228, %v2228
  %v2542 = vmul.f32 %v2229, %v2229
  %v2543 = vmul.f32 %v2230, %v2230
  %v2544 = vmul.f32 %v2231, %v2231
  %v2545 = vadd.f32 %v2521, %v2537
  %v2546 = vadd.f32 %v2522, %v2538
  %v2547 = vadd.f32 %v2523, %v2539
  %v2548 = vadd.f32 %v2524, %v2540
  %v2549 = vadd.f32 %v2525, %v2541
  %v2550 = vadd.f32 %v2526, %v2542
  %v2551 = vadd.f32 %v2527, %v2543
  %v2552 = vadd.f32 %v2528, %v2544
  %v2553 = vadd.f32 %v2529, %v2232
  %v2554 = vadd.f32 %v2530, %v2233
  %v2555 = vadd.f32 %v2531, %v2234
  %v2556 = vadd.f32 %v2532, %v2235
  %v2557 = vadd.f32 %v2533, %v2236
  %v2558 = vadd.f32 %v2534, %v2237
  %v2559 = vadd.f32 %v2535, %v2238
  %v2560 = vadd.f32 %v2536, %v2239
  %v2561 = vmul.f32 %v2232, %v2232
  %v2562 = vmul.f32 %v2233, %v2233
  %v2563 = vmul.f32 %v2234, %v2234
  %v2564 = vmul.f32 %v2235, %v2235
  %v2565 = vmul.f32 %v2236, %v2236
  %v2566 = vmul.f32 %v2237, %v2237
  %v2567 = vmul.f32 %v2238, %v2238
  %v2568 = vmul.f32 %v2239, %v2239
  %v2569 = vadd.f32 %v2545, %v2561
  %v2570 = vadd.f32 %v2546, %v2562
  %v2571 = vadd.f32 %v2547, %v2563
  %v2572 = vadd.f32 %v2548, %v2564
  %v2573 = vadd.f32 %v2549, %v2565
  %v2574 = vadd.f32 %v2550, %v2566
  %v2575 = vadd.f32 %v2551, %v2567
  %v2576 = vadd.f32 %v2552, %v2568
  %v2577 = vadd.f32 %v2553, %v2240
  %v2578 = vadd.f32 %v2554, %v2241
  %v2579 = vadd.f32 %v2555, %v2242
  %v2580 = vadd.f32 %v2556, %v2243
  %v2581 = vadd.f32 %v2557, %v2244
  %v2582 = vadd.f32 %v2558, %v2245
  %v2583 = vadd.f32 %v2559, %v2246
  %v2584 = vadd.f32 %v2560, %v2247
  %v2585 = vmul.f32 %v2240, %v2240
  %v2586 = vmul.f32 %v2241, %v2241
  %v2587 = vmul.f32 %v2242, %v2242
  %v2588 = vmul.f32 %v2243, %v2243
  %v2589 = vmul.f32 %v2244, %v2244
  %v2590 = vmul.f32 %v2245, %v2245
  %v2591 = vmul.f32 %v2246, %v2246
  %v2592 = vmul.f32 %v2247, %v2247
  %v2593 = vadd.f32 %v2569, %v2585
  %v2594 = vadd.f32 %v2570, %v2586
  %v2595 = vadd.f32 %v2571, %v2587
  %v2596 = vadd.f32 %v2572, %v2588
  %v2597 = vadd.f32 %v2573, %v2589
  %v2598 = vadd.f32 %v2574, %v2590
  %v2599 = vadd.f32 %v2575, %v2591
  %v2600 = vadd.f32 %v2576, %v2592
  %v2601 = vadd.f32 %v2577, %v2248
  %v2602 = vadd.f32 %v2578, %v2249
  %v2603 = vadd.f32 %v2579, %v2250
  %v2604 = vadd.f32 %v2580, %v2251
  %v2605 = vadd.f32 %v2581, %v2252
  %v2606 = vadd.f32 %v2582, %v2253
  %v2607 = vadd.f32 %v2583, %v2254
  %v2608 = vadd.f32 %v2584, %v2255
  %v2609 = vmul.f32 %v2248, %v2248
  %v2610 = vmul.f32 %v2249, %v2249
  %v2611 = vmul.f32 %v2250, %v2250
  %v2612 = vmul.f32 %v2251, %v2251
  %v2613 = vmul.f32 %v2252, %v2252
  %v2614 = vmul.f32 %v2253, %v2253
  %v2615 = vmul.f32 %v2254, %v2254
  %v2616 = vmul.f32 %v2255, %v2255
  %v2617 = vadd.f32 %v2593, %v2609
  %v2618 = vadd.f32 %v2594, %v2610
  %v2619 = vadd.f32 %v2595, %v2611
  %v2620 = vadd.f32 %v2596, %v2612
  %v2621 = vadd.f32 %v2597, %v2613
  %v2622 = vadd.f32 %v2598, %v2614
  %v2623 = vadd.f32 %v2599, %v2615
  %v2624 = vadd.f32 %v2600, %v2616
  %v2626 = vlaneseq
  %v2627 = vshrl.u32 %v2626, 7
  %v2628 = vsub.s32 0, %v2627
  %v2629 = vrot.slane %v2256, %v2628
  %v2631 = vmul.f32 %v2601, %v2629
  %v2632 = vmul.f32 %v2602, %v2629
  %v2633 = vmul.f32 %v2603, %v2629
  %v2634 = vmul.f32 %v2604, %v2629
  %v2635 = vmul.f32 %v2605, %v2629
  %v2636 = vmul.f32 %v2606, %v2629
  %v2637 = vmul.f32 %v2607, %v2629
  %v2638 = vmul.f32 %v2608, %v2629
  %2639 = vadd.xlane.f32.xlu0 %v2631
  %v2640 = vpop.xlane.xlu0 %2639
  %2641 = vadd.xlane.f32.xlu0 %v2632
  %v2642 = vpop.xlane.xlu0 %2641
  %2643 = vadd.xlane.f32.xlu0 %v2633
  %v2644 = vpop.xlane.xlu0 %2643
  %2645 = vadd.xlane.f32.xlu0 %v2634
  %v2646 = vpop.xlane.xlu0 %2645
  %2647 = vadd.xlane.f32.xlu0 %v2635
  %v2648 = vpop.xlane.xlu0 %2647
  %2649 = vadd.xlane.f32.xlu0 %v2636
  %v2650 = vpop.xlane.xlu0 %2649
  %2651 = vadd.xlane.f32.xlu0 %v2637
  %v2652 = vpop.xlane.xlu0 %2651
  %2653 = vadd.xlane.f32.xlu0 %v2638
  %v2654 = vpop.xlane.xlu0 %2653
  %v2655 = vmul.f32 %v2640, 0.03125
  %v2656 = vmul.f32 %v2642, 0.03125
  %v2657 = vmul.f32 %v2644, 0.03125
  %v2658 = vmul.f32 %v2646, 0.03125
  %v2659 = vmul.f32 %v2648, 0.03125
  %v2660 = vmul.f32 %v2650, 0.03125
  %v2661 = vmul.f32 %v2652, 0.03125
  %v2662 = vmul.f32 %v2654, 0.03125
  %v2663 = vmul.f32 %v2617, %v2629
  %v2664 = vmul.f32 %v2618, %v2629
  %v2665 = vmul.f32 %v2619, %v2629
  %v2666 = vmul.f32 %v2620, %v2629
  %v2667 = vmul.f32 %v2621, %v2629
  %v2668 = vmul.f32 %v2622, %v2629
  %v2669 = vmul.f32 %v2623, %v2629
  %v2670 = vmul.f32 %v2624, %v2629
  %2671 = vadd.xlane.f32.xlu0 %v2663
  %v2672 = vpop.xlane.xlu0 %2671
  %2673 = vadd.xlane.f32.xlu0 %v2664
  %v2674 = vpop.xlane.xlu0 %2673
  %2675 = vadd.xlane.f32.xlu0 %v2665
  %v2676 = vpop.xlane.xlu0 %2675
  %2677 = vadd.xlane.f32.xlu0 %v2666
  %v2678 = vpop.xlane.xlu0 %2677
  %2679 = vadd.xlane.f32.xlu0 %v2667
  %v2680 = vpop.xlane.xlu0 %2679
  %2681 = vadd.xlane.f32.xlu0 %v2668
  %v2682 = vpop.xlane.xlu0 %2681
  %2683 = vadd.xlane.f32.xlu0 %v2669
  %v2684 = vpop.xlane.xlu0 %2683
  %2685 = vadd.xlane.f32.xlu0 %v2670
  %v2686 = vpop.xlane.xlu0 %2685
  %v2687 = vmul.f32 %v2672, 0.03125
  %v2688 = vmul.f32 %v2674, 0.03125
  %v2689 = vmul.f32 %v2676, 0.03125
  %v2690 = vmul.f32 %v2678, 0.03125
  %v2691 = vmul.f32 %v2680, 0.03125
  %v2692 = vmul.f32 %v2682, 0.03125
  %v2693 = vmul.f32 %v2684, 0.03125
  %v2694 = vmul.f32 %v2686, 0.03125
  %v2695 = vmul.f32 %v2655, %v2655
  %v2696 = vmul.f32 %v2656, %v2656
  %v2697 = vmul.f32 %v2657, %v2657
  %v2698 = vmul.f32 %v2658, %v2658
  %v2699 = vmul.f32 %v2659, %v2659
  %v2700 = vmul.f32 %v2660, %v2660
  %v2701 = vmul.f32 %v2661, %v2661
  %v2702 = vmul.f32 %v2662, %v2662
  %v2703 = vsub.f32 %v2687, %v2695
  %v2704 = vsub.f32 %v2688, %v2696
  %v2705 = vsub.f32 %v2689, %v2697
  %v2706 = vsub.f32 %v2690, %v2698
  %v2707 = vsub.f32 %v2691, %v2699
  %v2708 = vsub.f32 %v2692, %v2700
  %v2709 = vsub.f32 %v2693, %v2701
  %v2710 = vsub.f32 %v2694, %v2702
  %v2711 = vld [vmem:[%s4] sm:$0xff]
  %v2712 = vld [vmem:[%s4 + $0x8] sm:$0xff]
  %v2713 = vld [vmem:[%s4 + $0x10] sm:$0xff]
  %v2714 = vld [vmem:[%s4 + $0x18] sm:$0xff]
  %v2715 = vld [vmem:[%s4 + $0x20] sm:$0xff]
  %v2716 = vld [vmem:[%s4 + $0x28] sm:$0xff]
  %v2717 = vld [vmem:[%s4 + $0x30] sm:$0xff]
  %v2718 = vld [vmem:[%s4 + $0x38] sm:$0xff]
  %v2719 = vadd.f32 %v2703, 1e-05
  %v2720 = vadd.f32 %v2704, 1e-05
  %v2721 = vadd.f32 %v2705, 1e-05
  %v2722 = vadd.f32 %v2706, 1e-05
  %v2723 = vadd.f32 %v2707, 1e-05
  %v2724 = vadd.f32 %v2708, 1e-05
  %v2725 = vadd.f32 %v2709, 1e-05
  %v2726 = vadd.f32 %v2710, 1e-05
  %v2727 = vrsqrt.pop %v2719
  %v2728 = vrsqrt.pop %v2720
  %v2729 = vrsqrt.pop %v2721
  %v2730 = vrsqrt.pop %v2722
  %v2731 = vrsqrt.pop %v2723
  %v2732 = vrsqrt.pop %v2724
  %v2733 = vrsqrt.pop %v2725
  %v2734 = vrsqrt.pop %v2726
  %v2735 = vmul.f32 %v2711, %v2727
  %v2736 = vmul.f32 %v2712, %v2728
  %v2737 = vmul.f32 %v2713, %v2729
  %v2738 = vmul.f32 %v2714, %v2730
  %v2739 = vmul.f32 %v2715, %v2731
  %v2740 = vmul.f32 %v2716, %v2732
  %v2741 = vmul.f32 %v2717, %v2733
  %v2742 = vmul.f32 %v2718, %v2734
  %v2743 = vld [vmem:[%s5] sm:$0xff]
  %v2744 = vld [vmem:[%s5 + $0x8] sm:$0xff]
  %v2745 = vld [vmem:[%s5 + $0x10] sm:$0xff]
  %v2746 = vld [vmem:[%s5 + $0x18] sm:$0xff]
  %v2747 = vld [vmem:[%s5 + $0x20] sm:$0xff]
  %v2748 = vld [vmem:[%s5 + $0x28] sm:$0xff]
  %v2749 = vld [vmem:[%s5 + $0x30] sm:$0xff]
  %v2750 = vld [vmem:[%s5 + $0x38] sm:$0xff]
  %v2751 = vmul.f32 %v2655, %v2735
  %v2752 = vmul.f32 %v2656, %v2736
  %v2753 = vmul.f32 %v2657, %v2737
  %v2754 = vmul.f32 %v2658, %v2738
  %v2755 = vmul.f32 %v2659, %v2739
  %v2756 = vmul.f32 %v2660, %v2740
  %v2757 = vmul.f32 %v2661, %v2741
  %v2758 = vmul.f32 %v2662, %v2742
  %v2759 = vsub.f32 %v2743, %v2751
  %v2760 = vsub.f32 %v2744, %v2752
  %v2761 = vsub.f32 %v2745, %v2753
  %v2762 = vsub.f32 %v2746, %v2754
  %v2763 = vsub.f32 %v2747, %v2755
  %v2764 = vsub.f32 %v2748, %v2756
  %v2765 = vsub.f32 %v2749, %v2757
  %v2766 = vsub.f32 %v2750, %v2758
  %2768 = vset.pattern.permute.xlu0 0
  %2769 = vperm.xlu0 %2768, %v2735
  %v2770 = vpop.permute.xlu0 %2769
  %2773 = vset.pattern.permute.xlu0 0
  %2774 = vperm.xlu0 %2773, %v2736
  %v2775 = vpop.permute.xlu0 %2774
  %2778 = vset.pattern.permute.xlu0 0
  %2779 = vperm.xlu0 %2778, %v2737
  %v2780 = vpop.permute.xlu0 %2779
  %2783 = vset.pattern.permute.xlu0 0
  %2784 = vperm.xlu0 %2783, %v2738
  %v2785 = vpop.permute.xlu0 %2784
  %2788 = vset.pattern.permute.xlu0 0
  %2789 = vperm.xlu0 %2788, %v2739
  %v2790 = vpop.permute.xlu0 %2789
  %2793 = vset.pattern.permute.xlu0 0
  %2794 = vperm.xlu0 %2793, %v2740
  %v2795 = vpop.permute.xlu0 %2794
  %2798 = vset.pattern.permute.xlu0 0
  %2799 = vperm.xlu0 %2798, %v2741
  %v2800 = vpop.permute.xlu0 %2799
  %2803 = vset.pattern.permute.xlu0 0
  %2804 = vperm.xlu0 %2803, %v2742
  %v2805 = vpop.permute.xlu0 %2804
  %v2807 = vmul.f32 %v2128, %v2770
  %v2808 = vmul.f32 %v2129, %v2775
  %v2809 = vmul.f32 %v2130, %v2780
  %v2810 = vmul.f32 %v2131, %v2785
  %v2811 = vmul.f32 %v2132, %v2790
  %v2812 = vmul.f32 %v2133, %v2795
  %v2813 = vmul.f32 %v2134, %v2800
  %v2814 = vmul.f32 %v2135, %v2805
  %2816 = vset.pattern.permute.xlu0 0
  %2817 = vperm.xlu0 %2816, %v2759
  %v2818 = vpop.permute.xlu0 %2817
  %2821 = vset.pattern.permute.xlu0 0
  %2822 = vperm.xlu0 %2821, %v2760
  %v2823 = vpop.permute.xlu0 %2822
  %2826 = vset.pattern.permute.xlu0 0
  %2827 = vperm.xlu0 %2826, %v2761
  %v2828 = vpop.permute.xlu0 %2827
  %2831 = vset.pattern.permute.xlu0 0
  %2832 = vperm.xlu0 %2831, %v2762
  %v2833 = vpop.permute.xlu0 %2832
  %2836 = vset.pattern.permute.xlu0 0
  %2837 = vperm.xlu0 %2836, %v2763
  %v2838 = vpop.permute.xlu0 %2837
  %2841 = vset.pattern.permute.xlu0 0
  %2842 = vperm.xlu0 %2841, %v2764
  %v2843 = vpop.permute.xlu0 %2842
  %2846 = vset.pattern.permute.xlu0 0
  %2847 = vperm.xlu0 %2846, %v2765
  %v2848 = vpop.permute.xlu0 %2847
  %2851 = vset.pattern.permute.xlu0 0
  %2852 = vperm.xlu0 %2851, %v2766
  %v2853 = vpop.permute.xlu0 %2852
  %v2855 = vadd.f32 %v2807, %v2818
  %v2856 = vadd.f32 %v2808, %v2823
  %v2857 = vadd.f32 %v2809, %v2828
  %v2858 = vadd.f32 %v2810, %v2833
  %v2859 = vadd.f32 %v2811, %v2838
  %v2860 = vadd.f32 %v2812, %v2843
  %v2861 = vadd.f32 %v2813, %v2848
  %v2862 = vadd.f32 %v2814, %v2853
  %v2863 = vmax.f32 %v2855, 0.0
  %v2864 = vmax.f32 %v2856, 0.0
  %v2865 = vmax.f32 %v2857, 0.0
  %v2866 = vmax.f32 %v2858, 0.0
  %v2867 = vmax.f32 %v2859, 0.0
  %v2868 = vmax.f32 %v2860, 0.0
  %v2869 = vmax.f32 %v2861, 0.0
  %v2870 = vmax.f32 %v2862, 0.0
  %v2871 = vpack.c.bf16 %v2864, %v2863
  %v2872 = vpack.c.bf16 %v2866, %v2865
  %v2873 = vpack.c.bf16 %v2868, %v2867
  %v2874 = vpack.c.bf16 %v2870, %v2869
  %v2879 = vunpack.c.l.b16 %v2871
  %v2880 = vunpack.c.h.b16 %v2871
  %v2881 = vunpack.c.l.b16 %v2872
  %v2882 = vunpack.c.h.b16 %v2872
  %v2883 = vunpack.c.l.b16 %v2873
  %v2884 = vunpack.c.h.b16 %v2873
  %v2885 = vunpack.c.l.b16 %v2874
  %v2886 = vunpack.c.h.b16 %v2874
  %v2887 = vpack.c.b16 %v2879, %v2879
  %v2888 = vpack.c.b16 %v2880, %v2880
  %v2889 = vpack.c.b16 %v2881, %v2881
  %v2890 = vpack.c.b16 %v2882, %v2882
  %v2891 = vpack.c.b16 %v2883, %v2883
  %v2892 = vpack.c.b16 %v2884, %v2884
  %v2893 = vpack.c.b16 %v2885, %v2885
  %v2894 = vpack.c.b16 %v2886, %v2886
  %2903 = vst [vmem:[%s7] sm:$0xf] %v2887
  %2904 = vst [vmem:[%s7 + $0x4] sm:$0xf] %v2888
  %2905 = vst [vmem:[%s7 + $0x8] sm:$0xf] %v2889
  %2906 = vst [vmem:[%s7 + $0xc] sm:$0xf] %v2890
  %2907 = vst [vmem:[%s7 + $0x10] sm:$0xf] %v2891
  %2908 = vst [vmem:[%s7 + $0x14] sm:$0xf] %v2892
  %2909 = vst [vmem:[%s7 + $0x18] sm:$0xf] %v2893
  %2910 = vst [vmem:[%s7 + $0x1c] sm:$0xf] %v2894
  %v2911 = vmul.f32 %v2136, %v2770
  %v2912 = vmul.f32 %v2137, %v2775
  %v2913 = vmul.f32 %v2138, %v2780
  %v2914 = vmul.f32 %v2139, %v2785
  %v2915 = vmul.f32 %v2140, %v2790
  %v2916 = vmul.f32 %v2141, %v2795
  %v2917 = vmul.f32 %v2142, %v2800
  %v2918 = vmul.f32 %v2143, %v2805
  %v2919 = vadd.f32 %v2911, %v2818
  %v2920 = vadd.f32 %v2912, %v2823
  %v2921 = vadd.f32 %v2913, %v2828
  %v2922 = vadd.f32 %v2914, %v2833
  %v2923 = vadd.f32 %v2915, %v2838
  %v2924 = vadd.f32 %v2916, %v2843
  %v2925 = vadd.f32 %v2917, %v2848
  %v2926 = vadd.f32 %v2918, %v2853
  %v2927 = vmax.f32 %v2919, 0.0
  %v2928 = vmax.f32 %v2920, 0.0
  %v2929 = vmax.f32 %v2921, 0.0
  %v2930 = vmax.f32 %v2922, 0.0
  %v2931 = vmax.f32 %v2923, 0.0
  %v2932 = vmax.f32 %v2924, 0.0
  %v2933 = vmax.f32 %v2925, 0.0
  %v2934 = vmax.f32 %v2926, 0.0
  %v2935 = vpack.c.bf16 %v2928, %v2927
  %v2936 = vpack.c.bf16 %v2930, %v2929
  %v2937 = vpack.c.bf16 %v2932, %v2931
  %v2938 = vpack.c.bf16 %v2934, %v2933
  %v2943 = vunpack.c.l.b16 %v2935
  %v2944 = vunpack.c.h.b16 %v2935
  %v2945 = vunpack.c.l.b16 %v2936
  %v2946 = vunpack.c.h.b16 %v2936
  %v2947 = vunpack.c.l.b16 %v2937
  %v2948 = vunpack.c.h.b16 %v2937
  %v2949 = vunpack.c.l.b16 %v2938
  %v2950 = vunpack.c.h.b16 %v2938
  %v2951 = vpack.c.b16 %v2943, %v2943
  %v2952 = vpack.c.b16 %v2944, %v2944
  %v2953 = vpack.c.b16 %v2945, %v2945
  %v2954 = vpack.c.b16 %v2946, %v2946
  %v2955 = vpack.c.b16 %v2947, %v2947
  %v2956 = vpack.c.b16 %v2948, %v2948
  %v2957 = vpack.c.b16 %v2949, %v2949
  %v2958 = vpack.c.b16 %v2950, %v2950
  %2967 = vst [vmem:[%s7 + $0x20] sm:$0xf] %v2951
  %2968 = vst [vmem:[%s7 + $0x24] sm:$0xf] %v2952
  %2969 = vst [vmem:[%s7 + $0x28] sm:$0xf] %v2953
  %2970 = vst [vmem:[%s7 + $0x2c] sm:$0xf] %v2954
  %2971 = vst [vmem:[%s7 + $0x30] sm:$0xf] %v2955
  %2972 = vst [vmem:[%s7 + $0x34] sm:$0xf] %v2956
  %2973 = vst [vmem:[%s7 + $0x38] sm:$0xf] %v2957
  %2974 = vst [vmem:[%s7 + $0x3c] sm:$0xf] %v2958
  %v2975 = vmul.f32 %v2144, %v2770
  %v2976 = vmul.f32 %v2145, %v2775
  %v2977 = vmul.f32 %v2146, %v2780
  %v2978 = vmul.f32 %v2147, %v2785
  %v2979 = vmul.f32 %v2148, %v2790
  %v2980 = vmul.f32 %v2149, %v2795
  %v2981 = vmul.f32 %v2150, %v2800
  %v2982 = vmul.f32 %v2151, %v2805
  %v2983 = vadd.f32 %v2975, %v2818
  %v2984 = vadd.f32 %v2976, %v2823
  %v2985 = vadd.f32 %v2977, %v2828
  %v2986 = vadd.f32 %v2978, %v2833
  %v2987 = vadd.f32 %v2979, %v2838
  %v2988 = vadd.f32 %v2980, %v2843
  %v2989 = vadd.f32 %v2981, %v2848
  %v2990 = vadd.f32 %v2982, %v2853
  %v2991 = vmax.f32 %v2983, 0.0
  %v2992 = vmax.f32 %v2984, 0.0
  %v2993 = vmax.f32 %v2985, 0.0
  %v2994 = vmax.f32 %v2986, 0.0
  %v2995 = vmax.f32 %v2987, 0.0
  %v2996 = vmax.f32 %v2988, 0.0
  %v2997 = vmax.f32 %v2989, 0.0
  %v2998 = vmax.f32 %v2990, 0.0
  %v2999 = vpack.c.bf16 %v2992, %v2991
  %v3000 = vpack.c.bf16 %v2994, %v2993
  %v3001 = vpack.c.bf16 %v2996, %v2995
  %v3002 = vpack.c.bf16 %v2998, %v2997
  %v3007 = vunpack.c.l.b16 %v2999
  %v3008 = vunpack.c.h.b16 %v2999
  %v3009 = vunpack.c.l.b16 %v3000
  %v3010 = vunpack.c.h.b16 %v3000
  %v3011 = vunpack.c.l.b16 %v3001
  %v3012 = vunpack.c.h.b16 %v3001
  %v3013 = vunpack.c.l.b16 %v3002
  %v3014 = vunpack.c.h.b16 %v3002
  %v3015 = vpack.c.b16 %v3007, %v3007
  %v3016 = vpack.c.b16 %v3008, %v3008
  %v3017 = vpack.c.b16 %v3009, %v3009
  %v3018 = vpack.c.b16 %v3010, %v3010
  %v3019 = vpack.c.b16 %v3011, %v3011
  %v3020 = vpack.c.b16 %v3012, %v3012
  %v3021 = vpack.c.b16 %v3013, %v3013
  %v3022 = vpack.c.b16 %v3014, %v3014
  %3031 = vst [vmem:[%s7 + $0x40] sm:$0xf] %v3015
  %3032 = vst [vmem:[%s7 + $0x44] sm:$0xf] %v3016
  %3033 = vst [vmem:[%s7 + $0x48] sm:$0xf] %v3017
  %3034 = vst [vmem:[%s7 + $0x4c] sm:$0xf] %v3018
  %3035 = vst [vmem:[%s7 + $0x50] sm:$0xf] %v3019
  %3036 = vst [vmem:[%s7 + $0x54] sm:$0xf] %v3020
  %3037 = vst [vmem:[%s7 + $0x58] sm:$0xf] %v3021
  %3038 = vst [vmem:[%s7 + $0x5c] sm:$0xf] %v3022
  %v3039 = vmul.f32 %v2152, %v2770
  %v3040 = vmul.f32 %v2153, %v2775
  %v3041 = vmul.f32 %v2154, %v2780
  %v3042 = vmul.f32 %v2155, %v2785
  %v3043 = vmul.f32 %v2156, %v2790
  %v3044 = vmul.f32 %v2157, %v2795
  %v3045 = vmul.f32 %v2158, %v2800
  %v3046 = vmul.f32 %v2159, %v2805
  %v3047 = vadd.f32 %v3039, %v2818
  %v3048 = vadd.f32 %v3040, %v2823
  %v3049 = vadd.f32 %v3041, %v2828
  %v3050 = vadd.f32 %v3042, %v2833
  %v3051 = vadd.f32 %v3043, %v2838
  %v3052 = vadd.f32 %v3044, %v2843
  %v3053 = vadd.f32 %v3045, %v2848
  %v3054 = vadd.f32 %v3046, %v2853
  %v3055 = vmax.f32 %v3047, 0.0
  %v3056 = vmax.f32 %v3048, 0.0
  %v3057 = vmax.f32 %v3049, 0.0
  %v3058 = vmax.f32 %v3050, 0.0
  %v3059 = vmax.f32 %v3051, 0.0
  %v3060 = vmax.f32 %v3052, 0.0
  %v3061 = vmax.f32 %v3053, 0.0
  %v3062 = vmax.f32 %v3054, 0.0
  %v3063 = vpack.c.bf16 %v3056, %v3055
  %v3064 = vpack.c.bf16 %v3058, %v3057
  %v3065 = vpack.c.bf16 %v3060, %v3059
  %v3066 = vpack.c.bf16 %v3062, %v3061
  %v3071 = vunpack.c.l.b16 %v3063
  %v3072 = vunpack.c.h.b16 %v3063
  %v3073 = vunpack.c.l.b16 %v3064
  %v3074 = vunpack.c.h.b16 %v3064
  %v3075 = vunpack.c.l.b16 %v3065
  %v3076 = vunpack.c.h.b16 %v3065
  %v3077 = vunpack.c.l.b16 %v3066
  %v3078 = vunpack.c.h.b16 %v3066
  %v3079 = vpack.c.b16 %v3071, %v3071
  %v3080 = vpack.c.b16 %v3072, %v3072
  %v3081 = vpack.c.b16 %v3073, %v3073
  %v3082 = vpack.c.b16 %v3074, %v3074
  %v3083 = vpack.c.b16 %v3075, %v3075
  %v3084 = vpack.c.b16 %v3076, %v3076
  %v3085 = vpack.c.b16 %v3077, %v3077
  %v3086 = vpack.c.b16 %v3078, %v3078
  %3095 = vst [vmem:[%s7 + $0x60] sm:$0xf] %v3079
  %3096 = vst [vmem:[%s7 + $0x64] sm:$0xf] %v3080
  %3097 = vst [vmem:[%s7 + $0x68] sm:$0xf] %v3081
  %3098 = vst [vmem:[%s7 + $0x6c] sm:$0xf] %v3082
  %3099 = vst [vmem:[%s7 + $0x70] sm:$0xf] %v3083
  %3100 = vst [vmem:[%s7 + $0x74] sm:$0xf] %v3084
  %3101 = vst [vmem:[%s7 + $0x78] sm:$0xf] %v3085
  %3102 = vst [vmem:[%s7 + $0x7c] sm:$0xf] %v3086
  %v3103 = vmul.f32 %v2160, %v2770
  %v3104 = vmul.f32 %v2161, %v2775
  %v3105 = vmul.f32 %v2162, %v2780
  %v3106 = vmul.f32 %v2163, %v2785
  %v3107 = vmul.f32 %v2164, %v2790
  %v3108 = vmul.f32 %v2165, %v2795
  %v3109 = vmul.f32 %v2166, %v2800
  %v3110 = vmul.f32 %v2167, %v2805
  %v3111 = vadd.f32 %v3103, %v2818
  %v3112 = vadd.f32 %v3104, %v2823
  %v3113 = vadd.f32 %v3105, %v2828
  %v3114 = vadd.f32 %v3106, %v2833
  %v3115 = vadd.f32 %v3107, %v2838
  %v3116 = vadd.f32 %v3108, %v2843
  %v3117 = vadd.f32 %v3109, %v2848
  %v3118 = vadd.f32 %v3110, %v2853
  %v3119 = vmax.f32 %v3111, 0.0
  %v3120 = vmax.f32 %v3112, 0.0
  %v3121 = vmax.f32 %v3113, 0.0
  %v3122 = vmax.f32 %v3114, 0.0
  %v3123 = vmax.f32 %v3115, 0.0
  %v3124 = vmax.f32 %v3116, 0.0
  %v3125 = vmax.f32 %v3117, 0.0
  %v3126 = vmax.f32 %v3118, 0.0
  %v3127 = vpack.c.bf16 %v3120, %v3119
  %v3128 = vpack.c.bf16 %v3122, %v3121
  %v3129 = vpack.c.bf16 %v3124, %v3123
  %v3130 = vpack.c.bf16 %v3126, %v3125
  %v3135 = vunpack.c.l.b16 %v3127
  %v3136 = vunpack.c.h.b16 %v3127
  %v3137 = vunpack.c.l.b16 %v3128
  %v3138 = vunpack.c.h.b16 %v3128
  %v3139 = vunpack.c.l.b16 %v3129
  %v3140 = vunpack.c.h.b16 %v3129
  %v3141 = vunpack.c.l.b16 %v3130
  %v3142 = vunpack.c.h.b16 %v3130
  %v3143 = vpack.c.b16 %v3135, %v3135
  %v3144 = vpack.c.b16 %v3136, %v3136
  %v3145 = vpack.c.b16 %v3137, %v3137
  %v3146 = vpack.c.b16 %v3138, %v3138
  %v3147 = vpack.c.b16 %v3139, %v3139
  %v3148 = vpack.c.b16 %v3140, %v3140
  %v3149 = vpack.c.b16 %v3141, %v3141
  %v3150 = vpack.c.b16 %v3142, %v3142
  %3159 = vst [vmem:[%s7 + $0x80] sm:$0xf] %v3143
  %3160 = vst [vmem:[%s7 + $0x84] sm:$0xf] %v3144
  %3161 = vst [vmem:[%s7 + $0x88] sm:$0xf] %v3145
  %3162 = vst [vmem:[%s7 + $0x8c] sm:$0xf] %v3146
  %3163 = vst [vmem:[%s7 + $0x90] sm:$0xf] %v3147
  %3164 = vst [vmem:[%s7 + $0x94] sm:$0xf] %v3148
  %3165 = vst [vmem:[%s7 + $0x98] sm:$0xf] %v3149
  %3166 = vst [vmem:[%s7 + $0x9c] sm:$0xf] %v3150
  %v3167 = vmul.f32 %v2168, %v2770
  %v3168 = vmul.f32 %v2169, %v2775
  %v3169 = vmul.f32 %v2170, %v2780
  %v3170 = vmul.f32 %v2171, %v2785
  %v3171 = vmul.f32 %v2172, %v2790
  %v3172 = vmul.f32 %v2173, %v2795
  %v3173 = vmul.f32 %v2174, %v2800
  %v3174 = vmul.f32 %v2175, %v2805
  %v3175 = vadd.f32 %v3167, %v2818
  %v3176 = vadd.f32 %v3168, %v2823
  %v3177 = vadd.f32 %v3169, %v2828
  %v3178 = vadd.f32 %v3170, %v2833
  %v3179 = vadd.f32 %v3171, %v2838
  %v3180 = vadd.f32 %v3172, %v2843
  %v3181 = vadd.f32 %v3173, %v2848
  %v3182 = vadd.f32 %v3174, %v2853
  %v3183 = vmax.f32 %v3175, 0.0
  %v3184 = vmax.f32 %v3176, 0.0
  %v3185 = vmax.f32 %v3177, 0.0
  %v3186 = vmax.f32 %v3178, 0.0
  %v3187 = vmax.f32 %v3179, 0.0
  %v3188 = vmax.f32 %v3180, 0.0
  %v3189 = vmax.f32 %v3181, 0.0
  %v3190 = vmax.f32 %v3182, 0.0
  %v3191 = vpack.c.bf16 %v3184, %v3183
  %v3192 = vpack.c.bf16 %v3186, %v3185
  %v3193 = vpack.c.bf16 %v3188, %v3187
  %v3194 = vpack.c.bf16 %v3190, %v3189
  %v3199 = vunpack.c.l.b16 %v3191
  %v3200 = vunpack.c.h.b16 %v3191
  %v3201 = vunpack.c.l.b16 %v3192
  %v3202 = vunpack.c.h.b16 %v3192
  %v3203 = vunpack.c.l.b16 %v3193
  %v3204 = vunpack.c.h.b16 %v3193
  %v3205 = vunpack.c.l.b16 %v3194
  %v3206 = vunpack.c.h.b16 %v3194
  %v3207 = vpack.c.b16 %v3199, %v3199
  %v3208 = vpack.c.b16 %v3200, %v3200
  %v3209 = vpack.c.b16 %v3201, %v3201
  %v3210 = vpack.c.b16 %v3202, %v3202
  %v3211 = vpack.c.b16 %v3203, %v3203
  %v3212 = vpack.c.b16 %v3204, %v3204
  %v3213 = vpack.c.b16 %v3205, %v3205
  %v3214 = vpack.c.b16 %v3206, %v3206
  %3223 = vst [vmem:[%s7 + $0xa0] sm:$0xf] %v3207
  %3224 = vst [vmem:[%s7 + $0xa4] sm:$0xf] %v3208
  %3225 = vst [vmem:[%s7 + $0xa8] sm:$0xf] %v3209
  %3226 = vst [vmem:[%s7 + $0xac] sm:$0xf] %v3210
  %3227 = vst [vmem:[%s7 + $0xb0] sm:$0xf] %v3211
  %3228 = vst [vmem:[%s7 + $0xb4] sm:$0xf] %v3212
  %3229 = vst [vmem:[%s7 + $0xb8] sm:$0xf] %v3213
  %3230 = vst [vmem:[%s7 + $0xbc] sm:$0xf] %v3214
  %v3231 = vmul.f32 %v2176, %v2770
  %v3232 = vmul.f32 %v2177, %v2775
  %v3233 = vmul.f32 %v2178, %v2780
  %v3234 = vmul.f32 %v2179, %v2785
  %v3235 = vmul.f32 %v2180, %v2790
  %v3236 = vmul.f32 %v2181, %v2795
  %v3237 = vmul.f32 %v2182, %v2800
  %v3238 = vmul.f32 %v2183, %v2805
  %v3239 = vadd.f32 %v3231, %v2818
  %v3240 = vadd.f32 %v3232, %v2823
  %v3241 = vadd.f32 %v3233, %v2828
  %v3242 = vadd.f32 %v3234, %v2833
  %v3243 = vadd.f32 %v3235, %v2838
  %v3244 = vadd.f32 %v3236, %v2843
  %v3245 = vadd.f32 %v3237, %v2848
  %v3246 = vadd.f32 %v3238, %v2853
  %v3247 = vmax.f32 %v3239, 0.0
  %v3248 = vmax.f32 %v3240, 0.0
  %v3249 = vmax.f32 %v3241, 0.0
  %v3250 = vmax.f32 %v3242, 0.0
  %v3251 = vmax.f32 %v3243, 0.0
  %v3252 = vmax.f32 %v3244, 0.0
  %v3253 = vmax.f32 %v3245, 0.0
  %v3254 = vmax.f32 %v3246, 0.0
  %v3255 = vpack.c.bf16 %v3248, %v3247
  %v3256 = vpack.c.bf16 %v3250, %v3249
  %v3257 = vpack.c.bf16 %v3252, %v3251
  %v3258 = vpack.c.bf16 %v3254, %v3253
  %v3263 = vunpack.c.l.b16 %v3255
  %v3264 = vunpack.c.h.b16 %v3255
  %v3265 = vunpack.c.l.b16 %v3256
  %v3266 = vunpack.c.h.b16 %v3256
  %v3267 = vunpack.c.l.b16 %v3257
  %v3268 = vunpack.c.h.b16 %v3257
  %v3269 = vunpack.c.l.b16 %v3258
  %v3270 = vunpack.c.h.b16 %v3258
  %v3271 = vpack.c.b16 %v3263, %v3263
  %v3272 = vpack.c.b16 %v3264, %v3264
  %v3273 = vpack.c.b16 %v3265, %v3265
  %v3274 = vpack.c.b16 %v3266, %v3266
  %v3275 = vpack.c.b16 %v3267, %v3267
  %v3276 = vpack.c.b16 %v3268, %v3268
  %v3277 = vpack.c.b16 %v3269, %v3269
  %v3278 = vpack.c.b16 %v3270, %v3270
  %3287 = vst [vmem:[%s7 + $0xc0] sm:$0xf] %v3271
  %3288 = vst [vmem:[%s7 + $0xc4] sm:$0xf] %v3272
  %3289 = vst [vmem:[%s7 + $0xc8] sm:$0xf] %v3273
  %3290 = vst [vmem:[%s7 + $0xcc] sm:$0xf] %v3274
  %3291 = vst [vmem:[%s7 + $0xd0] sm:$0xf] %v3275
  %3292 = vst [vmem:[%s7 + $0xd4] sm:$0xf] %v3276
  %3293 = vst [vmem:[%s7 + $0xd8] sm:$0xf] %v3277
  %3294 = vst [vmem:[%s7 + $0xdc] sm:$0xf] %v3278
  %v3295 = vmul.f32 %v2184, %v2770
  %v3296 = vmul.f32 %v2185, %v2775
  %v3297 = vmul.f32 %v2186, %v2780
  %v3298 = vmul.f32 %v2187, %v2785
  %v3299 = vmul.f32 %v2188, %v2790
  %v3300 = vmul.f32 %v2189, %v2795
  %v3301 = vmul.f32 %v2190, %v2800
  %v3302 = vmul.f32 %v2191, %v2805
  %v3303 = vadd.f32 %v3295, %v2818
  %v3304 = vadd.f32 %v3296, %v2823
  %v3305 = vadd.f32 %v3297, %v2828
  %v3306 = vadd.f32 %v3298, %v2833
  %v3307 = vadd.f32 %v3299, %v2838
  %v3308 = vadd.f32 %v3300, %v2843
  %v3309 = vadd.f32 %v3301, %v2848
  %v3310 = vadd.f32 %v3302, %v2853
  %v3311 = vmax.f32 %v3303, 0.0
  %v3312 = vmax.f32 %v3304, 0.0
  %v3313 = vmax.f32 %v3305, 0.0
  %v3314 = vmax.f32 %v3306, 0.0
  %v3315 = vmax.f32 %v3307, 0.0
  %v3316 = vmax.f32 %v3308, 0.0
  %v3317 = vmax.f32 %v3309, 0.0
  %v3318 = vmax.f32 %v3310, 0.0
  %v3319 = vpack.c.bf16 %v3312, %v3311
  %v3320 = vpack.c.bf16 %v3314, %v3313
  %v3321 = vpack.c.bf16 %v3316, %v3315
  %v3322 = vpack.c.bf16 %v3318, %v3317
  %v3327 = vunpack.c.l.b16 %v3319
  %v3328 = vunpack.c.h.b16 %v3319
  %v3329 = vunpack.c.l.b16 %v3320
  %v3330 = vunpack.c.h.b16 %v3320
  %v3331 = vunpack.c.l.b16 %v3321
  %v3332 = vunpack.c.h.b16 %v3321
  %v3333 = vunpack.c.l.b16 %v3322
  %v3334 = vunpack.c.h.b16 %v3322
  %v3335 = vpack.c.b16 %v3327, %v3327
  %v3336 = vpack.c.b16 %v3328, %v3328
  %v3337 = vpack.c.b16 %v3329, %v3329
  %v3338 = vpack.c.b16 %v3330, %v3330
  %v3339 = vpack.c.b16 %v3331, %v3331
  %v3340 = vpack.c.b16 %v3332, %v3332
  %v3341 = vpack.c.b16 %v3333, %v3333
  %v3342 = vpack.c.b16 %v3334, %v3334
  %3351 = vst [vmem:[%s7 + $0xe0] sm:$0xf] %v3335
  %3352 = vst [vmem:[%s7 + $0xe4] sm:$0xf] %v3336
  %3353 = vst [vmem:[%s7 + $0xe8] sm:$0xf] %v3337
  %3354 = vst [vmem:[%s7 + $0xec] sm:$0xf] %v3338
  %3355 = vst [vmem:[%s7 + $0xf0] sm:$0xf] %v3339
  %3356 = vst [vmem:[%s7 + $0xf4] sm:$0xf] %v3340
  %3357 = vst [vmem:[%s7 + $0xf8] sm:$0xf] %v3341
  %3358 = vst [vmem:[%s7 + $0xfc] sm:$0xf] %v3342
  %v3359 = vmul.f32 %v2192, %v2770
  %v3360 = vmul.f32 %v2193, %v2775
  %v3361 = vmul.f32 %v2194, %v2780
  %v3362 = vmul.f32 %v2195, %v2785
  %v3363 = vmul.f32 %v2196, %v2790
  %v3364 = vmul.f32 %v2197, %v2795
  %v3365 = vmul.f32 %v2198, %v2800
  %v3366 = vmul.f32 %v2199, %v2805
  %v3367 = vadd.f32 %v3359, %v2818
  %v3368 = vadd.f32 %v3360, %v2823
  %v3369 = vadd.f32 %v3361, %v2828
  %v3370 = vadd.f32 %v3362, %v2833
  %v3371 = vadd.f32 %v3363, %v2838
  %v3372 = vadd.f32 %v3364, %v2843
  %v3373 = vadd.f32 %v3365, %v2848
  %v3374 = vadd.f32 %v3366, %v2853
  %v3375 = vmax.f32 %v3367, 0.0
  %v3376 = vmax.f32 %v3368, 0.0
  %v3377 = vmax.f32 %v3369, 0.0
  %v3378 = vmax.f32 %v3370, 0.0
  %v3379 = vmax.f32 %v3371, 0.0
  %v3380 = vmax.f32 %v3372, 0.0
  %v3381 = vmax.f32 %v3373, 0.0
  %v3382 = vmax.f32 %v3374, 0.0
  %v3383 = vpack.c.bf16 %v3376, %v3375
  %v3384 = vpack.c.bf16 %v3378, %v3377
  %v3385 = vpack.c.bf16 %v3380, %v3379
  %v3386 = vpack.c.bf16 %v3382, %v3381
  %v3391 = vunpack.c.l.b16 %v3383
  %v3392 = vunpack.c.h.b16 %v3383
  %v3393 = vunpack.c.l.b16 %v3384
  %v3394 = vunpack.c.h.b16 %v3384
  %v3395 = vunpack.c.l.b16 %v3385
  %v3396 = vunpack.c.h.b16 %v3385
  %v3397 = vunpack.c.l.b16 %v3386
  %v3398 = vunpack.c.h.b16 %v3386
  %v3399 = vpack.c.b16 %v3391, %v3391
  %v3400 = vpack.c.b16 %v3392, %v3392
  %v3401 = vpack.c.b16 %v3393, %v3393
  %v3402 = vpack.c.b16 %v3394, %v3394
  %v3403 = vpack.c.b16 %v3395, %v3395
  %v3404 = vpack.c.b16 %v3396, %v3396
  %v3405 = vpack.c.b16 %v3397, %v3397
  %v3406 = vpack.c.b16 %v3398, %v3398
  %3415 = vst [vmem:[%s7 + $0x100] sm:$0xf] %v3399
  %3416 = vst [vmem:[%s7 + $0x104] sm:$0xf] %v3400
  %3417 = vst [vmem:[%s7 + $0x108] sm:$0xf] %v3401
  %3418 = vst [vmem:[%s7 + $0x10c] sm:$0xf] %v3402
  %3419 = vst [vmem:[%s7 + $0x110] sm:$0xf] %v3403
  %3420 = vst [vmem:[%s7 + $0x114] sm:$0xf] %v3404
  %3421 = vst [vmem:[%s7 + $0x118] sm:$0xf] %v3405
  %3422 = vst [vmem:[%s7 + $0x11c] sm:$0xf] %v3406
  %v3423 = vmul.f32 %v2200, %v2770
  %v3424 = vmul.f32 %v2201, %v2775
  %v3425 = vmul.f32 %v2202, %v2780
  %v3426 = vmul.f32 %v2203, %v2785
  %v3427 = vmul.f32 %v2204, %v2790
  %v3428 = vmul.f32 %v2205, %v2795
  %v3429 = vmul.f32 %v2206, %v2800
  %v3430 = vmul.f32 %v2207, %v2805
  %v3431 = vadd.f32 %v3423, %v2818
  %v3432 = vadd.f32 %v3424, %v2823
  %v3433 = vadd.f32 %v3425, %v2828
  %v3434 = vadd.f32 %v3426, %v2833
  %v3435 = vadd.f32 %v3427, %v2838
  %v3436 = vadd.f32 %v3428, %v2843
  %v3437 = vadd.f32 %v3429, %v2848
  %v3438 = vadd.f32 %v3430, %v2853
  %v3439 = vmax.f32 %v3431, 0.0
  %v3440 = vmax.f32 %v3432, 0.0
  %v3441 = vmax.f32 %v3433, 0.0
  %v3442 = vmax.f32 %v3434, 0.0
  %v3443 = vmax.f32 %v3435, 0.0
  %v3444 = vmax.f32 %v3436, 0.0
  %v3445 = vmax.f32 %v3437, 0.0
  %v3446 = vmax.f32 %v3438, 0.0
  %v3447 = vpack.c.bf16 %v3440, %v3439
  %v3448 = vpack.c.bf16 %v3442, %v3441
  %v3449 = vpack.c.bf16 %v3444, %v3443
  %v3450 = vpack.c.bf16 %v3446, %v3445
  %v3455 = vunpack.c.l.b16 %v3447
  %v3456 = vunpack.c.h.b16 %v3447
  %v3457 = vunpack.c.l.b16 %v3448
  %v3458 = vunpack.c.h.b16 %v3448
  %v3459 = vunpack.c.l.b16 %v3449
  %v3460 = vunpack.c.h.b16 %v3449
  %v3461 = vunpack.c.l.b16 %v3450
  %v3462 = vunpack.c.h.b16 %v3450
  %v3463 = vpack.c.b16 %v3455, %v3455
  %v3464 = vpack.c.b16 %v3456, %v3456
  %v3465 = vpack.c.b16 %v3457, %v3457
  %v3466 = vpack.c.b16 %v3458, %v3458
  %v3467 = vpack.c.b16 %v3459, %v3459
  %v3468 = vpack.c.b16 %v3460, %v3460
  %v3469 = vpack.c.b16 %v3461, %v3461
  %v3470 = vpack.c.b16 %v3462, %v3462
  %3479 = vst [vmem:[%s7 + $0x120] sm:$0xf] %v3463
  %3480 = vst [vmem:[%s7 + $0x124] sm:$0xf] %v3464
  %3481 = vst [vmem:[%s7 + $0x128] sm:$0xf] %v3465
  %3482 = vst [vmem:[%s7 + $0x12c] sm:$0xf] %v3466
  %3483 = vst [vmem:[%s7 + $0x130] sm:$0xf] %v3467
  %3484 = vst [vmem:[%s7 + $0x134] sm:$0xf] %v3468
  %3485 = vst [vmem:[%s7 + $0x138] sm:$0xf] %v3469
  %3486 = vst [vmem:[%s7 + $0x13c] sm:$0xf] %v3470
  %v3487 = vmul.f32 %v2208, %v2770
  %v3488 = vmul.f32 %v2209, %v2775
  %v3489 = vmul.f32 %v2210, %v2780
  %v3490 = vmul.f32 %v2211, %v2785
  %v3491 = vmul.f32 %v2212, %v2790
  %v3492 = vmul.f32 %v2213, %v2795
  %v3493 = vmul.f32 %v2214, %v2800
  %v3494 = vmul.f32 %v2215, %v2805
  %v3495 = vadd.f32 %v3487, %v2818
  %v3496 = vadd.f32 %v3488, %v2823
  %v3497 = vadd.f32 %v3489, %v2828
  %v3498 = vadd.f32 %v3490, %v2833
  %v3499 = vadd.f32 %v3491, %v2838
  %v3500 = vadd.f32 %v3492, %v2843
  %v3501 = vadd.f32 %v3493, %v2848
  %v3502 = vadd.f32 %v3494, %v2853
  %v3503 = vmax.f32 %v3495, 0.0
  %v3504 = vmax.f32 %v3496, 0.0
  %v3505 = vmax.f32 %v3497, 0.0
  %v3506 = vmax.f32 %v3498, 0.0
  %v3507 = vmax.f32 %v3499, 0.0
  %v3508 = vmax.f32 %v3500, 0.0
  %v3509 = vmax.f32 %v3501, 0.0
  %v3510 = vmax.f32 %v3502, 0.0
  %v3511 = vpack.c.bf16 %v3504, %v3503
  %v3512 = vpack.c.bf16 %v3506, %v3505
  %v3513 = vpack.c.bf16 %v3508, %v3507
  %v3514 = vpack.c.bf16 %v3510, %v3509
  %v3519 = vunpack.c.l.b16 %v3511
  %v3520 = vunpack.c.h.b16 %v3511
  %v3521 = vunpack.c.l.b16 %v3512
  %v3522 = vunpack.c.h.b16 %v3512
  %v3523 = vunpack.c.l.b16 %v3513
  %v3524 = vunpack.c.h.b16 %v3513
  %v3525 = vunpack.c.l.b16 %v3514
  %v3526 = vunpack.c.h.b16 %v3514
  %v3527 = vpack.c.b16 %v3519, %v3519
  %v3528 = vpack.c.b16 %v3520, %v3520
  %v3529 = vpack.c.b16 %v3521, %v3521
  %v3530 = vpack.c.b16 %v3522, %v3522
  %v3531 = vpack.c.b16 %v3523, %v3523
  %v3532 = vpack.c.b16 %v3524, %v3524
  %v3533 = vpack.c.b16 %v3525, %v3525
  %v3534 = vpack.c.b16 %v3526, %v3526
  %3543 = vst [vmem:[%s7 + $0x140] sm:$0xf] %v3527
  %3544 = vst [vmem:[%s7 + $0x144] sm:$0xf] %v3528
  %3545 = vst [vmem:[%s7 + $0x148] sm:$0xf] %v3529
  %3546 = vst [vmem:[%s7 + $0x14c] sm:$0xf] %v3530
  %3547 = vst [vmem:[%s7 + $0x150] sm:$0xf] %v3531
  %3548 = vst [vmem:[%s7 + $0x154] sm:$0xf] %v3532
  %3549 = vst [vmem:[%s7 + $0x158] sm:$0xf] %v3533
  %3550 = vst [vmem:[%s7 + $0x15c] sm:$0xf] %v3534
  %v3551 = vmul.f32 %v2216, %v2770
  %v3552 = vmul.f32 %v2217, %v2775
  %v3553 = vmul.f32 %v2218, %v2780
  %v3554 = vmul.f32 %v2219, %v2785
  %v3555 = vmul.f32 %v2220, %v2790
  %v3556 = vmul.f32 %v2221, %v2795
  %v3557 = vmul.f32 %v2222, %v2800
  %v3558 = vmul.f32 %v2223, %v2805
  %v3559 = vadd.f32 %v3551, %v2818
  %v3560 = vadd.f32 %v3552, %v2823
  %v3561 = vadd.f32 %v3553, %v2828
  %v3562 = vadd.f32 %v3554, %v2833
  %v3563 = vadd.f32 %v3555, %v2838
  %v3564 = vadd.f32 %v3556, %v2843
  %v3565 = vadd.f32 %v3557, %v2848
  %v3566 = vadd.f32 %v3558, %v2853
  %v3567 = vmax.f32 %v3559, 0.0
  %v3568 = vmax.f32 %v3560, 0.0
  %v3569 = vmax.f32 %v3561, 0.0
  %v3570 = vmax.f32 %v3562, 0.0
  %v3571 = vmax.f32 %v3563, 0.0
  %v3572 = vmax.f32 %v3564, 0.0
  %v3573 = vmax.f32 %v3565, 0.0
  %v3574 = vmax.f32 %v3566, 0.0
  %v3575 = vpack.c.bf16 %v3568, %v3567
  %v3576 = vpack.c.bf16 %v3570, %v3569
  %v3577 = vpack.c.bf16 %v3572, %v3571
  %v3578 = vpack.c.bf16 %v3574, %v3573
  %v3583 = vunpack.c.l.b16 %v3575
  %v3584 = vunpack.c.h.b16 %v3575
  %v3585 = vunpack.c.l.b16 %v3576
  %v3586 = vunpack.c.h.b16 %v3576
  %v3587 = vunpack.c.l.b16 %v3577
  %v3588 = vunpack.c.h.b16 %v3577
  %v3589 = vunpack.c.l.b16 %v3578
  %v3590 = vunpack.c.h.b16 %v3578
  %v3591 = vpack.c.b16 %v3583, %v3583
  %v3592 = vpack.c.b16 %v3584, %v3584
  %v3593 = vpack.c.b16 %v3585, %v3585
  %v3594 = vpack.c.b16 %v3586, %v3586
  %v3595 = vpack.c.b16 %v3587, %v3587
  %v3596 = vpack.c.b16 %v3588, %v3588
  %v3597 = vpack.c.b16 %v3589, %v3589
  %v3598 = vpack.c.b16 %v3590, %v3590
  %3607 = vst [vmem:[%s7 + $0x160] sm:$0xf] %v3591
  %3608 = vst [vmem:[%s7 + $0x164] sm:$0xf] %v3592
  %3609 = vst [vmem:[%s7 + $0x168] sm:$0xf] %v3593
  %3610 = vst [vmem:[%s7 + $0x16c] sm:$0xf] %v3594
  %3611 = vst [vmem:[%s7 + $0x170] sm:$0xf] %v3595
  %3612 = vst [vmem:[%s7 + $0x174] sm:$0xf] %v3596
  %3613 = vst [vmem:[%s7 + $0x178] sm:$0xf] %v3597
  %3614 = vst [vmem:[%s7 + $0x17c] sm:$0xf] %v3598
  %v3615 = vmul.f32 %v2224, %v2770
  %v3616 = vmul.f32 %v2225, %v2775
  %v3617 = vmul.f32 %v2226, %v2780
  %v3618 = vmul.f32 %v2227, %v2785
  %v3619 = vmul.f32 %v2228, %v2790
  %v3620 = vmul.f32 %v2229, %v2795
  %v3621 = vmul.f32 %v2230, %v2800
  %v3622 = vmul.f32 %v2231, %v2805
  %v3623 = vadd.f32 %v3615, %v2818
  %v3624 = vadd.f32 %v3616, %v2823
  %v3625 = vadd.f32 %v3617, %v2828
  %v3626 = vadd.f32 %v3618, %v2833
  %v3627 = vadd.f32 %v3619, %v2838
  %v3628 = vadd.f32 %v3620, %v2843
  %v3629 = vadd.f32 %v3621, %v2848
  %v3630 = vadd.f32 %v3622, %v2853
  %v3631 = vmax.f32 %v3623, 0.0
  %v3632 = vmax.f32 %v3624, 0.0
  %v3633 = vmax.f32 %v3625, 0.0
  %v3634 = vmax.f32 %v3626, 0.0
  %v3635 = vmax.f32 %v3627, 0.0
  %v3636 = vmax.f32 %v3628, 0.0
  %v3637 = vmax.f32 %v3629, 0.0
  %v3638 = vmax.f32 %v3630, 0.0
  %v3639 = vpack.c.bf16 %v3632, %v3631
  %v3640 = vpack.c.bf16 %v3634, %v3633
  %v3641 = vpack.c.bf16 %v3636, %v3635
  %v3642 = vpack.c.bf16 %v3638, %v3637
  %v3647 = vunpack.c.l.b16 %v3639
  %v3648 = vunpack.c.h.b16 %v3639
  %v3649 = vunpack.c.l.b16 %v3640
  %v3650 = vunpack.c.h.b16 %v3640
  %v3651 = vunpack.c.l.b16 %v3641
  %v3652 = vunpack.c.h.b16 %v3641
  %v3653 = vunpack.c.l.b16 %v3642
  %v3654 = vunpack.c.h.b16 %v3642
  %v3655 = vpack.c.b16 %v3647, %v3647
  %v3656 = vpack.c.b16 %v3648, %v3648
  %v3657 = vpack.c.b16 %v3649, %v3649
  %v3658 = vpack.c.b16 %v3650, %v3650
  %v3659 = vpack.c.b16 %v3651, %v3651
  %v3660 = vpack.c.b16 %v3652, %v3652
  %v3661 = vpack.c.b16 %v3653, %v3653
  %v3662 = vpack.c.b16 %v3654, %v3654
  %3671 = vst [vmem:[%s7 + $0x180] sm:$0xf] %v3655
  %3672 = vst [vmem:[%s7 + $0x184] sm:$0xf] %v3656
  %3673 = vst [vmem:[%s7 + $0x188] sm:$0xf] %v3657
  %3674 = vst [vmem:[%s7 + $0x18c] sm:$0xf] %v3658
  %3675 = vst [vmem:[%s7 + $0x190] sm:$0xf] %v3659
  %3676 = vst [vmem:[%s7 + $0x194] sm:$0xf] %v3660
  %3677 = vst [vmem:[%s7 + $0x198] sm:$0xf] %v3661
  %3678 = vst [vmem:[%s7 + $0x19c] sm:$0xf] %v3662
  %v3679 = vmul.f32 %v2232, %v2770
  %v3680 = vmul.f32 %v2233, %v2775
  %v3681 = vmul.f32 %v2234, %v2780
  %v3682 = vmul.f32 %v2235, %v2785
  %v3683 = vmul.f32 %v2236, %v2790
  %v3684 = vmul.f32 %v2237, %v2795
  %v3685 = vmul.f32 %v2238, %v2800
  %v3686 = vmul.f32 %v2239, %v2805
  %v3687 = vadd.f32 %v3679, %v2818
  %v3688 = vadd.f32 %v3680, %v2823
  %v3689 = vadd.f32 %v3681, %v2828
  %v3690 = vadd.f32 %v3682, %v2833
  %v3691 = vadd.f32 %v3683, %v2838
  %v3692 = vadd.f32 %v3684, %v2843
  %v3693 = vadd.f32 %v3685, %v2848
  %v3694 = vadd.f32 %v3686, %v2853
  %v3695 = vmax.f32 %v3687, 0.0
  %v3696 = vmax.f32 %v3688, 0.0
  %v3697 = vmax.f32 %v3689, 0.0
  %v3698 = vmax.f32 %v3690, 0.0
  %v3699 = vmax.f32 %v3691, 0.0
  %v3700 = vmax.f32 %v3692, 0.0
  %v3701 = vmax.f32 %v3693, 0.0
  %v3702 = vmax.f32 %v3694, 0.0
  %v3703 = vpack.c.bf16 %v3696, %v3695
  %v3704 = vpack.c.bf16 %v3698, %v3697
  %v3705 = vpack.c.bf16 %v3700, %v3699
  %v3706 = vpack.c.bf16 %v3702, %v3701
  %v3711 = vunpack.c.l.b16 %v3703
  %v3712 = vunpack.c.h.b16 %v3703
  %v3713 = vunpack.c.l.b16 %v3704
  %v3714 = vunpack.c.h.b16 %v3704
  %v3715 = vunpack.c.l.b16 %v3705
  %v3716 = vunpack.c.h.b16 %v3705
  %v3717 = vunpack.c.l.b16 %v3706
  %v3718 = vunpack.c.h.b16 %v3706
  %v3719 = vpack.c.b16 %v3711, %v3711
  %v3720 = vpack.c.b16 %v3712, %v3712
  %v3721 = vpack.c.b16 %v3713, %v3713
  %v3722 = vpack.c.b16 %v3714, %v3714
  %v3723 = vpack.c.b16 %v3715, %v3715
  %v3724 = vpack.c.b16 %v3716, %v3716
  %v3725 = vpack.c.b16 %v3717, %v3717
  %v3726 = vpack.c.b16 %v3718, %v3718
  %3735 = vst [vmem:[%s7 + $0x1a0] sm:$0xf] %v3719
  %3736 = vst [vmem:[%s7 + $0x1a4] sm:$0xf] %v3720
  %3737 = vst [vmem:[%s7 + $0x1a8] sm:$0xf] %v3721
  %3738 = vst [vmem:[%s7 + $0x1ac] sm:$0xf] %v3722
  %3739 = vst [vmem:[%s7 + $0x1b0] sm:$0xf] %v3723
  %3740 = vst [vmem:[%s7 + $0x1b4] sm:$0xf] %v3724
  %3741 = vst [vmem:[%s7 + $0x1b8] sm:$0xf] %v3725
  %3742 = vst [vmem:[%s7 + $0x1bc] sm:$0xf] %v3726
  %v3743 = vmul.f32 %v2240, %v2770
  %v3744 = vmul.f32 %v2241, %v2775
  %v3745 = vmul.f32 %v2242, %v2780
  %v3746 = vmul.f32 %v2243, %v2785
  %v3747 = vmul.f32 %v2244, %v2790
  %v3748 = vmul.f32 %v2245, %v2795
  %v3749 = vmul.f32 %v2246, %v2800
  %v3750 = vmul.f32 %v2247, %v2805
  %v3751 = vadd.f32 %v3743, %v2818
  %v3752 = vadd.f32 %v3744, %v2823
  %v3753 = vadd.f32 %v3745, %v2828
  %v3754 = vadd.f32 %v3746, %v2833
  %v3755 = vadd.f32 %v3747, %v2838
  %v3756 = vadd.f32 %v3748, %v2843
  %v3757 = vadd.f32 %v3749, %v2848
  %v3758 = vadd.f32 %v3750, %v2853
  %v3759 = vmax.f32 %v3751, 0.0
  %v3760 = vmax.f32 %v3752, 0.0
  %v3761 = vmax.f32 %v3753, 0.0
  %v3762 = vmax.f32 %v3754, 0.0
  %v3763 = vmax.f32 %v3755, 0.0
  %v3764 = vmax.f32 %v3756, 0.0
  %v3765 = vmax.f32 %v3757, 0.0
  %v3766 = vmax.f32 %v3758, 0.0
  %v3767 = vpack.c.bf16 %v3760, %v3759
  %v3768 = vpack.c.bf16 %v3762, %v3761
  %v3769 = vpack.c.bf16 %v3764, %v3763
  %v3770 = vpack.c.bf16 %v3766, %v3765
  %v3775 = vunpack.c.l.b16 %v3767
  %v3776 = vunpack.c.h.b16 %v3767
  %v3777 = vunpack.c.l.b16 %v3768
  %v3778 = vunpack.c.h.b16 %v3768
  %v3779 = vunpack.c.l.b16 %v3769
  %v3780 = vunpack.c.h.b16 %v3769
  %v3781 = vunpack.c.l.b16 %v3770
  %v3782 = vunpack.c.h.b16 %v3770
  %v3783 = vpack.c.b16 %v3775, %v3775
  %v3784 = vpack.c.b16 %v3776, %v3776
  %v3785 = vpack.c.b16 %v3777, %v3777
  %v3786 = vpack.c.b16 %v3778, %v3778
  %v3787 = vpack.c.b16 %v3779, %v3779
  %v3788 = vpack.c.b16 %v3780, %v3780
  %v3789 = vpack.c.b16 %v3781, %v3781
  %v3790 = vpack.c.b16 %v3782, %v3782
  %3799 = vst [vmem:[%s7 + $0x1c0] sm:$0xf] %v3783
  %3800 = vst [vmem:[%s7 + $0x1c4] sm:$0xf] %v3784
  %3801 = vst [vmem:[%s7 + $0x1c8] sm:$0xf] %v3785
  %3802 = vst [vmem:[%s7 + $0x1cc] sm:$0xf] %v3786
  %3803 = vst [vmem:[%s7 + $0x1d0] sm:$0xf] %v3787
  %3804 = vst [vmem:[%s7 + $0x1d4] sm:$0xf] %v3788
  %3805 = vst [vmem:[%s7 + $0x1d8] sm:$0xf] %v3789
  %3806 = vst [vmem:[%s7 + $0x1dc] sm:$0xf] %v3790
  %v3807 = vmul.f32 %v2248, %v2770
  %v3808 = vmul.f32 %v2249, %v2775
  %v3809 = vmul.f32 %v2250, %v2780
  %v3810 = vmul.f32 %v2251, %v2785
  %v3811 = vmul.f32 %v2252, %v2790
  %v3812 = vmul.f32 %v2253, %v2795
  %v3813 = vmul.f32 %v2254, %v2800
  %v3814 = vmul.f32 %v2255, %v2805
  %v3815 = vadd.f32 %v3807, %v2818
  %v3816 = vadd.f32 %v3808, %v2823
  %v3817 = vadd.f32 %v3809, %v2828
  %v3818 = vadd.f32 %v3810, %v2833
  %v3819 = vadd.f32 %v3811, %v2838
  %v3820 = vadd.f32 %v3812, %v2843
  %v3821 = vadd.f32 %v3813, %v2848
  %v3822 = vadd.f32 %v3814, %v2853
  %v3823 = vmax.f32 %v3815, 0.0
  %v3824 = vmax.f32 %v3816, 0.0
  %v3825 = vmax.f32 %v3817, 0.0
  %v3826 = vmax.f32 %v3818, 0.0
  %v3827 = vmax.f32 %v3819, 0.0
  %v3828 = vmax.f32 %v3820, 0.0
  %v3829 = vmax.f32 %v3821, 0.0
  %v3830 = vmax.f32 %v3822, 0.0
  %v3831 = vpack.c.bf16 %v3824, %v3823
  %v3832 = vpack.c.bf16 %v3826, %v3825
  %v3833 = vpack.c.bf16 %v3828, %v3827
  %v3834 = vpack.c.bf16 %v3830, %v3829
  %v3839 = vunpack.c.l.b16 %v3831
  %v3840 = vunpack.c.h.b16 %v3831
  %v3841 = vunpack.c.l.b16 %v3832
  %v3842 = vunpack.c.h.b16 %v3832
  %v3843 = vunpack.c.l.b16 %v3833
  %v3844 = vunpack.c.h.b16 %v3833
  %v3845 = vunpack.c.l.b16 %v3834
  %v3846 = vunpack.c.h.b16 %v3834
  %v3847 = vpack.c.b16 %v3839, %v3839
  %v3848 = vpack.c.b16 %v3840, %v3840
  %v3849 = vpack.c.b16 %v3841, %v3841
  %v3850 = vpack.c.b16 %v3842, %v3842
  %v3851 = vpack.c.b16 %v3843, %v3843
  %v3852 = vpack.c.b16 %v3844, %v3844
  %v3853 = vpack.c.b16 %v3845, %v3845
  %v3854 = vpack.c.b16 %v3846, %v3846
  %3863 = vst [vmem:[%s7 + $0x1e0] sm:$0xf] %v3847
  %3864 = vst [vmem:[%s7 + $0x1e4] sm:$0xf] %v3848
  %3865 = vst [vmem:[%s7 + $0x1e8] sm:$0xf] %v3849
  %3866 = vst [vmem:[%s7 + $0x1ec] sm:$0xf] %v3850
  %3867 = vst [vmem:[%s7 + $0x1f0] sm:$0xf] %v3851
  %3868 = vst [vmem:[%s7 + $0x1f4] sm:$0xf] %v3852
  %3869 = vst [vmem:[%s7 + $0x1f8] sm:$0xf] %v3853
  %3870 = vst [vmem:[%s7 + $0x1fc] sm:$0xf] %v3854
  // Predicated region
  $region30: #{generator_forward.4} parent=0 // pred_check
    _
  $region31: #{generator_forward.4} parent=0 // pred_check_branch
    %3872 = sbr.rel (0) target = $region33
  $region32: #{generator_forward.4} parent=0 // pred_region
    _
  $region33: #{generator_forward.4} parent=0 // pred_fallthru
    _
  // Predicated region
  $region34: #{generator_forward.4} parent=0 // pred_check
    _
  $region35: #{generator_forward.4} parent=0 // pred_check_branch
    %3874 = sbr.rel (0) target = $region37
  $region36: #{generator_forward.4} parent=0 // pred_region
    _
  $region37: #{generator_forward.4} parent=0 // pred_fallthru
    _

// kernel: generator_forward.6
$region0: #{generator_forward.6}
  #allocation0 [shape = 'u32[]', space=smem, size = 0x4, offset = 0x4, fixed_abs, tag = 'smem constant byte address 0x4 - core index']
  #allocation1 [shape = 'u32[144,128]{1,0:T(1,128)}', space=vmem, size = 0x12000, scoped, tag = 'internal scratch']
  #allocation2 [shape = 'f32[1,1]{1,0:T(1,128)S(6)}', space=smem, size = 0x200, scoped, tag = 'scoped memory for generator_forward.6']
  %s0 = inlined_call_operand.vmem [shape: bf16[32,384], index: 0, kind: input, shape index: {}]
  %s1 = inlined_call_operand.vmem [shape: bf16[9,64,32], index: 1, kind: input, shape index: {}]
  %s2 = inlined_call_operand.vmem [shape: f32[64,1], index: 2, kind: input, shape index: {}]
  %s3 = inlined_call_operand.<no memory space> [shape: f32[1,1], index: 3, kind: input, shape index: {}]
  %s4 = inlined_call_operand.vmem [shape: f32[16,1], index: 4, kind: input, shape index: {}]
  %s5 = inlined_call_operand.vmem [shape: f32[16,1], index: 5, kind: input, shape index: {}]
  %s6 = inlined_call_operand.vmem [shape: f32[1,256], index: 6, kind: input, shape index: {}]
  %s7 = inlined_call_operand.vmem [shape: bf16[64,256], index: 7, kind: output, shape index: {}]
  %s8 = sld [smem:[#allocation0]]
  $region38: #{generator_forward.6} parent=0
    _
  %s10 = ssub.s32 1, %s8
  %s11 = scalar_select 0, %s10, %s8
  %12 = sst [smem:[#allocation2]] %s3
  // Predicated region
  $region2: #{generator_forward.6} parent=0 // pred_check
    _
  $region3: #{generator_forward.6} parent=0 // pred_check_branch
    %14 = sbr.rel (0) target = $region5
  $region4: #{generator_forward.6} parent=0 // pred_region
    _
  $region5: #{generator_forward.6} parent=0 // pred_fallthru
    _
  // Predicated region
  $region6: #{generator_forward.6} parent=0 // pred_check
    _
  $region7: #{generator_forward.6} parent=0 // pred_check_branch
    %16 = sbr.rel (0) target = $region9
  $region8: #{generator_forward.6} parent=0 // pred_region
    _
  $region9: #{generator_forward.6} parent=0 // pred_fallthru
    _
  // Predicated region
  $region10: #{generator_forward.6} parent=0 // pred_check
    _
  $region11: #{generator_forward.6} parent=0 // pred_check_branch
    %18 = sbr.rel (0) target = $region13
  $region12: #{generator_forward.6} parent=0 // pred_region
    _
  $region13: #{generator_forward.6} parent=0 // pred_fallthru
    _
  // Predicated region
  $region14: #{generator_forward.6} parent=0 // pred_check
    _
  $region15: #{generator_forward.6} parent=0 // pred_check_branch
    %20 = sbr.rel (0) target = $region17
  $region16: #{generator_forward.6} parent=0 // pred_region
    _
  $region17: #{generator_forward.6} parent=0 // pred_fallthru
    _
  // Predicated region
  $region18: #{generator_forward.6} parent=0 // pred_check
    _
  $region19: #{generator_forward.6} parent=0 // pred_check_branch
    %22 = sbr.rel (0) target = $region21
  $region20: #{generator_forward.6} parent=0 // pred_region
    _
  $region21: #{generator_forward.6} parent=0 // pred_fallthru
    _
  // Predicated region
  $region22: #{generator_forward.6} parent=0 // pred_check
    _
  $region23: #{generator_forward.6} parent=0 // pred_check_branch
    %24 = sbr.rel (0) target = $region25
  $region24: #{generator_forward.6} parent=0 // pred_region
    _
  $region25: #{generator_forward.6} parent=0 // pred_fallthru
    _
  // Predicated region
  $region26: #{generator_forward.6} parent=0 // pred_check
    _
  $region27: #{generator_forward.6} parent=0 // pred_check_branch
    %26 = sbr.rel (0) target = $region29
  $region28: #{generator_forward.6} parent=0 // pred_region
    _
  $region29: #{generator_forward.6} parent=0 // pred_fallthru
    _
  %v28 = vld [vmem:[%s1] sm:$0xf]
  %v29 = vld [vmem:[%s1 + $0x4] sm:$0xf]
  %v30 = vld [vmem:[%s1 + $0x8] sm:$0xf]
  %v31 = vld [vmem:[%s1 + $0xc] sm:$0xf]
  %v32 = vld [vmem:[%s1 + $0x10] sm:$0xf]
  %v33 = vld [vmem:[%s1 + $0x14] sm:$0xf]
  %v34 = vld [vmem:[%s1 + $0x18] sm:$0xf]
  %v35 = vld [vmem:[%s1 + $0x1c] sm:$0xf]
  %v36 = vld [vmem:[%s0] sm:$0xff]
  %v37 = vld [vmem:[%s0 + $0xc] sm:$0xff]
  %v38 = vld [vmem:[%s0 + $0x18] sm:$0xff]
  %v39 = vld [vmem:[%s0 + $0x24] sm:$0xff]
  %s40 = scalar_lea.vmem %s1, 32
  %v41 = vld [vmem:[%s40] sm:$0xf]
  %v42 = vld [vmem:[%s40 + $0x4] sm:$0xf]
  %v43 = vld [vmem:[%s40 + $0x8] sm:$0xf]
  %v44 = vld [vmem:[%s40 + $0xc] sm:$0xf]
  %v45 = vld [vmem:[%s40 + $0x10] sm:$0xf]
  %v46 = vld [vmem:[%s40 + $0x14] sm:$0xf]
  %v47 = vld [vmem:[%s40 + $0x18] sm:$0xf]
  %v48 = vld [vmem:[%s40 + $0x1c] sm:$0xf]
  %v49 = vld [vmem:[%s0] sm:$0xff]
  %v50 = vld [vmem:[%s0 + $0x8] sm:$0xf]
  %v51 = vld [vmem:[%s0 + $0xc] sm:$0xff]
  %v52 = vld [vmem:[%s0 + $0x14] sm:$0xf]
  %v53 = vld [vmem:[%s0 + $0x18] sm:$0xff]
  %v54 = vld [vmem:[%s0 + $0x20] sm:$0xf]
  %v55 = vld [vmem:[%s0 + $0x24] sm:$0xff]
  %v56 = vld [vmem:[%s0 + $0x2c] sm:$0xf]
  %v65 = vunpack.c.l.b16 %v41
  %v66 = vunpack.c.l.b16 %v42
  %v67 = vunpack.c.l.b16 %v43
  %v68 = vunpack.c.l.b16 %v44
  %v69 = vunpack.c.l.b16 %v45
  %v70 = vunpack.c.l.b16 %v46
  %v71 = vunpack.c.l.b16 %v47
  %v72 = vunpack.c.l.b16 %v48
  %v73 = vpack.c.b16 %v66, %v65
  %v74 = vpack.c.b16 %v68, %v67
  %v75 = vpack.c.b16 %v70, %v69
  %v76 = vpack.c.b16 %v72, %v71
  %v85 = vunpack.c.l.b16 %v49
  %v86 = vunpack.c.h.b16 %v49
  %v87 = vunpack.c.l.b16 %v50
  %v88 = vunpack.c.l.b16 %v51
  %v89 = vunpack.c.h.b16 %v51
  %v90 = vunpack.c.l.b16 %v52
  %v91 = vunpack.c.l.b16 %v53
  %v92 = vunpack.c.h.b16 %v53
  %v93 = vunpack.c.l.b16 %v54
  %v94 = vunpack.c.l.b16 %v55
  %v95 = vunpack.c.h.b16 %v55
  %v96 = vunpack.c.l.b16 %v56
  %v97 = vpack.c.b16 %v88, %v85
  %v98 = vpack.c.b16 %v89, %v86
  %v99 = vpack.c.b16 %v90, %v87
  %v100 = vpack.c.b16 %v94, %v91
  %v101 = vpack.c.b16 %v95, %v92
  %v102 = vpack.c.b16 %v96, %v93
  %103 = vrot.lane.b32.xlu0 %v97, 127
  %v104 = vpop.permute.xlu0 %103
  %105 = vrot.lane.b32.xlu0 %v98, 127
  %v106 = vpop.permute.xlu0 %105
  %107 = vrot.lane.b32.xlu0 %v99, 127
  %v108 = vpop.permute.xlu0 %107
  %109 = vrot.lane.b32.xlu0 %v100, 127
  %v110 = vpop.permute.xlu0 %109
  %111 = vrot.lane.b32.xlu0 %v101, 127
  %v112 = vpop.permute.xlu0 %111
  %113 = vrot.lane.b32.xlu0 %v102, 127
  %v114 = vpop.permute.xlu0 %113
  %vm115 = vcmask 1039360
  %v116 = vsel %vm115, %v104, %v106
  %v117 = vsel %vm115, %v106, %v108
  %v118 = vsel %vm115, %v110, %v112
  %v119 = vsel %vm115, %v112, %v114
  %vm124 = vcmask 261120
  %v126 = vsel %vm124, %v73, 0
  %v129 = vsel %vm124, %v74, 0
  %v132 = vsel %vm124, %v75, 0
  %v135 = vsel %vm124, %v76, 0
  %137 = vmatprep.subr.bf16.mxu0 %v117
  %138 = vmatpush1.bf16.msra.mxu0 %v116
  %139 = vmatprep.subr.bf16.mxu0 %v119
  %140 = vmatpush1.bf16.msra.mxu0 %v118
  %141 = vmatprep.subr.bf16.mxu0 0
  %142 = vmatpush1.bf16.msra.mxu0 0
  %143 = vmatprep.subr.bf16.mxu0 0
  %144 = vmatpush1.bf16.msra.mxu0 0
  %145 = vmatprep.subr.bf16.mxu0 0
  %146 = vmatpush1.bf16.msra.mxu0 0
  %147 = vmatprep.subr.bf16.mxu0 0
  %148 = vmatpush1.bf16.msra.mxu0 0
  %149 = vmatprep.subr.bf16.mxu0 0
  %150 = vmatpush1.bf16.msra.mxu0 0
  %151 = vmatprep.subr.bf16.mxu0 0
  %152 = vmatpush1.bf16.msra.mxu0 0
  %153 = vmatprep.subr.bf16.mxu0 0
  %154 = vmatpush1.bf16.msra.mxu0 0
  %155 = vmatprep.subr.bf16.mxu0 0
  %156 = vmatpush1.bf16.msra.mxu0 0
  %157 = vmatprep.subr.bf16.mxu0 0
  %158 = vmatpush1.bf16.msra.mxu0 0
  %159 = vmatprep.subr.bf16.mxu0 0
  %160 = vmatpush1.bf16.msra.mxu0 0
  %161 = vmatprep.subr.bf16.mxu0 0
  %162 = vmatpush1.bf16.msra.mxu0 0
  %163 = vmatprep.subr.bf16.mxu0 0
  %164 = vmatpush1.bf16.msra.mxu0 0
  %165 = vmatprep.subr.bf16.mxu0 0
  %166 = vmatpush1.bf16.msra.mxu0 0
  %167 = vmatprep.subr.bf16.mxu0 0
  %168 = vmatpush1.bf16.msra.mxu0 0
  %169 = vmatprep.mubr.bf16.mxu0 0
  %170 = vmatmul.mubr.bf16.gmra.mrb[0].mxu0 %v126
  %v171 = vpop.f32.mrb[0].mxu0
  %v172 = vadd.f32 0.0, %v171
  %v173 = vpop.f32.mrb[0].mxu0
  %v174 = vadd.f32 0.0, %v173
  %v175 = vpop.f32.mrb[0].mxu0
  %v176 = vadd.f32 0.0, %v175
  %v177 = vpop.f32.mrb[0].mxu0
  %v178 = vadd.f32 0.0, %v177
  %179 = vmatprep.mubr.bf16.mxu0 0
  %180 = vmatmul.mubr.bf16.gmra.mrb[0].mxu0 %v129
  %v181 = vpop.f32.mrb[0].mxu0
  %v182 = vadd.f32 0.0, %v181
  %v183 = vpop.f32.mrb[0].mxu0
  %v184 = vadd.f32 0.0, %v183
  %v185 = vpop.f32.mrb[0].mxu0
  %v186 = vadd.f32 0.0, %v185
  %v187 = vpop.f32.mrb[0].mxu0
  %v188 = vadd.f32 0.0, %v187
  %189 = vmatprep.mubr.bf16.mxu0 0
  %190 = vmatmul.mubr.bf16.gmra.mrb[0].mxu0 %v132
  %v191 = vpop.f32.mrb[0].mxu0
  %v192 = vadd.f32 0.0, %v191
  %v193 = vpop.f32.mrb[0].mxu0
  %v194 = vadd.f32 0.0, %v193
  %v195 = vpop.f32.mrb[0].mxu0
  %v196 = vadd.f32 0.0, %v195
  %v197 = vpop.f32.mrb[0].mxu0
  %v198 = vadd.f32 0.0, %v197
  %199 = vmatprep.mubr.bf16.mxu0 0
  %200 = vmatmul.mubr.bf16.gmra.mrb[0].mxu0 %v135
  %v201 = vpop.f32.mrb[0].mxu0
  %v202 = vadd.f32 0.0, %v201
  %v203 = vpop.f32.mrb[0].mxu0
  %v204 = vadd.f32 0.0, %v203
  %v205 = vpop.f32.mrb[0].mxu0
  %v206 = vadd.f32 0.0, %v205
  %v207 = vpop.f32.mrb[0].mxu0
  %v208 = vadd.f32 0.0, %v207
  %209 = vdwg.mxu0
  %v218 = vunpack.c.l.b16 %v28
  %v219 = vunpack.c.l.b16 %v29
  %v220 = vunpack.c.l.b16 %v30
  %v221 = vunpack.c.l.b16 %v31
  %v222 = vunpack.c.l.b16 %v32
  %v223 = vunpack.c.l.b16 %v33
  %v224 = vunpack.c.l.b16 %v34
  %v225 = vunpack.c.l.b16 %v35
  %v226 = vpack.c.b16 %v219, %v218
  %v227 = vpack.c.b16 %v221, %v220
  %v228 = vpack.c.b16 %v223, %v222
  %v229 = vpack.c.b16 %v225, %v224
  %v234 = vunpack.c.l.b16 %v36
  %v235 = vunpack.c.h.b16 %v36
  %v236 = vunpack.c.l.b16 %v37
  %v237 = vunpack.c.h.b16 %v37
  %v238 = vunpack.c.l.b16 %v38
  %v239 = vunpack.c.h.b16 %v38
  %v240 = vunpack.c.l.b16 %v39
  %v241 = vunpack.c.h.b16 %v39
  %v242 = vpack.c.b16 %v236, %v234
  %v243 = vpack.c.b16 %v237, %v235
  %v244 = vpack.c.b16 %v240, %v238
  %v245 = vpack.c.b16 %v241, %v239
  %v251 = vsel %vm124, %v226, 0
  %v254 = vsel %vm124, %v227, 0
  %v257 = vsel %vm124, %v228, 0
  %v260 = vsel %vm124, %v229, 0
  %262 = vmatprep.subr.bf16.mxu0 %v243
  %263 = vmatpush1.bf16.msra.mxu0 %v242
  %264 = vmatprep.subr.bf16.mxu0 %v245
  %265 = vmatpush1.bf16.msra.mxu0 %v244
  %266 = vmatprep.subr.bf16.mxu0 0
  %267 = vmatpush1.bf16.msra.mxu0 0
  %268 = vmatprep.subr.bf16.mxu0 0
  %269 = vmatpush1.bf16.msra.mxu0 0
  %270 = vmatprep.subr.bf16.mxu0 0
  %271 = vmatpush1.bf16.msra.mxu0 0
  %272 = vmatprep.subr.bf16.mxu0 0
  %273 = vmatpush1.bf16.msra.mxu0 0
  %274 = vmatprep.subr.bf16.mxu0 0
  %275 = vmatpush1.bf16.msra.mxu0 0
  %276 = vmatprep.subr.bf16.mxu0 0
  %277 = vmatpush1.bf16.msra.mxu0 0
  %278 = vmatprep.subr.bf16.mxu0 0
  %279 = vmatpush1.bf16.msra.mxu0 0
  %280 = vmatprep.subr.bf16.mxu0 0
  %281 = vmatpush1.bf16.msra.mxu0 0
  %282 = vmatprep.subr.bf16.mxu0 0
  %283 = vmatpush1.bf16.msra.mxu0 0
  %284 = vmatprep.subr.bf16.mxu0 0
  %285 = vmatpush1.bf16.msra.mxu0 0
  %286 = vmatprep.subr.bf16.mxu0 0
  %287 = vmatpush1.bf16.msra.mxu0 0
  %288 = vmatprep.subr.bf16.mxu0 0
  %289 = vmatpush1.bf16.msra.mxu0 0
  %290 = vmatprep.subr.bf16.mxu0 0
  %291 = vmatpush1.bf16.msra.mxu0 0
  %292 = vmatprep.subr.bf16.mxu0 0
  %293 = vmatpush1.bf16.msra.mxu0 0
  %294 = vmatprep.mubr.bf16.mxu0 0
  %295 = vmatmul.mubr.bf16.gmra.mrb[0].mxu0 %v251
  %v296 = vpop.f32.mrb[0].mxu0
  %v297 = vadd.f32 %v172, %v296
  %v298 = vpop.f32.mrb[0].mxu0
  %v299 = vadd.f32 %v174, %v298
  %v300 = vpop.f32.mrb[0].mxu0
  %v301 = vadd.f32 %v176, %v300
  %v302 = vpop.f32.mrb[0].mxu0
  %v303 = vadd.f32 %v178, %v302
  %304 = vmatprep.mubr.bf16.mxu0 0
  %305 = vmatmul.mubr.bf16.gmra.mrb[0].mxu0 %v254
  %v306 = vpop.f32.mrb[0].mxu0
  %v307 = vadd.f32 %v182, %v306
  %v308 = vpop.f32.mrb[0].mxu0
  %v309 = vadd.f32 %v184, %v308
  %v310 = vpop.f32.mrb[0].mxu0
  %v311 = vadd.f32 %v186, %v310
  %v312 = vpop.f32.mrb[0].mxu0
  %v313 = vadd.f32 %v188, %v312
  %314 = vmatprep.mubr.bf16.mxu0 0
  %315 = vmatmul.mubr.bf16.gmra.mrb[0].mxu0 %v257
  %v316 = vpop.f32.mrb[0].mxu0
  %v317 = vadd.f32 %v192, %v316
  %v318 = vpop.f32.mrb[0].mxu0
  %v319 = vadd.f32 %v194, %v318
  %v320 = vpop.f32.mrb[0].mxu0
  %v321 = vadd.f32 %v196, %v320
  %v322 = vpop.f32.mrb[0].mxu0
  %v323 = vadd.f32 %v198, %v322
  %324 = vmatprep.mubr.bf16.mxu0 0
  %325 = vmatmul.mubr.bf16.gmra.mrb[0].mxu0 %v260
  %v326 = vpop.f32.mrb[0].mxu0
  %v327 = vadd.f32 %v202, %v326
  %v328 = vpop.f32.mrb[0].mxu0
  %v329 = vadd.f32 %v204, %v328
  %v330 = vpop.f32.mrb[0].mxu0
  %v331 = vadd.f32 %v206, %v330
  %v332 = vpop.f32.mrb[0].mxu0
  %v333 = vadd.f32 %v208, %v332
  %334 = vdwg.mxu0
  %s335 = scalar_lea.vmem %s1, 64
  %v336 = vld [vmem:[%s335] sm:$0xf]
  %v337 = vld [vmem:[%s335 + $0x4] sm:$0xf]
  %v338 = vld [vmem:[%s335 + $0x8] sm:$0xf]
  %v339 = vld [vmem:[%s335 + $0xc] sm:$0xf]
  %v340 = vld [vmem:[%s335 + $0x10] sm:$0xf]
  %v341 = vld [vmem:[%s335 + $0x14] sm:$0xf]
  %v342 = vld [vmem:[%s335 + $0x18] sm:$0xf]
  %v343 = vld [vmem:[%s335 + $0x1c] sm:$0xf]
  %v352 = vunpack.c.l.b16 %v336
  %v353 = vunpack.c.l.b16 %v337
  %v354 = vunpack.c.l.b16 %v338
  %v355 = vunpack.c.l.b16 %v339
  %v356 = vunpack.c.l.b16 %v340
  %v357 = vunpack.c.l.b16 %v341
  %v358 = vunpack.c.l.b16 %v342
  %v359 = vunpack.c.l.b16 %v343
  %v360 = vpack.c.b16 %v353, %v352
  %v361 = vpack.c.b16 %v355, %v354
  %v362 = vpack.c.b16 %v357, %v356
  %v363 = vpack.c.b16 %v359, %v358
  %364 = vrot.lane.b32.xlu0 %v97, 126
  %v365 = vpop.permute.xlu0 %364
  %366 = vrot.lane.b32.xlu0 %v98, 126
  %v367 = vpop.permute.xlu0 %366
  %368 = vrot.lane.b32.xlu0 %v99, 126
  %v369 = vpop.permute.xlu0 %368
  %370 = vrot.lane.b32.xlu0 %v100, 126
  %v371 = vpop.permute.xlu0 %370
  %372 = vrot.lane.b32.xlu0 %v101, 126
  %v373 = vpop.permute.xlu0 %372
  %374 = vrot.lane.b32.xlu0 %v102, 126
  %v375 = vpop.permute.xlu0 %374
  %vm376 = vcmask 1031168
  %v377 = vsel %vm376, %v365, %v367
  %v378 = vsel %vm376, %v367, %v369
  %v379 = vsel %vm376, %v371, %v373
  %v380 = vsel %vm376, %v373, %v375
  %v386 = vsel %vm124, %v360, 0
  %v389 = vsel %vm124, %v361, 0
  %v392 = vsel %vm124, %v362, 0
  %v395 = vsel %vm124, %v363, 0
  %397 = vmatprep.subr.bf16.mxu0 %v378
  %398 = vmatpush1.bf16.msra.mxu0 %v377
  %399 = vmatprep.subr.bf16.mxu0 %v380
  %400 = vmatpush1.bf16.msra.mxu0 %v379
  %401 = vmatprep.subr.bf16.mxu0 0
  %402 = vmatpush1.bf16.msra.mxu0 0
  %403 = vmatprep.subr.bf16.mxu0 0
  %404 = vmatpush1.bf16.msra.mxu0 0
  %405 = vmatprep.subr.bf16.mxu0 0
  %406 = vmatpush1.bf16.msra.mxu0 0
  %407 = vmatprep.subr.bf16.mxu0 0
  %408 = vmatpush1.bf16.msra.mxu0 0
  %409 = vmatprep.subr.bf16.mxu0 0
  %410 = vmatpush1.bf16.msra.mxu0 0
  %411 = vmatprep.subr.bf16.mxu0 0
  %412 = vmatpush1.bf16.msra.mxu0 0
  %413 = vmatprep.subr.bf16.mxu0 0
  %414 = vmatpush1.bf16.msra.mxu0 0
  %415 = vmatprep.subr.bf16.mxu0 0
  %416 = vmatpush1.bf16.msra.mxu0 0
  %417 = vmatprep.subr.bf16.mxu0 0
  %418 = vmatpush1.bf16.msra.mxu0 0
  %419 = vmatprep.subr.bf16.mxu0 0
  %420 = vmatpush1.bf16.msra.mxu0 0
  %421 = vmatprep.subr.bf16.mxu0 0
  %422 = vmatpush1.bf16.msra.mxu0 0
  %423 = vmatprep.subr.bf16.mxu0 0
  %424 = vmatpush1.bf16.msra.mxu0 0
  %425 = vmatprep.subr.bf16.mxu0 0
  %426 = vmatpush1.bf16.msra.mxu0 0
  %427 = vmatprep.subr.bf16.mxu0 0
  %428 = vmatpush1.bf16.msra.mxu0 0
  %429 = vmatprep.mubr.bf16.mxu0 0
  %430 = vmatmul.mubr.bf16.gmra.mrb[0].mxu0 %v386
  %v431 = vpop.f32.mrb[0].mxu0
  %v432 = vadd.f32 0.0, %v431
  %v433 = vpop.f32.mrb[0].mxu0
  %v434 = vadd.f32 0.0, %v433
  %v435 = vpop.f32.mrb[0].mxu0
  %v436 = vadd.f32 0.0, %v435
  %v437 = vpop.f32.mrb[0].mxu0
  %v438 = vadd.f32 0.0, %v437
  %439 = vmatprep.mubr.bf16.mxu0 0
  %440 = vmatmul.mubr.bf16.gmra.mrb[0].mxu0 %v389
  %v441 = vpop.f32.mrb[0].mxu0
  %v442 = vadd.f32 0.0, %v441
  %v443 = vpop.f32.mrb[0].mxu0
  %v444 = vadd.f32 0.0, %v443
  %v445 = vpop.f32.mrb[0].mxu0
  %v446 = vadd.f32 0.0, %v445
  %v447 = vpop.f32.mrb[0].mxu0
  %v448 = vadd.f32 0.0, %v447
  %449 = vmatprep.mubr.bf16.mxu0 0
  %450 = vmatmul.mubr.bf16.gmra.mrb[0].mxu0 %v392
  %v451 = vpop.f32.mrb[0].mxu0
  %v452 = vadd.f32 0.0, %v451
  %v453 = vpop.f32.mrb[0].mxu0
  %v454 = vadd.f32 0.0, %v453
  %v455 = vpop.f32.mrb[0].mxu0
  %v456 = vadd.f32 0.0, %v455
  %v457 = vpop.f32.mrb[0].mxu0
  %v458 = vadd.f32 0.0, %v457
  %459 = vmatprep.mubr.bf16.mxu0 0
  %460 = vmatmul.mubr.bf16.gmra.mrb[0].mxu0 %v395
  %v461 = vpop.f32.mrb[0].mxu0
  %v462 = vadd.f32 0.0, %v461
  %v463 = vpop.f32.mrb[0].mxu0
  %v464 = vadd.f32 0.0, %v463
  %v465 = vpop.f32.mrb[0].mxu0
  %v466 = vadd.f32 0.0, %v465
  %v467 = vpop.f32.mrb[0].mxu0
  %v468 = vadd.f32 0.0, %v467
  %469 = vdwg.mxu0
  %v470 = vadd.f32 %v297, %v432
  %v471 = vadd.f32 %v299, %v434
  %v472 = vadd.f32 %v301, %v436
  %v473 = vadd.f32 %v303, %v438
  %v474 = vadd.f32 %v307, %v442
  %v475 = vadd.f32 %v309, %v444
  %v476 = vadd.f32 %v311, %v446
  %v477 = vadd.f32 %v313, %v448
  %v478 = vadd.f32 %v317, %v452
  %v479 = vadd.f32 %v319, %v454
  %v480 = vadd.f32 %v321, %v456
  %v481 = vadd.f32 %v323, %v458
  %v482 = vadd.f32 %v327, %v462
  %v483 = vadd.f32 %v329, %v464
  %v484 = vadd.f32 %v331, %v466
  %v485 = vadd.f32 %v333, %v468
  %s486 = scalar_lea.vmem %s1, 96
  %v487 = vld [vmem:[%s486] sm:$0xf]
  %v488 = vld [vmem:[%s486 + $0x4] sm:$0xf]
  %v489 = vld [vmem:[%s486 + $0x8] sm:$0xf]
  %v490 = vld [vmem:[%s486 + $0xc] sm:$0xf]
  %v491 = vld [vmem:[%s486 + $0x10] sm:$0xf]
  %v492 = vld [vmem:[%s486 + $0x14] sm:$0xf]
  %v493 = vld [vmem:[%s486 + $0x18] sm:$0xf]
  %v494 = vld [vmem:[%s486 + $0x1c] sm:$0xf]
  %v503 = vunpack.c.l.b16 %v487
  %v504 = vunpack.c.l.b16 %v488
  %v505 = vunpack.c.l.b16 %v489
  %v506 = vunpack.c.l.b16 %v490
  %v507 = vunpack.c.l.b16 %v491
  %v508 = vunpack.c.l.b16 %v492
  %v509 = vunpack.c.l.b16 %v493
  %v510 = vunpack.c.l.b16 %v494
  %v511 = vpack.c.b16 %v504, %v503
  %v512 = vpack.c.b16 %v506, %v505
  %v513 = vpack.c.b16 %v508, %v507
  %v514 = vpack.c.b16 %v510, %v509
  %515 = vrot.lane.b32.xlu0 %v97, 118
  %v516 = vpop.permute.xlu0 %515
  %517 = vrot.lane.b32.xlu0 %v98, 118
  %v518 = vpop.permute.xlu0 %517
  %519 = vrot.lane.b32.xlu0 %v99, 118
  %v520 = vpop.permute.xlu0 %519
  %521 = vrot.lane.b32.xlu0 %v100, 118
  %v522 = vpop.permute.xlu0 %521
  %523 = vrot.lane.b32.xlu0 %v101, 118
  %v524 = vpop.permute.xlu0 %523
  %525 = vrot.lane.b32.xlu0 %v102, 118
  %v526 = vpop.permute.xlu0 %525
  %vm527 = vcmask 965632
  %v528 = vsel %vm527, %v516, %v518
  %v529 = vsel %vm527, %v518, %v520
  %v530 = vsel %vm527, %v522, %v524
  %v531 = vsel %vm527, %v524, %v526
  %v537 = vsel %vm124, %v511, 0
  %v540 = vsel %vm124, %v512, 0
  %v543 = vsel %vm124, %v513, 0
  %v546 = vsel %vm124, %v514, 0
  %548 = vmatprep.subr.bf16.mxu0 %v529
  %549 = vmatpush1.bf16.msra.mxu0 %v528
  %550 = vmatprep.subr.bf16.mxu0 %v531
  %551 = vmatpush1.bf16.msra.mxu0 %v530
  %552 = vmatprep.subr.bf16.mxu0 0
  %553 = vmatpush1.bf16.msra.mxu0 0
  %554 = vmatprep.subr.bf16.mxu0 0
  %555 = vmatpush1.bf16.msra.mxu0 0
  %556 = vmatprep.subr.bf16.mxu0 0
  %557 = vmatpush1.bf16.msra.mxu0 0
  %558 = vmatprep.subr.bf16.mxu0 0
  %559 = vmatpush1.bf16.msra.mxu0 0
  %560 = vmatprep.subr.bf16.mxu0 0
  %561 = vmatpush1.bf16.msra.mxu0 0
  %562 = vmatprep.subr.bf16.mxu0 0
  %563 = vmatpush1.bf16.msra.mxu0 0
  %564 = vmatprep.subr.bf16.mxu0 0
  %565 = vmatpush1.bf16.msra.mxu0 0
  %566 = vmatprep.subr.bf16.mxu0 0
  %567 = vmatpush1.bf16.msra.mxu0 0
  %568 = vmatprep.subr.bf16.mxu0 0
  %569 = vmatpush1.bf16.msra.mxu0 0
  %570 = vmatprep.subr.bf16.mxu0 0
  %571 = vmatpush1.bf16.msra.mxu0 0
  %572 = vmatprep.subr.bf16.mxu0 0
  %573 = vmatpush1.bf16.msra.mxu0 0
  %574 = vmatprep.subr.bf16.mxu0 0
  %575 = vmatpush1.bf16.msra.mxu0 0
  %576 = vmatprep.subr.bf16.mxu0 0
  %577 = vmatpush1.bf16.msra.mxu0 0
  %578 = vmatprep.subr.bf16.mxu0 0
  %579 = vmatpush1.bf16.msra.mxu0 0
  %580 = vmatprep.mubr.bf16.mxu0 0
  %581 = vmatmul.mubr.bf16.gmra.mrb[0].mxu0 %v537
  %v582 = vpop.f32.mrb[0].mxu0
  %v583 = vadd.f32 0.0, %v582
  %v584 = vpop.f32.mrb[0].mxu0
  %v585 = vadd.f32 0.0, %v584
  %v586 = vpop.f32.mrb[0].mxu0
  %v587 = vadd.f32 0.0, %v586
  %v588 = vpop.f32.mrb[0].mxu0
  %v589 = vadd.f32 0.0, %v588
  %590 = vmatprep.mubr.bf16.mxu0 0
  %591 = vmatmul.mubr.bf16.gmra.mrb[0].mxu0 %v540
  %v592 = vpop.f32.mrb[0].mxu0
  %v593 = vadd.f32 0.0, %v592
  %v594 = vpop.f32.mrb[0].mxu0
  %v595 = vadd.f32 0.0, %v594
  %v596 = vpop.f32.mrb[0].mxu0
  %v597 = vadd.f32 0.0, %v596
  %v598 = vpop.f32.mrb[0].mxu0
  %v599 = vadd.f32 0.0, %v598
  %600 = vmatprep.mubr.bf16.mxu0 0
  %601 = vmatmul.mubr.bf16.gmra.mrb[0].mxu0 %v543
  %v602 = vpop.f32.mrb[0].mxu0
  %v603 = vadd.f32 0.0, %v602
  %v604 = vpop.f32.mrb[0].mxu0
  %v605 = vadd.f32 0.0, %v604
  %v606 = vpop.f32.mrb[0].mxu0
  %v607 = vadd.f32 0.0, %v606
  %v608 = vpop.f32.mrb[0].mxu0
  %v609 = vadd.f32 0.0, %v608
  %610 = vmatprep.mubr.bf16.mxu0 0
  %611 = vmatmul.mubr.bf16.gmra.mrb[0].mxu0 %v546
  %v612 = vpop.f32.mrb[0].mxu0
  %v613 = vadd.f32 0.0, %v612
  %v614 = vpop.f32.mrb[0].mxu0
  %v615 = vadd.f32 0.0, %v614
  %v616 = vpop.f32.mrb[0].mxu0
  %v617 = vadd.f32 0.0, %v616
  %v618 = vpop.f32.mrb[0].mxu0
  %v619 = vadd.f32 0.0, %v618
  %620 = vdwg.mxu0
  %v621 = vadd.f32 %v470, %v583
  %v622 = vadd.f32 %v471, %v585
  %v623 = vadd.f32 %v472, %v587
  %v624 = vadd.f32 %v473, %v589
  %v625 = vadd.f32 %v474, %v593
  %v626 = vadd.f32 %v475, %v595
  %v627 = vadd.f32 %v476, %v597
  %v628 = vadd.f32 %v477, %v599
  %v629 = vadd.f32 %v478, %v603
  %v630 = vadd.f32 %v479, %v605
  %v631 = vadd.f32 %v480, %v607
  %v632 = vadd.f32 %v481, %v609
  %v633 = vadd.f32 %v482, %v613
  %v634 = vadd.f32 %v483, %v615
  %v635 = vadd.f32 %v484, %v617
  %v636 = vadd.f32 %v485, %v619
  %s637 = scalar_lea.vmem %s1, 128
  %v638 = vld [vmem:[%s637] sm:$0xf]
  %v639 = vld [vmem:[%s637 + $0x4] sm:$0xf]
  %v640 = vld [vmem:[%s637 + $0x8] sm:$0xf]
  %v641 = vld [vmem:[%s637 + $0xc] sm:$0xf]
  %v642 = vld [vmem:[%s637 + $0x10] sm:$0xf]
  %v643 = vld [vmem:[%s637 + $0x14] sm:$0xf]
  %v644 = vld [vmem:[%s637 + $0x18] sm:$0xf]
  %v645 = vld [vmem:[%s637 + $0x1c] sm:$0xf]
  %v654 = vunpack.c.l.b16 %v638
  %v655 = vunpack.c.l.b16 %v639
  %v656 = vunpack.c.l.b16 %v640
  %v657 = vunpack.c.l.b16 %v641
  %v658 = vunpack.c.l.b16 %v642
  %v659 = vunpack.c.l.b16 %v643
  %v660 = vunpack.c.l.b16 %v644
  %v661 = vunpack.c.l.b16 %v645
  %v662 = vpack.c.b16 %v655, %v654
  %v663 = vpack.c.b16 %v657, %v656
  %v664 = vpack.c.b16 %v659, %v658
  %v665 = vpack.c.b16 %v661, %v660
  %666 = vrot.lane.b32.xlu0 %v97, 117
  %v667 = vpop.permute.xlu0 %666
  %668 = vrot.lane.b32.xlu0 %v98, 117
  %v669 = vpop.permute.xlu0 %668
  %670 = vrot.lane.b32.xlu0 %v99, 117
  %v671 = vpop.permute.xlu0 %670
  %672 = vrot.lane.b32.xlu0 %v100, 117
  %v673 = vpop.permute.xlu0 %672
  %674 = vrot.lane.b32.xlu0 %v101, 117
  %v675 = vpop.permute.xlu0 %674
  %676 = vrot.lane.b32.xlu0 %v102, 117
  %v677 = vpop.permute.xlu0 %676
  %vm678 = vcmask 957440
  %v679 = vsel %vm678, %v667, %v669
  %v680 = vsel %vm678, %v669, %v671
  %v681 = vsel %vm678, %v673, %v675
  %v682 = vsel %vm678, %v675, %v677
  %v688 = vsel %vm124, %v662, 0
  %v691 = vsel %vm124, %v663, 0
  %v694 = vsel %vm124, %v664, 0
  %v697 = vsel %vm124, %v665, 0
  %699 = vmatprep.subr.bf16.mxu0 %v680
  %700 = vmatpush1.bf16.msra.mxu0 %v679
  %701 = vmatprep.subr.bf16.mxu0 %v682
  %702 = vmatpush1.bf16.msra.mxu0 %v681
  %703 = vmatprep.subr.bf16.mxu0 0
  %704 = vmatpush1.bf16.msra.mxu0 0
  %705 = vmatprep.subr.bf16.mxu0 0
  %706 = vmatpush1.bf16.msra.mxu0 0
  %707 = vmatprep.subr.bf16.mxu0 0
  %708 = vmatpush1.bf16.msra.mxu0 0
  %709 = vmatprep.subr.bf16.mxu0 0
  %710 = vmatpush1.bf16.msra.mxu0 0
  %711 = vmatprep.subr.bf16.mxu0 0
  %712 = vmatpush1.bf16.msra.mxu0 0
  %713 = vmatprep.subr.bf16.mxu0 0
  %714 = vmatpush1.bf16.msra.mxu0 0
  %715 = vmatprep.subr.bf16.mxu0 0
  %716 = vmatpush1.bf16.msra.mxu0 0
  %717 = vmatprep.subr.bf16.mxu0 0
  %718 = vmatpush1.bf16.msra.mxu0 0
  %719 = vmatprep.subr.bf16.mxu0 0
  %720 = vmatpush1.bf16.msra.mxu0 0
  %721 = vmatprep.subr.bf16.mxu0 0
  %722 = vmatpush1.bf16.msra.mxu0 0
  %723 = vmatprep.subr.bf16.mxu0 0
  %724 = vmatpush1.bf16.msra.mxu0 0
  %725 = vmatprep.subr.bf16.mxu0 0
  %726 = vmatpush1.bf16.msra.mxu0 0
  %727 = vmatprep.subr.bf16.mxu0 0
  %728 = vmatpush1.bf16.msra.mxu0 0
  %729 = vmatprep.subr.bf16.mxu0 0
  %730 = vmatpush1.bf16.msra.mxu0 0
  %731 = vmatprep.mubr.bf16.mxu0 0
  %732 = vmatmul.mubr.bf16.gmra.mrb[0].mxu0 %v688
  %v733 = vpop.f32.mrb[0].mxu0
  %v734 = vadd.f32 0.0, %v733
  %v735 = vpop.f32.mrb[0].mxu0
  %v736 = vadd.f32 0.0, %v735
  %v737 = vpop.f32.mrb[0].mxu0
  %v738 = vadd.f32 0.0, %v737
  %v739 = vpop.f32.mrb[0].mxu0
  %v740 = vadd.f32 0.0, %v739
  %741 = vmatprep.mubr.bf16.mxu0 0
  %742 = vmatmul.mubr.bf16.gmra.mrb[0].mxu0 %v691
  %v743 = vpop.f32.mrb[0].mxu0
  %v744 = vadd.f32 0.0, %v743
  %v745 = vpop.f32.mrb[0].mxu0
  %v746 = vadd.f32 0.0, %v745
  %v747 = vpop.f32.mrb[0].mxu0
  %v748 = vadd.f32 0.0, %v747
  %v749 = vpop.f32.mrb[0].mxu0
  %v750 = vadd.f32 0.0, %v749
  %751 = vmatprep.mubr.bf16.mxu0 0
  %752 = vmatmul.mubr.bf16.gmra.mrb[0].mxu0 %v694
  %v753 = vpop.f32.mrb[0].mxu0
  %v754 = vadd.f32 0.0, %v753
  %v755 = vpop.f32.mrb[0].mxu0
  %v756 = vadd.f32 0.0, %v755
  %v757 = vpop.f32.mrb[0].mxu0
  %v758 = vadd.f32 0.0, %v757
  %v759 = vpop.f32.mrb[0].mxu0
  %v760 = vadd.f32 0.0, %v759
  %761 = vmatprep.mubr.bf16.mxu0 0
  %762 = vmatmul.mubr.bf16.gmra.mrb[0].mxu0 %v697
  %v763 = vpop.f32.mrb[0].mxu0
  %v764 = vadd.f32 0.0, %v763
  %v765 = vpop.f32.mrb[0].mxu0
  %v766 = vadd.f32 0.0, %v765
  %v767 = vpop.f32.mrb[0].mxu0
  %v768 = vadd.f32 0.0, %v767
  %v769 = vpop.f32.mrb[0].mxu0
  %v770 = vadd.f32 0.0, %v769
  %771 = vdwg.mxu0
  %v772 = vadd.f32 %v621, %v734
  %v773 = vadd.f32 %v622, %v736
  %v774 = vadd.f32 %v623, %v738
  %v775 = vadd.f32 %v624, %v740
  %v776 = vadd.f32 %v625, %v744
  %v777 = vadd.f32 %v626, %v746
  %v778 = vadd.f32 %v627, %v748
  %v779 = vadd.f32 %v628, %v750
  %v780 = vadd.f32 %v629, %v754
  %v781 = vadd.f32 %v630, %v756
  %v782 = vadd.f32 %v631, %v758
  %v783 = vadd.f32 %v632, %v760
  %v784 = vadd.f32 %v633, %v764
  %v785 = vadd.f32 %v634, %v766
  %v786 = vadd.f32 %v635, %v768
  %v787 = vadd.f32 %v636, %v770
  %s788 = scalar_lea.vmem %s1, 160
  %v789 = vld [vmem:[%s788] sm:$0xf]
  %v790 = vld [vmem:[%s788 + $0x4] sm:$0xf]
  %v791 = vld [vmem:[%s788 + $0x8] sm:$0xf]
  %v792 = vld [vmem:[%s788 + $0xc] sm:$0xf]
  %v793 = vld [vmem:[%s788 + $0x10] sm:$0xf]
  %v794 = vld [vmem:[%s788 + $0x14] sm:$0xf]
  %v795 = vld [vmem:[%s788 + $0x18] sm:$0xf]
  %v796 = vld [vmem:[%s788 + $0x1c] sm:$0xf]
  %v805 = vunpack.c.l.b16 %v789
  %v806 = vunpack.c.l.b16 %v790
  %v807 = vunpack.c.l.b16 %v791
  %v808 = vunpack.c.l.b16 %v792
  %v809 = vunpack.c.l.b16 %v793
  %v810 = vunpack.c.l.b16 %v794
  %v811 = vunpack.c.l.b16 %v795
  %v812 = vunpack.c.l.b16 %v796
  %v813 = vpack.c.b16 %v806, %v805
  %v814 = vpack.c.b16 %v808, %v807
  %v815 = vpack.c.b16 %v810, %v809
  %v816 = vpack.c.b16 %v812, %v811
  %817 = vrot.lane.b32.xlu0 %v97, 116
  %v818 = vpop.permute.xlu0 %817
  %819 = vrot.lane.b32.xlu0 %v98, 116
  %v820 = vpop.permute.xlu0 %819
  %821 = vrot.lane.b32.xlu0 %v99, 116
  %v822 = vpop.permute.xlu0 %821
  %823 = vrot.lane.b32.xlu0 %v100, 116
  %v824 = vpop.permute.xlu0 %823
  %825 = vrot.lane.b32.xlu0 %v101, 116
  %v826 = vpop.permute.xlu0 %825
  %827 = vrot.lane.b32.xlu0 %v102, 116
  %v828 = vpop.permute.xlu0 %827
  %vm829 = vcmask 949248
  %v830 = vsel %vm829, %v818, %v820
  %v831 = vsel %vm829, %v820, %v822
  %v832 = vsel %vm829, %v824, %v826
  %v833 = vsel %vm829, %v826, %v828
  %v839 = vsel %vm124, %v813, 0
  %v842 = vsel %vm124, %v814, 0
  %v845 = vsel %vm124, %v815, 0
  %v848 = vsel %vm124, %v816, 0
  %850 = vmatprep.subr.bf16.mxu0 %v831
  %851 = vmatpush1.bf16.msra.mxu0 %v830
  %852 = vmatprep.subr.bf16.mxu0 %v833
  %853 = vmatpush1.bf16.msra.mxu0 %v832
  %854 = vmatprep.subr.bf16.mxu0 0
  %855 = vmatpush1.bf16.msra.mxu0 0
  %856 = vmatprep.subr.bf16.mxu0 0
  %857 = vmatpush1.bf16.msra.mxu0 0
  %858 = vmatprep.subr.bf16.mxu0 0
  %859 = vmatpush1.bf16.msra.mxu0 0
  %860 = vmatprep.subr.bf16.mxu0 0
  %861 = vmatpush1.bf16.msra.mxu0 0
  %862 = vmatprep.subr.bf16.mxu0 0
  %863 = vmatpush1.bf16.msra.mxu0 0
  %864 = vmatprep.subr.bf16.mxu0 0
  %865 = vmatpush1.bf16.msra.mxu0 0
  %866 = vmatprep.subr.bf16.mxu0 0
  %867 = vmatpush1.bf16.msra.mxu0 0
  %868 = vmatprep.subr.bf16.mxu0 0
  %869 = vmatpush1.bf16.msra.mxu0 0
  %870 = vmatprep.subr.bf16.mxu0 0
  %871 = vmatpush1.bf16.msra.mxu0 0
  %872 = vmatprep.subr.bf16.mxu0 0
  %873 = vmatpush1.bf16.msra.mxu0 0
  %874 = vmatprep.subr.bf16.mxu0 0
  %875 = vmatpush1.bf16.msra.mxu0 0
  %876 = vmatprep.subr.bf16.mxu0 0
  %877 = vmatpush1.bf16.msra.mxu0 0
  %878 = vmatprep.subr.bf16.mxu0 0
  %879 = vmatpush1.bf16.msra.mxu0 0
  %880 = vmatprep.subr.bf16.mxu0 0
  %881 = vmatpush1.bf16.msra.mxu0 0
  %882 = vmatprep.mubr.bf16.mxu0 0
  %883 = vmatmul.mubr.bf16.gmra.mrb[0].mxu0 %v839
  %v884 = vpop.f32.mrb[0].mxu0
  %v885 = vadd.f32 0.0, %v884
  %v886 = vpop.f32.mrb[0].mxu0
  %v887 = vadd.f32 0.0, %v886
  %v888 = vpop.f32.mrb[0].mxu0
  %v889 = vadd.f32 0.0, %v888
  %v890 = vpop.f32.mrb[0].mxu0
  %v891 = vadd.f32 0.0, %v890
  %892 = vmatprep.mubr.bf16.mxu0 0
  %893 = vmatmul.mubr.bf16.gmra.mrb[0].mxu0 %v842
  %v894 = vpop.f32.mrb[0].mxu0
  %v895 = vadd.f32 0.0, %v894
  %v896 = vpop.f32.mrb[0].mxu0
  %v897 = vadd.f32 0.0, %v896
  %v898 = vpop.f32.mrb[0].mxu0
  %v899 = vadd.f32 0.0, %v898
  %v900 = vpop.f32.mrb[0].mxu0
  %v901 = vadd.f32 0.0, %v900
  %902 = vmatprep.mubr.bf16.mxu0 0
  %903 = vmatmul.mubr.bf16.gmra.mrb[0].mxu0 %v845
  %v904 = vpop.f32.mrb[0].mxu0
  %v905 = vadd.f32 0.0, %v904
  %v906 = vpop.f32.mrb[0].mxu0
  %v907 = vadd.f32 0.0, %v906
  %v908 = vpop.f32.mrb[0].mxu0
  %v909 = vadd.f32 0.0, %v908
  %v910 = vpop.f32.mrb[0].mxu0
  %v911 = vadd.f32 0.0, %v910
  %912 = vmatprep.mubr.bf16.mxu0 0
  %913 = vmatmul.mubr.bf16.gmra.mrb[0].mxu0 %v848
  %v914 = vpop.f32.mrb[0].mxu0
  %v915 = vadd.f32 0.0, %v914
  %v916 = vpop.f32.mrb[0].mxu0
  %v917 = vadd.f32 0.0, %v916
  %v918 = vpop.f32.mrb[0].mxu0
  %v919 = vadd.f32 0.0, %v918
  %v920 = vpop.f32.mrb[0].mxu0
  %v921 = vadd.f32 0.0, %v920
  %922 = vdwg.mxu0
  %v923 = vadd.f32 %v772, %v885
  %v924 = vadd.f32 %v773, %v887
  %v925 = vadd.f32 %v774, %v889
  %v926 = vadd.f32 %v775, %v891
  %v927 = vadd.f32 %v776, %v895
  %v928 = vadd.f32 %v777, %v897
  %v929 = vadd.f32 %v778, %v899
  %v930 = vadd.f32 %v779, %v901
  %v931 = vadd.f32 %v780, %v905
  %v932 = vadd.f32 %v781, %v907
  %v933 = vadd.f32 %v782, %v909
  %v934 = vadd.f32 %v783, %v911
  %v935 = vadd.f32 %v784, %v915
  %v936 = vadd.f32 %v785, %v917
  %v937 = vadd.f32 %v786, %v919
  %v938 = vadd.f32 %v787, %v921
  %s939 = scalar_lea.vmem %s1, 192
  %v940 = vld [vmem:[%s939] sm:$0xf]
  %v941 = vld [vmem:[%s939 + $0x4] sm:$0xf]
  %v942 = vld [vmem:[%s939 + $0x8] sm:$0xf]
  %v943 = vld [vmem:[%s939 + $0xc] sm:$0xf]
  %v944 = vld [vmem:[%s939 + $0x10] sm:$0xf]
  %v945 = vld [vmem:[%s939 + $0x14] sm:$0xf]
  %v946 = vld [vmem:[%s939 + $0x18] sm:$0xf]
  %v947 = vld [vmem:[%s939 + $0x1c] sm:$0xf]
  %v956 = vunpack.c.l.b16 %v940
  %v957 = vunpack.c.l.b16 %v941
  %v958 = vunpack.c.l.b16 %v942
  %v959 = vunpack.c.l.b16 %v943
  %v960 = vunpack.c.l.b16 %v944
  %v961 = vunpack.c.l.b16 %v945
  %v962 = vunpack.c.l.b16 %v946
  %v963 = vunpack.c.l.b16 %v947
  %v964 = vpack.c.b16 %v957, %v956
  %v965 = vpack.c.b16 %v959, %v958
  %v966 = vpack.c.b16 %v961, %v960
  %v967 = vpack.c.b16 %v963, %v962
  %968 = vrot.lane.b32.xlu0 %v97, 108
  %v969 = vpop.permute.xlu0 %968
  %970 = vrot.lane.b32.xlu0 %v98, 108
  %v971 = vpop.permute.xlu0 %970
  %972 = vrot.lane.b32.xlu0 %v99, 108
  %v973 = vpop.permute.xlu0 %972
  %974 = vrot.lane.b32.xlu0 %v100, 108
  %v975 = vpop.permute.xlu0 %974
  %976 = vrot.lane.b32.xlu0 %v101, 108
  %v977 = vpop.permute.xlu0 %976
  %978 = vrot.lane.b32.xlu0 %v102, 108
  %v979 = vpop.permute.xlu0 %978
  %vm980 = vcmask 883712
  %v981 = vsel %vm980, %v969, %v971
  %v982 = vsel %vm980, %v971, %v973
  %v983 = vsel %vm980, %v975, %v977
  %v984 = vsel %vm980, %v977, %v979
  %v990 = vsel %vm124, %v964, 0
  %v993 = vsel %vm124, %v965, 0
  %v996 = vsel %vm124, %v966, 0
  %v999 = vsel %vm124, %v967, 0
  %1001 = vmatprep.subr.bf16.mxu0 %v982
  %1002 = vmatpush1.bf16.msra.mxu0 %v981
  %1003 = vmatprep.subr.bf16.mxu0 %v984
  %1004 = vmatpush1.bf16.msra.mxu0 %v983
  %1005 = vmatprep.subr.bf16.mxu0 0
  %1006 = vmatpush1.bf16.msra.mxu0 0
  %1007 = vmatprep.subr.bf16.mxu0 0
  %1008 = vmatpush1.bf16.msra.mxu0 0
  %1009 = vmatprep.subr.bf16.mxu0 0
  %1010 = vmatpush1.bf16.msra.mxu0 0
  %1011 = vmatprep.subr.bf16.mxu0 0
  %1012 = vmatpush1.bf16.msra.mxu0 0
  %1013 = vmatprep.subr.bf16.mxu0 0
  %1014 = vmatpush1.bf16.msra.mxu0 0
  %1015 = vmatprep.subr.bf16.mxu0 0
  %1016 = vmatpush1.bf16.msra.mxu0 0
  %1017 = vmatprep.subr.bf16.mxu0 0
  %1018 = vmatpush1.bf16.msra.mxu0 0
  %1019 = vmatprep.subr.bf16.mxu0 0
  %1020 = vmatpush1.bf16.msra.mxu0 0
  %1021 = vmatprep.subr.bf16.mxu0 0
  %1022 = vmatpush1.bf16.msra.mxu0 0
  %1023 = vmatprep.subr.bf16.mxu0 0
  %1024 = vmatpush1.bf16.msra.mxu0 0
  %1025 = vmatprep.subr.bf16.mxu0 0
  %1026 = vmatpush1.bf16.msra.mxu0 0
  %1027 = vmatprep.subr.bf16.mxu0 0
  %1028 = vmatpush1.bf16.msra.mxu0 0
  %1029 = vmatprep.subr.bf16.mxu0 0
  %1030 = vmatpush1.bf16.msra.mxu0 0
  %1031 = vmatprep.subr.bf16.mxu0 0
  %1032 = vmatpush1.bf16.msra.mxu0 0
  %1033 = vmatprep.mubr.bf16.mxu0 0
  %1034 = vmatmul.mubr.bf16.gmra.mrb[0].mxu0 %v990
  %v1035 = vpop.f32.mrb[0].mxu0
  %v1036 = vadd.f32 0.0, %v1035
  %v1037 = vpop.f32.mrb[0].mxu0
  %v1038 = vadd.f32 0.0, %v1037
  %v1039 = vpop.f32.mrb[0].mxu0
  %v1040 = vadd.f32 0.0, %v1039
  %v1041 = vpop.f32.mrb[0].mxu0
  %v1042 = vadd.f32 0.0, %v1041
  %1043 = vmatprep.mubr.bf16.mxu0 0
  %1044 = vmatmul.mubr.bf16.gmra.mrb[0].mxu0 %v993
  %v1045 = vpop.f32.mrb[0].mxu0
  %v1046 = vadd.f32 0.0, %v1045
  %v1047 = vpop.f32.mrb[0].mxu0
  %v1048 = vadd.f32 0.0, %v1047
  %v1049 = vpop.f32.mrb[0].mxu0
  %v1050 = vadd.f32 0.0, %v1049
  %v1051 = vpop.f32.mrb[0].mxu0
  %v1052 = vadd.f32 0.0, %v1051
  %1053 = vmatprep.mubr.bf16.mxu0 0
  %1054 = vmatmul.mubr.bf16.gmra.mrb[0].mxu0 %v996
  %v1055 = vpop.f32.mrb[0].mxu0
  %v1056 = vadd.f32 0.0, %v1055
  %v1057 = vpop.f32.mrb[0].mxu0
  %v1058 = vadd.f32 0.0, %v1057
  %v1059 = vpop.f32.mrb[0].mxu0
  %v1060 = vadd.f32 0.0, %v1059
  %v1061 = vpop.f32.mrb[0].mxu0
  %v1062 = vadd.f32 0.0, %v1061
  %1063 = vmatprep.mubr.bf16.mxu0 0
  %1064 = vmatmul.mubr.bf16.gmra.mrb[0].mxu0 %v999
  %v1065 = vpop.f32.mrb[0].mxu0
  %v1066 = vadd.f32 0.0, %v1065
  %v1067 = vpop.f32.mrb[0].mxu0
  %v1068 = vadd.f32 0.0, %v1067
  %v1069 = vpop.f32.mrb[0].mxu0
  %v1070 = vadd.f32 0.0, %v1069
  %v1071 = vpop.f32.mrb[0].mxu0
  %v1072 = vadd.f32 0.0, %v1071
  %1073 = vdwg.mxu0
  %v1074 = vadd.f32 %v923, %v1036
  %v1075 = vadd.f32 %v924, %v1038
  %v1076 = vadd.f32 %v925, %v1040
  %v1077 = vadd.f32 %v926, %v1042
  %v1078 = vadd.f32 %v927, %v1046
  %v1079 = vadd.f32 %v928, %v1048
  %v1080 = vadd.f32 %v929, %v1050
  %v1081 = vadd.f32 %v930, %v1052
  %v1082 = vadd.f32 %v931, %v1056
  %v1083 = vadd.f32 %v932, %v1058
  %v1084 = vadd.f32 %v933, %v1060
  %v1085 = vadd.f32 %v934, %v1062
  %v1086 = vadd.f32 %v935, %v1066
  %v1087 = vadd.f32 %v936, %v1068
  %v1088 = vadd.f32 %v937, %v1070
  %v1089 = vadd.f32 %v938, %v1072
  %s1090 = scalar_lea.vmem %s1, 224
  %v1091 = vld [vmem:[%s1090] sm:$0xf]
  %v1092 = vld [vmem:[%s1090 + $0x4] sm:$0xf]
  %v1093 = vld [vmem:[%s1090 + $0x8] sm:$0xf]
  %v1094 = vld [vmem:[%s1090 + $0xc] sm:$0xf]
  %v1095 = vld [vmem:[%s1090 + $0x10] sm:$0xf]
  %v1096 = vld [vmem:[%s1090 + $0x14] sm:$0xf]
  %v1097 = vld [vmem:[%s1090 + $0x18] sm:$0xf]
  %v1098 = vld [vmem:[%s1090 + $0x1c] sm:$0xf]
  %v1107 = vunpack.c.l.b16 %v1091
  %v1108 = vunpack.c.l.b16 %v1092
  %v1109 = vunpack.c.l.b16 %v1093
  %v1110 = vunpack.c.l.b16 %v1094
  %v1111 = vunpack.c.l.b16 %v1095
  %v1112 = vunpack.c.l.b16 %v1096
  %v1113 = vunpack.c.l.b16 %v1097
  %v1114 = vunpack.c.l.b16 %v1098
  %v1115 = vpack.c.b16 %v1108, %v1107
  %v1116 = vpack.c.b16 %v1110, %v1109
  %v1117 = vpack.c.b16 %v1112, %v1111
  %v1118 = vpack.c.b16 %v1114, %v1113
  %1119 = vrot.lane.b32.xlu0 %v97, 107
  %v1120 = vpop.permute.xlu0 %1119
  %1121 = vrot.lane.b32.xlu0 %v98, 107
  %v1122 = vpop.permute.xlu0 %1121
  %1123 = vrot.lane.b32.xlu0 %v99, 107
  %v1124 = vpop.permute.xlu0 %1123
  %1125 = vrot.lane.b32.xlu0 %v100, 107
  %v1126 = vpop.permute.xlu0 %1125
  %1127 = vrot.lane.b32.xlu0 %v101, 107
  %v1128 = vpop.permute.xlu0 %1127
  %1129 = vrot.lane.b32.xlu0 %v102, 107
  %v1130 = vpop.permute.xlu0 %1129
  %vm1131 = vcmask 875520
  %v1132 = vsel %vm1131, %v1120, %v1122
  %v1133 = vsel %vm1131, %v1122, %v1124
  %v1134 = vsel %vm1131, %v1126, %v1128
  %v1135 = vsel %vm1131, %v1128, %v1130
  %v1141 = vsel %vm124, %v1115, 0
  %v1144 = vsel %vm124, %v1116, 0
  %v1147 = vsel %vm124, %v1117, 0
  %v1150 = vsel %vm124, %v1118, 0
  %1152 = vmatprep.subr.bf16.mxu0 %v1133
  %1153 = vmatpush1.bf16.msra.mxu0 %v1132
  %1154 = vmatprep.subr.bf16.mxu0 %v1135
  %1155 = vmatpush1.bf16.msra.mxu0 %v1134
  %1156 = vmatprep.subr.bf16.mxu0 0
  %1157 = vmatpush1.bf16.msra.mxu0 0
  %1158 = vmatprep.subr.bf16.mxu0 0
  %1159 = vmatpush1.bf16.msra.mxu0 0
  %1160 = vmatprep.subr.bf16.mxu0 0
  %1161 = vmatpush1.bf16.msra.mxu0 0
  %1162 = vmatprep.subr.bf16.mxu0 0
  %1163 = vmatpush1.bf16.msra.mxu0 0
  %1164 = vmatprep.subr.bf16.mxu0 0
  %1165 = vmatpush1.bf16.msra.mxu0 0
  %1166 = vmatprep.subr.bf16.mxu0 0
  %1167 = vmatpush1.bf16.msra.mxu0 0
  %1168 = vmatprep.subr.bf16.mxu0 0
  %1169 = vmatpush1.bf16.msra.mxu0 0
  %1170 = vmatprep.subr.bf16.mxu0 0
  %1171 = vmatpush1.bf16.msra.mxu0 0
  %1172 = vmatprep.subr.bf16.mxu0 0
  %1173 = vmatpush1.bf16.msra.mxu0 0
  %1174 = vmatprep.subr.bf16.mxu0 0
  %1175 = vmatpush1.bf16.msra.mxu0 0
  %1176 = vmatprep.subr.bf16.mxu0 0
  %1177 = vmatpush1.bf16.msra.mxu0 0
  %1178 = vmatprep.subr.bf16.mxu0 0
  %1179 = vmatpush1.bf16.msra.mxu0 0
  %1180 = vmatprep.subr.bf16.mxu0 0
  %1181 = vmatpush1.bf16.msra.mxu0 0
  %1182 = vmatprep.subr.bf16.mxu0 0
  %1183 = vmatpush1.bf16.msra.mxu0 0
  %1184 = vmatprep.mubr.bf16.mxu0 0
  %1185 = vmatmul.mubr.bf16.gmra.mrb[0].mxu0 %v1141
  %v1186 = vpop.f32.mrb[0].mxu0
  %v1187 = vadd.f32 0.0, %v1186
  %v1188 = vpop.f32.mrb[0].mxu0
  %v1189 = vadd.f32 0.0, %v1188
  %v1190 = vpop.f32.mrb[0].mxu0
  %v1191 = vadd.f32 0.0, %v1190
  %v1192 = vpop.f32.mrb[0].mxu0
  %v1193 = vadd.f32 0.0, %v1192
  %1194 = vmatprep.mubr.bf16.mxu0 0
  %1195 = vmatmul.mubr.bf16.gmra.mrb[0].mxu0 %v1144
  %v1196 = vpop.f32.mrb[0].mxu0
  %v1197 = vadd.f32 0.0, %v1196
  %v1198 = vpop.f32.mrb[0].mxu0
  %v1199 = vadd.f32 0.0, %v1198
  %v1200 = vpop.f32.mrb[0].mxu0
  %v1201 = vadd.f32 0.0, %v1200
  %v1202 = vpop.f32.mrb[0].mxu0
  %v1203 = vadd.f32 0.0, %v1202
  %1204 = vmatprep.mubr.bf16.mxu0 0
  %1205 = vmatmul.mubr.bf16.gmra.mrb[0].mxu0 %v1147
  %v1206 = vpop.f32.mrb[0].mxu0
  %v1207 = vadd.f32 0.0, %v1206
  %v1208 = vpop.f32.mrb[0].mxu0
  %v1209 = vadd.f32 0.0, %v1208
  %v1210 = vpop.f32.mrb[0].mxu0
  %v1211 = vadd.f32 0.0, %v1210
  %v1212 = vpop.f32.mrb[0].mxu0
  %v1213 = vadd.f32 0.0, %v1212
  %1214 = vmatprep.mubr.bf16.mxu0 0
  %1215 = vmatmul.mubr.bf16.gmra.mrb[0].mxu0 %v1150
  %v1216 = vpop.f32.mrb[0].mxu0
  %v1217 = vadd.f32 0.0, %v1216
  %v1218 = vpop.f32.mrb[0].mxu0
  %v1219 = vadd.f32 0.0, %v1218
  %v1220 = vpop.f32.mrb[0].mxu0
  %v1221 = vadd.f32 0.0, %v1220
  %v1222 = vpop.f32.mrb[0].mxu0
  %v1223 = vadd.f32 0.0, %v1222
  %1224 = vdwg.mxu0
  %v1225 = vadd.f32 %v1074, %v1187
  %v1226 = vadd.f32 %v1075, %v1189
  %v1227 = vadd.f32 %v1076, %v1191
  %v1228 = vadd.f32 %v1077, %v1193
  %v1229 = vadd.f32 %v1078, %v1197
  %v1230 = vadd.f32 %v1079, %v1199
  %v1231 = vadd.f32 %v1080, %v1201
  %v1232 = vadd.f32 %v1081, %v1203
  %v1233 = vadd.f32 %v1082, %v1207
  %v1234 = vadd.f32 %v1083, %v1209
  %v1235 = vadd.f32 %v1084, %v1211
  %v1236 = vadd.f32 %v1085, %v1213
  %v1237 = vadd.f32 %v1086, %v1217
  %v1238 = vadd.f32 %v1087, %v1219
  %v1239 = vadd.f32 %v1088, %v1221
  %v1240 = vadd.f32 %v1089, %v1223
  %s1241 = scalar_lea.vmem %s1, 256
  %v1242 = vld [vmem:[%s1241] sm:$0xf]
  %v1243 = vld [vmem:[%s1241 + $0x4] sm:$0xf]
  %v1244 = vld [vmem:[%s1241 + $0x8] sm:$0xf]
  %v1245 = vld [vmem:[%s1241 + $0xc] sm:$0xf]
  %v1246 = vld [vmem:[%s1241 + $0x10] sm:$0xf]
  %v1247 = vld [vmem:[%s1241 + $0x14] sm:$0xf]
  %v1248 = vld [vmem:[%s1241 + $0x18] sm:$0xf]
  %v1249 = vld [vmem:[%s1241 + $0x1c] sm:$0xf]
  %v1258 = vunpack.c.l.b16 %v1242
  %v1259 = vunpack.c.l.b16 %v1243
  %v1260 = vunpack.c.l.b16 %v1244
  %v1261 = vunpack.c.l.b16 %v1245
  %v1262 = vunpack.c.l.b16 %v1246
  %v1263 = vunpack.c.l.b16 %v1247
  %v1264 = vunpack.c.l.b16 %v1248
  %v1265 = vunpack.c.l.b16 %v1249
  %v1266 = vpack.c.b16 %v1259, %v1258
  %v1267 = vpack.c.b16 %v1261, %v1260
  %v1268 = vpack.c.b16 %v1263, %v1262
  %v1269 = vpack.c.b16 %v1265, %v1264
  %1270 = vrot.lane.b32.xlu0 %v97, 106
  %v1271 = vpop.permute.xlu0 %1270
  %1272 = vrot.lane.b32.xlu0 %v98, 106
  %v1273 = vpop.permute.xlu0 %1272
  %1274 = vrot.lane.b32.xlu0 %v99, 106
  %v1275 = vpop.permute.xlu0 %1274
  %1276 = vrot.lane.b32.xlu0 %v100, 106
  %v1277 = vpop.permute.xlu0 %1276
  %1278 = vrot.lane.b32.xlu0 %v101, 106
  %v1279 = vpop.permute.xlu0 %1278
  %1280 = vrot.lane.b32.xlu0 %v102, 106
  %v1281 = vpop.permute.xlu0 %1280
  %vm1282 = vcmask 867328
  %v1283 = vsel %vm1282, %v1271, %v1273
  %v1284 = vsel %vm1282, %v1273, %v1275
  %v1285 = vsel %vm1282, %v1277, %v1279
  %v1286 = vsel %vm1282, %v1279, %v1281
  %v1292 = vsel %vm124, %v1266, 0
  %v1295 = vsel %vm124, %v1267, 0
  %v1298 = vsel %vm124, %v1268, 0
  %v1301 = vsel %vm124, %v1269, 0
  %1303 = vmatprep.subr.bf16.mxu0 %v1284
  %1304 = vmatpush1.bf16.msra.mxu0 %v1283
  %1305 = vmatprep.subr.bf16.mxu0 %v1286
  %1306 = vmatpush1.bf16.msra.mxu0 %v1285
  %1307 = vmatprep.subr.bf16.mxu0 0
  %1308 = vmatpush1.bf16.msra.mxu0 0
  %1309 = vmatprep.subr.bf16.mxu0 0
  %1310 = vmatpush1.bf16.msra.mxu0 0
  %1311 = vmatprep.subr.bf16.mxu0 0
  %1312 = vmatpush1.bf16.msra.mxu0 0
  %1313 = vmatprep.subr.bf16.mxu0 0
  %1314 = vmatpush1.bf16.msra.mxu0 0
  %1315 = vmatprep.subr.bf16.mxu0 0
  %1316 = vmatpush1.bf16.msra.mxu0 0
  %1317 = vmatprep.subr.bf16.mxu0 0
  %1318 = vmatpush1.bf16.msra.mxu0 0
  %1319 = vmatprep.subr.bf16.mxu0 0
  %1320 = vmatpush1.bf16.msra.mxu0 0
  %1321 = vmatprep.subr.bf16.mxu0 0
  %1322 = vmatpush1.bf16.msra.mxu0 0
  %1323 = vmatprep.subr.bf16.mxu0 0
  %1324 = vmatpush1.bf16.msra.mxu0 0
  %1325 = vmatprep.subr.bf16.mxu0 0
  %1326 = vmatpush1.bf16.msra.mxu0 0
  %1327 = vmatprep.subr.bf16.mxu0 0
  %1328 = vmatpush1.bf16.msra.mxu0 0
  %1329 = vmatprep.subr.bf16.mxu0 0
  %1330 = vmatpush1.bf16.msra.mxu0 0
  %1331 = vmatprep.subr.bf16.mxu0 0
  %1332 = vmatpush1.bf16.msra.mxu0 0
  %1333 = vmatprep.subr.bf16.mxu0 0
  %1334 = vmatpush1.bf16.msra.mxu0 0
  %1335 = vmatprep.mubr.bf16.mxu0 0
  %1336 = vmatmul.mubr.bf16.gmra.mrb[0].mxu0 %v1292
  %v1337 = vpop.f32.mrb[0].mxu0
  %v1338 = vadd.f32 0.0, %v1337
  %v1339 = vpop.f32.mrb[0].mxu0
  %v1340 = vadd.f32 0.0, %v1339
  %v1341 = vpop.f32.mrb[0].mxu0
  %v1342 = vadd.f32 0.0, %v1341
  %v1343 = vpop.f32.mrb[0].mxu0
  %v1344 = vadd.f32 0.0, %v1343
  %1345 = vmatprep.mubr.bf16.mxu0 0
  %1346 = vmatmul.mubr.bf16.gmra.mrb[0].mxu0 %v1295
  %v1347 = vpop.f32.mrb[0].mxu0
  %v1348 = vadd.f32 0.0, %v1347
  %v1349 = vpop.f32.mrb[0].mxu0
  %v1350 = vadd.f32 0.0, %v1349
  %v1351 = vpop.f32.mrb[0].mxu0
  %v1352 = vadd.f32 0.0, %v1351
  %v1353 = vpop.f32.mrb[0].mxu0
  %v1354 = vadd.f32 0.0, %v1353
  %1355 = vmatprep.mubr.bf16.mxu0 0
  %1356 = vmatmul.mubr.bf16.gmra.mrb[0].mxu0 %v1298
  %v1357 = vpop.f32.mrb[0].mxu0
  %v1358 = vadd.f32 0.0, %v1357
  %v1359 = vpop.f32.mrb[0].mxu0
  %v1360 = vadd.f32 0.0, %v1359
  %v1361 = vpop.f32.mrb[0].mxu0
  %v1362 = vadd.f32 0.0, %v1361
  %v1363 = vpop.f32.mrb[0].mxu0
  %v1364 = vadd.f32 0.0, %v1363
  %1365 = vmatprep.mubr.bf16.mxu0 0
  %1366 = vmatmul.mubr.bf16.gmra.mrb[0].mxu0 %v1301
  %v1367 = vpop.f32.mrb[0].mxu0
  %v1368 = vadd.f32 0.0, %v1367
  %v1369 = vpop.f32.mrb[0].mxu0
  %v1370 = vadd.f32 0.0, %v1369
  %v1371 = vpop.f32.mrb[0].mxu0
  %v1372 = vadd.f32 0.0, %v1371
  %v1373 = vpop.f32.mrb[0].mxu0
  %v1374 = vadd.f32 0.0, %v1373
  %1375 = vdwg.mxu0
  %v1376 = vadd.f32 %v1225, %v1338
  %v1377 = vadd.f32 %v1226, %v1340
  %v1378 = vadd.f32 %v1227, %v1342
  %v1379 = vadd.f32 %v1228, %v1344
  %v1380 = vadd.f32 %v1229, %v1348
  %v1381 = vadd.f32 %v1230, %v1350
  %v1382 = vadd.f32 %v1231, %v1352
  %v1383 = vadd.f32 %v1232, %v1354
  %v1384 = vadd.f32 %v1233, %v1358
  %v1385 = vadd.f32 %v1234, %v1360
  %v1386 = vadd.f32 %v1235, %v1362
  %v1387 = vadd.f32 %v1236, %v1364
  %v1388 = vadd.f32 %v1237, %v1368
  %v1389 = vadd.f32 %v1238, %v1370
  %v1390 = vadd.f32 %v1239, %v1372
  %v1391 = vadd.f32 %v1240, %v1374
  %s1392 = sld [smem:[#allocation2]]
  %v1393 = vstv %s1392
  %v1394 = vmul.f32 %v1376, %v1393
  %v1395 = vmul.f32 %v1377, %v1393
  %v1396 = vmul.f32 %v1378, %v1393
  %v1397 = vmul.f32 %v1379, %v1393
  %v1398 = vmul.f32 %v1380, %v1393
  %v1399 = vmul.f32 %v1381, %v1393
  %v1400 = vmul.f32 %v1382, %v1393
  %v1401 = vmul.f32 %v1383, %v1393
  %v1402 = vmul.f32 %v1384, %v1393
  %v1403 = vmul.f32 %v1385, %v1393
  %v1404 = vmul.f32 %v1386, %v1393
  %v1405 = vmul.f32 %v1387, %v1393
  %v1406 = vmul.f32 %v1388, %v1393
  %v1407 = vmul.f32 %v1389, %v1393
  %v1408 = vmul.f32 %v1390, %v1393
  %v1409 = vmul.f32 %v1391, %v1393
  %v1410 = vld [vmem:[%s2] sm:$0xff]
  %v1411 = vld [vmem:[%s2 + $0x8] sm:$0xff]
  %v1412 = vld [vmem:[%s2 + $0x10] sm:$0xff]
  %v1413 = vld [vmem:[%s2 + $0x18] sm:$0xff]
  %v1414 = vld [vmem:[%s2 + $0x20] sm:$0xff]
  %v1415 = vld [vmem:[%s2 + $0x28] sm:$0xff]
  %v1416 = vld [vmem:[%s2 + $0x30] sm:$0xff]
  %v1417 = vld [vmem:[%s2 + $0x38] sm:$0xff]
  %1419 = vset.pattern.permute.xlu0 0
  %1420 = vperm.xlu0 %1419, %v1410
  %v1421 = vpop.permute.xlu0 %1420
  %1424 = vset.pattern.permute.xlu0 0
  %1425 = vperm.xlu0 %1424, %v1411
  %v1426 = vpop.permute.xlu0 %1425
  %1429 = vset.pattern.permute.xlu0 0
  %1430 = vperm.xlu0 %1429, %v1412
  %v1431 = vpop.permute.xlu0 %1430
  %1434 = vset.pattern.permute.xlu0 0
  %1435 = vperm.xlu0 %1434, %v1413
  %v1436 = vpop.permute.xlu0 %1435
  %1439 = vset.pattern.permute.xlu0 0
  %1440 = vperm.xlu0 %1439, %v1414
  %v1441 = vpop.permute.xlu0 %1440
  %1444 = vset.pattern.permute.xlu0 0
  %1445 = vperm.xlu0 %1444, %v1415
  %v1446 = vpop.permute.xlu0 %1445
  %1449 = vset.pattern.permute.xlu0 0
  %1450 = vperm.xlu0 %1449, %v1416
  %v1451 = vpop.permute.xlu0 %1450
  %1454 = vset.pattern.permute.xlu0 0
  %1455 = vperm.xlu0 %1454, %v1417
  %v1456 = vpop.permute.xlu0 %1455
  %v1458 = vadd.f32 %v1394, %v1421
  %v1459 = vadd.f32 %v1395, %v1421
  %v1460 = vadd.f32 %v1396, %v1426
  %v1461 = vadd.f32 %v1397, %v1426
  %v1462 = vadd.f32 %v1398, %v1431
  %v1463 = vadd.f32 %v1399, %v1431
  %v1464 = vadd.f32 %v1400, %v1436
  %v1465 = vadd.f32 %v1401, %v1436
  %v1466 = vadd.f32 %v1402, %v1441
  %v1467 = vadd.f32 %v1403, %v1441
  %v1468 = vadd.f32 %v1404, %v1446
  %v1469 = vadd.f32 %v1405, %v1446
  %v1470 = vadd.f32 %v1406, %v1451
  %v1471 = vadd.f32 %v1407, %v1451
  %v1472 = vadd.f32 %v1408, %v1456
  %v1473 = vadd.f32 %v1409, %v1456
  %v1474 = vld [vmem:[%s6] sm:$0x3]
  %v1475 = vmul.f32 %v1458, %v1458
  %v1476 = vmul.f32 %v1459, %v1459
  %v1477 = vmul.f32 %v1460, %v1460
  %v1478 = vmul.f32 %v1461, %v1461
  %v1479 = vadd.f32 %v1458, %v1462
  %v1480 = vadd.f32 %v1459, %v1463
  %v1481 = vadd.f32 %v1460, %v1464
  %v1482 = vadd.f32 %v1461, %v1465
  %v1483 = vmul.f32 %v1462, %v1462
  %v1484 = vmul.f32 %v1463, %v1463
  %v1485 = vmul.f32 %v1464, %v1464
  %v1486 = vmul.f32 %v1465, %v1465
  %v1487 = vadd.f32 %v1475, %v1483
  %v1488 = vadd.f32 %v1476, %v1484
  %v1489 = vadd.f32 %v1477, %v1485
  %v1490 = vadd.f32 %v1478, %v1486
  %v1491 = vadd.f32 %v1479, %v1466
  %v1492 = vadd.f32 %v1480, %v1467
  %v1493 = vadd.f32 %v1481, %v1468
  %v1494 = vadd.f32 %v1482, %v1469
  %v1495 = vmul.f32 %v1466, %v1466
  %v1496 = vmul.f32 %v1467, %v1467
  %v1497 = vmul.f32 %v1468, %v1468
  %v1498 = vmul.f32 %v1469, %v1469
  %v1499 = vadd.f32 %v1487, %v1495
  %v1500 = vadd.f32 %v1488, %v1496
  %v1501 = vadd.f32 %v1489, %v1497
  %v1502 = vadd.f32 %v1490, %v1498
  %v1503 = vadd.f32 %v1491, %v1470
  %v1504 = vadd.f32 %v1492, %v1471
  %v1505 = vadd.f32 %v1493, %v1472
  %v1506 = vadd.f32 %v1494, %v1473
  %v1507 = vmul.f32 %v1470, %v1470
  %v1508 = vmul.f32 %v1471, %v1471
  %v1509 = vmul.f32 %v1472, %v1472
  %v1510 = vmul.f32 %v1473, %v1473
  %v1511 = vadd.f32 %v1499, %v1507
  %v1512 = vadd.f32 %v1500, %v1508
  %v1513 = vadd.f32 %v1501, %v1509
  %v1514 = vadd.f32 %v1502, %v1510
  %v1516 = vlaneseq
  %v1517 = vshrl.u32 %v1516, 7
  %v1518 = vsub.s32 0, %v1517
  %v1519 = vrot.slane %v1474, %v1518
  %v1520 = vlaneseq
  %v1521 = vshrl.u32 %v1520, 7
  %v1522 = vsub.s32 1, %v1521
  %v1523 = vrot.slane %v1474, %v1522
  %v1526 = vmul.f32 %v1503, %v1519
  %v1527 = vmul.f32 %v1504, %v1523
  %v1528 = vmul.f32 %v1505, %v1519
  %v1529 = vmul.f32 %v1506, %v1523
  %v1530 = vadd.f32 %v1526, %v1527
  %1531 = vadd.xlane.f32.xlu0 %v1530
  %v1532 = vpop.xlane.xlu0 %1531
  %v1533 = vadd.f32 %v1528, %v1529
  %1534 = vadd.xlane.f32.xlu0 %v1533
  %v1535 = vpop.xlane.xlu0 %1534
  %v1536 = vmul.f32 %v1532, 0.001953125
  %v1537 = vmul.f32 %v1535, 0.001953125
  %v1538 = vmul.f32 %v1511, %v1519
  %v1539 = vmul.f32 %v1512, %v1523
  %v1540 = vmul.f32 %v1513, %v1519
  %v1541 = vmul.f32 %v1514, %v1523
  %v1542 = vadd.f32 %v1538, %v1539
  %1543 = vadd.xlane.f32.xlu0 %v1542
  %v1544 = vpop.xlane.xlu0 %1543
  %v1545 = vadd.f32 %v1540, %v1541
  %1546 = vadd.xlane.f32.xlu0 %v1545
  %v1547 = vpop.xlane.xlu0 %1546
  %v1548 = vmul.f32 %v1544, 0.001953125
  %v1549 = vmul.f32 %v1547, 0.001953125
  %v1550 = vmul.f32 %v1536, %v1536
  %v1551 = vmul.f32 %v1537, %v1537
  %v1552 = vsub.f32 %v1548, %v1550
  %v1553 = vsub.f32 %v1549, %v1551
  %v1554 = vld [vmem:[%s4] sm:$0xff]
  %v1555 = vld [vmem:[%s4 + $0x8] sm:$0xff]
  %v1556 = vadd.f32 %v1552, 1e-05
  %v1557 = vadd.f32 %v1553, 1e-05
  %v1558 = vrsqrt.pop %v1556
  %v1559 = vrsqrt.pop %v1557
  %v1560 = vmul.f32 %v1554, %v1558
  %v1561 = vmul.f32 %v1555, %v1559
  %v1562 = vld [vmem:[%s5] sm:$0xff]
  %v1563 = vld [vmem:[%s5 + $0x8] sm:$0xff]
  %v1564 = vmul.f32 %v1536, %v1560
  %v1565 = vmul.f32 %v1537, %v1561
  %v1566 = vsub.f32 %v1562, %v1564
  %v1567 = vsub.f32 %v1563, %v1565
  %1569 = vset.pattern.permute.xlu0 0
  %1570 = vperm.xlu0 %1569, %v1560
  %v1571 = vpop.permute.xlu0 %1570
  %1574 = vset.pattern.permute.xlu0 0
  %1575 = vperm.xlu0 %1574, %v1561
  %v1576 = vpop.permute.xlu0 %1575
  %v1578 = vmul.f32 %v1458, %v1571
  %v1579 = vmul.f32 %v1459, %v1571
  %v1580 = vmul.f32 %v1460, %v1576
  %v1581 = vmul.f32 %v1461, %v1576
  %1583 = vset.pattern.permute.xlu0 0
  %1584 = vperm.xlu0 %1583, %v1566
  %v1585 = vpop.permute.xlu0 %1584
  %1588 = vset.pattern.permute.xlu0 0
  %1589 = vperm.xlu0 %1588, %v1567
  %v1590 = vpop.permute.xlu0 %1589
  %v1592 = vadd.f32 %v1578, %v1585
  %v1593 = vadd.f32 %v1579, %v1585
  %v1594 = vadd.f32 %v1580, %v1590
  %v1595 = vadd.f32 %v1581, %v1590
  %v1596 = vmax.f32 %v1592, 0.0
  %v1597 = vmax.f32 %v1593, 0.0
  %v1598 = vmax.f32 %v1594, 0.0
  %v1599 = vmax.f32 %v1595, 0.0
  %v1600 = vpack.c.bf16 %v1598, %v1596
  %v1601 = vpack.c.bf16 %v1599, %v1597
  %v1604 = vunpack.c.l.b16 %v1600
  %v1605 = vunpack.c.l.b16 %v1601
  %v1606 = vunpack.c.h.b16 %v1600
  %v1607 = vunpack.c.h.b16 %v1601
  %v1608 = vpack.c.b16 %v1605, %v1604
  %v1609 = vpack.c.b16 %v1607, %v1606
  %1612 = vst [vmem:[%s7] sm:$0xff] %v1608
  %1613 = vst [vmem:[%s7 + $0x8] sm:$0xff] %v1609
  %v1614 = vmul.f32 %v1462, %v1571
  %v1615 = vmul.f32 %v1463, %v1571
  %v1616 = vmul.f32 %v1464, %v1576
  %v1617 = vmul.f32 %v1465, %v1576
  %v1618 = vadd.f32 %v1614, %v1585
  %v1619 = vadd.f32 %v1615, %v1585
  %v1620 = vadd.f32 %v1616, %v1590
  %v1621 = vadd.f32 %v1617, %v1590
  %v1622 = vmax.f32 %v1618, 0.0
  %v1623 = vmax.f32 %v1619, 0.0
  %v1624 = vmax.f32 %v1620, 0.0
  %v1625 = vmax.f32 %v1621, 0.0
  %v1626 = vpack.c.bf16 %v1624, %v1622
  %v1627 = vpack.c.bf16 %v1625, %v1623
  %v1630 = vunpack.c.l.b16 %v1626
  %v1631 = vunpack.c.l.b16 %v1627
  %v1632 = vunpack.c.h.b16 %v1626
  %v1633 = vunpack.c.h.b16 %v1627
  %v1634 = vpack.c.b16 %v1631, %v1630
  %v1635 = vpack.c.b16 %v1633, %v1632
  %1638 = vst [vmem:[%s7 + $0x10] sm:$0xff] %v1634
  %1639 = vst [vmem:[%s7 + $0x18] sm:$0xff] %v1635
  %v1640 = vmul.f32 %v1466, %v1571
  %v1641 = vmul.f32 %v1467, %v1571
  %v1642 = vmul.f32 %v1468, %v1576
  %v1643 = vmul.f32 %v1469, %v1576
  %v1644 = vadd.f32 %v1640, %v1585
  %v1645 = vadd.f32 %v1641, %v1585
  %v1646 = vadd.f32 %v1642, %v1590
  %v1647 = vadd.f32 %v1643, %v1590
  %v1648 = vmax.f32 %v1644, 0.0
  %v1649 = vmax.f32 %v1645, 0.0
  %v1650 = vmax.f32 %v1646, 0.0
  %v1651 = vmax.f32 %v1647, 0.0
  %v1652 = vpack.c.bf16 %v1650, %v1648
  %v1653 = vpack.c.bf16 %v1651, %v1649
  %v1656 = vunpack.c.l.b16 %v1652
  %v1657 = vunpack.c.l.b16 %v1653
  %v1658 = vunpack.c.h.b16 %v1652
  %v1659 = vunpack.c.h.b16 %v1653
  %v1660 = vpack.c.b16 %v1657, %v1656
  %v1661 = vpack.c.b16 %v1659, %v1658
  %1664 = vst [vmem:[%s7 + $0x20] sm:$0xff] %v1660
  %1665 = vst [vmem:[%s7 + $0x28] sm:$0xff] %v1661
  %v1666 = vmul.f32 %v1470, %v1571
  %v1667 = vmul.f32 %v1471, %v1571
  %v1668 = vmul.f32 %v1472, %v1576
  %v1669 = vmul.f32 %v1473, %v1576
  %v1670 = vadd.f32 %v1666, %v1585
  %v1671 = vadd.f32 %v1667, %v1585
  %v1672 = vadd.f32 %v1668, %v1590
  %v1673 = vadd.f32 %v1669, %v1590
  %v1674 = vmax.f32 %v1670, 0.0
  %v1675 = vmax.f32 %v1671, 0.0
  %v1676 = vmax.f32 %v1672, 0.0
  %v1677 = vmax.f32 %v1673, 0.0
  %v1678 = vpack.c.bf16 %v1676, %v1674
  %v1679 = vpack.c.bf16 %v1677, %v1675
  %v1682 = vunpack.c.l.b16 %v1678
  %v1683 = vunpack.c.l.b16 %v1679
  %v1684 = vunpack.c.h.b16 %v1678
  %v1685 = vunpack.c.h.b16 %v1679
  %v1686 = vpack.c.b16 %v1683, %v1682
  %v1687 = vpack.c.b16 %v1685, %v1684
  %1690 = vst [vmem:[%s7 + $0x30] sm:$0xff] %v1686
  %1691 = vst [vmem:[%s7 + $0x38] sm:$0xff] %v1687
  // Predicated region
  $region30: #{generator_forward.6} parent=0 // pred_check
    _
  $region31: #{generator_forward.6} parent=0 // pred_check_branch
    %1693 = sbr.rel (0) target = $region33
  $region32: #{generator_forward.6} parent=0 // pred_region
    _
  $region33: #{generator_forward.6} parent=0 // pred_fallthru
    _
  // Predicated region
  $region34: #{generator_forward.6} parent=0 // pred_check
    _
  $region35: #{generator_forward.6} parent=0 // pred_check_branch
    %1695 = sbr.rel (0) target = $region37
  $region36: #{generator_forward.6} parent=0 // pred_region
    _
  $region37: #{generator_forward.6} parent=0 // pred_fallthru
    _

// kernel: generator_forward.7
$region0: #{generator_forward.7}
  #allocation0 [shape = 'u32[]', space=smem, size = 0x4, offset = 0x4, fixed_abs, tag = 'smem constant byte address 0x4 - core index']
  #allocation1 [shape = 'u32[144,128]{1,0:T(1,128)}', space=vmem, size = 0x12000, scoped, tag = 'internal scratch']
  %s0 = inlined_call_operand.vmem [shape: bf16[16,896], index: 0, kind: input, shape index: {}]
  %s1 = inlined_call_operand.vmem [shape: bf16[9,16,16], index: 1, kind: input, shape index: {}]
  %s2 = inlined_call_operand.vmem [shape: f32[16,1], index: 2, kind: input, shape index: {}]
  %s3 = inlined_call_operand.vmem [shape: f32[16,768], index: 3, kind: output, shape index: {}]
  %s4 = sld [smem:[#allocation0]]
  $region22: #{generator_forward.7} parent=0
    _
  %s6 = ssub.s32 1, %s4
  %s7 = scalar_select 0, %s6, %s4
  // Predicated region
  $region2: #{generator_forward.7} parent=0 // pred_check
    _
  $region3: #{generator_forward.7} parent=0 // pred_check_branch
    %9 = sbr.rel (0) target = $region5
  $region4: #{generator_forward.7} parent=0 // pred_region
    _
  $region5: #{generator_forward.7} parent=0 // pred_fallthru
    _
  // Predicated region
  $region6: #{generator_forward.7} parent=0 // pred_check
    _
  $region7: #{generator_forward.7} parent=0 // pred_check_branch
    %11 = sbr.rel (0) target = $region9
  $region8: #{generator_forward.7} parent=0 // pred_region
    _
  $region9: #{generator_forward.7} parent=0 // pred_fallthru
    _
  // Predicated region
  $region10: #{generator_forward.7} parent=0 // pred_check
    _
  $region11: #{generator_forward.7} parent=0 // pred_check_branch
    %13 = sbr.rel (0) target = $region13
  $region12: #{generator_forward.7} parent=0 // pred_region
    _
  $region13: #{generator_forward.7} parent=0 // pred_fallthru
    _
  %v15 = vld [vmem:[%s1] sm:$0xf]
  %v16 = vld [vmem:[%s1 + $0x4] sm:$0xf]
  %v17 = vld [vmem:[%s0] sm:$0xff]
  %v18 = vld [vmem:[%s0 + $0x8] sm:$0xff]
  %v19 = vld [vmem:[%s0 + $0x10] sm:$0xff]
  %v20 = vld [vmem:[%s0 + $0x1c] sm:$0xff]
  %v21 = vld [vmem:[%s0 + $0x24] sm:$0xff]
  %v22 = vld [vmem:[%s0 + $0x2c] sm:$0xff]
  %s23 = scalar_lea.vmem %s1, 8
  %v24 = vld [vmem:[%s23] sm:$0xf]
  %v25 = vld [vmem:[%s23 + $0x4] sm:$0xf]
  %v26 = vld [vmem:[%s0] sm:$0xff]
  %v27 = vld [vmem:[%s0 + $0x8] sm:$0xff]
  %v28 = vld [vmem:[%s0 + $0x10] sm:$0xff]
  %v29 = vld [vmem:[%s0 + $0x18] sm:$0xf]
  %v30 = vld [vmem:[%s0 + $0x1c] sm:$0xff]
  %v31 = vld [vmem:[%s0 + $0x24] sm:$0xff]
  %v32 = vld [vmem:[%s0 + $0x2c] sm:$0xff]
  %v33 = vld [vmem:[%s0 + $0x34] sm:$0xf]
  %v36 = vunpack.c.l.b16 %v24
  %v37 = vunpack.c.l.b16 %v25
  %v38 = vpack.c.b16 %v37, %v36
  %v47 = vunpack.c.l.b16 %v26
  %v48 = vunpack.c.h.b16 %v26
  %v49 = vunpack.c.l.b16 %v27
  %v50 = vunpack.c.h.b16 %v27
  %v51 = vunpack.c.l.b16 %v28
  %v52 = vunpack.c.h.b16 %v28
  %v53 = vunpack.c.l.b16 %v29
  %v54 = vunpack.c.l.b16 %v30
  %v55 = vunpack.c.h.b16 %v30
  %v56 = vunpack.c.l.b16 %v31
  %v57 = vunpack.c.h.b16 %v31
  %v58 = vunpack.c.l.b16 %v32
  %v59 = vunpack.c.h.b16 %v32
  %v60 = vunpack.c.l.b16 %v33
  %v61 = vpack.c.b16 %v54, %v47
  %v62 = vpack.c.b16 %v55, %v48
  %v63 = vpack.c.b16 %v56, %v49
  %v64 = vpack.c.b16 %v57, %v50
  %v65 = vpack.c.b16 %v58, %v51
  %v66 = vpack.c.b16 %v59, %v52
  %v67 = vpack.c.b16 %v60, %v53
  %68 = vrot.lane.b32.xlu0 %v61, 127
  %v69 = vpop.permute.xlu0 %68
  %70 = vrot.lane.b32.xlu0 %v62, 127
  %v71 = vpop.permute.xlu0 %70
  %72 = vrot.lane.b32.xlu0 %v63, 127
  %v73 = vpop.permute.xlu0 %72
  %74 = vrot.lane.b32.xlu0 %v64, 127
  %v75 = vpop.permute.xlu0 %74
  %76 = vrot.lane.b32.xlu0 %v65, 127
  %v77 = vpop.permute.xlu0 %76
  %78 = vrot.lane.b32.xlu0 %v66, 127
  %v79 = vpop.permute.xlu0 %78
  %80 = vrot.lane.b32.xlu0 %v67, 127
  %v81 = vpop.permute.xlu0 %80
  %vm82 = vcmask 1039360
  %v83 = vsel %vm82, %v69, %v71
  %v84 = vsel %vm82, %v71, %v73
  %v85 = vsel %vm82, %v73, %v75
  %v86 = vsel %vm82, %v75, %v77
  %v87 = vsel %vm82, %v77, %v79
  %v88 = vsel %vm82, %v79, %v81
  %vm95 = vcmask 130048
  %v97 = vsel %vm95, %v38, 0
  %99 = vmatprep.subr.bf16.mxu0 %v84
  %100 = vmatpush1.bf16.msra.mxu0 %v83
  %101 = vmatprep.subr.bf16.mxu0 0
  %102 = vmatpush1.bf16.msra.mxu0 0
  %103 = vmatprep.subr.bf16.mxu0 0
  %104 = vmatpush1.bf16.msra.mxu0 0
  %105 = vmatprep.subr.bf16.mxu0 0
  %106 = vmatpush1.bf16.msra.mxu0 0
  %107 = vmatprep.subr.bf16.mxu0 0
  %108 = vmatpush1.bf16.msra.mxu0 0
  %109 = vmatprep.subr.bf16.mxu0 0
  %110 = vmatpush1.bf16.msra.mxu0 0
  %111 = vmatprep.subr.bf16.mxu0 0
  %112 = vmatpush1.bf16.msra.mxu0 0
  %113 = vmatprep.subr.bf16.mxu0 0
  %114 = vmatpush1.bf16.msra.mxu0 0
  %115 = vmatprep.subr.bf16.mxu0 0
  %116 = vmatpush1.bf16.msra.mxu0 0
  %117 = vmatprep.subr.bf16.mxu0 0
  %118 = vmatpush1.bf16.msra.mxu0 0
  %119 = vmatprep.subr.bf16.mxu0 0
  %120 = vmatpush1.bf16.msra.mxu0 0
  %121 = vmatprep.subr.bf16.mxu0 0
  %122 = vmatpush1.bf16.msra.mxu0 0
  %123 = vmatprep.subr.bf16.mxu0 0
  %124 = vmatpush1.bf16.msra.mxu0 0
  %125 = vmatprep.subr.bf16.mxu0 0
  %126 = vmatpush1.bf16.msra.mxu0 0
  %127 = vmatprep.subr.bf16.mxu0 0
  %128 = vmatpush1.bf16.msra.mxu0 0
  %129 = vmatprep.subr.bf16.mxu0 0
  %130 = vmatpush1.bf16.msra.mxu0 0
  %131 = vmatprep.mubr.bf16.mxu0 0
  %132 = vmatmul.mubr.bf16.gmra.mrb[0].mxu0 %v97
  %v133 = vpop.f32.mrb[0].mxu0
  %v134 = vadd.f32 0.0, %v133
  %v135 = vpop.f32.mrb[0].mxu0
  %v136 = vadd.f32 0.0, %v135
  %v137 = vpop.f32.mrb[0].mxu0
  %v138 = vadd.f32 0.0, %v137
  %v139 = vpop.f32.mrb[0].mxu0
  %v140 = vadd.f32 0.0, %v139
  %141 = vdwg.mxu0
  %142 = vmatprep.subr.bf16.mxu0 %v86
  %143 = vmatpush1.bf16.msra.mxu0 %v85
  %144 = vmatprep.subr.bf16.mxu0 0
  %145 = vmatpush1.bf16.msra.mxu0 0
  %146 = vmatprep.subr.bf16.mxu0 0
  %147 = vmatpush1.bf16.msra.mxu0 0
  %148 = vmatprep.subr.bf16.mxu0 0
  %149 = vmatpush1.bf16.msra.mxu0 0
  %150 = vmatprep.subr.bf16.mxu0 0
  %151 = vmatpush1.bf16.msra.mxu0 0
  %152 = vmatprep.subr.bf16.mxu0 0
  %153 = vmatpush1.bf16.msra.mxu0 0
  %154 = vmatprep.subr.bf16.mxu0 0
  %155 = vmatpush1.bf16.msra.mxu0 0
  %156 = vmatprep.subr.bf16.mxu0 0
  %157 = vmatpush1.bf16.msra.mxu0 0
  %158 = vmatprep.subr.bf16.mxu0 0
  %159 = vmatpush1.bf16.msra.mxu0 0
  %160 = vmatprep.subr.bf16.mxu0 0
  %161 = vmatpush1.bf16.msra.mxu0 0
  %162 = vmatprep.subr.bf16.mxu0 0
  %163 = vmatpush1.bf16.msra.mxu0 0
  %164 = vmatprep.subr.bf16.mxu0 0
  %165 = vmatpush1.bf16.msra.mxu0 0
  %166 = vmatprep.subr.bf16.mxu0 0
  %167 = vmatpush1.bf16.msra.mxu0 0
  %168 = vmatprep.subr.bf16.mxu0 0
  %169 = vmatpush1.bf16.msra.mxu0 0
  %170 = vmatprep.subr.bf16.mxu0 0
  %171 = vmatpush1.bf16.msra.mxu0 0
  %172 = vmatprep.subr.bf16.mxu0 0
  %173 = vmatpush1.bf16.msra.mxu0 0
  %174 = vmatprep.mubr.bf16.mxu0 0
  %175 = vmatmul.mubr.bf16.gmra.mrb[0].mxu0 %v97
  %v176 = vpop.f32.mrb[0].mxu0
  %v177 = vadd.f32 0.0, %v176
  %v178 = vpop.f32.mrb[0].mxu0
  %v179 = vadd.f32 0.0, %v178
  %v180 = vpop.f32.mrb[0].mxu0
  %v181 = vadd.f32 0.0, %v180
  %v182 = vpop.f32.mrb[0].mxu0
  %v183 = vadd.f32 0.0, %v182
  %184 = vdwg.mxu0
  %185 = vmatprep.subr.bf16.mxu0 %v88
  %186 = vmatpush1.bf16.msra.mxu0 %v87
  %187 = vmatprep.subr.bf16.mxu0 0
  %188 = vmatpush1.bf16.msra.mxu0 0
  %189 = vmatprep.subr.bf16.mxu0 0
  %190 = vmatpush1.bf16.msra.mxu0 0
  %191 = vmatprep.subr.bf16.mxu0 0
  %192 = vmatpush1.bf16.msra.mxu0 0
  %193 = vmatprep.subr.bf16.mxu0 0
  %194 = vmatpush1.bf16.msra.mxu0 0
  %195 = vmatprep.subr.bf16.mxu0 0
  %196 = vmatpush1.bf16.msra.mxu0 0
  %197 = vmatprep.subr.bf16.mxu0 0
  %198 = vmatpush1.bf16.msra.mxu0 0
  %199 = vmatprep.subr.bf16.mxu0 0
  %200 = vmatpush1.bf16.msra.mxu0 0
  %201 = vmatprep.subr.bf16.mxu0 0
  %202 = vmatpush1.bf16.msra.mxu0 0
  %203 = vmatprep.subr.bf16.mxu0 0
  %204 = vmatpush1.bf16.msra.mxu0 0
  %205 = vmatprep.subr.bf16.mxu0 0
  %206 = vmatpush1.bf16.msra.mxu0 0
  %207 = vmatprep.subr.bf16.mxu0 0
  %208 = vmatpush1.bf16.msra.mxu0 0
  %209 = vmatprep.subr.bf16.mxu0 0
  %210 = vmatpush1.bf16.msra.mxu0 0
  %211 = vmatprep.subr.bf16.mxu0 0
  %212 = vmatpush1.bf16.msra.mxu0 0
  %213 = vmatprep.subr.bf16.mxu0 0
  %214 = vmatpush1.bf16.msra.mxu0 0
  %215 = vmatprep.subr.bf16.mxu0 0
  %216 = vmatpush1.bf16.msra.mxu0 0
  %217 = vmatprep.mubr.bf16.mxu0 0
  %218 = vmatmul.mubr.bf16.gmra.mrb[0].mxu0 %v97
  %v219 = vpop.f32.mrb[0].mxu0
  %v220 = vadd.f32 0.0, %v219
  %v221 = vpop.f32.mrb[0].mxu0
  %v222 = vadd.f32 0.0, %v221
  %v223 = vpop.f32.mrb[0].mxu0
  %v224 = vadd.f32 0.0, %v223
  %v225 = vpop.f32.mrb[0].mxu0
  %v226 = vadd.f32 0.0, %v225
  %227 = vdwg.mxu0
  %v230 = vunpack.c.l.b16 %v15
  %v231 = vunpack.c.l.b16 %v16
  %v232 = vpack.c.b16 %v231, %v230
  %v239 = vunpack.c.l.b16 %v17
  %v240 = vunpack.c.h.b16 %v17
  %v241 = vunpack.c.l.b16 %v18
  %v242 = vunpack.c.h.b16 %v18
  %v243 = vunpack.c.l.b16 %v19
  %v244 = vunpack.c.h.b16 %v19
  %v245 = vunpack.c.l.b16 %v20
  %v246 = vunpack.c.h.b16 %v20
  %v247 = vunpack.c.l.b16 %v21
  %v248 = vunpack.c.h.b16 %v21
  %v249 = vunpack.c.l.b16 %v22
  %v250 = vunpack.c.h.b16 %v22
  %v251 = vpack.c.b16 %v245, %v239
  %v252 = vpack.c.b16 %v246, %v240
  %v253 = vpack.c.b16 %v247, %v241
  %v254 = vpack.c.b16 %v248, %v242
  %v255 = vpack.c.b16 %v249, %v243
  %v256 = vpack.c.b16 %v250, %v244
  %v264 = vsel %vm95, %v232, 0
  %266 = vmatprep.subr.bf16.mxu0 %v252
  %267 = vmatpush1.bf16.msra.mxu0 %v251
  %268 = vmatprep.subr.bf16.mxu0 0
  %269 = vmatpush1.bf16.msra.mxu0 0
  %270 = vmatprep.subr.bf16.mxu0 0
  %271 = vmatpush1.bf16.msra.mxu0 0
  %272 = vmatprep.subr.bf16.mxu0 0
  %273 = vmatpush1.bf16.msra.mxu0 0
  %274 = vmatprep.subr.bf16.mxu0 0
  %275 = vmatpush1.bf16.msra.mxu0 0
  %276 = vmatprep.subr.bf16.mxu0 0
  %277 = vmatpush1.bf16.msra.mxu0 0
  %278 = vmatprep.subr.bf16.mxu0 0
  %279 = vmatpush1.bf16.msra.mxu0 0
  %280 = vmatprep.subr.bf16.mxu0 0
  %281 = vmatpush1.bf16.msra.mxu0 0
  %282 = vmatprep.subr.bf16.mxu0 0
  %283 = vmatpush1.bf16.msra.mxu0 0
  %284 = vmatprep.subr.bf16.mxu0 0
  %285 = vmatpush1.bf16.msra.mxu0 0
  %286 = vmatprep.subr.bf16.mxu0 0
  %287 = vmatpush1.bf16.msra.mxu0 0
  %288 = vmatprep.subr.bf16.mxu0 0
  %289 = vmatpush1.bf16.msra.mxu0 0
  %290 = vmatprep.subr.bf16.mxu0 0
  %291 = vmatpush1.bf16.msra.mxu0 0
  %292 = vmatprep.subr.bf16.mxu0 0
  %293 = vmatpush1.bf16.msra.mxu0 0
  %294 = vmatprep.subr.bf16.mxu0 0
  %295 = vmatpush1.bf16.msra.mxu0 0
  %296 = vmatprep.subr.bf16.mxu0 0
  %297 = vmatpush1.bf16.msra.mxu0 0
  %298 = vmatprep.mubr.bf16.mxu0 0
  %299 = vmatmul.mubr.bf16.gmra.mrb[0].mxu0 %v264
  %v300 = vpop.f32.mrb[0].mxu0
  %v301 = vadd.f32 %v134, %v300
  %v302 = vpop.f32.mrb[0].mxu0
  %v303 = vadd.f32 %v136, %v302
  %v304 = vpop.f32.mrb[0].mxu0
  %v305 = vadd.f32 %v138, %v304
  %v306 = vpop.f32.mrb[0].mxu0
  %v307 = vadd.f32 %v140, %v306
  %308 = vdwg.mxu0
  %309 = vmatprep.subr.bf16.mxu0 %v254
  %310 = vmatpush1.bf16.msra.mxu0 %v253
  %311 = vmatprep.subr.bf16.mxu0 0
  %312 = vmatpush1.bf16.msra.mxu0 0
  %313 = vmatprep.subr.bf16.mxu0 0
  %314 = vmatpush1.bf16.msra.mxu0 0
  %315 = vmatprep.subr.bf16.mxu0 0
  %316 = vmatpush1.bf16.msra.mxu0 0
  %317 = vmatprep.subr.bf16.mxu0 0
  %318 = vmatpush1.bf16.msra.mxu0 0
  %319 = vmatprep.subr.bf16.mxu0 0
  %320 = vmatpush1.bf16.msra.mxu0 0
  %321 = vmatprep.subr.bf16.mxu0 0
  %322 = vmatpush1.bf16.msra.mxu0 0
  %323 = vmatprep.subr.bf16.mxu0 0
  %324 = vmatpush1.bf16.msra.mxu0 0
  %325 = vmatprep.subr.bf16.mxu0 0
  %326 = vmatpush1.bf16.msra.mxu0 0
  %327 = vmatprep.subr.bf16.mxu0 0
  %328 = vmatpush1.bf16.msra.mxu0 0
  %329 = vmatprep.subr.bf16.mxu0 0
  %330 = vmatpush1.bf16.msra.mxu0 0
  %331 = vmatprep.subr.bf16.mxu0 0
  %332 = vmatpush1.bf16.msra.mxu0 0
  %333 = vmatprep.subr.bf16.mxu0 0
  %334 = vmatpush1.bf16.msra.mxu0 0
  %335 = vmatprep.subr.bf16.mxu0 0
  %336 = vmatpush1.bf16.msra.mxu0 0
  %337 = vmatprep.subr.bf16.mxu0 0
  %338 = vmatpush1.bf16.msra.mxu0 0
  %339 = vmatprep.subr.bf16.mxu0 0
  %340 = vmatpush1.bf16.msra.mxu0 0
  %341 = vmatprep.mubr.bf16.mxu0 0
  %342 = vmatmul.mubr.bf16.gmra.mrb[0].mxu0 %v264
  %v343 = vpop.f32.mrb[0].mxu0
  %v344 = vadd.f32 %v177, %v343
  %v345 = vpop.f32.mrb[0].mxu0
  %v346 = vadd.f32 %v179, %v345
  %v347 = vpop.f32.mrb[0].mxu0
  %v348 = vadd.f32 %v181, %v347
  %v349 = vpop.f32.mrb[0].mxu0
  %v350 = vadd.f32 %v183, %v349
  %351 = vdwg.mxu0
  %352 = vmatprep.subr.bf16.mxu0 %v256
  %353 = vmatpush1.bf16.msra.mxu0 %v255
  %354 = vmatprep.subr.bf16.mxu0 0
  %355 = vmatpush1.bf16.msra.mxu0 0
  %356 = vmatprep.subr.bf16.mxu0 0
  %357 = vmatpush1.bf16.msra.mxu0 0
  %358 = vmatprep.subr.bf16.mxu0 0
  %359 = vmatpush1.bf16.msra.mxu0 0
  %360 = vmatprep.subr.bf16.mxu0 0
  %361 = vmatpush1.bf16.msra.mxu0 0
  %362 = vmatprep.subr.bf16.mxu0 0
  %363 = vmatpush1.bf16.msra.mxu0 0
  %364 = vmatprep.subr.bf16.mxu0 0
  %365 = vmatpush1.bf16.msra.mxu0 0
  %366 = vmatprep.subr.bf16.mxu0 0
  %367 = vmatpush1.bf16.msra.mxu0 0
  %368 = vmatprep.subr.bf16.mxu0 0
  %369 = vmatpush1.bf16.msra.mxu0 0
  %370 = vmatprep.subr.bf16.mxu0 0
  %371 = vmatpush1.bf16.msra.mxu0 0
  %372 = vmatprep.subr.bf16.mxu0 0
  %373 = vmatpush1.bf16.msra.mxu0 0
  %374 = vmatprep.subr.bf16.mxu0 0
  %375 = vmatpush1.bf16.msra.mxu0 0
  %376 = vmatprep.subr.bf16.mxu0 0
  %377 = vmatpush1.bf16.msra.mxu0 0
  %378 = vmatprep.subr.bf16.mxu0 0
  %379 = vmatpush1.bf16.msra.mxu0 0
  %380 = vmatprep.subr.bf16.mxu0 0
  %381 = vmatpush1.bf16.msra.mxu0 0
  %382 = vmatprep.subr.bf16.mxu0 0
  %383 = vmatpush1.bf16.msra.mxu0 0
  %384 = vmatprep.mubr.bf16.mxu0 0
  %385 = vmatmul.mubr.bf16.gmra.mrb[0].mxu0 %v264
  %v386 = vpop.f32.mrb[0].mxu0
  %v387 = vadd.f32 %v220, %v386
  %v388 = vpop.f32.mrb[0].mxu0
  %v389 = vadd.f32 %v222, %v388
  %v390 = vpop.f32.mrb[0].mxu0
  %v391 = vadd.f32 %v224, %v390
  %v392 = vpop.f32.mrb[0].mxu0
  %v393 = vadd.f32 %v226, %v392
  %394 = vdwg.mxu0
  %s395 = scalar_lea.vmem %s1, 16
  %v396 = vld [vmem:[%s395] sm:$0xf]
  %v397 = vld [vmem:[%s395 + $0x4] sm:$0xf]
  %v400 = vunpack.c.l.b16 %v396
  %v401 = vunpack.c.l.b16 %v397
  %v402 = vpack.c.b16 %v401, %v400
  %403 = vrot.lane.b32.xlu0 %v61, 126
  %v404 = vpop.permute.xlu0 %403
  %405 = vrot.lane.b32.xlu0 %v62, 126
  %v406 = vpop.permute.xlu0 %405
  %407 = vrot.lane.b32.xlu0 %v63, 126
  %v408 = vpop.permute.xlu0 %407
  %409 = vrot.lane.b32.xlu0 %v64, 126
  %v410 = vpop.permute.xlu0 %409
  %411 = vrot.lane.b32.xlu0 %v65, 126
  %v412 = vpop.permute.xlu0 %411
  %413 = vrot.lane.b32.xlu0 %v66, 126
  %v414 = vpop.permute.xlu0 %413
  %415 = vrot.lane.b32.xlu0 %v67, 126
  %v416 = vpop.permute.xlu0 %415
  %vm417 = vcmask 1031168
  %v418 = vsel %vm417, %v404, %v406
  %v419 = vsel %vm417, %v406, %v408
  %v420 = vsel %vm417, %v408, %v410
  %v421 = vsel %vm417, %v410, %v412
  %v422 = vsel %vm417, %v412, %v414
  %v423 = vsel %vm417, %v414, %v416
  %v431 = vsel %vm95, %v402, 0
  %433 = vmatprep.subr.bf16.mxu0 %v419
  %434 = vmatpush1.bf16.msra.mxu0 %v418
  %435 = vmatprep.subr.bf16.mxu0 0
  %436 = vmatpush1.bf16.msra.mxu0 0
  %437 = vmatprep.subr.bf16.mxu0 0
  %438 = vmatpush1.bf16.msra.mxu0 0
  %439 = vmatprep.subr.bf16.mxu0 0
  %440 = vmatpush1.bf16.msra.mxu0 0
  %441 = vmatprep.subr.bf16.mxu0 0
  %442 = vmatpush1.bf16.msra.mxu0 0
  %443 = vmatprep.subr.bf16.mxu0 0
  %444 = vmatpush1.bf16.msra.mxu0 0
  %445 = vmatprep.subr.bf16.mxu0 0
  %446 = vmatpush1.bf16.msra.mxu0 0
  %447 = vmatprep.subr.bf16.mxu0 0
  %448 = vmatpush1.bf16.msra.mxu0 0
  %449 = vmatprep.subr.bf16.mxu0 0
  %450 = vmatpush1.bf16.msra.mxu0 0
  %451 = vmatprep.subr.bf16.mxu0 0
  %452 = vmatpush1.bf16.msra.mxu0 0
  %453 = vmatprep.subr.bf16.mxu0 0
  %454 = vmatpush1.bf16.msra.mxu0 0
  %455 = vmatprep.subr.bf16.mxu0 0
  %456 = vmatpush1.bf16.msra.mxu0 0
  %457 = vmatprep.subr.bf16.mxu0 0
  %458 = vmatpush1.bf16.msra.mxu0 0
  %459 = vmatprep.subr.bf16.mxu0 0
  %460 = vmatpush1.bf16.msra.mxu0 0
  %461 = vmatprep.subr.bf16.mxu0 0
  %462 = vmatpush1.bf16.msra.mxu0 0
  %463 = vmatprep.subr.bf16.mxu0 0
  %464 = vmatpush1.bf16.msra.mxu0 0
  %465 = vmatprep.mubr.bf16.mxu0 0
  %466 = vmatmul.mubr.bf16.gmra.mrb[0].mxu0 %v431
  %v467 = vpop.f32.mrb[0].mxu0
  %v468 = vadd.f32 0.0, %v467
  %v469 = vpop.f32.mrb[0].mxu0
  %v470 = vadd.f32 0.0, %v469
  %v471 = vpop.f32.mrb[0].mxu0
  %v472 = vadd.f32 0.0, %v471
  %v473 = vpop.f32.mrb[0].mxu0
  %v474 = vadd.f32 0.0, %v473
  %475 = vdwg.mxu0
  %476 = vmatprep.subr.bf16.mxu0 %v421
  %477 = vmatpush1.bf16.msra.mxu0 %v420
  %478 = vmatprep.subr.bf16.mxu0 0
  %479 = vmatpush1.bf16.msra.mxu0 0
  %480 = vmatprep.subr.bf16.mxu0 0
  %481 = vmatpush1.bf16.msra.mxu0 0
  %482 = vmatprep.subr.bf16.mxu0 0
  %483 = vmatpush1.bf16.msra.mxu0 0
  %484 = vmatprep.subr.bf16.mxu0 0
  %485 = vmatpush1.bf16.msra.mxu0 0
  %486 = vmatprep.subr.bf16.mxu0 0
  %487 = vmatpush1.bf16.msra.mxu0 0
  %488 = vmatprep.subr.bf16.mxu0 0
  %489 = vmatpush1.bf16.msra.mxu0 0
  %490 = vmatprep.subr.bf16.mxu0 0
  %491 = vmatpush1.bf16.msra.mxu0 0
  %492 = vmatprep.subr.bf16.mxu0 0
  %493 = vmatpush1.bf16.msra.mxu0 0
  %494 = vmatprep.subr.bf16.mxu0 0
  %495 = vmatpush1.bf16.msra.mxu0 0
  %496 = vmatprep.subr.bf16.mxu0 0
  %497 = vmatpush1.bf16.msra.mxu0 0
  %498 = vmatprep.subr.bf16.mxu0 0
  %499 = vmatpush1.bf16.msra.mxu0 0
  %500 = vmatprep.subr.bf16.mxu0 0
  %501 = vmatpush1.bf16.msra.mxu0 0
  %502 = vmatprep.subr.bf16.mxu0 0
  %503 = vmatpush1.bf16.msra.mxu0 0
  %504 = vmatprep.subr.bf16.mxu0 0
  %505 = vmatpush1.bf16.msra.mxu0 0
  %506 = vmatprep.subr.bf16.mxu0 0
  %507 = vmatpush1.bf16.msra.mxu0 0
  %508 = vmatprep.mubr.bf16.mxu0 0
  %509 = vmatmul.mubr.bf16.gmra.mrb[0].mxu0 %v431
  %v510 = vpop.f32.mrb[0].mxu0
  %v511 = vadd.f32 0.0, %v510
  %v512 = vpop.f32.mrb[0].mxu0
  %v513 = vadd.f32 0.0, %v512
  %v514 = vpop.f32.mrb[0].mxu0
  %v515 = vadd.f32 0.0, %v514
  %v516 = vpop.f32.mrb[0].mxu0
  %v517 = vadd.f32 0.0, %v516
  %518 = vdwg.mxu0
  %519 = vmatprep.subr.bf16.mxu0 %v423
  %520 = vmatpush1.bf16.msra.mxu0 %v422
  %521 = vmatprep.subr.bf16.mxu0 0
  %522 = vmatpush1.bf16.msra.mxu0 0
  %523 = vmatprep.subr.bf16.mxu0 0
  %524 = vmatpush1.bf16.msra.mxu0 0
  %525 = vmatprep.subr.bf16.mxu0 0
  %526 = vmatpush1.bf16.msra.mxu0 0
  %527 = vmatprep.subr.bf16.mxu0 0
  %528 = vmatpush1.bf16.msra.mxu0 0
  %529 = vmatprep.subr.bf16.mxu0 0
  %530 = vmatpush1.bf16.msra.mxu0 0
  %531 = vmatprep.subr.bf16.mxu0 0
  %532 = vmatpush1.bf16.msra.mxu0 0
  %533 = vmatprep.subr.bf16.mxu0 0
  %534 = vmatpush1.bf16.msra.mxu0 0
  %535 = vmatprep.subr.bf16.mxu0 0
  %536 = vmatpush1.bf16.msra.mxu0 0
  %537 = vmatprep.subr.bf16.mxu0 0
  %538 = vmatpush1.bf16.msra.mxu0 0
  %539 = vmatprep.subr.bf16.mxu0 0
  %540 = vmatpush1.bf16.msra.mxu0 0
  %541 = vmatprep.subr.bf16.mxu0 0
  %542 = vmatpush1.bf16.msra.mxu0 0
  %543 = vmatprep.subr.bf16.mxu0 0
  %544 = vmatpush1.bf16.msra.mxu0 0
  %545 = vmatprep.subr.bf16.mxu0 0
  %546 = vmatpush1.bf16.msra.mxu0 0
  %547 = vmatprep.subr.bf16.mxu0 0
  %548 = vmatpush1.bf16.msra.mxu0 0
  %549 = vmatprep.subr.bf16.mxu0 0
  %550 = vmatpush1.bf16.msra.mxu0 0
  %551 = vmatprep.mubr.bf16.mxu0 0
  %552 = vmatmul.mubr.bf16.gmra.mrb[0].mxu0 %v431
  %v553 = vpop.f32.mrb[0].mxu0
  %v554 = vadd.f32 0.0, %v553
  %v555 = vpop.f32.mrb[0].mxu0
  %v556 = vadd.f32 0.0, %v555
  %v557 = vpop.f32.mrb[0].mxu0
  %v558 = vadd.f32 0.0, %v557
  %v559 = vpop.f32.mrb[0].mxu0
  %v560 = vadd.f32 0.0, %v559
  %561 = vdwg.mxu0
  %v562 = vadd.f32 %v301, %v468
  %v563 = vadd.f32 %v303, %v470
  %v564 = vadd.f32 %v344, %v511
  %v565 = vadd.f32 %v346, %v513
  %v566 = vadd.f32 %v387, %v554
  %v567 = vadd.f32 %v389, %v556
  %v568 = vadd.f32 %v305, %v472
  %v569 = vadd.f32 %v307, %v474
  %v570 = vadd.f32 %v348, %v515
  %v571 = vadd.f32 %v350, %v517
  %v572 = vadd.f32 %v391, %v558
  %v573 = vadd.f32 %v393, %v560
  %s574 = scalar_lea.vmem %s1, 24
  %v575 = vld [vmem:[%s574] sm:$0xf]
  %v576 = vld [vmem:[%s574 + $0x4] sm:$0xf]
  %v579 = vunpack.c.l.b16 %v575
  %v580 = vunpack.c.l.b16 %v576
  %v581 = vpack.c.b16 %v580, %v579
  %582 = vrot.lane.b32.xlu0 %v61, 110
  %v583 = vpop.permute.xlu0 %582
  %584 = vrot.lane.b32.xlu0 %v62, 110
  %v585 = vpop.permute.xlu0 %584
  %586 = vrot.lane.b32.xlu0 %v63, 110
  %v587 = vpop.permute.xlu0 %586
  %588 = vrot.lane.b32.xlu0 %v64, 110
  %v589 = vpop.permute.xlu0 %588
  %590 = vrot.lane.b32.xlu0 %v65, 110
  %v591 = vpop.permute.xlu0 %590
  %592 = vrot.lane.b32.xlu0 %v66, 110
  %v593 = vpop.permute.xlu0 %592
  %594 = vrot.lane.b32.xlu0 %v67, 110
  %v595 = vpop.permute.xlu0 %594
  %vm596 = vcmask 900096
  %v597 = vsel %vm596, %v583, %v585
  %v598 = vsel %vm596, %v585, %v587
  %v599 = vsel %vm596, %v587, %v589
  %v600 = vsel %vm596, %v589, %v591
  %v601 = vsel %vm596, %v591, %v593
  %v602 = vsel %vm596, %v593, %v595
  %v610 = vsel %vm95, %v581, 0
  %612 = vmatprep.subr.bf16.mxu0 %v598
  %613 = vmatpush1.bf16.msra.mxu0 %v597
  %614 = vmatprep.subr.bf16.mxu0 0
  %615 = vmatpush1.bf16.msra.mxu0 0
  %616 = vmatprep.subr.bf16.mxu0 0
  %617 = vmatpush1.bf16.msra.mxu0 0
  %618 = vmatprep.subr.bf16.mxu0 0
  %619 = vmatpush1.bf16.msra.mxu0 0
  %620 = vmatprep.subr.bf16.mxu0 0
  %621 = vmatpush1.bf16.msra.mxu0 0
  %622 = vmatprep.subr.bf16.mxu0 0
  %623 = vmatpush1.bf16.msra.mxu0 0
  %624 = vmatprep.subr.bf16.mxu0 0
  %625 = vmatpush1.bf16.msra.mxu0 0
  %626 = vmatprep.subr.bf16.mxu0 0
  %627 = vmatpush1.bf16.msra.mxu0 0
  %628 = vmatprep.subr.bf16.mxu0 0
  %629 = vmatpush1.bf16.msra.mxu0 0
  %630 = vmatprep.subr.bf16.mxu0 0
  %631 = vmatpush1.bf16.msra.mxu0 0
  %632 = vmatprep.subr.bf16.mxu0 0
  %633 = vmatpush1.bf16.msra.mxu0 0
  %634 = vmatprep.subr.bf16.mxu0 0
  %635 = vmatpush1.bf16.msra.mxu0 0
  %636 = vmatprep.subr.bf16.mxu0 0
  %637 = vmatpush1.bf16.msra.mxu0 0
  %638 = vmatprep.subr.bf16.mxu0 0
  %639 = vmatpush1.bf16.msra.mxu0 0
  %640 = vmatprep.subr.bf16.mxu0 0
  %641 = vmatpush1.bf16.msra.mxu0 0
  %642 = vmatprep.subr.bf16.mxu0 0
  %643 = vmatpush1.bf16.msra.mxu0 0
  %644 = vmatprep.mubr.bf16.mxu0 0
  %645 = vmatmul.mubr.bf16.gmra.mrb[0].mxu0 %v610
  %v646 = vpop.f32.mrb[0].mxu0
  %v647 = vadd.f32 0.0, %v646
  %v648 = vpop.f32.mrb[0].mxu0
  %v649 = vadd.f32 0.0, %v648
  %v650 = vpop.f32.mrb[0].mxu0
  %v651 = vadd.f32 0.0, %v650
  %v652 = vpop.f32.mrb[0].mxu0
  %v653 = vadd.f32 0.0, %v652
  %654 = vdwg.mxu0
  %655 = vmatprep.subr.bf16.mxu0 %v600
  %656 = vmatpush1.bf16.msra.mxu0 %v599
  %657 = vmatprep.subr.bf16.mxu0 0
  %658 = vmatpush1.bf16.msra.mxu0 0
  %659 = vmatprep.subr.bf16.mxu0 0
  %660 = vmatpush1.bf16.msra.mxu0 0
  %661 = vmatprep.subr.bf16.mxu0 0
  %662 = vmatpush1.bf16.msra.mxu0 0
  %663 = vmatprep.subr.bf16.mxu0 0
  %664 = vmatpush1.bf16.msra.mxu0 0
  %665 = vmatprep.subr.bf16.mxu0 0
  %666 = vmatpush1.bf16.msra.mxu0 0
  %667 = vmatprep.subr.bf16.mxu0 0
  %668 = vmatpush1.bf16.msra.mxu0 0
  %669 = vmatprep.subr.bf16.mxu0 0
  %670 = vmatpush1.bf16.msra.mxu0 0
  %671 = vmatprep.subr.bf16.mxu0 0
  %672 = vmatpush1.bf16.msra.mxu0 0
  %673 = vmatprep.subr.bf16.mxu0 0
  %674 = vmatpush1.bf16.msra.mxu0 0
  %675 = vmatprep.subr.bf16.mxu0 0
  %676 = vmatpush1.bf16.msra.mxu0 0
  %677 = vmatprep.subr.bf16.mxu0 0
  %678 = vmatpush1.bf16.msra.mxu0 0
  %679 = vmatprep.subr.bf16.mxu0 0
  %680 = vmatpush1.bf16.msra.mxu0 0
  %681 = vmatprep.subr.bf16.mxu0 0
  %682 = vmatpush1.bf16.msra.mxu0 0
  %683 = vmatprep.subr.bf16.mxu0 0
  %684 = vmatpush1.bf16.msra.mxu0 0
  %685 = vmatprep.subr.bf16.mxu0 0
  %686 = vmatpush1.bf16.msra.mxu0 0
  %687 = vmatprep.mubr.bf16.mxu0 0
  %688 = vmatmul.mubr.bf16.gmra.mrb[0].mxu0 %v610
  %v689 = vpop.f32.mrb[0].mxu0
  %v690 = vadd.f32 0.0, %v689
  %v691 = vpop.f32.mrb[0].mxu0
  %v692 = vadd.f32 0.0, %v691
  %v693 = vpop.f32.mrb[0].mxu0
  %v694 = vadd.f32 0.0, %v693
  %v695 = vpop.f32.mrb[0].mxu0
  %v696 = vadd.f32 0.0, %v695
  %697 = vdwg.mxu0
  %698 = vmatprep.subr.bf16.mxu0 %v602
  %699 = vmatpush1.bf16.msra.mxu0 %v601
  %700 = vmatprep.subr.bf16.mxu0 0
  %701 = vmatpush1.bf16.msra.mxu0 0
  %702 = vmatprep.subr.bf16.mxu0 0
  %703 = vmatpush1.bf16.msra.mxu0 0
  %704 = vmatprep.subr.bf16.mxu0 0
  %705 = vmatpush1.bf16.msra.mxu0 0
  %706 = vmatprep.subr.bf16.mxu0 0
  %707 = vmatpush1.bf16.msra.mxu0 0
  %708 = vmatprep.subr.bf16.mxu0 0
  %709 = vmatpush1.bf16.msra.mxu0 0
  %710 = vmatprep.subr.bf16.mxu0 0
  %711 = vmatpush1.bf16.msra.mxu0 0
  %712 = vmatprep.subr.bf16.mxu0 0
  %713 = vmatpush1.bf16.msra.mxu0 0
  %714 = vmatprep.subr.bf16.mxu0 0
  %715 = vmatpush1.bf16.msra.mxu0 0
  %716 = vmatprep.subr.bf16.mxu0 0
  %717 = vmatpush1.bf16.msra.mxu0 0
  %718 = vmatprep.subr.bf16.mxu0 0
  %719 = vmatpush1.bf16.msra.mxu0 0
  %720 = vmatprep.subr.bf16.mxu0 0
  %721 = vmatpush1.bf16.msra.mxu0 0
  %722 = vmatprep.subr.bf16.mxu0 0
  %723 = vmatpush1.bf16.msra.mxu0 0
  %724 = vmatprep.subr.bf16.mxu0 0
  %725 = vmatpush1.bf16.msra.mxu0 0
  %726 = vmatprep.subr.bf16.mxu0 0
  %727 = vmatpush1.bf16.msra.mxu0 0
  %728 = vmatprep.subr.bf16.mxu0 0
  %729 = vmatpush1.bf16.msra.mxu0 0
  %730 = vmatprep.mubr.bf16.mxu0 0
  %731 = vmatmul.mubr.bf16.gmra.mrb[0].mxu0 %v610
  %v732 = vpop.f32.mrb[0].mxu0
  %v733 = vadd.f32 0.0, %v732
  %v734 = vpop.f32.mrb[0].mxu0
  %v735 = vadd.f32 0.0, %v734
  %v736 = vpop.f32.mrb[0].mxu0
  %v737 = vadd.f32 0.0, %v736
  %v738 = vpop.f32.mrb[0].mxu0
  %v739 = vadd.f32 0.0, %v738
  %740 = vdwg.mxu0
  %v741 = vadd.f32 %v562, %v647
  %v742 = vadd.f32 %v563, %v649
  %v743 = vadd.f32 %v564, %v690
  %v744 = vadd.f32 %v565, %v692
  %v745 = vadd.f32 %v566, %v733
  %v746 = vadd.f32 %v567, %v735
  %v747 = vadd.f32 %v568, %v651
  %v748 = vadd.f32 %v569, %v653
  %v749 = vadd.f32 %v570, %v694
  %v750 = vadd.f32 %v571, %v696
  %v751 = vadd.f32 %v572, %v737
  %v752 = vadd.f32 %v573, %v739
  %s753 = scalar_lea.vmem %s1, 32
  %v754 = vld [vmem:[%s753] sm:$0xf]
  %v755 = vld [vmem:[%s753 + $0x4] sm:$0xf]
  %v758 = vunpack.c.l.b16 %v754
  %v759 = vunpack.c.l.b16 %v755
  %v760 = vpack.c.b16 %v759, %v758
  %761 = vrot.lane.b32.xlu0 %v61, 109
  %v762 = vpop.permute.xlu0 %761
  %763 = vrot.lane.b32.xlu0 %v62, 109
  %v764 = vpop.permute.xlu0 %763
  %765 = vrot.lane.b32.xlu0 %v63, 109
  %v766 = vpop.permute.xlu0 %765
  %767 = vrot.lane.b32.xlu0 %v64, 109
  %v768 = vpop.permute.xlu0 %767
  %769 = vrot.lane.b32.xlu0 %v65, 109
  %v770 = vpop.permute.xlu0 %769
  %771 = vrot.lane.b32.xlu0 %v66, 109
  %v772 = vpop.permute.xlu0 %771
  %773 = vrot.lane.b32.xlu0 %v67, 109
  %v774 = vpop.permute.xlu0 %773
  %vm775 = vcmask 891904
  %v776 = vsel %vm775, %v762, %v764
  %v777 = vsel %vm775, %v764, %v766
  %v778 = vsel %vm775, %v766, %v768
  %v779 = vsel %vm775, %v768, %v770
  %v780 = vsel %vm775, %v770, %v772
  %v781 = vsel %vm775, %v772, %v774
  %v789 = vsel %vm95, %v760, 0
  %791 = vmatprep.subr.bf16.mxu0 %v777
  %792 = vmatpush1.bf16.msra.mxu0 %v776
  %793 = vmatprep.subr.bf16.mxu0 0
  %794 = vmatpush1.bf16.msra.mxu0 0
  %795 = vmatprep.subr.bf16.mxu0 0
  %796 = vmatpush1.bf16.msra.mxu0 0
  %797 = vmatprep.subr.bf16.mxu0 0
  %798 = vmatpush1.bf16.msra.mxu0 0
  %799 = vmatprep.subr.bf16.mxu0 0
  %800 = vmatpush1.bf16.msra.mxu0 0
  %801 = vmatprep.subr.bf16.mxu0 0
  %802 = vmatpush1.bf16.msra.mxu0 0
  %803 = vmatprep.subr.bf16.mxu0 0
  %804 = vmatpush1.bf16.msra.mxu0 0
  %805 = vmatprep.subr.bf16.mxu0 0
  %806 = vmatpush1.bf16.msra.mxu0 0
  %807 = vmatprep.subr.bf16.mxu0 0
  %808 = vmatpush1.bf16.msra.mxu0 0
  %809 = vmatprep.subr.bf16.mxu0 0
  %810 = vmatpush1.bf16.msra.mxu0 0
  %811 = vmatprep.subr.bf16.mxu0 0
  %812 = vmatpush1.bf16.msra.mxu0 0
  %813 = vmatprep.subr.bf16.mxu0 0
  %814 = vmatpush1.bf16.msra.mxu0 0
  %815 = vmatprep.subr.bf16.mxu0 0
  %816 = vmatpush1.bf16.msra.mxu0 0
  %817 = vmatprep.subr.bf16.mxu0 0
  %818 = vmatpush1.bf16.msra.mxu0 0
  %819 = vmatprep.subr.bf16.mxu0 0
  %820 = vmatpush1.bf16.msra.mxu0 0
  %821 = vmatprep.subr.bf16.mxu0 0
  %822 = vmatpush1.bf16.msra.mxu0 0
  %823 = vmatprep.mubr.bf16.mxu0 0
  %824 = vmatmul.mubr.bf16.gmra.mrb[0].mxu0 %v789
  %v825 = vpop.f32.mrb[0].mxu0
  %v826 = vadd.f32 0.0, %v825
  %v827 = vpop.f32.mrb[0].mxu0
  %v828 = vadd.f32 0.0, %v827
  %v829 = vpop.f32.mrb[0].mxu0
  %v830 = vadd.f32 0.0, %v829
  %v831 = vpop.f32.mrb[0].mxu0
  %v832 = vadd.f32 0.0, %v831
  %833 = vdwg.mxu0
  %834 = vmatprep.subr.bf16.mxu0 %v779
  %835 = vmatpush1.bf16.msra.mxu0 %v778
  %836 = vmatprep.subr.bf16.mxu0 0
  %837 = vmatpush1.bf16.msra.mxu0 0
  %838 = vmatprep.subr.bf16.mxu0 0
  %839 = vmatpush1.bf16.msra.mxu0 0
  %840 = vmatprep.subr.bf16.mxu0 0
  %841 = vmatpush1.bf16.msra.mxu0 0
  %842 = vmatprep.subr.bf16.mxu0 0
  %843 = vmatpush1.bf16.msra.mxu0 0
  %844 = vmatprep.subr.bf16.mxu0 0
  %845 = vmatpush1.bf16.msra.mxu0 0
  %846 = vmatprep.subr.bf16.mxu0 0
  %847 = vmatpush1.bf16.msra.mxu0 0
  %848 = vmatprep.subr.bf16.mxu0 0
  %849 = vmatpush1.bf16.msra.mxu0 0
  %850 = vmatprep.subr.bf16.mxu0 0
  %851 = vmatpush1.bf16.msra.mxu0 0
  %852 = vmatprep.subr.bf16.mxu0 0
  %853 = vmatpush1.bf16.msra.mxu0 0
  %854 = vmatprep.subr.bf16.mxu0 0
  %855 = vmatpush1.bf16.msra.mxu0 0
  %856 = vmatprep.subr.bf16.mxu0 0
  %857 = vmatpush1.bf16.msra.mxu0 0
  %858 = vmatprep.subr.bf16.mxu0 0
  %859 = vmatpush1.bf16.msra.mxu0 0
  %860 = vmatprep.subr.bf16.mxu0 0
  %861 = vmatpush1.bf16.msra.mxu0 0
  %862 = vmatprep.subr.bf16.mxu0 0
  %863 = vmatpush1.bf16.msra.mxu0 0
  %864 = vmatprep.subr.bf16.mxu0 0
  %865 = vmatpush1.bf16.msra.mxu0 0
  %866 = vmatprep.mubr.bf16.mxu0 0
  %867 = vmatmul.mubr.bf16.gmra.mrb[0].mxu0 %v789
  %v868 = vpop.f32.mrb[0].mxu0
  %v869 = vadd.f32 0.0, %v868
  %v870 = vpop.f32.mrb[0].mxu0
  %v871 = vadd.f32 0.0, %v870
  %v872 = vpop.f32.mrb[0].mxu0
  %v873 = vadd.f32 0.0, %v872
  %v874 = vpop.f32.mrb[0].mxu0
  %v875 = vadd.f32 0.0, %v874
  %876 = vdwg.mxu0
  %877 = vmatprep.subr.bf16.mxu0 %v781
  %878 = vmatpush1.bf16.msra.mxu0 %v780
  %879 = vmatprep.subr.bf16.mxu0 0
  %880 = vmatpush1.bf16.msra.mxu0 0
  %881 = vmatprep.subr.bf16.mxu0 0
  %882 = vmatpush1.bf16.msra.mxu0 0
  %883 = vmatprep.subr.bf16.mxu0 0
  %884 = vmatpush1.bf16.msra.mxu0 0
  %885 = vmatprep.subr.bf16.mxu0 0
  %886 = vmatpush1.bf16.msra.mxu0 0
  %887 = vmatprep.subr.bf16.mxu0 0
  %888 = vmatpush1.bf16.msra.mxu0 0
  %889 = vmatprep.subr.bf16.mxu0 0
  %890 = vmatpush1.bf16.msra.mxu0 0
  %891 = vmatprep.subr.bf16.mxu0 0
  %892 = vmatpush1.bf16.msra.mxu0 0
  %893 = vmatprep.subr.bf16.mxu0 0
  %894 = vmatpush1.bf16.msra.mxu0 0
  %895 = vmatprep.subr.bf16.mxu0 0
  %896 = vmatpush1.bf16.msra.mxu0 0
  %897 = vmatprep.subr.bf16.mxu0 0
  %898 = vmatpush1.bf16.msra.mxu0 0
  %899 = vmatprep.subr.bf16.mxu0 0
  %900 = vmatpush1.bf16.msra.mxu0 0
  %901 = vmatprep.subr.bf16.mxu0 0
  %902 = vmatpush1.bf16.msra.mxu0 0
  %903 = vmatprep.subr.bf16.mxu0 0
  %904 = vmatpush1.bf16.msra.mxu0 0
  %905 = vmatprep.subr.bf16.mxu0 0
  %906 = vmatpush1.bf16.msra.mxu0 0
  %907 = vmatprep.subr.bf16.mxu0 0
  %908 = vmatpush1.bf16.msra.mxu0 0
  %909 = vmatprep.mubr.bf16.mxu0 0
  %910 = vmatmul.mubr.bf16.gmra.mrb[0].mxu0 %v789
  %v911 = vpop.f32.mrb[0].mxu0
  %v912 = vadd.f32 0.0, %v911
  %v913 = vpop.f32.mrb[0].mxu0
  %v914 = vadd.f32 0.0, %v913
  %v915 = vpop.f32.mrb[0].mxu0
  %v916 = vadd.f32 0.0, %v915
  %v917 = vpop.f32.mrb[0].mxu0
  %v918 = vadd.f32 0.0, %v917
  %919 = vdwg.mxu0
  %v920 = vadd.f32 %v741, %v826
  %v921 = vadd.f32 %v742, %v828
  %v922 = vadd.f32 %v743, %v869
  %v923 = vadd.f32 %v744, %v871
  %v924 = vadd.f32 %v745, %v912
  %v925 = vadd.f32 %v746, %v914
  %v926 = vadd.f32 %v747, %v830
  %v927 = vadd.f32 %v748, %v832
  %v928 = vadd.f32 %v749, %v873
  %v929 = vadd.f32 %v750, %v875
  %v930 = vadd.f32 %v751, %v916
  %v931 = vadd.f32 %v752, %v918
  %s932 = scalar_lea.vmem %s1, 40
  %v933 = vld [vmem:[%s932] sm:$0xf]
  %v934 = vld [vmem:[%s932 + $0x4] sm:$0xf]
  %v937 = vunpack.c.l.b16 %v933
  %v938 = vunpack.c.l.b16 %v934
  %v939 = vpack.c.b16 %v938, %v937
  %940 = vrot.lane.b32.xlu0 %v61, 108
  %v941 = vpop.permute.xlu0 %940
  %942 = vrot.lane.b32.xlu0 %v62, 108
  %v943 = vpop.permute.xlu0 %942
  %944 = vrot.lane.b32.xlu0 %v63, 108
  %v945 = vpop.permute.xlu0 %944
  %946 = vrot.lane.b32.xlu0 %v64, 108
  %v947 = vpop.permute.xlu0 %946
  %948 = vrot.lane.b32.xlu0 %v65, 108
  %v949 = vpop.permute.xlu0 %948
  %950 = vrot.lane.b32.xlu0 %v66, 108
  %v951 = vpop.permute.xlu0 %950
  %952 = vrot.lane.b32.xlu0 %v67, 108
  %v953 = vpop.permute.xlu0 %952
  %vm954 = vcmask 883712
  %v955 = vsel %vm954, %v941, %v943
  %v956 = vsel %vm954, %v943, %v945
  %v957 = vsel %vm954, %v945, %v947
  %v958 = vsel %vm954, %v947, %v949
  %v959 = vsel %vm954, %v949, %v951
  %v960 = vsel %vm954, %v951, %v953
  %v968 = vsel %vm95, %v939, 0
  %970 = vmatprep.subr.bf16.mxu0 %v956
  %971 = vmatpush1.bf16.msra.mxu0 %v955
  %972 = vmatprep.subr.bf16.mxu0 0
  %973 = vmatpush1.bf16.msra.mxu0 0
  %974 = vmatprep.subr.bf16.mxu0 0
  %975 = vmatpush1.bf16.msra.mxu0 0
  %976 = vmatprep.subr.bf16.mxu0 0
  %977 = vmatpush1.bf16.msra.mxu0 0
  %978 = vmatprep.subr.bf16.mxu0 0
  %979 = vmatpush1.bf16.msra.mxu0 0
  %980 = vmatprep.subr.bf16.mxu0 0
  %981 = vmatpush1.bf16.msra.mxu0 0
  %982 = vmatprep.subr.bf16.mxu0 0
  %983 = vmatpush1.bf16.msra.mxu0 0
  %984 = vmatprep.subr.bf16.mxu0 0
  %985 = vmatpush1.bf16.msra.mxu0 0
  %986 = vmatprep.subr.bf16.mxu0 0
  %987 = vmatpush1.bf16.msra.mxu0 0
  %988 = vmatprep.subr.bf16.mxu0 0
  %989 = vmatpush1.bf16.msra.mxu0 0
  %990 = vmatprep.subr.bf16.mxu0 0
  %991 = vmatpush1.bf16.msra.mxu0 0
  %992 = vmatprep.subr.bf16.mxu0 0
  %993 = vmatpush1.bf16.msra.mxu0 0
  %994 = vmatprep.subr.bf16.mxu0 0
  %995 = vmatpush1.bf16.msra.mxu0 0
  %996 = vmatprep.subr.bf16.mxu0 0
  %997 = vmatpush1.bf16.msra.mxu0 0
  %998 = vmatprep.subr.bf16.mxu0 0
  %999 = vmatpush1.bf16.msra.mxu0 0
  %1000 = vmatprep.subr.bf16.mxu0 0
  %1001 = vmatpush1.bf16.msra.mxu0 0
  %1002 = vmatprep.mubr.bf16.mxu0 0
  %1003 = vmatmul.mubr.bf16.gmra.mrb[0].mxu0 %v968
  %v1004 = vpop.f32.mrb[0].mxu0
  %v1005 = vadd.f32 0.0, %v1004
  %v1006 = vpop.f32.mrb[0].mxu0
  %v1007 = vadd.f32 0.0, %v1006
  %v1008 = vpop.f32.mrb[0].mxu0
  %v1009 = vadd.f32 0.0, %v1008
  %v1010 = vpop.f32.mrb[0].mxu0
  %v1011 = vadd.f32 0.0, %v1010
  %1012 = vdwg.mxu0
  %1013 = vmatprep.subr.bf16.mxu0 %v958
  %1014 = vmatpush1.bf16.msra.mxu0 %v957
  %1015 = vmatprep.subr.bf16.mxu0 0
  %1016 = vmatpush1.bf16.msra.mxu0 0
  %1017 = vmatprep.subr.bf16.mxu0 0
  %1018 = vmatpush1.bf16.msra.mxu0 0
  %1019 = vmatprep.subr.bf16.mxu0 0
  %1020 = vmatpush1.bf16.msra.mxu0 0
  %1021 = vmatprep.subr.bf16.mxu0 0
  %1022 = vmatpush1.bf16.msra.mxu0 0
  %1023 = vmatprep.subr.bf16.mxu0 0
  %1024 = vmatpush1.bf16.msra.mxu0 0
  %1025 = vmatprep.subr.bf16.mxu0 0
  %1026 = vmatpush1.bf16.msra.mxu0 0
  %1027 = vmatprep.subr.bf16.mxu0 0
  %1028 = vmatpush1.bf16.msra.mxu0 0
  %1029 = vmatprep.subr.bf16.mxu0 0
  %1030 = vmatpush1.bf16.msra.mxu0 0
  %1031 = vmatprep.subr.bf16.mxu0 0
  %1032 = vmatpush1.bf16.msra.mxu0 0
  %1033 = vmatprep.subr.bf16.mxu0 0
  %1034 = vmatpush1.bf16.msra.mxu0 0
  %1035 = vmatprep.subr.bf16.mxu0 0
  %1036 = vmatpush1.bf16.msra.mxu0 0
  %1037 = vmatprep.subr.bf16.mxu0 0
  %1038 = vmatpush1.bf16.msra.mxu0 0
  %1039 = vmatprep.subr.bf16.mxu0 0
  %1040 = vmatpush1.bf16.msra.mxu0 0
  %1041 = vmatprep.subr.bf16.mxu0 0
  %1042 = vmatpush1.bf16.msra.mxu0 0
  %1043 = vmatprep.subr.bf16.mxu0 0
  %1044 = vmatpush1.bf16.msra.mxu0 0
  %1045 = vmatprep.mubr.bf16.mxu0 0
  %1046 = vmatmul.mubr.bf16.gmra.mrb[0].mxu0 %v968
  %v1047 = vpop.f32.mrb[0].mxu0
  %v1048 = vadd.f32 0.0, %v1047
  %v1049 = vpop.f32.mrb[0].mxu0
  %v1050 = vadd.f32 0.0, %v1049
  %v1051 = vpop.f32.mrb[0].mxu0
  %v1052 = vadd.f32 0.0, %v1051
  %v1053 = vpop.f32.mrb[0].mxu0
  %v1054 = vadd.f32 0.0, %v1053
  %1055 = vdwg.mxu0
  %1056 = vmatprep.subr.bf16.mxu0 %v960
  %1057 = vmatpush1.bf16.msra.mxu0 %v959
  %1058 = vmatprep.subr.bf16.mxu0 0
  %1059 = vmatpush1.bf16.msra.mxu0 0
  %1060 = vmatprep.subr.bf16.mxu0 0
  %1061 = vmatpush1.bf16.msra.mxu0 0
  %1062 = vmatprep.subr.bf16.mxu0 0
  %1063 = vmatpush1.bf16.msra.mxu0 0
  %1064 = vmatprep.subr.bf16.mxu0 0
  %1065 = vmatpush1.bf16.msra.mxu0 0
  %1066 = vmatprep.subr.bf16.mxu0 0
  %1067 = vmatpush1.bf16.msra.mxu0 0
  %1068 = vmatprep.subr.bf16.mxu0 0
  %1069 = vmatpush1.bf16.msra.mxu0 0
  %1070 = vmatprep.subr.bf16.mxu0 0
  %1071 = vmatpush1.bf16.msra.mxu0 0
  %1072 = vmatprep.subr.bf16.mxu0 0
  %1073 = vmatpush1.bf16.msra.mxu0 0
  %1074 = vmatprep.subr.bf16.mxu0 0
  %1075 = vmatpush1.bf16.msra.mxu0 0
  %1076 = vmatprep.subr.bf16.mxu0 0
  %1077 = vmatpush1.bf16.msra.mxu0 0
  %1078 = vmatprep.subr.bf16.mxu0 0
  %1079 = vmatpush1.bf16.msra.mxu0 0
  %1080 = vmatprep.subr.bf16.mxu0 0
  %1081 = vmatpush1.bf16.msra.mxu0 0
  %1082 = vmatprep.subr.bf16.mxu0 0
  %1083 = vmatpush1.bf16.msra.mxu0 0
  %1084 = vmatprep.subr.bf16.mxu0 0
  %1085 = vmatpush1.bf16.msra.mxu0 0
  %1086 = vmatprep.subr.bf16.mxu0 0
  %1087 = vmatpush1.bf16.msra.mxu0 0
  %1088 = vmatprep.mubr.bf16.mxu0 0
  %1089 = vmatmul.mubr.bf16.gmra.mrb[0].mxu0 %v968
  %v1090 = vpop.f32.mrb[0].mxu0
  %v1091 = vadd.f32 0.0, %v1090
  %v1092 = vpop.f32.mrb[0].mxu0
  %v1093 = vadd.f32 0.0, %v1092
  %v1094 = vpop.f32.mrb[0].mxu0
  %v1095 = vadd.f32 0.0, %v1094
  %v1096 = vpop.f32.mrb[0].mxu0
  %v1097 = vadd.f32 0.0, %v1096
  %1098 = vdwg.mxu0
  %v1099 = vadd.f32 %v920, %v1005
  %v1100 = vadd.f32 %v921, %v1007
  %v1101 = vadd.f32 %v922, %v1048
  %v1102 = vadd.f32 %v923, %v1050
  %v1103 = vadd.f32 %v924, %v1091
  %v1104 = vadd.f32 %v925, %v1093
  %v1105 = vadd.f32 %v926, %v1009
  %v1106 = vadd.f32 %v927, %v1011
  %v1107 = vadd.f32 %v928, %v1052
  %v1108 = vadd.f32 %v929, %v1054
  %v1109 = vadd.f32 %v930, %v1095
  %v1110 = vadd.f32 %v931, %v1097
  %s1111 = scalar_lea.vmem %s1, 48
  %v1112 = vld [vmem:[%s1111] sm:$0xf]
  %v1113 = vld [vmem:[%s1111 + $0x4] sm:$0xf]
  %v1116 = vunpack.c.l.b16 %v1112
  %v1117 = vunpack.c.l.b16 %v1113
  %v1118 = vpack.c.b16 %v1117, %v1116
  %1119 = vrot.lane.b32.xlu0 %v61, 92
  %v1120 = vpop.permute.xlu0 %1119
  %1121 = vrot.lane.b32.xlu0 %v62, 92
  %v1122 = vpop.permute.xlu0 %1121
  %1123 = vrot.lane.b32.xlu0 %v63, 92
  %v1124 = vpop.permute.xlu0 %1123
  %1125 = vrot.lane.b32.xlu0 %v64, 92
  %v1126 = vpop.permute.xlu0 %1125
  %1127 = vrot.lane.b32.xlu0 %v65, 92
  %v1128 = vpop.permute.xlu0 %1127
  %1129 = vrot.lane.b32.xlu0 %v66, 92
  %v1130 = vpop.permute.xlu0 %1129
  %1131 = vrot.lane.b32.xlu0 %v67, 92
  %v1132 = vpop.permute.xlu0 %1131
  %vm1133 = vcmask 752640
  %v1134 = vsel %vm1133, %v1120, %v1122
  %v1135 = vsel %vm1133, %v1122, %v1124
  %v1136 = vsel %vm1133, %v1124, %v1126
  %v1137 = vsel %vm1133, %v1126, %v1128
  %v1138 = vsel %vm1133, %v1128, %v1130
  %v1139 = vsel %vm1133, %v1130, %v1132
  %v1147 = vsel %vm95, %v1118, 0
  %1149 = vmatprep.subr.bf16.mxu0 %v1135
  %1150 = vmatpush1.bf16.msra.mxu0 %v1134
  %1151 = vmatprep.subr.bf16.mxu0 0
  %1152 = vmatpush1.bf16.msra.mxu0 0
  %1153 = vmatprep.subr.bf16.mxu0 0
  %1154 = vmatpush1.bf16.msra.mxu0 0
  %1155 = vmatprep.subr.bf16.mxu0 0
  %1156 = vmatpush1.bf16.msra.mxu0 0
  %1157 = vmatprep.subr.bf16.mxu0 0
  %1158 = vmatpush1.bf16.msra.mxu0 0
  %1159 = vmatprep.subr.bf16.mxu0 0
  %1160 = vmatpush1.bf16.msra.mxu0 0
  %1161 = vmatprep.subr.bf16.mxu0 0
  %1162 = vmatpush1.bf16.msra.mxu0 0
  %1163 = vmatprep.subr.bf16.mxu0 0
  %1164 = vmatpush1.bf16.msra.mxu0 0
  %1165 = vmatprep.subr.bf16.mxu0 0
  %1166 = vmatpush1.bf16.msra.mxu0 0
  %1167 = vmatprep.subr.bf16.mxu0 0
  %1168 = vmatpush1.bf16.msra.mxu0 0
  %1169 = vmatprep.subr.bf16.mxu0 0
  %1170 = vmatpush1.bf16.msra.mxu0 0
  %1171 = vmatprep.subr.bf16.mxu0 0
  %1172 = vmatpush1.bf16.msra.mxu0 0
  %1173 = vmatprep.subr.bf16.mxu0 0
  %1174 = vmatpush1.bf16.msra.mxu0 0
  %1175 = vmatprep.subr.bf16.mxu0 0
  %1176 = vmatpush1.bf16.msra.mxu0 0
  %1177 = vmatprep.subr.bf16.mxu0 0
  %1178 = vmatpush1.bf16.msra.mxu0 0
  %1179 = vmatprep.subr.bf16.mxu0 0
  %1180 = vmatpush1.bf16.msra.mxu0 0
  %1181 = vmatprep.mubr.bf16.mxu0 0
  %1182 = vmatmul.mubr.bf16.gmra.mrb[0].mxu0 %v1147
  %v1183 = vpop.f32.mrb[0].mxu0
  %v1184 = vadd.f32 0.0, %v1183
  %v1185 = vpop.f32.mrb[0].mxu0
  %v1186 = vadd.f32 0.0, %v1185
  %v1187 = vpop.f32.mrb[0].mxu0
  %v1188 = vadd.f32 0.0, %v1187
  %v1189 = vpop.f32.mrb[0].mxu0
  %v1190 = vadd.f32 0.0, %v1189
  %1191 = vdwg.mxu0
  %1192 = vmatprep.subr.bf16.mxu0 %v1137
  %1193 = vmatpush1.bf16.msra.mxu0 %v1136
  %1194 = vmatprep.subr.bf16.mxu0 0
  %1195 = vmatpush1.bf16.msra.mxu0 0
  %1196 = vmatprep.subr.bf16.mxu0 0
  %1197 = vmatpush1.bf16.msra.mxu0 0
  %1198 = vmatprep.subr.bf16.mxu0 0
  %1199 = vmatpush1.bf16.msra.mxu0 0
  %1200 = vmatprep.subr.bf16.mxu0 0
  %1201 = vmatpush1.bf16.msra.mxu0 0
  %1202 = vmatprep.subr.bf16.mxu0 0
  %1203 = vmatpush1.bf16.msra.mxu0 0
  %1204 = vmatprep.subr.bf16.mxu0 0
  %1205 = vmatpush1.bf16.msra.mxu0 0
  %1206 = vmatprep.subr.bf16.mxu0 0
  %1207 = vmatpush1.bf16.msra.mxu0 0
  %1208 = vmatprep.subr.bf16.mxu0 0
  %1209 = vmatpush1.bf16.msra.mxu0 0
  %1210 = vmatprep.subr.bf16.mxu0 0
  %1211 = vmatpush1.bf16.msra.mxu0 0
  %1212 = vmatprep.subr.bf16.mxu0 0
  %1213 = vmatpush1.bf16.msra.mxu0 0
  %1214 = vmatprep.subr.bf16.mxu0 0
  %1215 = vmatpush1.bf16.msra.mxu0 0
  %1216 = vmatprep.subr.bf16.mxu0 0
  %1217 = vmatpush1.bf16.msra.mxu0 0
  %1218 = vmatprep.subr.bf16.mxu0 0
  %1219 = vmatpush1.bf16.msra.mxu0 0
  %1220 = vmatprep.subr.bf16.mxu0 0
  %1221 = vmatpush1.bf16.msra.mxu0 0
  %1222 = vmatprep.subr.bf16.mxu0 0
  %1223 = vmatpush1.bf16.msra.mxu0 0
  %1224 = vmatprep.mubr.bf16.mxu0 0
  %1225 = vmatmul.mubr.bf16.gmra.mrb[0].mxu0 %v1147
  %v1226 = vpop.f32.mrb[0].mxu0
  %v1227 = vadd.f32 0.0, %v1226
  %v1228 = vpop.f32.mrb[0].mxu0
  %v1229 = vadd.f32 0.0, %v1228
  %v1230 = vpop.f32.mrb[0].mxu0
  %v1231 = vadd.f32 0.0, %v1230
  %v1232 = vpop.f32.mrb[0].mxu0
  %v1233 = vadd.f32 0.0, %v1232
  %1234 = vdwg.mxu0
  %1235 = vmatprep.subr.bf16.mxu0 %v1139
  %1236 = vmatpush1.bf16.msra.mxu0 %v1138
  %1237 = vmatprep.subr.bf16.mxu0 0
  %1238 = vmatpush1.bf16.msra.mxu0 0
  %1239 = vmatprep.subr.bf16.mxu0 0
  %1240 = vmatpush1.bf16.msra.mxu0 0
  %1241 = vmatprep.subr.bf16.mxu0 0
  %1242 = vmatpush1.bf16.msra.mxu0 0
  %1243 = vmatprep.subr.bf16.mxu0 0
  %1244 = vmatpush1.bf16.msra.mxu0 0
  %1245 = vmatprep.subr.bf16.mxu0 0
  %1246 = vmatpush1.bf16.msra.mxu0 0
  %1247 = vmatprep.subr.bf16.mxu0 0
  %1248 = vmatpush1.bf16.msra.mxu0 0
  %1249 = vmatprep.subr.bf16.mxu0 0
  %1250 = vmatpush1.bf16.msra.mxu0 0
  %1251 = vmatprep.subr.bf16.mxu0 0
  %1252 = vmatpush1.bf16.msra.mxu0 0
  %1253 = vmatprep.subr.bf16.mxu0 0
  %1254 = vmatpush1.bf16.msra.mxu0 0
  %1255 = vmatprep.subr.bf16.mxu0 0
  %1256 = vmatpush1.bf16.msra.mxu0 0
  %1257 = vmatprep.subr.bf16.mxu0 0
  %1258 = vmatpush1.bf16.msra.mxu0 0
  %1259 = vmatprep.subr.bf16.mxu0 0
  %1260 = vmatpush1.bf16.msra.mxu0 0
  %1261 = vmatprep.subr.bf16.mxu0 0
  %1262 = vmatpush1.bf16.msra.mxu0 0
  %1263 = vmatprep.subr.bf16.mxu0 0
  %1264 = vmatpush1.bf16.msra.mxu0 0
  %1265 = vmatprep.subr.bf16.mxu0 0
  %1266 = vmatpush1.bf16.msra.mxu0 0
  %1267 = vmatprep.mubr.bf16.mxu0 0
  %1268 = vmatmul.mubr.bf16.gmra.mrb[0].mxu0 %v1147
  %v1269 = vpop.f32.mrb[0].mxu0
  %v1270 = vadd.f32 0.0, %v1269
  %v1271 = vpop.f32.mrb[0].mxu0
  %v1272 = vadd.f32 0.0, %v1271
  %v1273 = vpop.f32.mrb[0].mxu0
  %v1274 = vadd.f32 0.0, %v1273
  %v1275 = vpop.f32.mrb[0].mxu0
  %v1276 = vadd.f32 0.0, %v1275
  %1277 = vdwg.mxu0
  %v1278 = vadd.f32 %v1099, %v1184
  %v1279 = vadd.f32 %v1100, %v1186
  %v1280 = vadd.f32 %v1101, %v1227
  %v1281 = vadd.f32 %v1102, %v1229
  %v1282 = vadd.f32 %v1103, %v1270
  %v1283 = vadd.f32 %v1104, %v1272
  %v1284 = vadd.f32 %v1105, %v1188
  %v1285 = vadd.f32 %v1106, %v1190
  %v1286 = vadd.f32 %v1107, %v1231
  %v1287 = vadd.f32 %v1108, %v1233
  %v1288 = vadd.f32 %v1109, %v1274
  %v1289 = vadd.f32 %v1110, %v1276
  %s1290 = scalar_lea.vmem %s1, 56
  %v1291 = vld [vmem:[%s1290] sm:$0xf]
  %v1292 = vld [vmem:[%s1290 + $0x4] sm:$0xf]
  %v1295 = vunpack.c.l.b16 %v1291
  %v1296 = vunpack.c.l.b16 %v1292
  %v1297 = vpack.c.b16 %v1296, %v1295
  %1298 = vrot.lane.b32.xlu0 %v61, 91
  %v1299 = vpop.permute.xlu0 %1298
  %1300 = vrot.lane.b32.xlu0 %v62, 91
  %v1301 = vpop.permute.xlu0 %1300
  %1302 = vrot.lane.b32.xlu0 %v63, 91
  %v1303 = vpop.permute.xlu0 %1302
  %1304 = vrot.lane.b32.xlu0 %v64, 91
  %v1305 = vpop.permute.xlu0 %1304
  %1306 = vrot.lane.b32.xlu0 %v65, 91
  %v1307 = vpop.permute.xlu0 %1306
  %1308 = vrot.lane.b32.xlu0 %v66, 91
  %v1309 = vpop.permute.xlu0 %1308
  %1310 = vrot.lane.b32.xlu0 %v67, 91
  %v1311 = vpop.permute.xlu0 %1310
  %vm1312 = vcmask 744448
  %v1313 = vsel %vm1312, %v1299, %v1301
  %v1314 = vsel %vm1312, %v1301, %v1303
  %v1315 = vsel %vm1312, %v1303, %v1305
  %v1316 = vsel %vm1312, %v1305, %v1307
  %v1317 = vsel %vm1312, %v1307, %v1309
  %v1318 = vsel %vm1312, %v1309, %v1311
  %v1326 = vsel %vm95, %v1297, 0
  %1328 = vmatprep.subr.bf16.mxu0 %v1314
  %1329 = vmatpush1.bf16.msra.mxu0 %v1313
  %1330 = vmatprep.subr.bf16.mxu0 0
  %1331 = vmatpush1.bf16.msra.mxu0 0
  %1332 = vmatprep.subr.bf16.mxu0 0
  %1333 = vmatpush1.bf16.msra.mxu0 0
  %1334 = vmatprep.subr.bf16.mxu0 0
  %1335 = vmatpush1.bf16.msra.mxu0 0
  %1336 = vmatprep.subr.bf16.mxu0 0
  %1337 = vmatpush1.bf16.msra.mxu0 0
  %1338 = vmatprep.subr.bf16.mxu0 0
  %1339 = vmatpush1.bf16.msra.mxu0 0
  %1340 = vmatprep.subr.bf16.mxu0 0
  %1341 = vmatpush1.bf16.msra.mxu0 0
  %1342 = vmatprep.subr.bf16.mxu0 0
  %1343 = vmatpush1.bf16.msra.mxu0 0
  %1344 = vmatprep.subr.bf16.mxu0 0
  %1345 = vmatpush1.bf16.msra.mxu0 0
  %1346 = vmatprep.subr.bf16.mxu0 0
  %1347 = vmatpush1.bf16.msra.mxu0 0
  %1348 = vmatprep.subr.bf16.mxu0 0
  %1349 = vmatpush1.bf16.msra.mxu0 0
  %1350 = vmatprep.subr.bf16.mxu0 0
  %1351 = vmatpush1.bf16.msra.mxu0 0
  %1352 = vmatprep.subr.bf16.mxu0 0
  %1353 = vmatpush1.bf16.msra.mxu0 0
  %1354 = vmatprep.subr.bf16.mxu0 0
  %1355 = vmatpush1.bf16.msra.mxu0 0
  %1356 = vmatprep.subr.bf16.mxu0 0
  %1357 = vmatpush1.bf16.msra.mxu0 0
  %1358 = vmatprep.subr.bf16.mxu0 0
  %1359 = vmatpush1.bf16.msra.mxu0 0
  %1360 = vmatprep.mubr.bf16.mxu0 0
  %1361 = vmatmul.mubr.bf16.gmra.mrb[0].mxu0 %v1326
  %v1362 = vpop.f32.mrb[0].mxu0
  %v1363 = vadd.f32 0.0, %v1362
  %v1364 = vpop.f32.mrb[0].mxu0
  %v1365 = vadd.f32 0.0, %v1364
  %v1366 = vpop.f32.mrb[0].mxu0
  %v1367 = vadd.f32 0.0, %v1366
  %v1368 = vpop.f32.mrb[0].mxu0
  %v1369 = vadd.f32 0.0, %v1368
  %1370 = vdwg.mxu0
  %1371 = vmatprep.subr.bf16.mxu0 %v1316
  %1372 = vmatpush1.bf16.msra.mxu0 %v1315
  %1373 = vmatprep.subr.bf16.mxu0 0
  %1374 = vmatpush1.bf16.msra.mxu0 0
  %1375 = vmatprep.subr.bf16.mxu0 0
  %1376 = vmatpush1.bf16.msra.mxu0 0
  %1377 = vmatprep.subr.bf16.mxu0 0
  %1378 = vmatpush1.bf16.msra.mxu0 0
  %1379 = vmatprep.subr.bf16.mxu0 0
  %1380 = vmatpush1.bf16.msra.mxu0 0
  %1381 = vmatprep.subr.bf16.mxu0 0
  %1382 = vmatpush1.bf16.msra.mxu0 0
  %1383 = vmatprep.subr.bf16.mxu0 0
  %1384 = vmatpush1.bf16.msra.mxu0 0
  %1385 = vmatprep.subr.bf16.mxu0 0
  %1386 = vmatpush1.bf16.msra.mxu0 0
  %1387 = vmatprep.subr.bf16.mxu0 0
  %1388 = vmatpush1.bf16.msra.mxu0 0
  %1389 = vmatprep.subr.bf16.mxu0 0
  %1390 = vmatpush1.bf16.msra.mxu0 0
  %1391 = vmatprep.subr.bf16.mxu0 0
  %1392 = vmatpush1.bf16.msra.mxu0 0
  %1393 = vmatprep.subr.bf16.mxu0 0
  %1394 = vmatpush1.bf16.msra.mxu0 0
  %1395 = vmatprep.subr.bf16.mxu0 0
  %1396 = vmatpush1.bf16.msra.mxu0 0
  %1397 = vmatprep.subr.bf16.mxu0 0
  %1398 = vmatpush1.bf16.msra.mxu0 0
  %1399 = vmatprep.subr.bf16.mxu0 0
  %1400 = vmatpush1.bf16.msra.mxu0 0
  %1401 = vmatprep.subr.bf16.mxu0 0
  %1402 = vmatpush1.bf16.msra.mxu0 0
  %1403 = vmatprep.mubr.bf16.mxu0 0
  %1404 = vmatmul.mubr.bf16.gmra.mrb[0].mxu0 %v1326
  %v1405 = vpop.f32.mrb[0].mxu0
  %v1406 = vadd.f32 0.0, %v1405
  %v1407 = vpop.f32.mrb[0].mxu0
  %v1408 = vadd.f32 0.0, %v1407
  %v1409 = vpop.f32.mrb[0].mxu0
  %v1410 = vadd.f32 0.0, %v1409
  %v1411 = vpop.f32.mrb[0].mxu0
  %v1412 = vadd.f32 0.0, %v1411
  %1413 = vdwg.mxu0
  %1414 = vmatprep.subr.bf16.mxu0 %v1318
  %1415 = vmatpush1.bf16.msra.mxu0 %v1317
  %1416 = vmatprep.subr.bf16.mxu0 0
  %1417 = vmatpush1.bf16.msra.mxu0 0
  %1418 = vmatprep.subr.bf16.mxu0 0
  %1419 = vmatpush1.bf16.msra.mxu0 0
  %1420 = vmatprep.subr.bf16.mxu0 0
  %1421 = vmatpush1.bf16.msra.mxu0 0
  %1422 = vmatprep.subr.bf16.mxu0 0
  %1423 = vmatpush1.bf16.msra.mxu0 0
  %1424 = vmatprep.subr.bf16.mxu0 0
  %1425 = vmatpush1.bf16.msra.mxu0 0
  %1426 = vmatprep.subr.bf16.mxu0 0
  %1427 = vmatpush1.bf16.msra.mxu0 0
  %1428 = vmatprep.subr.bf16.mxu0 0
  %1429 = vmatpush1.bf16.msra.mxu0 0
  %1430 = vmatprep.subr.bf16.mxu0 0
  %1431 = vmatpush1.bf16.msra.mxu0 0
  %1432 = vmatprep.subr.bf16.mxu0 0
  %1433 = vmatpush1.bf16.msra.mxu0 0
  %1434 = vmatprep.subr.bf16.mxu0 0
  %1435 = vmatpush1.bf16.msra.mxu0 0
  %1436 = vmatprep.subr.bf16.mxu0 0
  %1437 = vmatpush1.bf16.msra.mxu0 0
  %1438 = vmatprep.subr.bf16.mxu0 0
  %1439 = vmatpush1.bf16.msra.mxu0 0
  %1440 = vmatprep.subr.bf16.mxu0 0
  %1441 = vmatpush1.bf16.msra.mxu0 0
  %1442 = vmatprep.subr.bf16.mxu0 0
  %1443 = vmatpush1.bf16.msra.mxu0 0
  %1444 = vmatprep.subr.bf16.mxu0 0
  %1445 = vmatpush1.bf16.msra.mxu0 0
  %1446 = vmatprep.mubr.bf16.mxu0 0
  %1447 = vmatmul.mubr.bf16.gmra.mrb[0].mxu0 %v1326
  %v1448 = vpop.f32.mrb[0].mxu0
  %v1449 = vadd.f32 0.0, %v1448
  %v1450 = vpop.f32.mrb[0].mxu0
  %v1451 = vadd.f32 0.0, %v1450
  %v1452 = vpop.f32.mrb[0].mxu0
  %v1453 = vadd.f32 0.0, %v1452
  %v1454 = vpop.f32.mrb[0].mxu0
  %v1455 = vadd.f32 0.0, %v1454
  %1456 = vdwg.mxu0
  %v1457 = vadd.f32 %v1278, %v1363
  %v1458 = vadd.f32 %v1279, %v1365
  %v1459 = vadd.f32 %v1280, %v1406
  %v1460 = vadd.f32 %v1281, %v1408
  %v1461 = vadd.f32 %v1282, %v1449
  %v1462 = vadd.f32 %v1283, %v1451
  %v1463 = vadd.f32 %v1284, %v1367
  %v1464 = vadd.f32 %v1285, %v1369
  %v1465 = vadd.f32 %v1286, %v1410
  %v1466 = vadd.f32 %v1287, %v1412
  %v1467 = vadd.f32 %v1288, %v1453
  %v1468 = vadd.f32 %v1289, %v1455
  %s1469 = scalar_lea.vmem %s1, 64
  %v1470 = vld [vmem:[%s1469] sm:$0xf]
  %v1471 = vld [vmem:[%s1469 + $0x4] sm:$0xf]
  %v1474 = vunpack.c.l.b16 %v1470
  %v1475 = vunpack.c.l.b16 %v1471
  %v1476 = vpack.c.b16 %v1475, %v1474
  %1477 = vrot.lane.b32.xlu0 %v61, 90
  %v1478 = vpop.permute.xlu0 %1477
  %1479 = vrot.lane.b32.xlu0 %v62, 90
  %v1480 = vpop.permute.xlu0 %1479
  %1481 = vrot.lane.b32.xlu0 %v63, 90
  %v1482 = vpop.permute.xlu0 %1481
  %1483 = vrot.lane.b32.xlu0 %v64, 90
  %v1484 = vpop.permute.xlu0 %1483
  %1485 = vrot.lane.b32.xlu0 %v65, 90
  %v1486 = vpop.permute.xlu0 %1485
  %1487 = vrot.lane.b32.xlu0 %v66, 90
  %v1488 = vpop.permute.xlu0 %1487
  %1489 = vrot.lane.b32.xlu0 %v67, 90
  %v1490 = vpop.permute.xlu0 %1489
  %vm1491 = vcmask 736256
  %v1492 = vsel %vm1491, %v1478, %v1480
  %v1493 = vsel %vm1491, %v1480, %v1482
  %v1494 = vsel %vm1491, %v1482, %v1484
  %v1495 = vsel %vm1491, %v1484, %v1486
  %v1496 = vsel %vm1491, %v1486, %v1488
  %v1497 = vsel %vm1491, %v1488, %v1490
  %v1505 = vsel %vm95, %v1476, 0
  %1507 = vmatprep.subr.bf16.mxu0 %v1493
  %1508 = vmatpush1.bf16.msra.mxu0 %v1492
  %1509 = vmatprep.subr.bf16.mxu0 0
  %1510 = vmatpush1.bf16.msra.mxu0 0
  %1511 = vmatprep.subr.bf16.mxu0 0
  %1512 = vmatpush1.bf16.msra.mxu0 0
  %1513 = vmatprep.subr.bf16.mxu0 0
  %1514 = vmatpush1.bf16.msra.mxu0 0
  %1515 = vmatprep.subr.bf16.mxu0 0
  %1516 = vmatpush1.bf16.msra.mxu0 0
  %1517 = vmatprep.subr.bf16.mxu0 0
  %1518 = vmatpush1.bf16.msra.mxu0 0
  %1519 = vmatprep.subr.bf16.mxu0 0
  %1520 = vmatpush1.bf16.msra.mxu0 0
  %1521 = vmatprep.subr.bf16.mxu0 0
  %1522 = vmatpush1.bf16.msra.mxu0 0
  %1523 = vmatprep.subr.bf16.mxu0 0
  %1524 = vmatpush1.bf16.msra.mxu0 0
  %1525 = vmatprep.subr.bf16.mxu0 0
  %1526 = vmatpush1.bf16.msra.mxu0 0
  %1527 = vmatprep.subr.bf16.mxu0 0
  %1528 = vmatpush1.bf16.msra.mxu0 0
  %1529 = vmatprep.subr.bf16.mxu0 0
  %1530 = vmatpush1.bf16.msra.mxu0 0
  %1531 = vmatprep.subr.bf16.mxu0 0
  %1532 = vmatpush1.bf16.msra.mxu0 0
  %1533 = vmatprep.subr.bf16.mxu0 0
  %1534 = vmatpush1.bf16.msra.mxu0 0
  %1535 = vmatprep.subr.bf16.mxu0 0
  %1536 = vmatpush1.bf16.msra.mxu0 0
  %1537 = vmatprep.subr.bf16.mxu0 0
  %1538 = vmatpush1.bf16.msra.mxu0 0
  %1539 = vmatprep.mubr.bf16.mxu0 0
  %1540 = vmatmul.mubr.bf16.gmra.mrb[0].mxu0 %v1505
  %v1541 = vpop.f32.mrb[0].mxu0
  %v1542 = vadd.f32 0.0, %v1541
  %v1543 = vpop.f32.mrb[0].mxu0
  %v1544 = vadd.f32 0.0, %v1543
  %v1545 = vpop.f32.mrb[0].mxu0
  %v1546 = vadd.f32 0.0, %v1545
  %v1547 = vpop.f32.mrb[0].mxu0
  %v1548 = vadd.f32 0.0, %v1547
  %1549 = vdwg.mxu0
  %1550 = vmatprep.subr.bf16.mxu0 %v1495
  %1551 = vmatpush1.bf16.msra.mxu0 %v1494
  %1552 = vmatprep.subr.bf16.mxu0 0
  %1553 = vmatpush1.bf16.msra.mxu0 0
  %1554 = vmatprep.subr.bf16.mxu0 0
  %1555 = vmatpush1.bf16.msra.mxu0 0
  %1556 = vmatprep.subr.bf16.mxu0 0
  %1557 = vmatpush1.bf16.msra.mxu0 0
  %1558 = vmatprep.subr.bf16.mxu0 0
  %1559 = vmatpush1.bf16.msra.mxu0 0
  %1560 = vmatprep.subr.bf16.mxu0 0
  %1561 = vmatpush1.bf16.msra.mxu0 0
  %1562 = vmatprep.subr.bf16.mxu0 0
  %1563 = vmatpush1.bf16.msra.mxu0 0
  %1564 = vmatprep.subr.bf16.mxu0 0
  %1565 = vmatpush1.bf16.msra.mxu0 0
  %1566 = vmatprep.subr.bf16.mxu0 0
  %1567 = vmatpush1.bf16.msra.mxu0 0
  %1568 = vmatprep.subr.bf16.mxu0 0
  %1569 = vmatpush1.bf16.msra.mxu0 0
  %1570 = vmatprep.subr.bf16.mxu0 0
  %1571 = vmatpush1.bf16.msra.mxu0 0
  %1572 = vmatprep.subr.bf16.mxu0 0
  %1573 = vmatpush1.bf16.msra.mxu0 0
  %1574 = vmatprep.subr.bf16.mxu0 0
  %1575 = vmatpush1.bf16.msra.mxu0 0
  %1576 = vmatprep.subr.bf16.mxu0 0
  %1577 = vmatpush1.bf16.msra.mxu0 0
  %1578 = vmatprep.subr.bf16.mxu0 0
  %1579 = vmatpush1.bf16.msra.mxu0 0
  %1580 = vmatprep.subr.bf16.mxu0 0
  %1581 = vmatpush1.bf16.msra.mxu0 0
  %1582 = vmatprep.mubr.bf16.mxu0 0
  %1583 = vmatmul.mubr.bf16.gmra.mrb[0].mxu0 %v1505
  %v1584 = vpop.f32.mrb[0].mxu0
  %v1585 = vadd.f32 0.0, %v1584
  %v1586 = vpop.f32.mrb[0].mxu0
  %v1587 = vadd.f32 0.0, %v1586
  %v1588 = vpop.f32.mrb[0].mxu0
  %v1589 = vadd.f32 0.0, %v1588
  %v1590 = vpop.f32.mrb[0].mxu0
  %v1591 = vadd.f32 0.0, %v1590
  %1592 = vdwg.mxu0
  %1593 = vmatprep.subr.bf16.mxu0 %v1497
  %1594 = vmatpush1.bf16.msra.mxu0 %v1496
  %1595 = vmatprep.subr.bf16.mxu0 0
  %1596 = vmatpush1.bf16.msra.mxu0 0
  %1597 = vmatprep.subr.bf16.mxu0 0
  %1598 = vmatpush1.bf16.msra.mxu0 0
  %1599 = vmatprep.subr.bf16.mxu0 0
  %1600 = vmatpush1.bf16.msra.mxu0 0
  %1601 = vmatprep.subr.bf16.mxu0 0
  %1602 = vmatpush1.bf16.msra.mxu0 0
  %1603 = vmatprep.subr.bf16.mxu0 0
  %1604 = vmatpush1.bf16.msra.mxu0 0
  %1605 = vmatprep.subr.bf16.mxu0 0
  %1606 = vmatpush1.bf16.msra.mxu0 0
  %1607 = vmatprep.subr.bf16.mxu0 0
  %1608 = vmatpush1.bf16.msra.mxu0 0
  %1609 = vmatprep.subr.bf16.mxu0 0
  %1610 = vmatpush1.bf16.msra.mxu0 0
  %1611 = vmatprep.subr.bf16.mxu0 0
  %1612 = vmatpush1.bf16.msra.mxu0 0
  %1613 = vmatprep.subr.bf16.mxu0 0
  %1614 = vmatpush1.bf16.msra.mxu0 0
  %1615 = vmatprep.subr.bf16.mxu0 0
  %1616 = vmatpush1.bf16.msra.mxu0 0
  %1617 = vmatprep.subr.bf16.mxu0 0
  %1618 = vmatpush1.bf16.msra.mxu0 0
  %1619 = vmatprep.subr.bf16.mxu0 0
  %1620 = vmatpush1.bf16.msra.mxu0 0
  %1621 = vmatprep.subr.bf16.mxu0 0
  %1622 = vmatpush1.bf16.msra.mxu0 0
  %1623 = vmatprep.subr.bf16.mxu0 0
  %1624 = vmatpush1.bf16.msra.mxu0 0
  %1625 = vmatprep.mubr.bf16.mxu0 0
  %1626 = vmatmul.mubr.bf16.gmra.mrb[0].mxu0 %v1505
  %v1627 = vpop.f32.mrb[0].mxu0
  %v1628 = vadd.f32 0.0, %v1627
  %v1629 = vpop.f32.mrb[0].mxu0
  %v1630 = vadd.f32 0.0, %v1629
  %v1631 = vpop.f32.mrb[0].mxu0
  %v1632 = vadd.f32 0.0, %v1631
  %v1633 = vpop.f32.mrb[0].mxu0
  %v1634 = vadd.f32 0.0, %v1633
  %1635 = vdwg.mxu0
  %v1636 = vadd.f32 %v1457, %v1542
  %v1637 = vadd.f32 %v1458, %v1544
  %v1638 = vadd.f32 %v1459, %v1585
  %v1639 = vadd.f32 %v1460, %v1587
  %v1640 = vadd.f32 %v1461, %v1628
  %v1641 = vadd.f32 %v1462, %v1630
  %v1642 = vadd.f32 %v1463, %v1546
  %v1643 = vadd.f32 %v1464, %v1548
  %v1644 = vadd.f32 %v1465, %v1589
  %v1645 = vadd.f32 %v1466, %v1591
  %v1646 = vadd.f32 %v1467, %v1632
  %v1647 = vadd.f32 %v1468, %v1634
  %v1648 = vld [vmem:[%s2] sm:$0xff]
  %v1649 = vld [vmem:[%s2 + $0x8] sm:$0xff]
  %1651 = vset.pattern.permute.xlu0 0
  %1652 = vperm.xlu0 %1651, %v1648
  %v1653 = vpop.permute.xlu0 %1652
  %1656 = vset.pattern.permute.xlu0 0
  %1657 = vperm.xlu0 %1656, %v1649
  %v1658 = vpop.permute.xlu0 %1657
  %v1660 = vadd.f32 %v1636, %v1653
  %v1661 = vadd.f32 %v1637, %v1653
  %v1662 = vadd.f32 %v1638, %v1653
  %v1663 = vadd.f32 %v1639, %v1653
  %v1664 = vadd.f32 %v1640, %v1653
  %v1665 = vadd.f32 %v1641, %v1653
  %v1666 = vadd.f32 %v1642, %v1658
  %v1667 = vadd.f32 %v1643, %v1658
  %v1668 = vadd.f32 %v1644, %v1658
  %v1669 = vadd.f32 %v1645, %v1658
  %v1670 = vadd.f32 %v1646, %v1658
  %v1671 = vadd.f32 %v1647, %v1658
  %v1672 = vtanh.pop %v1660
  %v1673 = vtanh.pop %v1661
  %v1674 = vtanh.pop %v1662
  %v1675 = vtanh.pop %v1663
  %v1676 = vtanh.pop %v1664
  %v1677 = vtanh.pop %v1665
  %v1678 = vtanh.pop %v1666
  %v1679 = vtanh.pop %v1667
  %v1680 = vtanh.pop %v1668
  %v1681 = vtanh.pop %v1669
  %v1682 = vtanh.pop %v1670
  %v1683 = vtanh.pop %v1671
  %1684 = vst [vmem:[%s3] sm:$0xff] %v1672
  %1685 = vst [vmem:[%s3 + $0x8] sm:$0xff] %v1673
  %1686 = vst [vmem:[%s3 + $0x10] sm:$0xff] %v1674
  %1687 = vst [vmem:[%s3 + $0x18] sm:$0xff] %v1675
  %1688 = vst [vmem:[%s3 + $0x20] sm:$0xff] %v1676
  %1689 = vst [vmem:[%s3 + $0x28] sm:$0xff] %v1677
  %1690 = vst [vmem:[%s3 + $0x30] sm:$0xff] %v1678
  %1691 = vst [vmem:[%s3 + $0x38] sm:$0xff] %v1679
  %1692 = vst [vmem:[%s3 + $0x40] sm:$0xff] %v1680
  %1693 = vst [vmem:[%s3 + $0x48] sm:$0xff] %v1681
  %1694 = vst [vmem:[%s3 + $0x50] sm:$0xff] %v1682
  %1695 = vst [vmem:[%s3 + $0x58] sm:$0xff] %v1683
  // Predicated region
  $region14: #{generator_forward.7} parent=0 // pred_check
    _
  $region15: #{generator_forward.7} parent=0 // pred_check_branch
    %1697 = sbr.rel (0) target = $region17
  $region16: #{generator_forward.7} parent=0 // pred_region
    _
  $region17: #{generator_forward.7} parent=0 // pred_fallthru
    _
  // Predicated region
  $region18: #{generator_forward.7} parent=0 // pred_check
    _
  $region19: #{generator_forward.7} parent=0 // pred_check_branch
    %1699 = sbr.rel (0) target = $region21
  $region20: #{generator_forward.7} parent=0 // pred_region
    _
  $region21: #{generator_forward.7} parent=0 // pred_fallthru
    _

</llo_original>
